<compile_context>
chip_gen: v6e
topology: v6e:2x2x1
jax: 0.10.0
libtpu: 0.0.40
codegen_flags: <defaults>
</compile_context>

<pallas_src>
import functools

import numpy as np

import jax
import jax.numpy as jnp
from jax.experimental import pallas as pl
from jax.experimental.pallas import tpu as pltpu

# ----------------------------- config ----------------------------------------
D = 8                       # number of sigma-encoder layers
W = 64                      # hidden width (PyTorch default 256; small here)
W2 = W // 2
C_XYZ = 63                  # in_channels_xyz (3 + 3*10*2)
C_DIR = 27                  # in_channels_dir (3 + 3*4*2)
C_IN = C_XYZ + C_DIR        # 90, the concatenated network input width
C_PAD = 96                  # x padded to 96 lanes (16-row-aligned weight slots)
SKIPS = (4,)
assert tuple(SKIPS) == (4,)  # the fused x-slot layout assumes the single default skip

CHUNK = 256                 # rows per inner sub-chunk (weights loaded into MXU once per chunk)
TB_MAX = 2048               # max rows per grid step
WLANES = 256                # lane width of the packed weight block (>= FUSED_COLS)
BLANES = 128                # lane width of the packed bias block
ROW_ALIGN = 16              # bf16 sublane-tile alignment for packed weight slots

# fused x-matmul column layout: [xyz_0 | dir_x | xyz_4_x]
X0_COL = 0
DIR_COL = W
X4_COL = W + W2
FUSED_COLS = 2 * W + W2     # 160


# ----------------------------- packed-parameter layout -----------------------
def _align(n, a):
    return ((n + a - 1) // a) * a


def _build_weight_layout():
    """Row layout of the single packed (R, WLANES) weight block.

    The fused slot is (C_PAD, 160): all three matmuls whose LHS is the raw input
    x share one MXU pass (unused input rows are zero, so cat-splits are exact).
    """
    slots = [("x_fused", C_PAD, FUSED_COLS)]
    for i in range(1, D):
        slots.append((f"xyz_{i}_h", W, W) if i in SKIPS else (f"xyz_{i}", W, W))
    slots += [("final_sigma", W, W + 1),              # fused [xyz_final | sigma]
              ("dir_h", W, W2),                       # dir encoding, h_final part
              ("rgb", W2, 3)]
    off, offsets, shapes = 0, {}, {}
    for name, rows, cols in slots:
        offsets[name] = off
        shapes[name] = (rows, cols)
        off += _align(rows, ROW_ALIGN)
    return offsets, shapes, off


_W_OFF, _W_SHAPE, W_ROWS_TOTAL = _build_weight_layout()

_B_NAMES = [f"xyz_{i}" for i in range(D)] + ["final_sigma", "dir", "rgb"]
_B_ROW = {n: i for i, n in enumerate(_B_NAMES)}
_B_COLS = {**{f"xyz_{i}": W for i in range(D)},
           "final_sigma": W + 1, "dir": W2, "rgb": 3}
B_ROWS_TOTAL = _align(len(_B_NAMES), 8)


# ----------------------------- kernel -----------------------------------------
def nerf_kernel(x_ref, w_ref, b_ref, out_ref, keep_ref, *, num_chunks):
    """One batch tile.

    x_ref    : (TB, C_PAD)             f32   rays (xyz||dir embedding, zero-padded)
    w_ref    : (W_ROWS_TOTAL, WLANES)  bf16  packed weights (resident in VMEM)
    b_ref    : (B_ROWS_TOTAL, BLANES)  f32   packed biases
    out_ref  : (TB, 4)                 f32   rows = (r, g, b, sigma)
    keep_ref : (2, CHUNK, FUSED_COLS)  f32   staged fused-matmul partials
    """
    f32 = jnp.float32
    bf16 = jnp.bfloat16

    def wget(name):
        rows, cols = _W_SHAPE[name]
        off = _W_OFF[name]
        return w_ref[off:off + rows, 0:cols]          # static, 16-row-aligned slice

    def bget(name):
        row = _B_ROW[name]
        return b_ref[row:row + 1, 0:_B_COLS[name]]    # (1, cols) f32

    def mm(a, name):
        return jnp.dot(a, wget(name), preferred_element_type=f32)

    # Static Python loop == lax.fori_loop(..., unroll=True): trip count is small
    # and static; unrolling gives the LLO scheduler cross-chunk visibility.
    for ci in range(num_chunks):
        r0 = ci * CHUNK
        slot = ci & 1
        xb = x_ref[r0:r0 + CHUNK, :].astype(bf16)      # (CHUNK, C_PAD)

        # --- fused x-matmul: [xyz_0 | dir_x | xyz_4_x] share the LHS xb -------
        r = mm(xb, "x_fused")                          # (CHUNK, 160) f32
        keep_ref[slot] = r                             # stage skip/dir partials in VMEM
        h = jnp.maximum(r[:, X0_COL:X0_COL + W] + bget("xyz_0"), 0.0).astype(bf16)

        # --- xyz encoder layers 1..D-1 (skip layer adds the staged xyz partial)
        for i in range(1, D):
            if i in SKIPS:
                # TODO(synk): on v7x, verify the MRB accumulates the two terms
                # rather than popping + adding on the VPU (bundle-level check).
                z = mm(h, f"xyz_{i}_h") + keep_ref[slot, :, X4_COL:X4_COL + W]
            else:
                z = mm(h, f"xyz_{i}")
            h = jnp.maximum(z + bget(f"xyz_{i}"), 0.0).astype(bf16)

        # --- fused xyz_encoding_final (cols :W) + sigma head (col W), no act ---
        fs = mm(h, "final_sigma") + bget("final_sigma")          # (CHUNK, W+1)
        sigma = fs[:, W:W + 1]
        h_final = fs[:, 0:W].astype(bf16)

        # --- dir encoding: relu(h_final @ Wd_h + dir_partial + bd) -------------
        de = jnp.maximum(mm(h_final, "dir_h")
                         + keep_ref[slot, :, DIR_COL:DIR_COL + W2]
                         + bget("dir"), 0.0)                      # (CHUNK, W2)

        # --- rgb head: sigmoid --------------------------------------------------
        rgb = jax.nn.sigmoid(mm(de.astype(bf16), "rgb") + bget("rgb"))  # (CHUNK, 3)

        # module-native (B, 4) store: [rgb | sigma]
        out_ref[r0:r0 + CHUNK, :] = jnp.concatenate([rgb, sigma], axis=-1)


# ----------------------------- wrapper -----------------------------------------
def _choose_tile(batch):
    """Largest CHUNK-multiple tile that still leaves >= 4 grid steps (2 per TC
    on v7x) when the batch allows it; floors at CHUNK rows."""
    tb = TB_MAX
    while tb > CHUNK and pl.cdiv(batch, tb) < 4:
        tb //= 2
    return tb


def nerf_forward(x, wpack, bpack, *, tile=None):
    """x: (B, C_IN) f32  ->  (B, 4) f32  (rgb, sigma), matching the PyTorch module."""
    B, cin = x.shape
    assert cin == C_IN
    tb = _choose_tile(B) if tile is None else tile
    assert tb % CHUNK == 0
    n_blocks = pl.cdiv(B, tb)
    Bp = n_blocks * tb
    # Pad rows to the tile and lanes C_IN -> C_PAD.  The padded lanes MUST be
    # real zeros: they enter the fused matmul (their weight rows are also zero).
    xp = jnp.pad(x, ((0, Bp - B), (0, C_PAD - C_IN)))

    kernel = functools.partial(nerf_kernel, num_chunks=tb // CHUNK)
    out = pl.pallas_call(
        kernel,
        out_shape=jax.ShapeDtypeStruct((Bp, 4), jnp.float32),
        grid=(n_blocks,),
        in_specs=[
            pl.BlockSpec((tb, C_PAD), lambda b: (b, 0)),                 # ray tile
            pl.BlockSpec((W_ROWS_TOTAL, WLANES), lambda b: (0, 0)),      # packed weights (resident)
            pl.BlockSpec((B_ROWS_TOTAL, BLANES), lambda b: (0, 0)),      # packed biases (resident)
        ],
        out_specs=pl.BlockSpec((tb, 4), lambda b: (b, 0)),               # module-native layout
        scratch_shapes=[pltpu.VMEM((2, CHUNK, FUSED_COLS), jnp.float32)],
        compiler_params=pltpu.CompilerParams(
            dimension_semantics=("parallel",)),
    )(xp, wpack, bpack)
    return out[:B]


# ----------------------------- params (init + packing) -------------------------
def init_params(key):
    """f32 params mirroring the PyTorch Linear shapes, stored as (in, out)/(out,)."""
    def linear(k, fi, fo):
        kw, kb = jax.random.split(k)
        bound = 1.0 / float(np.sqrt(fi))
        w = jax.random.uniform(kw, (fi, fo), jnp.float32, -bound, bound)
        b = jax.random.uniform(kb, (fo,), jnp.float32, -bound, bound)
        return w, b

    keys = jax.random.split(key, D + 4)
    params = {}
    for i in range(D):
        if i == 0:
            params["xyz_0"] = linear(keys[i], C_XYZ, W)
        elif i in SKIPS:
            params[f"xyz_{i}"] = linear(keys[i], C_XYZ + W, W)   # cat([xyz, h]) order
        else:
            params[f"xyz_{i}"] = linear(keys[i], W, W)
    params["sigma"] = linear(keys[D], W, 1)
    params["final"] = linear(keys[D + 1], W, W)
    params["dir"] = linear(keys[D + 2], W + C_DIR, W2)           # cat([h_final, dir]) order
    params["rgb"] = linear(keys[D + 3], W2, 3)
    return params


def pack_params(params):
    """Pack per-layer params into (wpack bf16 (R,WLANES), bpack f32 (Rb,BLANES))."""
    wpack = np.zeros((W_ROWS_TOTAL, WLANES), np.float32)
    bpack = np.zeros((B_ROWS_TOTAL, BLANES), np.float32)

    def put_w(name, mat, row0=0, col0=0):
        mat = np.asarray(mat, np.float32)
        o = _W_OFF[name]
        r, c = mat.shape
        wpack[o + row0:o + row0 + r, col0:col0 + c] = mat

    def put_b(name, vec):
        vec = np.asarray(vec, np.float32)
        bpack[_B_ROW[name], :vec.shape[0]] = vec

    # fused slot: layer-1 xyz weight (input rows 0:63)
    w0, b0 = params["xyz_0"]
    put_w("x_fused", w0, row0=0, col0=X0_COL)
    put_b("xyz_0", b0)

    for i in range(1, D):
        w, b = params[f"xyz_{i}"]
        if i in SKIPS:
            put_w("x_fused", w[:C_XYZ], row0=0, col0=X4_COL)   # skip-layer xyz part
            put_w(f"xyz_{i}_h", w[C_XYZ:])                     # skip-layer hidden part
        else:
            put_w(f"xyz_{i}", w)
        put_b(f"xyz_{i}", b)

    wf, bf_ = params["final"]
    ws, bs = params["sigma"]
    put_w("final_sigma", np.concatenate([np.asarray(wf), np.asarray(ws)], axis=1))
    put_b("final_sigma", np.concatenate([np.asarray(bf_), np.asarray(bs)]))

    wd, bd = params["dir"]
    put_w("dir_h", wd[:W])
    put_w("x_fused", wd[W:], row0=C_XYZ, col0=DIR_COL)         # dir part (input rows 63:90)
    put_b("dir", bd)

    wr, br = params["rgb"]
    put_w("rgb", wr)
    put_b("rgb", br)

    return jnp.asarray(wpack, jnp.bfloat16), jnp.asarray(bpack, jnp.float32)


# ----------------------------- reference ---------------------------------------
def nerf_reference(x, params, *, matmul_dtype=jnp.bfloat16):
    """Pure-JAX forward matching the PyTorch module.

    matmul_dtype=bfloat16 mirrors the kernel's bf16-MXU matmuls (f32 accumulate);
    matmul_dtype=float32 is the exact original-module arithmetic.
    """
    def mm(a, w):
        return jnp.dot(a.astype(matmul_dtype), w.astype(matmul_dtype),
                       preferred_element_type=jnp.float32)

    xyz = x[:, :C_XYZ]
    dirv = x[:, C_XYZ:]
    w, b = params["xyz_0"]
    h = jax.nn.relu(mm(xyz, w) + b)
    for i in range(1, D):
        w, b = params[f"xyz_{i}"]
        if i in SKIPS:
            h = jax.nn.relu(mm(xyz, w[:C_XYZ]) + mm(h, w[C_XYZ:]) + b)
        else:
            h = jax.nn.relu(mm(h, w) + b)
    ws, bs = params["sigma"]
    sigma = mm(h, ws) + bs
    wf, bf_ = params["final"]
    h_final = mm(h, wf) + bf_
    wd, bd = params["dir"]
    de = jax.nn.relu(mm(h_final, wd[:W]) + mm(dirv, wd[W:]) + bd)
    wr, br = params["rgb"]
    rgb = jax.nn.sigmoid(mm(de, wr) + br)
    return jnp.concatenate([rgb, sigma], axis=-1)


# ----------------------------- main ---------------------------------------------
if __name__ == "__main__":
    key = jax.random.PRNGKey(0)
    k_param, k_x = jax.random.split(key)

    params = init_params(k_param)
    wpack, bpack = pack_params(params)

    B = 2048                     # tile chooser -> 4 grid steps of 512 rows (2 chunks each)
    x = jax.random.normal(k_x, (B, C_IN), dtype=jnp.float32)

    out = jax.block_until_ready(nerf_forward(x, wpack, bpack))
    assert out.shape == (B, 4)

    ref_bf16 = nerf_reference(x, params, matmul_dtype=jnp.bfloat16)
    ref_f32 = nerf_reference(x, params, matmul_dtype=jnp.float32)
    assert jnp.allclose(out, ref_bf16, atol=5e-3, rtol=5e-3), (
        float(jnp.max(jnp.abs(out - ref_bf16))))     # kernel matches its bf16-MXU math
    assert jnp.allclose(out, ref_f32, atol=1e-1, rtol=1e-1), (
        float(jnp.max(jnp.abs(out - ref_f32))))      # and stays close to f32 semantics

    # ragged-tail path (B not a multiple of the tile): pad + slice handling
    out_r = jax.block_until_ready(nerf_forward(x[:257], wpack, bpack))
    assert out_r.shape == (257, 4)
    assert jnp.allclose(out_r, ref_bf16[:257], atol=5e-3, rtol=5e-3)

    print("KERNEL_OK")
</pallas_src>

<mosaic_0001>
module attributes {stable_mosaic.version = 11 : i64} {
  func.func @nerf_kernel(%arg0: i32, %arg1: memref<512x96xf32, #tpu.memory_space<vmem>>, %arg2: memref<704x256xbf16, #tpu.memory_space<vmem>>, %arg3: memref<16x128xf32, #tpu.memory_space<vmem>>, %arg4: memref<512x4xf32, #tpu.memory_space<vmem>>, %arg5: memref<2x256x160xf32, #tpu.memory_space<vmem>>) attributes {dimension_semantics = [#tpu.dimension_semantics<parallel>], iteration_bounds = array<i64: 4>, scalar_prefetch = 0 : i64, scratch_operands = 1 : i64, tpu.core_type = #tpu.core_type<tc>, window_params = [{transform_indices = @transform_0, window_bounds = array<i64: 512, 96>}, {pipeline_mode = #tpu.pipeline_mode<synchronous>, transform_indices = @transform_1, window_bounds = array<i64: 704, 256>}, {pipeline_mode = #tpu.pipeline_mode<synchronous>, transform_indices = @transform_2, window_bounds = array<i64: 16, 128>}, {transform_indices = @transform_3, window_bounds = array<i64: 512, 4>}]} {
    %c0 = arith.constant 0 : index
    %c0_0 = arith.constant 0 : index
    %0 = vector.load %arg1[%c0, %c0_0] : memref<512x96xf32, #tpu.memory_space<vmem>>, vector<256x96xf32>
    %1 = arith.truncf %0 : vector<256x96xf32> to vector<256x96xbf16>
    %c0_1 = arith.constant 0 : index
    %c0_2 = arith.constant 0 : index
    %2 = vector.load %arg2[%c0_1, %c0_2] : memref<704x256xbf16, #tpu.memory_space<vmem>>, vector<96x160xbf16>
    %cst = arith.constant dense<0.000000e+00> : vector<256x160xf32>
    %3 = tpu.matmul %1, %2, %cst {dimension_numbers = #tpu.dot_dimension_numbers<[1], [0], [0], [1], [0, 0, 1, 1], [], []>} : vector<256x96xbf16>, vector<96x160xbf16>, vector<256x160xf32> -> vector<256x160xf32>
    %c0_3 = arith.constant 0 : index
    %c0_4 = arith.constant 0 : index
    %c0_5 = arith.constant 0 : index
    %4 = vector.load %arg5[%c0_3, %c0_4, %c0_5] : memref<2x256x160xf32, #tpu.memory_space<vmem>>, vector<1x256x160xf32>
    %5 = vector.shape_cast %4 : vector<1x256x160xf32> to vector<256x160xf32>
    %6 = vector.shape_cast %3 : vector<256x160xf32> to vector<1x256x160xf32>
    tpu.vector_store %arg5[%c0_3, %c0_4, %c0_5], %6 {strides = array<i32>} : memref<2x256x160xf32, #tpu.memory_space<vmem>>, vector<1x256x160xf32>,
    %7 = vector.extract_strided_slice %3 {offsets = [0, 0], sizes = [256, 64], strides = [1, 1]} : vector<256x160xf32> to vector<256x64xf32>
    %c0_6 = arith.constant 0 : index
    %c0_7 = arith.constant 0 : index
    %8 = vector.load %arg3[%c0_6, %c0_7] : memref<16x128xf32, #tpu.memory_space<vmem>>, vector<1x64xf32>
    %9 = vector.broadcast %8 : vector<1x64xf32> to vector<256x64xf32>
    %10 = arith.addf %7, %9 : vector<256x64xf32>
    %cst_8 = arith.constant 0.000000e+00 : f32
    %11 = vector.broadcast %cst_8 : f32 to vector<256x64xf32>
    %12 = arith.maximumf %10, %11 : vector<256x64xf32>
    %13 = arith.truncf %12 : vector<256x64xf32> to vector<256x64xbf16>
    %c96 = arith.constant 96 : index
    %c0_9 = arith.constant 0 : index
    %14 = vector.load %arg2[%c96, %c0_9] : memref<704x256xbf16, #tpu.memory_space<vmem>>, vector<64x64xbf16>
    %cst_10 = arith.constant dense<0.000000e+00> : vector<256x64xf32>
    %15 = tpu.matmul %13, %14, %cst_10 {dimension_numbers = #tpu.dot_dimension_numbers<[1], [0], [0], [1], [0, 0, 1, 1], [], []>} : vector<256x64xbf16>, vector<64x64xbf16>, vector<256x64xf32> -> vector<256x64xf32>
    %c1 = arith.constant 1 : index
    %c0_11 = arith.constant 0 : index
    %16 = vector.load %arg3[%c1, %c0_11] : memref<16x128xf32, #tpu.memory_space<vmem>>, vector<1x64xf32>
    %17 = vector.broadcast %16 : vector<1x64xf32> to vector<256x64xf32>
    %18 = arith.addf %15, %17 : vector<256x64xf32>
    %cst_12 = arith.constant 0.000000e+00 : f32
    %19 = vector.broadcast %cst_12 : f32 to vector<256x64xf32>
    %20 = arith.maximumf %18, %19 : vector<256x64xf32>
    %21 = arith.truncf %20 : vector<256x64xf32> to vector<256x64xbf16>
    %c160 = arith.constant 160 : index
    %c0_13 = arith.constant 0 : index
    %22 = vector.load %arg2[%c160, %c0_13] : memref<704x256xbf16, #tpu.memory_space<vmem>>, vector<64x64xbf16>
    %cst_14 = arith.constant dense<0.000000e+00> : vector<256x64xf32>
    %23 = tpu.matmul %21, %22, %cst_14 {dimension_numbers = #tpu.dot_dimension_numbers<[1], [0], [0], [1], [0, 0, 1, 1], [], []>} : vector<256x64xbf16>, vector<64x64xbf16>, vector<256x64xf32> -> vector<256x64xf32>
    %c2 = arith.constant 2 : index
    %c0_15 = arith.constant 0 : index
    %24 = vector.load %arg3[%c2, %c0_15] : memref<16x128xf32, #tpu.memory_space<vmem>>, vector<1x64xf32>
    %25 = vector.broadcast %24 : vector<1x64xf32> to vector<256x64xf32>
    %26 = arith.addf %23, %25 : vector<256x64xf32>
    %cst_16 = arith.constant 0.000000e+00 : f32
    %27 = vector.broadcast %cst_16 : f32 to vector<256x64xf32>
    %28 = arith.maximumf %26, %27 : vector<256x64xf32>
    %29 = arith.truncf %28 : vector<256x64xf32> to vector<256x64xbf16>
    %c224 = arith.constant 224 : index
    %c0_17 = arith.constant 0 : index
    %30 = vector.load %arg2[%c224, %c0_17] : memref<704x256xbf16, #tpu.memory_space<vmem>>, vector<64x64xbf16>
    %cst_18 = arith.constant dense<0.000000e+00> : vector<256x64xf32>
    %31 = tpu.matmul %29, %30, %cst_18 {dimension_numbers = #tpu.dot_dimension_numbers<[1], [0], [0], [1], [0, 0, 1, 1], [], []>} : vector<256x64xbf16>, vector<64x64xbf16>, vector<256x64xf32> -> vector<256x64xf32>
    %c3 = arith.constant 3 : index
    %c0_19 = arith.constant 0 : index
    %32 = vector.load %arg3[%c3, %c0_19] : memref<16x128xf32, #tpu.memory_space<vmem>>, vector<1x64xf32>
    %33 = vector.broadcast %32 : vector<1x64xf32> to vector<256x64xf32>
    %34 = arith.addf %31, %33 : vector<256x64xf32>
    %cst_20 = arith.constant 0.000000e+00 : f32
    %35 = vector.broadcast %cst_20 : f32 to vector<256x64xf32>
    %36 = arith.maximumf %34, %35 : vector<256x64xf32>
    %37 = arith.truncf %36 : vector<256x64xf32> to vector<256x64xbf16>
    %c288 = arith.constant 288 : index
    %c0_21 = arith.constant 0 : index
    %38 = vector.load %arg2[%c288, %c0_21] : memref<704x256xbf16, #tpu.memory_space<vmem>>, vector<64x64xbf16>
    %cst_22 = arith.constant dense<0.000000e+00> : vector<256x64xf32>
    %39 = tpu.matmul %37, %38, %cst_22 {dimension_numbers = #tpu.dot_dimension_numbers<[1], [0], [0], [1], [0, 0, 1, 1], [], []>} : vector<256x64xbf16>, vector<64x64xbf16>, vector<256x64xf32> -> vector<256x64xf32>
    %c0_23 = arith.constant 0 : index
    %c0_24 = arith.constant 0 : index
    %c96_25 = arith.constant 96 : index
    %40 = vector.load %arg5[%c0_23, %c0_24, %c96_25] : memref<2x256x160xf32, #tpu.memory_space<vmem>>, vector<1x256x64xf32>
    %41 = vector.shape_cast %40 : vector<1x256x64xf32> to vector<256x64xf32>
    %42 = arith.addf %39, %41 : vector<256x64xf32>
    %c4 = arith.constant 4 : index
    %c0_26 = arith.constant 0 : index
    %43 = vector.load %arg3[%c4, %c0_26] : memref<16x128xf32, #tpu.memory_space<vmem>>, vector<1x64xf32>
    %44 = vector.broadcast %43 : vector<1x64xf32> to vector<256x64xf32>
    %45 = arith.addf %42, %44 : vector<256x64xf32>
    %cst_27 = arith.constant 0.000000e+00 : f32
    %46 = vector.broadcast %cst_27 : f32 to vector<256x64xf32>
    %47 = arith.maximumf %45, %46 : vector<256x64xf32>
    %48 = arith.truncf %47 : vector<256x64xf32> to vector<256x64xbf16>
    %c352 = arith.constant 352 : index
    %c0_28 = arith.constant 0 : index
    %49 = vector.load %arg2[%c352, %c0_28] : memref<704x256xbf16, #tpu.memory_space<vmem>>, vector<64x64xbf16>
    %cst_29 = arith.constant dense<0.000000e+00> : vector<256x64xf32>
    %50 = tpu.matmul %48, %49, %cst_29 {dimension_numbers = #tpu.dot_dimension_numbers<[1], [0], [0], [1], [0, 0, 1, 1], [], []>} : vector<256x64xbf16>, vector<64x64xbf16>, vector<256x64xf32> -> vector<256x64xf32>
    %c5 = arith.constant 5 : index
    %c0_30 = arith.constant 0 : index
    %51 = vector.load %arg3[%c5, %c0_30] : memref<16x128xf32, #tpu.memory_space<vmem>>, vector<1x64xf32>
    %52 = vector.broadcast %51 : vector<1x64xf32> to vector<256x64xf32>
    %53 = arith.addf %50, %52 : vector<256x64xf32>
    %cst_31 = arith.constant 0.000000e+00 : f32
    %54 = vector.broadcast %cst_31 : f32 to vector<256x64xf32>
    %55 = arith.maximumf %53, %54 : vector<256x64xf32>
    %56 = arith.truncf %55 : vector<256x64xf32> to vector<256x64xbf16>
    %c416 = arith.constant 416 : index
    %c0_32 = arith.constant 0 : index
    %57 = vector.load %arg2[%c416, %c0_32] : memref<704x256xbf16, #tpu.memory_space<vmem>>, vector<64x64xbf16>
    %cst_33 = arith.constant dense<0.000000e+00> : vector<256x64xf32>
    %58 = tpu.matmul %56, %57, %cst_33 {dimension_numbers = #tpu.dot_dimension_numbers<[1], [0], [0], [1], [0, 0, 1, 1], [], []>} : vector<256x64xbf16>, vector<64x64xbf16>, vector<256x64xf32> -> vector<256x64xf32>
    %c6 = arith.constant 6 : index
    %c0_34 = arith.constant 0 : index
    %59 = vector.load %arg3[%c6, %c0_34] : memref<16x128xf32, #tpu.memory_space<vmem>>, vector<1x64xf32>
    %60 = vector.broadcast %59 : vector<1x64xf32> to vector<256x64xf32>
    %61 = arith.addf %58, %60 : vector<256x64xf32>
    %cst_35 = arith.constant 0.000000e+00 : f32
    %62 = vector.broadcast %cst_35 : f32 to vector<256x64xf32>
    %63 = arith.maximumf %61, %62 : vector<256x64xf32>
    %64 = arith.truncf %63 : vector<256x64xf32> to vector<256x64xbf16>
    %c480 = arith.constant 480 : index
    %c0_36 = arith.constant 0 : index
    %65 = vector.load %arg2[%c480, %c0_36] : memref<704x256xbf16, #tpu.memory_space<vmem>>, vector<64x64xbf16>
    %cst_37 = arith.constant dense<0.000000e+00> : vector<256x64xf32>
    %66 = tpu.matmul %64, %65, %cst_37 {dimension_numbers = #tpu.dot_dimension_numbers<[1], [0], [0], [1], [0, 0, 1, 1], [], []>} : vector<256x64xbf16>, vector<64x64xbf16>, vector<256x64xf32> -> vector<256x64xf32>
    %c7 = arith.constant 7 : index
    %c0_38 = arith.constant 0 : index
    %67 = vector.load %arg3[%c7, %c0_38] : memref<16x128xf32, #tpu.memory_space<vmem>>, vector<1x64xf32>
    %68 = vector.broadcast %67 : vector<1x64xf32> to vector<256x64xf32>
    %69 = arith.addf %66, %68 : vector<256x64xf32>
    %cst_39 = arith.constant 0.000000e+00 : f32
    %70 = vector.broadcast %cst_39 : f32 to vector<256x64xf32>
    %71 = arith.maximumf %69, %70 : vector<256x64xf32>
    %72 = arith.truncf %71 : vector<256x64xf32> to vector<256x64xbf16>
    %c544 = arith.constant 544 : index
    %c0_40 = arith.constant 0 : index
    %73 = vector.load %arg2[%c544, %c0_40] : memref<704x256xbf16, #tpu.memory_space<vmem>>, vector<64x65xbf16>
    %cst_41 = arith.constant dense<0.000000e+00> : vector<256x65xf32>
    %74 = tpu.matmul %72, %73, %cst_41 {dimension_numbers = #tpu.dot_dimension_numbers<[1], [0], [0], [1], [0, 0, 1, 1], [], []>} : vector<256x64xbf16>, vector<64x65xbf16>, vector<256x65xf32> -> vector<256x65xf32>
    %c8 = arith.constant 8 : index
    %c0_42 = arith.constant 0 : index
    %75 = vector.load %arg3[%c8, %c0_42] : memref<16x128xf32, #tpu.memory_space<vmem>>, vector<1x65xf32>
    %76 = vector.broadcast %75 : vector<1x65xf32> to vector<256x65xf32>
    %77 = arith.addf %74, %76 : vector<256x65xf32>
    %78 = vector.extract_strided_slice %77 {offsets = [0, 64], sizes = [256, 1], strides = [1, 1]} : vector<256x65xf32> to vector<256x1xf32>
    %79 = vector.extract_strided_slice %77 {offsets = [0, 0], sizes = [256, 64], strides = [1, 1]} : vector<256x65xf32> to vector<256x64xf32>
    %80 = arith.truncf %79 : vector<256x64xf32> to vector<256x64xbf16>
    %c608 = arith.constant 608 : index
    %c0_43 = arith.constant 0 : index
    %81 = vector.load %arg2[%c608, %c0_43] : memref<704x256xbf16, #tpu.memory_space<vmem>>, vector<64x32xbf16>
    %cst_44 = arith.constant dense<0.000000e+00> : vector<256x32xf32>
    %82 = tpu.matmul %80, %81, %cst_44 {dimension_numbers = #tpu.dot_dimension_numbers<[1], [0], [0], [1], [0, 0, 1, 1], [], []>} : vector<256x64xbf16>, vector<64x32xbf16>, vector<256x32xf32> -> vector<256x32xf32>
    %c0_45 = arith.constant 0 : index
    %c0_46 = arith.constant 0 : index
    %c64 = arith.constant 64 : index
    %83 = vector.load %arg5[%c0_45, %c0_46, %c64] : memref<2x256x160xf32, #tpu.memory_space<vmem>>, vector<1x256x32xf32>
    %84 = vector.shape_cast %83 : vector<1x256x32xf32> to vector<256x32xf32>
    %85 = arith.addf %82, %84 : vector<256x32xf32>
    %c9 = arith.constant 9 : index
    %c0_47 = arith.constant 0 : index
    %86 = vector.load %arg3[%c9, %c0_47] : memref<16x128xf32, #tpu.memory_space<vmem>>, vector<1x32xf32>
    %87 = vector.broadcast %86 : vector<1x32xf32> to vector<256x32xf32>
    %88 = arith.addf %85, %87 : vector<256x32xf32>
    %cst_48 = arith.constant 0.000000e+00 : f32
    %89 = vector.broadcast %cst_48 : f32 to vector<256x32xf32>
    %90 = arith.maximumf %88, %89 : vector<256x32xf32>
    %91 = arith.truncf %90 : vector<256x32xf32> to vector<256x32xbf16>
    %c672 = arith.constant 672 : index
    %c0_49 = arith.constant 0 : index
    %92 = vector.load %arg2[%c672, %c0_49] : memref<704x256xbf16, #tpu.memory_space<vmem>>, vector<32x3xbf16>
    %cst_50 = arith.constant dense<0.000000e+00> : vector<256x3xf32>
    %93 = tpu.matmul %91, %92, %cst_50 {dimension_numbers = #tpu.dot_dimension_numbers<[1], [0], [0], [1], [0, 0, 1, 1], [], []>} : vector<256x32xbf16>, vector<32x3xbf16>, vector<256x3xf32> -> vector<256x3xf32>
    %c10 = arith.constant 10 : index
    %c0_51 = arith.constant 0 : index
    %94 = vector.load %arg3[%c10, %c0_51] : memref<16x128xf32, #tpu.memory_space<vmem>>, vector<1x3xf32>
    %95 = vector.broadcast %94 : vector<1x3xf32> to vector<256x3xf32>
    %96 = arith.addf %93, %95 : vector<256x3xf32>
    %97 = arith.negf %96 : vector<256x3xf32>
    %98 = math.exp %97 : vector<256x3xf32>
    %cst_52 = arith.constant 1.000000e+00 : f32
    %99 = vector.broadcast %cst_52 : f32 to vector<256x3xf32>
    %100 = arith.addf %99, %98 : vector<256x3xf32>
    %101 = arith.divf %99, %100 : vector<256x3xf32>
    %102 = tpu.concatenate %101, %78 in 1 : vector<256x3xf32>, vector<256x1xf32> -> vector<256x4xf32>
    %c0_53 = arith.constant 0 : index
    %c0_54 = arith.constant 0 : index
    %103 = vector.load %arg4[%c0_53, %c0_54] : memref<512x4xf32, #tpu.memory_space<vmem>>, vector<256x4xf32>
    tpu.vector_store %arg4[%c0_53, %c0_54], %102 {strides = array<i32>} : memref<512x4xf32, #tpu.memory_space<vmem>>, vector<256x4xf32>,
    %c256 = arith.constant 256 : index
    %c0_55 = arith.constant 0 : index
    %104 = vector.load %arg1[%c256, %c0_55] : memref<512x96xf32, #tpu.memory_space<vmem>>, vector<256x96xf32>
    %105 = arith.truncf %104 : vector<256x96xf32> to vector<256x96xbf16>
    %c0_56 = arith.constant 0 : index
    %c0_57 = arith.constant 0 : index
    %106 = vector.load %arg2[%c0_56, %c0_57] : memref<704x256xbf16, #tpu.memory_space<vmem>>, vector<96x160xbf16>
    %cst_58 = arith.constant dense<0.000000e+00> : vector<256x160xf32>
    %107 = tpu.matmul %105, %106, %cst_58 {dimension_numbers = #tpu.dot_dimension_numbers<[1], [0], [0], [1], [0, 0, 1, 1], [], []>} : vector<256x96xbf16>, vector<96x160xbf16>, vector<256x160xf32> -> vector<256x160xf32>
    %c1_59 = arith.constant 1 : index
    %c0_60 = arith.constant 0 : index
    %c0_61 = arith.constant 0 : index
    %108 = vector.load %arg5[%c1_59, %c0_60, %c0_61] : memref<2x256x160xf32, #tpu.memory_space<vmem>>, vector<1x256x160xf32>
    %109 = vector.shape_cast %108 : vector<1x256x160xf32> to vector<256x160xf32>
    %110 = vector.shape_cast %107 : vector<256x160xf32> to vector<1x256x160xf32>
    tpu.vector_store %arg5[%c1_59, %c0_60, %c0_61], %110 {strides = array<i32>} : memref<2x256x160xf32, #tpu.memory_space<vmem>>, vector<1x256x160xf32>,
    %111 = vector.extract_strided_slice %107 {offsets = [0, 0], sizes = [256, 64], strides = [1, 1]} : vector<256x160xf32> to vector<256x64xf32>
    %c0_62 = arith.constant 0 : index
    %c0_63 = arith.constant 0 : index
    %112 = vector.load %arg3[%c0_62, %c0_63] : memref<16x128xf32, #tpu.memory_space<vmem>>, vector<1x64xf32>
    %113 = vector.broadcast %112 : vector<1x64xf32> to vector<256x64xf32>
    %114 = arith.addf %111, %113 : vector<256x64xf32>
    %cst_64 = arith.constant 0.000000e+00 : f32
    %115 = vector.broadcast %cst_64 : f32 to vector<256x64xf32>
    %116 = arith.maximumf %114, %115 : vector<256x64xf32>
    %117 = arith.truncf %116 : vector<256x64xf32> to vector<256x64xbf16>
    %c96_65 = arith.constant 96 : index
    %c0_66 = arith.constant 0 : index
    %118 = vector.load %arg2[%c96_65, %c0_66] : memref<704x256xbf16, #tpu.memory_space<vmem>>, vector<64x64xbf16>
    %cst_67 = arith.constant dense<0.000000e+00> : vector<256x64xf32>
    %119 = tpu.matmul %117, %118, %cst_67 {dimension_numbers = #tpu.dot_dimension_numbers<[1], [0], [0], [1], [0, 0, 1, 1], [], []>} : vector<256x64xbf16>, vector<64x64xbf16>, vector<256x64xf32> -> vector<256x64xf32>
    %c1_68 = arith.constant 1 : index
    %c0_69 = arith.constant 0 : index
    %120 = vector.load %arg3[%c1_68, %c0_69] : memref<16x128xf32, #tpu.memory_space<vmem>>, vector<1x64xf32>
    %121 = vector.broadcast %120 : vector<1x64xf32> to vector<256x64xf32>
    %122 = arith.addf %119, %121 : vector<256x64xf32>
    %cst_70 = arith.constant 0.000000e+00 : f32
    %123 = vector.broadcast %cst_70 : f32 to vector<256x64xf32>
    %124 = arith.maximumf %122, %123 : vector<256x64xf32>
    %125 = arith.truncf %124 : vector<256x64xf32> to vector<256x64xbf16>
    %c160_71 = arith.constant 160 : index
    %c0_72 = arith.constant 0 : index
    %126 = vector.load %arg2[%c160_71, %c0_72] : memref<704x256xbf16, #tpu.memory_space<vmem>>, vector<64x64xbf16>
    %cst_73 = arith.constant dense<0.000000e+00> : vector<256x64xf32>
    %127 = tpu.matmul %125, %126, %cst_73 {dimension_numbers = #tpu.dot_dimension_numbers<[1], [0], [0], [1], [0, 0, 1, 1], [], []>} : vector<256x64xbf16>, vector<64x64xbf16>, vector<256x64xf32> -> vector<256x64xf32>
    %c2_74 = arith.constant 2 : index
    %c0_75 = arith.constant 0 : index
    %128 = vector.load %arg3[%c2_74, %c0_75] : memref<16x128xf32, #tpu.memory_space<vmem>>, vector<1x64xf32>
    %129 = vector.broadcast %128 : vector<1x64xf32> to vector<256x64xf32>
    %130 = arith.addf %127, %129 : vector<256x64xf32>
    %cst_76 = arith.constant 0.000000e+00 : f32
    %131 = vector.broadcast %cst_76 : f32 to vector<256x64xf32>
    %132 = arith.maximumf %130, %131 : vector<256x64xf32>
    %133 = arith.truncf %132 : vector<256x64xf32> to vector<256x64xbf16>
    %c224_77 = arith.constant 224 : index
    %c0_78 = arith.constant 0 : index
    %134 = vector.load %arg2[%c224_77, %c0_78] : memref<704x256xbf16, #tpu.memory_space<vmem>>, vector<64x64xbf16>
    %cst_79 = arith.constant dense<0.000000e+00> : vector<256x64xf32>
    %135 = tpu.matmul %133, %134, %cst_79 {dimension_numbers = #tpu.dot_dimension_numbers<[1], [0], [0], [1], [0, 0, 1, 1], [], []>} : vector<256x64xbf16>, vector<64x64xbf16>, vector<256x64xf32> -> vector<256x64xf32>
    %c3_80 = arith.constant 3 : index
    %c0_81 = arith.constant 0 : index
    %136 = vector.load %arg3[%c3_80, %c0_81] : memref<16x128xf32, #tpu.memory_space<vmem>>, vector<1x64xf32>
    %137 = vector.broadcast %136 : vector<1x64xf32> to vector<256x64xf32>
    %138 = arith.addf %135, %137 : vector<256x64xf32>
    %cst_82 = arith.constant 0.000000e+00 : f32
    %139 = vector.broadcast %cst_82 : f32 to vector<256x64xf32>
    %140 = arith.maximumf %138, %139 : vector<256x64xf32>
    %141 = arith.truncf %140 : vector<256x64xf32> to vector<256x64xbf16>
    %c288_83 = arith.constant 288 : index
    %c0_84 = arith.constant 0 : index
    %142 = vector.load %arg2[%c288_83, %c0_84] : memref<704x256xbf16, #tpu.memory_space<vmem>>, vector<64x64xbf16>
    %cst_85 = arith.constant dense<0.000000e+00> : vector<256x64xf32>
    %143 = tpu.matmul %141, %142, %cst_85 {dimension_numbers = #tpu.dot_dimension_numbers<[1], [0], [0], [1], [0, 0, 1, 1], [], []>} : vector<256x64xbf16>, vector<64x64xbf16>, vector<256x64xf32> -> vector<256x64xf32>
    %c1_86 = arith.constant 1 : index
    %c0_87 = arith.constant 0 : index
    %c96_88 = arith.constant 96 : index
    %144 = vector.load %arg5[%c1_86, %c0_87, %c96_88] : memref<2x256x160xf32, #tpu.memory_space<vmem>>, vector<1x256x64xf32>
    %145 = vector.shape_cast %144 : vector<1x256x64xf32> to vector<256x64xf32>
    %146 = arith.addf %143, %145 : vector<256x64xf32>
    %c4_89 = arith.constant 4 : index
    %c0_90 = arith.constant 0 : index
    %147 = vector.load %arg3[%c4_89, %c0_90] : memref<16x128xf32, #tpu.memory_space<vmem>>, vector<1x64xf32>
    %148 = vector.broadcast %147 : vector<1x64xf32> to vector<256x64xf32>
    %149 = arith.addf %146, %148 : vector<256x64xf32>
    %cst_91 = arith.constant 0.000000e+00 : f32
    %150 = vector.broadcast %cst_91 : f32 to vector<256x64xf32>
    %151 = arith.maximumf %149, %150 : vector<256x64xf32>
    %152 = arith.truncf %151 : vector<256x64xf32> to vector<256x64xbf16>
    %c352_92 = arith.constant 352 : index
    %c0_93 = arith.constant 0 : index
    %153 = vector.load %arg2[%c352_92, %c0_93] : memref<704x256xbf16, #tpu.memory_space<vmem>>, vector<64x64xbf16>
    %cst_94 = arith.constant dense<0.000000e+00> : vector<256x64xf32>
    %154 = tpu.matmul %152, %153, %cst_94 {dimension_numbers = #tpu.dot_dimension_numbers<[1], [0], [0], [1], [0, 0, 1, 1], [], []>} : vector<256x64xbf16>, vector<64x64xbf16>, vector<256x64xf32> -> vector<256x64xf32>
    %c5_95 = arith.constant 5 : index
    %c0_96 = arith.constant 0 : index
    %155 = vector.load %arg3[%c5_95, %c0_96] : memref<16x128xf32, #tpu.memory_space<vmem>>, vector<1x64xf32>
    %156 = vector.broadcast %155 : vector<1x64xf32> to vector<256x64xf32>
    %157 = arith.addf %154, %156 : vector<256x64xf32>
    %cst_97 = arith.constant 0.000000e+00 : f32
    %158 = vector.broadcast %cst_97 : f32 to vector<256x64xf32>
    %159 = arith.maximumf %157, %158 : vector<256x64xf32>
    %160 = arith.truncf %159 : vector<256x64xf32> to vector<256x64xbf16>
    %c416_98 = arith.constant 416 : index
    %c0_99 = arith.constant 0 : index
    %161 = vector.load %arg2[%c416_98, %c0_99] : memref<704x256xbf16, #tpu.memory_space<vmem>>, vector<64x64xbf16>
    %cst_100 = arith.constant dense<0.000000e+00> : vector<256x64xf32>
    %162 = tpu.matmul %160, %161, %cst_100 {dimension_numbers = #tpu.dot_dimension_numbers<[1], [0], [0], [1], [0, 0, 1, 1], [], []>} : vector<256x64xbf16>, vector<64x64xbf16>, vector<256x64xf32> -> vector<256x64xf32>
    %c6_101 = arith.constant 6 : index
    %c0_102 = arith.constant 0 : index
    %163 = vector.load %arg3[%c6_101, %c0_102] : memref<16x128xf32, #tpu.memory_space<vmem>>, vector<1x64xf32>
    %164 = vector.broadcast %163 : vector<1x64xf32> to vector<256x64xf32>
    %165 = arith.addf %162, %164 : vector<256x64xf32>
    %cst_103 = arith.constant 0.000000e+00 : f32
    %166 = vector.broadcast %cst_103 : f32 to vector<256x64xf32>
    %167 = arith.maximumf %165, %166 : vector<256x64xf32>
    %168 = arith.truncf %167 : vector<256x64xf32> to vector<256x64xbf16>
    %c480_104 = arith.constant 480 : index
    %c0_105 = arith.constant 0 : index
    %169 = vector.load %arg2[%c480_104, %c0_105] : memref<704x256xbf16, #tpu.memory_space<vmem>>, vector<64x64xbf16>
    %cst_106 = arith.constant dense<0.000000e+00> : vector<256x64xf32>
    %170 = tpu.matmul %168, %169, %cst_106 {dimension_numbers = #tpu.dot_dimension_numbers<[1], [0], [0], [1], [0, 0, 1, 1], [], []>} : vector<256x64xbf16>, vector<64x64xbf16>, vector<256x64xf32> -> vector<256x64xf32>
    %c7_107 = arith.constant 7 : index
    %c0_108 = arith.constant 0 : index
    %171 = vector.load %arg3[%c7_107, %c0_108] : memref<16x128xf32, #tpu.memory_space<vmem>>, vector<1x64xf32>
    %172 = vector.broadcast %171 : vector<1x64xf32> to vector<256x64xf32>
    %173 = arith.addf %170, %172 : vector<256x64xf32>
    %cst_109 = arith.constant 0.000000e+00 : f32
    %174 = vector.broadcast %cst_109 : f32 to vector<256x64xf32>
    %175 = arith.maximumf %173, %174 : vector<256x64xf32>
    %176 = arith.truncf %175 : vector<256x64xf32> to vector<256x64xbf16>
    %c544_110 = arith.constant 544 : index
    %c0_111 = arith.constant 0 : index
    %177 = vector.load %arg2[%c544_110, %c0_111] : memref<704x256xbf16, #tpu.memory_space<vmem>>, vector<64x65xbf16>
    %cst_112 = arith.constant dense<0.000000e+00> : vector<256x65xf32>
    %178 = tpu.matmul %176, %177, %cst_112 {dimension_numbers = #tpu.dot_dimension_numbers<[1], [0], [0], [1], [0, 0, 1, 1], [], []>} : vector<256x64xbf16>, vector<64x65xbf16>, vector<256x65xf32> -> vector<256x65xf32>
    %c8_113 = arith.constant 8 : index
    %c0_114 = arith.constant 0 : index
    %179 = vector.load %arg3[%c8_113, %c0_114] : memref<16x128xf32, #tpu.memory_space<vmem>>, vector<1x65xf32>
    %180 = vector.broadcast %179 : vector<1x65xf32> to vector<256x65xf32>
    %181 = arith.addf %178, %180 : vector<256x65xf32>
    %182 = vector.extract_strided_slice %181 {offsets = [0, 64], sizes = [256, 1], strides = [1, 1]} : vector<256x65xf32> to vector<256x1xf32>
    %183 = vector.extract_strided_slice %181 {offsets = [0, 0], sizes = [256, 64], strides = [1, 1]} : vector<256x65xf32> to vector<256x64xf32>
    %184 = arith.truncf %183 : vector<256x64xf32> to vector<256x64xbf16>
    %c608_115 = arith.constant 608 : index
    %c0_116 = arith.constant 0 : index
    %185 = vector.load %arg2[%c608_115, %c0_116] : memref<704x256xbf16, #tpu.memory_space<vmem>>, vector<64x32xbf16>
    %cst_117 = arith.constant dense<0.000000e+00> : vector<256x32xf32>
    %186 = tpu.matmul %184, %185, %cst_117 {dimension_numbers = #tpu.dot_dimension_numbers<[1], [0], [0], [1], [0, 0, 1, 1], [], []>} : vector<256x64xbf16>, vector<64x32xbf16>, vector<256x32xf32> -> vector<256x32xf32>
    %c1_118 = arith.constant 1 : index
    %c0_119 = arith.constant 0 : index
    %c64_120 = arith.constant 64 : index
    %187 = vector.load %arg5[%c1_118, %c0_119, %c64_120] : memref<2x256x160xf32, #tpu.memory_space<vmem>>, vector<1x256x32xf32>
    %188 = vector.shape_cast %187 : vector<1x256x32xf32> to vector<256x32xf32>
    %189 = arith.addf %186, %188 : vector<256x32xf32>
    %c9_121 = arith.constant 9 : index
    %c0_122 = arith.constant 0 : index
    %190 = vector.load %arg3[%c9_121, %c0_122] : memref<16x128xf32, #tpu.memory_space<vmem>>, vector<1x32xf32>
    %191 = vector.broadcast %190 : vector<1x32xf32> to vector<256x32xf32>
    %192 = arith.addf %189, %191 : vector<256x32xf32>
    %cst_123 = arith.constant 0.000000e+00 : f32
    %193 = vector.broadcast %cst_123 : f32 to vector<256x32xf32>
    %194 = arith.maximumf %192, %193 : vector<256x32xf32>
    %195 = arith.truncf %194 : vector<256x32xf32> to vector<256x32xbf16>
    %c672_124 = arith.constant 672 : index
    %c0_125 = arith.constant 0 : index
    %196 = vector.load %arg2[%c672_124, %c0_125] : memref<704x256xbf16, #tpu.memory_space<vmem>>, vector<32x3xbf16>
    %cst_126 = arith.constant dense<0.000000e+00> : vector<256x3xf32>
    %197 = tpu.matmul %195, %196, %cst_126 {dimension_numbers = #tpu.dot_dimension_numbers<[1], [0], [0], [1], [0, 0, 1, 1], [], []>} : vector<256x32xbf16>, vector<32x3xbf16>, vector<256x3xf32> -> vector<256x3xf32>
    %c10_127 = arith.constant 10 : index
    %c0_128 = arith.constant 0 : index
    %198 = vector.load %arg3[%c10_127, %c0_128] : memref<16x128xf32, #tpu.memory_space<vmem>>, vector<1x3xf32>
    %199 = vector.broadcast %198 : vector<1x3xf32> to vector<256x3xf32>
    %200 = arith.addf %197, %199 : vector<256x3xf32>
    %201 = arith.negf %200 : vector<256x3xf32>
    %202 = math.exp %201 : vector<256x3xf32>
    %cst_129 = arith.constant 1.000000e+00 : f32
    %203 = vector.broadcast %cst_129 : f32 to vector<256x3xf32>
    %204 = arith.addf %203, %202 : vector<256x3xf32>
    %205 = arith.divf %203, %204 : vector<256x3xf32>
    %206 = tpu.concatenate %205, %182 in 1 : vector<256x3xf32>, vector<256x1xf32> -> vector<256x4xf32>
    %c256_130 = arith.constant 256 : index
    %c0_131 = arith.constant 0 : index
    %207 = vector.load %arg4[%c256_130, %c0_131] : memref<512x4xf32, #tpu.memory_space<vmem>>, vector<256x4xf32>
    tpu.vector_store %arg4[%c256_130, %c0_131], %206 {strides = array<i32>} : memref<512x4xf32, #tpu.memory_space<vmem>>, vector<256x4xf32>,
    return
  }
  func.func @transform_0(%arg0: i32) -> (i32, i32) {
    %c0_i32 = arith.constant 0 : i32
    %c0_i32_0 = arith.constant 0 : i32
    return %arg0, %c0_i32 : i32, i32
  }
  func.func @transform_1(%arg0: i32) -> (i32, i32) {
    %c0_i32 = arith.constant 0 : i32
    %c0_i32_0 = arith.constant 0 : i32
    %c0_i32_1 = arith.constant 0 : i32
    return %c0_i32, %c0_i32_0 : i32, i32
  }
  func.func @transform_2(%arg0: i32) -> (i32, i32) {
    %c0_i32 = arith.constant 0 : i32
    %c0_i32_0 = arith.constant 0 : i32
    %c0_i32_1 = arith.constant 0 : i32
    return %c0_i32, %c0_i32_0 : i32, i32
  }
  func.func @transform_3(%arg0: i32) -> (i32, i32) {
    %c0_i32 = arith.constant 0 : i32
    %c0_i32_0 = arith.constant 0 : i32
    return %arg0, %c0_i32 : i32, i32
  }
}

</mosaic_0001>

<llo_original>
// kernel: tpu_custom_call.1
$region0: #{tpu_custom_call.1}
  #allocation0 [shape = 'u32[]', space=smem, size = 0x4, offset = 0x4, fixed_abs, tag = 'smem constant byte address 0x4 - core index']
  #allocation1 [shape = 'u32[144,128]{1,0:T(1,128)}', space=vmem, size = 0x12000, scoped, tag = 'internal scratch']
  #allocation2 [shape = 'f32[2,256,160]{2,1,0:T(8,128)}', space=vmem, size = 0x80000, scoped, tag = 'scratch operand']
  %s0 = inlined_call_operand.vmem [shape: f32[2048,96], index: 0, kind: input, shape index: {}]
  %s1 = inlined_call_operand.vmem [shape: bf16[704,256], index: 1, kind: input, shape index: {}]
  %s2 = inlined_call_operand.vmem [shape: f32[16,128], index: 2, kind: input, shape index: {}]
  %s3 = inlined_call_operand.vmem [shape: f32[2048,4], index: 3, kind: output, shape index: {}]
  %s4 = sld [smem:[#allocation0]]
  $region45: #{tpu_custom_call.1} parent=0
    _
  %s6 = ssub.s32 1, %s4
  %s7 = scalar_select 0, %s6, %s4
  loop: start=0, step=1, limit=6
  $region2: #{tpu_custom_call.1} parent=0 // loop_pre_header
    _
  $region3: #{tpu_custom_call.1} parent=0 // loop_header
    %s9 = sphi 0, %s13
    %p10 = scmp.ge.s32.totalorder %s9, 6
    %s19 = sphi 0, %s21
    %s22 = sphi 0, %s19
    %s23 = sphi 0, %s22
    %s39 = sphi 0, %s23
    %s43 = sphi 0, %s43
    %s45 = sphi 0, %s43
    %s46 = sphi 0, %s45
    %s60 = sphi 0, %s46
    %s64 = sphi 0, %s64
    %s66 = sphi 0, %s64
    %s67 = sphi 0, %s66
    %s81 = sphi 0, %s67
    %s87 = sphi 0, %s89
    %s90 = sphi 0, %s87
    %s91 = sphi 0, %s90
    %s107 = sphi 0, %s91
  $region4: #{tpu_custom_call.1} parent=0 // loop_header_branch
    %12 = sbr.rel (%p10) target = $region8
  $region5: #{tpu_custom_call.1} parent=0 // loop_body
    %s14 = ssub.s32 %s9, 1
    %s15 = ssub.s32 %s9, 2
    %s16 = sadd.s32 %s9, 1
    %s17 = ssub.s32 %s9, %s16
    %p18 = scmp.eq.s32.totalorder %s17, 0
    %s20 = sadd.s32 %s19, 1
    %s21 = scalar_select %p18, %s19, %s20
    %p24 = pneg %p18
    %p25 = scmp.eq.s32.totalorder %s9, 3
    %p26 = por %p24, %p25
    %p27 = scmp.ne.s32.totalorder %s19, %s22
    %p28 = scmp.eq.s32.totalorder %s9, 0
    %p29 = por %p27, %p28
    %p30 = scmp.ne.s32.totalorder %s19, %s22
    %p31 = scmp.eq.s32.totalorder %s14, 3
    %p32 = por %p30, %p31
    %p33 = scmp.ne.s32.totalorder %s22, %s23
    %p34 = scmp.eq.s32.totalorder %s14, 0
    %p35 = por %p33, %p34
    %p36 = scmp.ne.s32.totalorder %s22, %s23
    %p37 = scmp.eq.s32.totalorder %s15, 3
    %p38 = por %p36, %p37
    %p40 = scmp.ne.s32.totalorder %s23, %s39
    %p41 = scmp.eq.s32.totalorder %s15, 0
    %p42 = por %p40, %p41
    %s44 = sadd.s32 %s43, 1
    %p47 = scmp.eq.s32.totalorder %s9, 3
    %p48 = scmp.ne.s32.totalorder %s43, %s45
    %p49 = scmp.eq.s32.totalorder %s9, 0
    %p50 = por %p48, %p49
    %p51 = scmp.ne.s32.totalorder %s43, %s45
    %p52 = scmp.eq.s32.totalorder %s14, 3
    %p53 = por %p51, %p52
    %p54 = scmp.ne.s32.totalorder %s45, %s46
    %p55 = scmp.eq.s32.totalorder %s14, 0
    %p56 = por %p54, %p55
    %p57 = scmp.ne.s32.totalorder %s45, %s46
    %p58 = scmp.eq.s32.totalorder %s15, 3
    %p59 = por %p57, %p58
    %p61 = scmp.ne.s32.totalorder %s46, %s60
    %p62 = scmp.eq.s32.totalorder %s15, 0
    %p63 = por %p61, %p62
    %s65 = sadd.s32 %s64, 1
    %p68 = scmp.eq.s32.totalorder %s9, 3
    %p69 = scmp.ne.s32.totalorder %s64, %s66
    %p70 = scmp.eq.s32.totalorder %s9, 0
    %p71 = por %p69, %p70
    %p72 = scmp.ne.s32.totalorder %s64, %s66
    %p73 = scmp.eq.s32.totalorder %s14, 3
    %p74 = por %p72, %p73
    %p75 = scmp.ne.s32.totalorder %s66, %s67
    %p76 = scmp.eq.s32.totalorder %s14, 0
    %p77 = por %p75, %p76
    %p78 = scmp.ne.s32.totalorder %s66, %s67
    %p79 = scmp.eq.s32.totalorder %s15, 3
    %p80 = por %p78, %p79
    %p82 = scmp.ne.s32.totalorder %s67, %s81
    %p83 = scmp.eq.s32.totalorder %s15, 0
    %p84 = por %p82, %p83
    %s85 = ssub.s32 %s9, %s16
    %p86 = scmp.eq.s32.totalorder %s85, 0
    %s88 = sadd.s32 %s87, 1
    %s89 = scalar_select %p86, %s87, %s88
    %p92 = pneg %p86
    %p93 = scmp.eq.s32.totalorder %s9, 3
    %p94 = por %p92, %p93
    %p95 = scmp.ne.s32.totalorder %s87, %s90
    %p96 = scmp.eq.s32.totalorder %s9, 0
    %p97 = por %p95, %p96
    %p98 = scmp.ne.s32.totalorder %s87, %s90
    %p99 = scmp.eq.s32.totalorder %s14, 3
    %p100 = por %p98, %p99
    %p101 = scmp.ne.s32.totalorder %s90, %s91
    %p102 = scmp.eq.s32.totalorder %s14, 0
    %p103 = por %p101, %p102
    %p104 = scmp.ne.s32.totalorder %s90, %s91
    %p105 = scmp.eq.s32.totalorder %s15, 3
    %p106 = por %p104, %p105
    %p108 = scmp.ne.s32.totalorder %s91, %s107
    %p109 = scmp.eq.s32.totalorder %s15, 0
    %p110 = por %p108, %p109
    %p111 = scmp.le.s32.totalorder 1, %s9
    %p112 = scmp.lt.s32.totalorder %s9, 5
    %p113 = pnand %p111, %p112
    %p114 = pneg %p113
    // Predicated region
    $region9: #{tpu_custom_call.1} parent=5 // pred_check
      _
    $region10: #{tpu_custom_call.1} parent=5 // pred_check_branch
      %116 = sbr.rel (%p113) target = $region12
    $region11: #{tpu_custom_call.1} parent=5 // pred_region
      %s117 = ssub.s32 %s9, 1
      // Predicated region
      $region13: #{tpu_custom_call.1} parent=11 // pred_check
        %p118 = pneg %p56
      $region14: #{tpu_custom_call.1} parent=11 // pred_check_branch
        %120 = sbr.rel (%p118) target = $region16
      $region15: #{tpu_custom_call.1} parent=11 // pred_region
        _
      $region16: #{tpu_custom_call.1} parent=11 // pred_fallthru
        _
      // Predicated region
      $region17: #{tpu_custom_call.1} parent=11 // pred_check
        %p121 = pneg %p77
      $region18: #{tpu_custom_call.1} parent=11 // pred_check_branch
        %123 = sbr.rel (%p121) target = $region20
      $region19: #{tpu_custom_call.1} parent=11 // pred_region
        _
      $region20: #{tpu_custom_call.1} parent=11 // pred_fallthru
        _
    $region12: #{tpu_custom_call.1} parent=5 // pred_fallthru
      _
    %p124 = scmp.lt.s32.totalorder %s9, 4
    // Predicated region
    $region21: #{tpu_custom_call.1} parent=5 // pred_check
      %p125 = pneg %p124
    $region22: #{tpu_custom_call.1} parent=5 // pred_check_branch
      %127 = sbr.rel (%p125) target = $region24
    $region23: #{tpu_custom_call.1} parent=5 // pred_region
      // Predicated region
      $region25: #{tpu_custom_call.1} parent=23 // pred_check
        %p128 = pneg %p29
      $region26: #{tpu_custom_call.1} parent=23 // pred_check_branch
        %130 = sbr.rel (%p128) target = $region28
      $region27: #{tpu_custom_call.1} parent=23 // pred_region
        %s131 = smul.u32 64, %s9
        %p132 = scmp.lt.s32.totalorder %s131, 255
        %s133 = scalar_select %p132, %s131, 255
        %s134 = smul.addr %s133, 8
        %s135 = scalar_lea.vmem %s0, %s134
        %s136 = smul.u32 64, %s9
      $region28: #{tpu_custom_call.1} parent=23 // pred_fallthru
        _
    $region24: #{tpu_custom_call.1} parent=5 // pred_fallthru
      _
    %p137 = scmp.le.s32.totalorder 1, %s9
    %p138 = scmp.lt.s32.totalorder %s9, 5
    %p139 = pnand %p137, %p138
    %p140 = pneg %p139
    // Predicated region
    $region29: #{tpu_custom_call.1} parent=5 // pred_check
      _
    $region30: #{tpu_custom_call.1} parent=5 // pred_check_branch
      %142 = sbr.rel (%p139) target = $region32
    $region31: #{tpu_custom_call.1} parent=5 // pred_region
      %s143 = ssub.s32 %s9, 1
      %s144 = smul.u32 64, %s14
      %p145 = scmp.lt.s32.totalorder %s144, 255
      %s146 = scalar_select %p145, %s144, 255
      %s147 = smul.addr %s146, 8
      %s148 = scalar_lea.vmem %s0, %s147
      %p149 = pneg %p35
      %p150 = pneg %p32
      %p151 = pneg %p56
      %p152 = pneg %p53
      %p153 = pneg %p77
      %p154 = pneg %p74
      %p155 = pneg %p103
      %p156 = pneg %p100
      %s157 = smul.u32 64, %s14
      %p158 = scmp.lt.s32.totalorder %s157, 255
      %s159 = scalar_select %p158, %s157, 255
      %s160 = smul.addr %s159, 8
      %s161 = scalar_lea.vmem %s3, %s160
      %s162 = smul.u32 64, %s14
      %p163 = scmp.lt.s32.totalorder %s162, 255
      %s164 = scalar_select %p163, %s162, 255
      %s165 = smul.addr %s164, 8
      %s166 = scalar_lea.vmem %s0, %s165
      %s167 = smul.u32 64, %s14
      %s168 = smul.u32 64, %s14
      %p169 = scmp.lt.s32.totalorder %s168, 255
      %s170 = scalar_select %p169, %s168, 255
      %s171 = smul.addr %s170, 8
      %s172 = scalar_lea.vmem %s3, %s171
      %s173 = smul.u32 64, %s14
      %v175 = vld [vmem:[%s166] sm:$0xff]
      %v176 = vld [vmem:[%s166 + $0x8] sm:$0xff]
      %v177 = vld [vmem:[%s166 + $0x10] sm:$0xff]
      %v178 = vld [vmem:[%s166 + $0x18] sm:$0xff]
      %v179 = vld [vmem:[%s166 + $0x20] sm:$0xff]
      %v180 = vld [vmem:[%s166 + $0x28] sm:$0xff]
      %v181 = vld [vmem:[%s166 + $0x30] sm:$0xff]
      %v182 = vld [vmem:[%s166 + $0x38] sm:$0xff]
      %v183 = vld [vmem:[%s166 + $0x40] sm:$0xff]
      %v184 = vld [vmem:[%s166 + $0x48] sm:$0xff]
      %v185 = vld [vmem:[%s166 + $0x50] sm:$0xff]
      %v186 = vld [vmem:[%s166 + $0x58] sm:$0xff]
      %v187 = vld [vmem:[%s166 + $0x60] sm:$0xff]
      %v188 = vld [vmem:[%s166 + $0x68] sm:$0xff]
      %v189 = vld [vmem:[%s166 + $0x70] sm:$0xff]
      %v190 = vld [vmem:[%s166 + $0x78] sm:$0xff]
      %v191 = vld [vmem:[%s166 + $0x80] sm:$0xff]
      %v192 = vld [vmem:[%s166 + $0x88] sm:$0xff]
      %v193 = vld [vmem:[%s166 + $0x90] sm:$0xff]
      %v194 = vld [vmem:[%s166 + $0x98] sm:$0xff]
      %v195 = vld [vmem:[%s166 + $0xa0] sm:$0xff]
      %v196 = vld [vmem:[%s166 + $0xa8] sm:$0xff]
      %v197 = vld [vmem:[%s166 + $0xb0] sm:$0xff]
      %v198 = vld [vmem:[%s166 + $0xb8] sm:$0xff]
      %v199 = vld [vmem:[%s166 + $0xc0] sm:$0xff]
      %v200 = vld [vmem:[%s166 + $0xc8] sm:$0xff]
      %v201 = vld [vmem:[%s166 + $0xd0] sm:$0xff]
      %v202 = vld [vmem:[%s166 + $0xd8] sm:$0xff]
      %v203 = vld [vmem:[%s166 + $0xe0] sm:$0xff]
      %v204 = vld [vmem:[%s166 + $0xe8] sm:$0xff]
      %v205 = vld [vmem:[%s166 + $0xf0] sm:$0xff]
      %v206 = vld [vmem:[%s166 + $0xf8] sm:$0xff]
      %v207 = vpack.c.bf16 %v176, %v175
      %v208 = vpack.c.bf16 %v178, %v177
      %v209 = vpack.c.bf16 %v180, %v179
      %v210 = vpack.c.bf16 %v182, %v181
      %v211 = vpack.c.bf16 %v184, %v183
      %v212 = vpack.c.bf16 %v186, %v185
      %v213 = vpack.c.bf16 %v188, %v187
      %v214 = vpack.c.bf16 %v190, %v189
      %v215 = vpack.c.bf16 %v192, %v191
      %v216 = vpack.c.bf16 %v194, %v193
      %v217 = vpack.c.bf16 %v196, %v195
      %v218 = vpack.c.bf16 %v198, %v197
      %v219 = vpack.c.bf16 %v200, %v199
      %v220 = vpack.c.bf16 %v202, %v201
      %v221 = vpack.c.bf16 %v204, %v203
      %v222 = vpack.c.bf16 %v206, %v205
      %v223 = vld [vmem:[%s1] sm:$0xff]
      %v224 = vld [vmem:[%s1 + $0x8] sm:$0xff]
      %v225 = vld [vmem:[%s1 + $0x10] sm:$0xff]
      %v226 = vld [vmem:[%s1 + $0x18] sm:$0xff]
      %v227 = vld [vmem:[%s1 + $0x20] sm:$0xff]
      %v228 = vld [vmem:[%s1 + $0x28] sm:$0xff]
      %v229 = vld [vmem:[%s1 + $0x30] sm:$0xff]
      %v230 = vld [vmem:[%s1 + $0x38] sm:$0xff]
      %v231 = vld [vmem:[%s1 + $0x40] sm:$0xff]
      %v232 = vld [vmem:[%s1 + $0x48] sm:$0xff]
      %v233 = vld [vmem:[%s1 + $0x50] sm:$0xff]
      %v234 = vld [vmem:[%s1 + $0x58] sm:$0xff]
      %v247 = vunpack.c.l.b16 %v223
      %v248 = vunpack.c.h.b16 %v223
      %v249 = vunpack.c.l.b16 %v224
      %v250 = vunpack.c.h.b16 %v224
      %v251 = vunpack.c.l.b16 %v225
      %v252 = vunpack.c.h.b16 %v225
      %v253 = vunpack.c.l.b16 %v226
      %v254 = vunpack.c.h.b16 %v226
      %v255 = vunpack.c.l.b16 %v227
      %v256 = vunpack.c.h.b16 %v227
      %v257 = vunpack.c.l.b16 %v228
      %v258 = vunpack.c.h.b16 %v228
      %v259 = vunpack.c.l.b16 %v229
      %v260 = vunpack.c.h.b16 %v229
      %v261 = vunpack.c.l.b16 %v230
      %v262 = vunpack.c.h.b16 %v230
      %v263 = vunpack.c.l.b16 %v231
      %v264 = vunpack.c.h.b16 %v231
      %v265 = vunpack.c.l.b16 %v232
      %v266 = vunpack.c.h.b16 %v232
      %v267 = vunpack.c.l.b16 %v233
      %v268 = vunpack.c.h.b16 %v233
      %v269 = vunpack.c.l.b16 %v234
      %v270 = vunpack.c.h.b16 %v234
      %v271 = vpack.c.b16 %v249, %v247
      %v272 = vpack.c.b16 %v250, %v248
      %v273 = vpack.c.b16 %v253, %v251
      %v274 = vpack.c.b16 %v254, %v252
      %v275 = vpack.c.b16 %v257, %v255
      %v276 = vpack.c.b16 %v258, %v256
      %v277 = vpack.c.b16 %v261, %v259
      %v278 = vpack.c.b16 %v262, %v260
      %v279 = vpack.c.b16 %v265, %v263
      %v280 = vpack.c.b16 %v266, %v264
      %v281 = vpack.c.b16 %v269, %v267
      %v282 = vpack.c.b16 %v270, %v268
      %vm295 = vcmask 785408
      %v297 = vsel %vm295, %v207, 0
      %v300 = vsel %vm295, %v208, 0
      %v303 = vsel %vm295, %v209, 0
      %v306 = vsel %vm295, %v210, 0
      %v309 = vsel %vm295, %v211, 0
      %v312 = vsel %vm295, %v212, 0
      %v315 = vsel %vm295, %v213, 0
      %v318 = vsel %vm295, %v214, 0
      %v321 = vsel %vm295, %v215, 0
      %v324 = vsel %vm295, %v216, 0
      %v327 = vsel %vm295, %v217, 0
      %v330 = vsel %vm295, %v218, 0
      %v333 = vsel %vm295, %v219, 0
      %v336 = vsel %vm295, %v220, 0
      %v339 = vsel %vm295, %v221, 0
      %v342 = vsel %vm295, %v222, 0
      %344 = vmatprep.subr.bf16.mxu0 0
      %345 = vmatpush1.bf16.msra.mxu0 0
      %346 = vmatprep.subr.bf16.mxu0 0
      %347 = vmatpush1.bf16.msra.mxu0 0
      %348 = vmatprep.subr.bf16.mxu0 %v282
      %349 = vmatpush1.bf16.msra.mxu0 %v281
      %350 = vmatprep.subr.bf16.mxu0 %v280
      %351 = vmatpush1.bf16.msra.mxu0 %v279
      %352 = vmatprep.subr.bf16.mxu0 %v278
      %353 = vmatpush1.bf16.msra.mxu0 %v277
      %354 = vmatprep.subr.bf16.mxu0 %v276
      %355 = vmatpush1.bf16.msra.mxu0 %v275
      %356 = vmatprep.subr.bf16.mxu0 %v274
      %357 = vmatpush1.bf16.msra.mxu0 %v273
      %358 = vmatprep.subr.bf16.mxu0 %v272
      %359 = vmatpush1.bf16.msra.mxu0 %v271
      %360 = vmatprep.subr.bf16.mxu0 0
      %361 = vmatpush2.bf16.msra.mxu0 0
      %362 = vmatprep.subr.bf16.mxu0 0
      %363 = vmatpush2.bf16.msra.mxu0 0
      %364 = vmatprep.subr.bf16.mxu0 0
      %365 = vmatpush2.bf16.msra.mxu0 0
      %366 = vmatprep.subr.bf16.mxu0 0
      %367 = vmatpush2.bf16.msra.mxu0 0
      %368 = vmatprep.subr.bf16.mxu0 0
      %369 = vmatpush2.bf16.msra.mxu0 0
      %370 = vmatprep.subr.bf16.mxu0 0
      %371 = vmatpush2.bf16.msra.mxu0 0
      %372 = vmatprep.subr.bf16.mxu0 0
      %373 = vmatpush2.bf16.msra.mxu0 0
      %374 = vmatprep.subr.bf16.mxu0 0
      %375 = vmatpush2.bf16.msra.mxu0 0
      %376 = vmatprep.mubr.bf16.mxu0 0
      %377 = vmatmul.mubr.bf16.gmra.mxu0 %v297
      %v378 = vpop.f32.mrf.mxu0
      %v379 = vadd.f32 0.0, %v378
      %v380 = vpop.f32.mrf.mxu0
      %v381 = vadd.f32 0.0, %v380
      %v382 = vpop.f32.mrf.mxu0
      %v383 = vadd.f32 0.0, %v382
      %v384 = vpop.f32.mrf.mxu0
      %v385 = vadd.f32 0.0, %v384
      %386 = vmatprep.mubr.bf16.mxu0 0
      %387 = vmatmul.mubr.bf16.gmra.mxu0 %v300
      %v388 = vpop.f32.mrf.mxu0
      %v389 = vadd.f32 0.0, %v388
      %v390 = vpop.f32.mrf.mxu0
      %v391 = vadd.f32 0.0, %v390
      %v392 = vpop.f32.mrf.mxu0
      %v393 = vadd.f32 0.0, %v392
      %v394 = vpop.f32.mrf.mxu0
      %v395 = vadd.f32 0.0, %v394
      %396 = vmatprep.mubr.bf16.mxu0 0
      %397 = vmatmul.mubr.bf16.gmra.mxu0 %v303
      %v398 = vpop.f32.mrf.mxu0
      %v399 = vadd.f32 0.0, %v398
      %v400 = vpop.f32.mrf.mxu0
      %v401 = vadd.f32 0.0, %v400
      %v402 = vpop.f32.mrf.mxu0
      %v403 = vadd.f32 0.0, %v402
      %v404 = vpop.f32.mrf.mxu0
      %v405 = vadd.f32 0.0, %v404
      %406 = vmatprep.mubr.bf16.mxu0 0
      %407 = vmatmul.mubr.bf16.gmra.mxu0 %v306
      %v408 = vpop.f32.mrf.mxu0
      %v409 = vadd.f32 0.0, %v408
      %v410 = vpop.f32.mrf.mxu0
      %v411 = vadd.f32 0.0, %v410
      %v412 = vpop.f32.mrf.mxu0
      %v413 = vadd.f32 0.0, %v412
      %v414 = vpop.f32.mrf.mxu0
      %v415 = vadd.f32 0.0, %v414
      %416 = vmatprep.mubr.bf16.mxu0 0
      %417 = vmatmul.mubr.bf16.gmra.mxu0 %v309
      %v418 = vpop.f32.mrf.mxu0
      %v419 = vadd.f32 0.0, %v418
      %v420 = vpop.f32.mrf.mxu0
      %v421 = vadd.f32 0.0, %v420
      %v422 = vpop.f32.mrf.mxu0
      %v423 = vadd.f32 0.0, %v422
      %v424 = vpop.f32.mrf.mxu0
      %v425 = vadd.f32 0.0, %v424
      %426 = vmatprep.mubr.bf16.mxu0 0
      %427 = vmatmul.mubr.bf16.gmra.mxu0 %v312
      %v428 = vpop.f32.mrf.mxu0
      %v429 = vadd.f32 0.0, %v428
      %v430 = vpop.f32.mrf.mxu0
      %v431 = vadd.f32 0.0, %v430
      %v432 = vpop.f32.mrf.mxu0
      %v433 = vadd.f32 0.0, %v432
      %v434 = vpop.f32.mrf.mxu0
      %v435 = vadd.f32 0.0, %v434
      %436 = vmatprep.mubr.bf16.mxu0 0
      %437 = vmatmul.mubr.bf16.gmra.mxu0 %v315
      %v438 = vpop.f32.mrf.mxu0
      %v439 = vadd.f32 0.0, %v438
      %v440 = vpop.f32.mrf.mxu0
      %v441 = vadd.f32 0.0, %v440
      %v442 = vpop.f32.mrf.mxu0
      %v443 = vadd.f32 0.0, %v442
      %v444 = vpop.f32.mrf.mxu0
      %v445 = vadd.f32 0.0, %v444
      %446 = vmatprep.mubr.bf16.mxu0 0
      %447 = vmatmul.mubr.bf16.gmra.mxu0 %v318
      %v448 = vpop.f32.mrf.mxu0
      %v449 = vadd.f32 0.0, %v448
      %v450 = vpop.f32.mrf.mxu0
      %v451 = vadd.f32 0.0, %v450
      %v452 = vpop.f32.mrf.mxu0
      %v453 = vadd.f32 0.0, %v452
      %v454 = vpop.f32.mrf.mxu0
      %v455 = vadd.f32 0.0, %v454
      %456 = vmatprep.mubr.bf16.mxu0 0
      %457 = vmatmul.mubr.bf16.gmra.mxu0 %v321
      %v458 = vpop.f32.mrf.mxu0
      %v459 = vadd.f32 0.0, %v458
      %v460 = vpop.f32.mrf.mxu0
      %v461 = vadd.f32 0.0, %v460
      %v462 = vpop.f32.mrf.mxu0
      %v463 = vadd.f32 0.0, %v462
      %v464 = vpop.f32.mrf.mxu0
      %v465 = vadd.f32 0.0, %v464
      %466 = vmatprep.mubr.bf16.mxu0 0
      %467 = vmatmul.mubr.bf16.gmra.mxu0 %v324
      %v468 = vpop.f32.mrf.mxu0
      %v469 = vadd.f32 0.0, %v468
      %v470 = vpop.f32.mrf.mxu0
      %v471 = vadd.f32 0.0, %v470
      %v472 = vpop.f32.mrf.mxu0
      %v473 = vadd.f32 0.0, %v472
      %v474 = vpop.f32.mrf.mxu0
      %v475 = vadd.f32 0.0, %v474
      %476 = vmatprep.mubr.bf16.mxu0 0
      %477 = vmatmul.mubr.bf16.gmra.mxu0 %v327
      %v478 = vpop.f32.mrf.mxu0
      %v479 = vadd.f32 0.0, %v478
      %v480 = vpop.f32.mrf.mxu0
      %v481 = vadd.f32 0.0, %v480
      %v482 = vpop.f32.mrf.mxu0
      %v483 = vadd.f32 0.0, %v482
      %v484 = vpop.f32.mrf.mxu0
      %v485 = vadd.f32 0.0, %v484
      %486 = vmatprep.mubr.bf16.mxu0 0
      %487 = vmatmul.mubr.bf16.gmra.mxu0 %v330
      %v488 = vpop.f32.mrf.mxu0
      %v489 = vadd.f32 0.0, %v488
      %v490 = vpop.f32.mrf.mxu0
      %v491 = vadd.f32 0.0, %v490
      %v492 = vpop.f32.mrf.mxu0
      %v493 = vadd.f32 0.0, %v492
      %v494 = vpop.f32.mrf.mxu0
      %v495 = vadd.f32 0.0, %v494
      %496 = vmatprep.mubr.bf16.mxu0 0
      %497 = vmatmul.mubr.bf16.gmra.mxu0 %v333
      %v498 = vpop.f32.mrf.mxu0
      %v499 = vadd.f32 0.0, %v498
      %v500 = vpop.f32.mrf.mxu0
      %v501 = vadd.f32 0.0, %v500
      %v502 = vpop.f32.mrf.mxu0
      %v503 = vadd.f32 0.0, %v502
      %v504 = vpop.f32.mrf.mxu0
      %v505 = vadd.f32 0.0, %v504
      %506 = vmatprep.mubr.bf16.mxu0 0
      %507 = vmatmul.mubr.bf16.gmra.mxu0 %v336
      %v508 = vpop.f32.mrf.mxu0
      %v509 = vadd.f32 0.0, %v508
      %v510 = vpop.f32.mrf.mxu0
      %v511 = vadd.f32 0.0, %v510
      %v512 = vpop.f32.mrf.mxu0
      %v513 = vadd.f32 0.0, %v512
      %v514 = vpop.f32.mrf.mxu0
      %v515 = vadd.f32 0.0, %v514
      %516 = vmatprep.mubr.bf16.mxu0 0
      %517 = vmatmul.mubr.bf16.gmra.mxu0 %v339
      %v518 = vpop.f32.mrf.mxu0
      %v519 = vadd.f32 0.0, %v518
      %v520 = vpop.f32.mrf.mxu0
      %v521 = vadd.f32 0.0, %v520
      %v522 = vpop.f32.mrf.mxu0
      %v523 = vadd.f32 0.0, %v522
      %v524 = vpop.f32.mrf.mxu0
      %v525 = vadd.f32 0.0, %v524
      %526 = vmatprep.mubr.bf16.mxu0 0
      %527 = vmatmul.mubr.bf16.gmra.mxu0 %v342
      %v528 = vpop.f32.mrf.mxu0
      %v529 = vadd.f32 0.0, %v528
      %v530 = vpop.f32.mrf.mxu0
      %v531 = vadd.f32 0.0, %v530
      %v532 = vpop.f32.mrf.mxu0
      %v533 = vadd.f32 0.0, %v532
      %v534 = vpop.f32.mrf.mxu0
      %v535 = vadd.f32 0.0, %v534
      %536 = vdwg.mxu0
      %537 = vst [vmem:[#allocation2] sm:$0xff] %v379
      %vm538 = vcmask 261120
      %539 = vst.msk [vmem:[#allocation2 + $0x8] sm:$0xff] %vm538, %v381
      %540 = vst [vmem:[#allocation2 + $0x10] sm:$0xff] %v383
      %541 = vst.msk [vmem:[#allocation2 + $0x18] sm:$0xff] %vm538, %v385
      %542 = vst [vmem:[#allocation2 + $0x20] sm:$0xff] %v389
      %543 = vst.msk [vmem:[#allocation2 + $0x28] sm:$0xff] %vm538, %v391
      %544 = vst [vmem:[#allocation2 + $0x30] sm:$0xff] %v393
      %545 = vst.msk [vmem:[#allocation2 + $0x38] sm:$0xff] %vm538, %v395
      %546 = vst [vmem:[#allocation2 + $0x40] sm:$0xff] %v399
      %547 = vst.msk [vmem:[#allocation2 + $0x48] sm:$0xff] %vm538, %v401
      %548 = vst [vmem:[#allocation2 + $0x50] sm:$0xff] %v403
      %549 = vst.msk [vmem:[#allocation2 + $0x58] sm:$0xff] %vm538, %v405
      %550 = vst [vmem:[#allocation2 + $0x60] sm:$0xff] %v409
      %551 = vst.msk [vmem:[#allocation2 + $0x68] sm:$0xff] %vm538, %v411
      %552 = vst [vmem:[#allocation2 + $0x70] sm:$0xff] %v413
      %553 = vst.msk [vmem:[#allocation2 + $0x78] sm:$0xff] %vm538, %v415
      %554 = vst [vmem:[#allocation2 + $0x80] sm:$0xff] %v419
      %555 = vst.msk [vmem:[#allocation2 + $0x88] sm:$0xff] %vm538, %v421
      %556 = vst [vmem:[#allocation2 + $0x90] sm:$0xff] %v423
      %557 = vst.msk [vmem:[#allocation2 + $0x98] sm:$0xff] %vm538, %v425
      %558 = vst [vmem:[#allocation2 + $0xa0] sm:$0xff] %v429
      %559 = vst.msk [vmem:[#allocation2 + $0xa8] sm:$0xff] %vm538, %v431
      %560 = vst [vmem:[#allocation2 + $0xb0] sm:$0xff] %v433
      %561 = vst.msk [vmem:[#allocation2 + $0xb8] sm:$0xff] %vm538, %v435
      %562 = vst [vmem:[#allocation2 + $0xc0] sm:$0xff] %v439
      %563 = vst.msk [vmem:[#allocation2 + $0xc8] sm:$0xff] %vm538, %v441
      %564 = vst [vmem:[#allocation2 + $0xd0] sm:$0xff] %v443
      %565 = vst.msk [vmem:[#allocation2 + $0xd8] sm:$0xff] %vm538, %v445
      %566 = vst [vmem:[#allocation2 + $0xe0] sm:$0xff] %v449
      %567 = vst.msk [vmem:[#allocation2 + $0xe8] sm:$0xff] %vm538, %v451
      %568 = vst [vmem:[#allocation2 + $0xf0] sm:$0xff] %v453
      %569 = vst.msk [vmem:[#allocation2 + $0xf8] sm:$0xff] %vm538, %v455
      %570 = vst [vmem:[#allocation2 + $0x100] sm:$0xff] %v459
      %571 = vst.msk [vmem:[#allocation2 + $0x108] sm:$0xff] %vm538, %v461
      %572 = vst [vmem:[#allocation2 + $0x110] sm:$0xff] %v463
      %573 = vst.msk [vmem:[#allocation2 + $0x118] sm:$0xff] %vm538, %v465
      %574 = vst [vmem:[#allocation2 + $0x120] sm:$0xff] %v469
      %575 = vst.msk [vmem:[#allocation2 + $0x128] sm:$0xff] %vm538, %v471
      %576 = vst [vmem:[#allocation2 + $0x130] sm:$0xff] %v473
      %577 = vst.msk [vmem:[#allocation2 + $0x138] sm:$0xff] %vm538, %v475
      %578 = vst [vmem:[#allocation2 + $0x140] sm:$0xff] %v479
      %579 = vst.msk [vmem:[#allocation2 + $0x148] sm:$0xff] %vm538, %v481
      %580 = vst [vmem:[#allocation2 + $0x150] sm:$0xff] %v483
      %581 = vst.msk [vmem:[#allocation2 + $0x158] sm:$0xff] %vm538, %v485
      %582 = vst [vmem:[#allocation2 + $0x160] sm:$0xff] %v489
      %583 = vst.msk [vmem:[#allocation2 + $0x168] sm:$0xff] %vm538, %v491
      %584 = vst [vmem:[#allocation2 + $0x170] sm:$0xff] %v493
      %585 = vst.msk [vmem:[#allocation2 + $0x178] sm:$0xff] %vm538, %v495
      %586 = vst [vmem:[#allocation2 + $0x180] sm:$0xff] %v499
      %587 = vst.msk [vmem:[#allocation2 + $0x188] sm:$0xff] %vm538, %v501
      %588 = vst [vmem:[#allocation2 + $0x190] sm:$0xff] %v503
      %589 = vst.msk [vmem:[#allocation2 + $0x198] sm:$0xff] %vm538, %v505
      %590 = vst [vmem:[#allocation2 + $0x1a0] sm:$0xff] %v509
      %591 = vst.msk [vmem:[#allocation2 + $0x1a8] sm:$0xff] %vm538, %v511
      %592 = vst [vmem:[#allocation2 + $0x1b0] sm:$0xff] %v513
      %593 = vst.msk [vmem:[#allocation2 + $0x1b8] sm:$0xff] %vm538, %v515
      %594 = vst [vmem:[#allocation2 + $0x1c0] sm:$0xff] %v519
      %595 = vst.msk [vmem:[#allocation2 + $0x1c8] sm:$0xff] %vm538, %v521
      %596 = vst [vmem:[#allocation2 + $0x1d0] sm:$0xff] %v523
      %597 = vst.msk [vmem:[#allocation2 + $0x1d8] sm:$0xff] %vm538, %v525
      %598 = vst [vmem:[#allocation2 + $0x1e0] sm:$0xff] %v529
      %599 = vst.msk [vmem:[#allocation2 + $0x1e8] sm:$0xff] %vm538, %v531
      %600 = vst [vmem:[#allocation2 + $0x1f0] sm:$0xff] %v533
      %601 = vst.msk [vmem:[#allocation2 + $0x1f8] sm:$0xff] %vm538, %v535
      %v602 = vld [vmem:[%s2] sm:$0x1]
      %v603 = vlaneseq
      %v604 = vshrl.u32 %v603, 7
      %v605 = vsub.s32 0, %v604
      %v606 = vrot.slane %v602, %v605
      %v607 = vadd.f32 %v379, %v606
      %v608 = vadd.f32 %v383, %v606
      %v609 = vadd.f32 %v389, %v606
      %v610 = vadd.f32 %v393, %v606
      %v611 = vadd.f32 %v399, %v606
      %v612 = vadd.f32 %v403, %v606
      %v613 = vadd.f32 %v409, %v606
      %v614 = vadd.f32 %v413, %v606
      %v615 = vadd.f32 %v419, %v606
      %v616 = vadd.f32 %v423, %v606
      %v617 = vadd.f32 %v429, %v606
      %v618 = vadd.f32 %v433, %v606
      %v619 = vadd.f32 %v439, %v606
      %v620 = vadd.f32 %v443, %v606
      %v621 = vadd.f32 %v449, %v606
      %v622 = vadd.f32 %v453, %v606
      %v623 = vadd.f32 %v459, %v606
      %v624 = vadd.f32 %v463, %v606
      %v625 = vadd.f32 %v469, %v606
      %v626 = vadd.f32 %v473, %v606
      %v627 = vadd.f32 %v479, %v606
      %v628 = vadd.f32 %v483, %v606
      %v629 = vadd.f32 %v489, %v606
      %v630 = vadd.f32 %v493, %v606
      %v631 = vadd.f32 %v499, %v606
      %v632 = vadd.f32 %v503, %v606
      %v633 = vadd.f32 %v509, %v606
      %v634 = vadd.f32 %v513, %v606
      %v635 = vadd.f32 %v519, %v606
      %v636 = vadd.f32 %v523, %v606
      %v637 = vadd.f32 %v529, %v606
      %v638 = vadd.f32 %v533, %v606
      %v639 = vmax.f32 %v607, 0.0
      %v640 = vmax.f32 %v608, 0.0
      %v641 = vmax.f32 %v609, 0.0
      %v642 = vmax.f32 %v610, 0.0
      %v643 = vmax.f32 %v611, 0.0
      %v644 = vmax.f32 %v612, 0.0
      %v645 = vmax.f32 %v613, 0.0
      %v646 = vmax.f32 %v614, 0.0
      %v647 = vmax.f32 %v615, 0.0
      %v648 = vmax.f32 %v616, 0.0
      %v649 = vmax.f32 %v617, 0.0
      %v650 = vmax.f32 %v618, 0.0
      %v651 = vmax.f32 %v619, 0.0
      %v652 = vmax.f32 %v620, 0.0
      %v653 = vmax.f32 %v621, 0.0
      %v654 = vmax.f32 %v622, 0.0
      %v655 = vmax.f32 %v623, 0.0
      %v656 = vmax.f32 %v624, 0.0
      %v657 = vmax.f32 %v625, 0.0
      %v658 = vmax.f32 %v626, 0.0
      %v659 = vmax.f32 %v627, 0.0
      %v660 = vmax.f32 %v628, 0.0
      %v661 = vmax.f32 %v629, 0.0
      %v662 = vmax.f32 %v630, 0.0
      %v663 = vmax.f32 %v631, 0.0
      %v664 = vmax.f32 %v632, 0.0
      %v665 = vmax.f32 %v633, 0.0
      %v666 = vmax.f32 %v634, 0.0
      %v667 = vmax.f32 %v635, 0.0
      %v668 = vmax.f32 %v636, 0.0
      %v669 = vmax.f32 %v637, 0.0
      %v670 = vmax.f32 %v638, 0.0
      %v671 = vpack.c.bf16 %v640, %v639
      %v672 = vpack.c.bf16 %v642, %v641
      %v673 = vpack.c.bf16 %v644, %v643
      %v674 = vpack.c.bf16 %v646, %v645
      %v675 = vpack.c.bf16 %v648, %v647
      %v676 = vpack.c.bf16 %v650, %v649
      %v677 = vpack.c.bf16 %v652, %v651
      %v678 = vpack.c.bf16 %v654, %v653
      %v679 = vpack.c.bf16 %v656, %v655
      %v680 = vpack.c.bf16 %v658, %v657
      %v681 = vpack.c.bf16 %v660, %v659
      %v682 = vpack.c.bf16 %v662, %v661
      %v683 = vpack.c.bf16 %v664, %v663
      %v684 = vpack.c.bf16 %v666, %v665
      %v685 = vpack.c.bf16 %v668, %v667
      %v686 = vpack.c.bf16 %v670, %v669
      %v687 = vld [vmem:[%s1 + $0x60] sm:$0xf]
      %v688 = vld [vmem:[%s1 + $0x68] sm:$0xf]
      %v689 = vld [vmem:[%s1 + $0x70] sm:$0xf]
      %v690 = vld [vmem:[%s1 + $0x78] sm:$0xf]
      %v691 = vld [vmem:[%s1 + $0x80] sm:$0xf]
      %v692 = vld [vmem:[%s1 + $0x88] sm:$0xf]
      %v693 = vld [vmem:[%s1 + $0x90] sm:$0xf]
      %v694 = vld [vmem:[%s1 + $0x98] sm:$0xf]
      %v695 = vld [vmem:[%s2 + $0x1] sm:$0x1]
      %v696 = vlaneseq
      %v697 = vshrl.u32 %v696, 7
      %v698 = vsub.s32 0, %v697
      %v699 = vrot.slane %v695, %v698
      %v708 = vunpack.c.l.b16 %v687
      %v709 = vunpack.c.l.b16 %v688
      %v710 = vunpack.c.l.b16 %v689
      %v711 = vunpack.c.l.b16 %v690
      %v712 = vunpack.c.l.b16 %v691
      %v713 = vunpack.c.l.b16 %v692
      %v714 = vunpack.c.l.b16 %v693
      %v715 = vunpack.c.l.b16 %v694
      %v716 = vpack.c.b16 %v709, %v708
      %v717 = vpack.c.b16 %v711, %v710
      %v718 = vpack.c.b16 %v713, %v712
      %v719 = vpack.c.b16 %v715, %v714
      %vm724 = vcmask 523264
      %v726 = vsel %vm724, %v671, 0
      %v729 = vsel %vm724, %v672, 0
      %v732 = vsel %vm724, %v673, 0
      %v735 = vsel %vm724, %v674, 0
      %v738 = vsel %vm724, %v675, 0
      %v741 = vsel %vm724, %v676, 0
      %v744 = vsel %vm724, %v677, 0
      %v747 = vsel %vm724, %v678, 0
      %v750 = vsel %vm724, %v679, 0
      %v753 = vsel %vm724, %v680, 0
      %v756 = vsel %vm724, %v681, 0
      %v759 = vsel %vm724, %v682, 0
      %v762 = vsel %vm724, %v683, 0
      %v765 = vsel %vm724, %v684, 0
      %v768 = vsel %vm724, %v685, 0
      %v771 = vsel %vm724, %v686, 0
      %773 = vmatprep.subr.bf16.mxu0 0
      %774 = vmatpush1.bf16.msra.mxu0 0
      %775 = vmatprep.subr.bf16.mxu0 0
      %776 = vmatpush1.bf16.msra.mxu0 0
      %777 = vmatprep.subr.bf16.mxu0 0
      %778 = vmatpush1.bf16.msra.mxu0 0
      %779 = vmatprep.subr.bf16.mxu0 0
      %780 = vmatpush1.bf16.msra.mxu0 0
      %781 = vmatprep.subr.bf16.mxu0 0
      %782 = vmatpush1.bf16.msra.mxu0 %v719
      %783 = vmatprep.subr.bf16.mxu0 0
      %784 = vmatpush1.bf16.msra.mxu0 %v718
      %785 = vmatprep.subr.bf16.mxu0 0
      %786 = vmatpush1.bf16.msra.mxu0 %v717
      %787 = vmatprep.subr.bf16.mxu0 0
      %788 = vmatpush1.bf16.msra.mxu0 %v716
      %789 = vmatprep.subr.bf16.mxu0 0
      %790 = vmatpush2.bf16.msra.mxu0 0
      %791 = vmatprep.subr.bf16.mxu0 0
      %792 = vmatpush2.bf16.msra.mxu0 0
      %793 = vmatprep.subr.bf16.mxu0 0
      %794 = vmatpush2.bf16.msra.mxu0 0
      %795 = vmatprep.subr.bf16.mxu0 0
      %796 = vmatpush2.bf16.msra.mxu0 0
      %797 = vmatprep.subr.bf16.mxu0 0
      %798 = vmatpush2.bf16.msra.mxu0 0
      %799 = vmatprep.subr.bf16.mxu0 0
      %800 = vmatpush2.bf16.msra.mxu0 0
      %801 = vmatprep.subr.bf16.mxu0 0
      %802 = vmatpush2.bf16.msra.mxu0 0
      %803 = vmatprep.subr.bf16.mxu0 0
      %804 = vmatpush2.bf16.msra.mxu0 0
      %805 = vmatprep.mubr.bf16.mxu0 0
      %806 = vmatmul.mubr.bf16.gmra.mxu0 %v726
      %v807 = vpop.f32.mrf.mxu0
      %v808 = vadd.f32 %v699, %v807
      %v809 = vpop.f32.mrf.mxu0
      %v810 = vpop.f32.mrf.mxu0
      %v811 = vadd.f32 %v699, %v810
      %v812 = vpop.f32.mrf.mxu0
      %813 = vmatprep.mubr.bf16.mxu0 0
      %814 = vmatmul.mubr.bf16.gmra.mxu0 %v729
      %v815 = vpop.f32.mrf.mxu0
      %v816 = vadd.f32 %v699, %v815
      %v817 = vpop.f32.mrf.mxu0
      %v818 = vpop.f32.mrf.mxu0
      %v819 = vadd.f32 %v699, %v818
      %v820 = vpop.f32.mrf.mxu0
      %821 = vmatprep.mubr.bf16.mxu0 0
      %822 = vmatmul.mubr.bf16.gmra.mxu0 %v732
      %v823 = vpop.f32.mrf.mxu0
      %v824 = vadd.f32 %v699, %v823
      %v825 = vpop.f32.mrf.mxu0
      %v826 = vpop.f32.mrf.mxu0
      %v827 = vadd.f32 %v699, %v826
      %v828 = vpop.f32.mrf.mxu0
      %829 = vmatprep.mubr.bf16.mxu0 0
      %830 = vmatmul.mubr.bf16.gmra.mxu0 %v735
      %v831 = vpop.f32.mrf.mxu0
      %v832 = vadd.f32 %v699, %v831
      %v833 = vpop.f32.mrf.mxu0
      %v834 = vpop.f32.mrf.mxu0
      %v835 = vadd.f32 %v699, %v834
      %v836 = vpop.f32.mrf.mxu0
      %837 = vmatprep.mubr.bf16.mxu0 0
      %838 = vmatmul.mubr.bf16.gmra.mxu0 %v738
      %v839 = vpop.f32.mrf.mxu0
      %v840 = vadd.f32 %v699, %v839
      %v841 = vpop.f32.mrf.mxu0
      %v842 = vpop.f32.mrf.mxu0
      %v843 = vadd.f32 %v699, %v842
      %v844 = vpop.f32.mrf.mxu0
      %845 = vmatprep.mubr.bf16.mxu0 0
      %846 = vmatmul.mubr.bf16.gmra.mxu0 %v741
      %v847 = vpop.f32.mrf.mxu0
      %v848 = vadd.f32 %v699, %v847
      %v849 = vpop.f32.mrf.mxu0
      %v850 = vpop.f32.mrf.mxu0
      %v851 = vadd.f32 %v699, %v850
      %v852 = vpop.f32.mrf.mxu0
      %853 = vmatprep.mubr.bf16.mxu0 0
      %854 = vmatmul.mubr.bf16.gmra.mxu0 %v744
      %v855 = vpop.f32.mrf.mxu0
      %v856 = vadd.f32 %v699, %v855
      %v857 = vpop.f32.mrf.mxu0
      %v858 = vpop.f32.mrf.mxu0
      %v859 = vadd.f32 %v699, %v858
      %v860 = vpop.f32.mrf.mxu0
      %861 = vmatprep.mubr.bf16.mxu0 0
      %862 = vmatmul.mubr.bf16.gmra.mxu0 %v747
      %v863 = vpop.f32.mrf.mxu0
      %v864 = vadd.f32 %v699, %v863
      %v865 = vpop.f32.mrf.mxu0
      %v866 = vpop.f32.mrf.mxu0
      %v867 = vadd.f32 %v699, %v866
      %v868 = vpop.f32.mrf.mxu0
      %869 = vmatprep.mubr.bf16.mxu0 0
      %870 = vmatmul.mubr.bf16.gmra.mxu0 %v750
      %v871 = vpop.f32.mrf.mxu0
      %v872 = vadd.f32 %v699, %v871
      %v873 = vpop.f32.mrf.mxu0
      %v874 = vpop.f32.mrf.mxu0
      %v875 = vadd.f32 %v699, %v874
      %v876 = vpop.f32.mrf.mxu0
      %877 = vmatprep.mubr.bf16.mxu0 0
      %878 = vmatmul.mubr.bf16.gmra.mxu0 %v753
      %v879 = vpop.f32.mrf.mxu0
      %v880 = vadd.f32 %v699, %v879
      %v881 = vpop.f32.mrf.mxu0
      %v882 = vpop.f32.mrf.mxu0
      %v883 = vadd.f32 %v699, %v882
      %v884 = vpop.f32.mrf.mxu0
      %885 = vmatprep.mubr.bf16.mxu0 0
      %886 = vmatmul.mubr.bf16.gmra.mxu0 %v756
      %v887 = vpop.f32.mrf.mxu0
      %v888 = vadd.f32 %v699, %v887
      %v889 = vpop.f32.mrf.mxu0
      %v890 = vpop.f32.mrf.mxu0
      %v891 = vadd.f32 %v699, %v890
      %v892 = vpop.f32.mrf.mxu0
      %893 = vmatprep.mubr.bf16.mxu0 0
      %894 = vmatmul.mubr.bf16.gmra.mxu0 %v759
      %v895 = vpop.f32.mrf.mxu0
      %v896 = vadd.f32 %v699, %v895
      %v897 = vpop.f32.mrf.mxu0
      %v898 = vpop.f32.mrf.mxu0
      %v899 = vadd.f32 %v699, %v898
      %v900 = vpop.f32.mrf.mxu0
      %901 = vmatprep.mubr.bf16.mxu0 0
      %902 = vmatmul.mubr.bf16.gmra.mxu0 %v762
      %v903 = vpop.f32.mrf.mxu0
      %v904 = vadd.f32 %v699, %v903
      %v905 = vpop.f32.mrf.mxu0
      %v906 = vpop.f32.mrf.mxu0
      %v907 = vadd.f32 %v699, %v906
      %v908 = vpop.f32.mrf.mxu0
      %909 = vmatprep.mubr.bf16.mxu0 0
      %910 = vmatmul.mubr.bf16.gmra.mxu0 %v765
      %v911 = vpop.f32.mrf.mxu0
      %v912 = vadd.f32 %v699, %v911
      %v913 = vpop.f32.mrf.mxu0
      %v914 = vpop.f32.mrf.mxu0
      %v915 = vadd.f32 %v699, %v914
      %v916 = vpop.f32.mrf.mxu0
      %917 = vmatprep.mubr.bf16.mxu0 0
      %918 = vmatmul.mubr.bf16.gmra.mxu0 %v768
      %v919 = vpop.f32.mrf.mxu0
      %v920 = vadd.f32 %v699, %v919
      %v921 = vpop.f32.mrf.mxu0
      %v922 = vpop.f32.mrf.mxu0
      %v923 = vadd.f32 %v699, %v922
      %v924 = vpop.f32.mrf.mxu0
      %925 = vmatprep.mubr.bf16.mxu0 0
      %926 = vmatmul.mubr.bf16.gmra.mxu0 %v771
      %v927 = vpop.f32.mrf.mxu0
      %v928 = vadd.f32 %v699, %v927
      %v929 = vpop.f32.mrf.mxu0
      %v930 = vpop.f32.mrf.mxu0
      %v931 = vadd.f32 %v699, %v930
      %v932 = vpop.f32.mrf.mxu0
      %933 = vdwg.mxu0
      %v934 = vmax.f32 %v808, 0.0
      %v935 = vmax.f32 %v811, 0.0
      %v936 = vmax.f32 %v816, 0.0
      %v937 = vmax.f32 %v819, 0.0
      %v938 = vmax.f32 %v824, 0.0
      %v939 = vmax.f32 %v827, 0.0
      %v940 = vmax.f32 %v832, 0.0
      %v941 = vmax.f32 %v835, 0.0
      %v942 = vmax.f32 %v840, 0.0
      %v943 = vmax.f32 %v843, 0.0
      %v944 = vmax.f32 %v848, 0.0
      %v945 = vmax.f32 %v851, 0.0
      %v946 = vmax.f32 %v856, 0.0
      %v947 = vmax.f32 %v859, 0.0
      %v948 = vmax.f32 %v864, 0.0
      %v949 = vmax.f32 %v867, 0.0
      %v950 = vmax.f32 %v872, 0.0
      %v951 = vmax.f32 %v875, 0.0
      %v952 = vmax.f32 %v880, 0.0
      %v953 = vmax.f32 %v883, 0.0
      %v954 = vmax.f32 %v888, 0.0
      %v955 = vmax.f32 %v891, 0.0
      %v956 = vmax.f32 %v896, 0.0
      %v957 = vmax.f32 %v899, 0.0
      %v958 = vmax.f32 %v904, 0.0
      %v959 = vmax.f32 %v907, 0.0
      %v960 = vmax.f32 %v912, 0.0
      %v961 = vmax.f32 %v915, 0.0
      %v962 = vmax.f32 %v920, 0.0
      %v963 = vmax.f32 %v923, 0.0
      %v964 = vmax.f32 %v928, 0.0
      %v965 = vmax.f32 %v931, 0.0
      %v966 = vpack.c.bf16 %v935, %v934
      %v967 = vpack.c.bf16 %v937, %v936
      %v968 = vpack.c.bf16 %v939, %v938
      %v969 = vpack.c.bf16 %v941, %v940
      %v970 = vpack.c.bf16 %v943, %v942
      %v971 = vpack.c.bf16 %v945, %v944
      %v972 = vpack.c.bf16 %v947, %v946
      %v973 = vpack.c.bf16 %v949, %v948
      %v974 = vpack.c.bf16 %v951, %v950
      %v975 = vpack.c.bf16 %v953, %v952
      %v976 = vpack.c.bf16 %v955, %v954
      %v977 = vpack.c.bf16 %v957, %v956
      %v978 = vpack.c.bf16 %v959, %v958
      %v979 = vpack.c.bf16 %v961, %v960
      %v980 = vpack.c.bf16 %v963, %v962
      %v981 = vpack.c.bf16 %v965, %v964
      %v982 = vld [vmem:[%s1 + $0xa0] sm:$0xf]
      %v983 = vld [vmem:[%s1 + $0xa8] sm:$0xf]
      %v984 = vld [vmem:[%s1 + $0xb0] sm:$0xf]
      %v985 = vld [vmem:[%s1 + $0xb8] sm:$0xf]
      %v986 = vld [vmem:[%s1 + $0xc0] sm:$0xf]
      %v987 = vld [vmem:[%s1 + $0xc8] sm:$0xf]
      %v988 = vld [vmem:[%s1 + $0xd0] sm:$0xf]
      %v989 = vld [vmem:[%s1 + $0xd8] sm:$0xf]
      %v990 = vld [vmem:[%s2 + $0x2] sm:$0x1]
      %v991 = vlaneseq
      %v992 = vshrl.u32 %v991, 7
      %v993 = vsub.s32 0, %v992
      %v994 = vrot.slane %v990, %v993
      %v1003 = vunpack.c.l.b16 %v982
      %v1004 = vunpack.c.l.b16 %v983
      %v1005 = vunpack.c.l.b16 %v984
      %v1006 = vunpack.c.l.b16 %v985
      %v1007 = vunpack.c.l.b16 %v986
      %v1008 = vunpack.c.l.b16 %v987
      %v1009 = vunpack.c.l.b16 %v988
      %v1010 = vunpack.c.l.b16 %v989
      %v1011 = vpack.c.b16 %v1004, %v1003
      %v1012 = vpack.c.b16 %v1006, %v1005
      %v1013 = vpack.c.b16 %v1008, %v1007
      %v1014 = vpack.c.b16 %v1010, %v1009
      %v1020 = vsel %vm724, %v966, 0
      %v1023 = vsel %vm724, %v967, 0
      %v1026 = vsel %vm724, %v968, 0
      %v1029 = vsel %vm724, %v969, 0
      %v1032 = vsel %vm724, %v970, 0
      %v1035 = vsel %vm724, %v971, 0
      %v1038 = vsel %vm724, %v972, 0
      %v1041 = vsel %vm724, %v973, 0
      %v1044 = vsel %vm724, %v974, 0
      %v1047 = vsel %vm724, %v975, 0
      %v1050 = vsel %vm724, %v976, 0
      %v1053 = vsel %vm724, %v977, 0
      %v1056 = vsel %vm724, %v978, 0
      %v1059 = vsel %vm724, %v979, 0
      %v1062 = vsel %vm724, %v980, 0
      %v1065 = vsel %vm724, %v981, 0
      %1067 = vmatprep.subr.bf16.mxu0 0
      %1068 = vmatpush1.bf16.msra.mxu0 0
      %1069 = vmatprep.subr.bf16.mxu0 0
      %1070 = vmatpush1.bf16.msra.mxu0 0
      %1071 = vmatprep.subr.bf16.mxu0 0
      %1072 = vmatpush1.bf16.msra.mxu0 0
      %1073 = vmatprep.subr.bf16.mxu0 0
      %1074 = vmatpush1.bf16.msra.mxu0 0
      %1075 = vmatprep.subr.bf16.mxu0 0
      %1076 = vmatpush1.bf16.msra.mxu0 %v1014
      %1077 = vmatprep.subr.bf16.mxu0 0
      %1078 = vmatpush1.bf16.msra.mxu0 %v1013
      %1079 = vmatprep.subr.bf16.mxu0 0
      %1080 = vmatpush1.bf16.msra.mxu0 %v1012
      %1081 = vmatprep.subr.bf16.mxu0 0
      %1082 = vmatpush1.bf16.msra.mxu0 %v1011
      %1083 = vmatprep.subr.bf16.mxu0 0
      %1084 = vmatpush2.bf16.msra.mxu0 0
      %1085 = vmatprep.subr.bf16.mxu0 0
      %1086 = vmatpush2.bf16.msra.mxu0 0
      %1087 = vmatprep.subr.bf16.mxu0 0
      %1088 = vmatpush2.bf16.msra.mxu0 0
      %1089 = vmatprep.subr.bf16.mxu0 0
      %1090 = vmatpush2.bf16.msra.mxu0 0
      %1091 = vmatprep.subr.bf16.mxu0 0
      %1092 = vmatpush2.bf16.msra.mxu0 0
      %1093 = vmatprep.subr.bf16.mxu0 0
      %1094 = vmatpush2.bf16.msra.mxu0 0
      %1095 = vmatprep.subr.bf16.mxu0 0
      %1096 = vmatpush2.bf16.msra.mxu0 0
      %1097 = vmatprep.subr.bf16.mxu0 0
      %1098 = vmatpush2.bf16.msra.mxu0 0
      %1099 = vmatprep.mubr.bf16.mxu0 0
      %1100 = vmatmul.mubr.bf16.gmra.mxu0 %v1020
      %v1101 = vpop.f32.mrf.mxu0
      %v1102 = vadd.f32 %v994, %v1101
      %v1103 = vpop.f32.mrf.mxu0
      %v1104 = vpop.f32.mrf.mxu0
      %v1105 = vadd.f32 %v994, %v1104
      %v1106 = vpop.f32.mrf.mxu0
      %1107 = vmatprep.mubr.bf16.mxu0 0
      %1108 = vmatmul.mubr.bf16.gmra.mxu0 %v1023
      %v1109 = vpop.f32.mrf.mxu0
      %v1110 = vadd.f32 %v994, %v1109
      %v1111 = vpop.f32.mrf.mxu0
      %v1112 = vpop.f32.mrf.mxu0
      %v1113 = vadd.f32 %v994, %v1112
      %v1114 = vpop.f32.mrf.mxu0
      %1115 = vmatprep.mubr.bf16.mxu0 0
      %1116 = vmatmul.mubr.bf16.gmra.mxu0 %v1026
      %v1117 = vpop.f32.mrf.mxu0
      %v1118 = vadd.f32 %v994, %v1117
      %v1119 = vpop.f32.mrf.mxu0
      %v1120 = vpop.f32.mrf.mxu0
      %v1121 = vadd.f32 %v994, %v1120
      %v1122 = vpop.f32.mrf.mxu0
      %1123 = vmatprep.mubr.bf16.mxu0 0
      %1124 = vmatmul.mubr.bf16.gmra.mxu0 %v1029
      %v1125 = vpop.f32.mrf.mxu0
      %v1126 = vadd.f32 %v994, %v1125
      %v1127 = vpop.f32.mrf.mxu0
      %v1128 = vpop.f32.mrf.mxu0
      %v1129 = vadd.f32 %v994, %v1128
      %v1130 = vpop.f32.mrf.mxu0
      %1131 = vmatprep.mubr.bf16.mxu0 0
      %1132 = vmatmul.mubr.bf16.gmra.mxu0 %v1032
      %v1133 = vpop.f32.mrf.mxu0
      %v1134 = vadd.f32 %v994, %v1133
      %v1135 = vpop.f32.mrf.mxu0
      %v1136 = vpop.f32.mrf.mxu0
      %v1137 = vadd.f32 %v994, %v1136
      %v1138 = vpop.f32.mrf.mxu0
      %1139 = vmatprep.mubr.bf16.mxu0 0
      %1140 = vmatmul.mubr.bf16.gmra.mxu0 %v1035
      %v1141 = vpop.f32.mrf.mxu0
      %v1142 = vadd.f32 %v994, %v1141
      %v1143 = vpop.f32.mrf.mxu0
      %v1144 = vpop.f32.mrf.mxu0
      %v1145 = vadd.f32 %v994, %v1144
      %v1146 = vpop.f32.mrf.mxu0
      %1147 = vmatprep.mubr.bf16.mxu0 0
      %1148 = vmatmul.mubr.bf16.gmra.mxu0 %v1038
      %v1149 = vpop.f32.mrf.mxu0
      %v1150 = vadd.f32 %v994, %v1149
      %v1151 = vpop.f32.mrf.mxu0
      %v1152 = vpop.f32.mrf.mxu0
      %v1153 = vadd.f32 %v994, %v1152
      %v1154 = vpop.f32.mrf.mxu0
      %1155 = vmatprep.mubr.bf16.mxu0 0
      %1156 = vmatmul.mubr.bf16.gmra.mxu0 %v1041
      %v1157 = vpop.f32.mrf.mxu0
      %v1158 = vadd.f32 %v994, %v1157
      %v1159 = vpop.f32.mrf.mxu0
      %v1160 = vpop.f32.mrf.mxu0
      %v1161 = vadd.f32 %v994, %v1160
      %v1162 = vpop.f32.mrf.mxu0
      %1163 = vmatprep.mubr.bf16.mxu0 0
      %1164 = vmatmul.mubr.bf16.gmra.mxu0 %v1044
      %v1165 = vpop.f32.mrf.mxu0
      %v1166 = vadd.f32 %v994, %v1165
      %v1167 = vpop.f32.mrf.mxu0
      %v1168 = vpop.f32.mrf.mxu0
      %v1169 = vadd.f32 %v994, %v1168
      %v1170 = vpop.f32.mrf.mxu0
      %1171 = vmatprep.mubr.bf16.mxu0 0
      %1172 = vmatmul.mubr.bf16.gmra.mxu0 %v1047
      %v1173 = vpop.f32.mrf.mxu0
      %v1174 = vadd.f32 %v994, %v1173
      %v1175 = vpop.f32.mrf.mxu0
      %v1176 = vpop.f32.mrf.mxu0
      %v1177 = vadd.f32 %v994, %v1176
      %v1178 = vpop.f32.mrf.mxu0
      %1179 = vmatprep.mubr.bf16.mxu0 0
      %1180 = vmatmul.mubr.bf16.gmra.mxu0 %v1050
      %v1181 = vpop.f32.mrf.mxu0
      %v1182 = vadd.f32 %v994, %v1181
      %v1183 = vpop.f32.mrf.mxu0
      %v1184 = vpop.f32.mrf.mxu0
      %v1185 = vadd.f32 %v994, %v1184
      %v1186 = vpop.f32.mrf.mxu0
      %1187 = vmatprep.mubr.bf16.mxu0 0
      %1188 = vmatmul.mubr.bf16.gmra.mxu0 %v1053
      %v1189 = vpop.f32.mrf.mxu0
      %v1190 = vadd.f32 %v994, %v1189
      %v1191 = vpop.f32.mrf.mxu0
      %v1192 = vpop.f32.mrf.mxu0
      %v1193 = vadd.f32 %v994, %v1192
      %v1194 = vpop.f32.mrf.mxu0
      %1195 = vmatprep.mubr.bf16.mxu0 0
      %1196 = vmatmul.mubr.bf16.gmra.mxu0 %v1056
      %v1197 = vpop.f32.mrf.mxu0
      %v1198 = vadd.f32 %v994, %v1197
      %v1199 = vpop.f32.mrf.mxu0
      %v1200 = vpop.f32.mrf.mxu0
      %v1201 = vadd.f32 %v994, %v1200
      %v1202 = vpop.f32.mrf.mxu0
      %1203 = vmatprep.mubr.bf16.mxu0 0
      %1204 = vmatmul.mubr.bf16.gmra.mxu0 %v1059
      %v1205 = vpop.f32.mrf.mxu0
      %v1206 = vadd.f32 %v994, %v1205
      %v1207 = vpop.f32.mrf.mxu0
      %v1208 = vpop.f32.mrf.mxu0
      %v1209 = vadd.f32 %v994, %v1208
      %v1210 = vpop.f32.mrf.mxu0
      %1211 = vmatprep.mubr.bf16.mxu0 0
      %1212 = vmatmul.mubr.bf16.gmra.mxu0 %v1062
      %v1213 = vpop.f32.mrf.mxu0
      %v1214 = vadd.f32 %v994, %v1213
      %v1215 = vpop.f32.mrf.mxu0
      %v1216 = vpop.f32.mrf.mxu0
      %v1217 = vadd.f32 %v994, %v1216
      %v1218 = vpop.f32.mrf.mxu0
      %1219 = vmatprep.mubr.bf16.mxu0 0
      %1220 = vmatmul.mubr.bf16.gmra.mxu0 %v1065
      %v1221 = vpop.f32.mrf.mxu0
      %v1222 = vadd.f32 %v994, %v1221
      %v1223 = vpop.f32.mrf.mxu0
      %v1224 = vpop.f32.mrf.mxu0
      %v1225 = vadd.f32 %v994, %v1224
      %v1226 = vpop.f32.mrf.mxu0
      %1227 = vdwg.mxu0
      %v1228 = vmax.f32 %v1102, 0.0
      %v1229 = vmax.f32 %v1105, 0.0
      %v1230 = vmax.f32 %v1110, 0.0
      %v1231 = vmax.f32 %v1113, 0.0
      %v1232 = vmax.f32 %v1118, 0.0
      %v1233 = vmax.f32 %v1121, 0.0
      %v1234 = vmax.f32 %v1126, 0.0
      %v1235 = vmax.f32 %v1129, 0.0
      %v1236 = vmax.f32 %v1134, 0.0
      %v1237 = vmax.f32 %v1137, 0.0
      %v1238 = vmax.f32 %v1142, 0.0
      %v1239 = vmax.f32 %v1145, 0.0
      %v1240 = vmax.f32 %v1150, 0.0
      %v1241 = vmax.f32 %v1153, 0.0
      %v1242 = vmax.f32 %v1158, 0.0
      %v1243 = vmax.f32 %v1161, 0.0
      %v1244 = vmax.f32 %v1166, 0.0
      %v1245 = vmax.f32 %v1169, 0.0
      %v1246 = vmax.f32 %v1174, 0.0
      %v1247 = vmax.f32 %v1177, 0.0
      %v1248 = vmax.f32 %v1182, 0.0
      %v1249 = vmax.f32 %v1185, 0.0
      %v1250 = vmax.f32 %v1190, 0.0
      %v1251 = vmax.f32 %v1193, 0.0
      %v1252 = vmax.f32 %v1198, 0.0
      %v1253 = vmax.f32 %v1201, 0.0
      %v1254 = vmax.f32 %v1206, 0.0
      %v1255 = vmax.f32 %v1209, 0.0
      %v1256 = vmax.f32 %v1214, 0.0
      %v1257 = vmax.f32 %v1217, 0.0
      %v1258 = vmax.f32 %v1222, 0.0
      %v1259 = vmax.f32 %v1225, 0.0
      %v1260 = vpack.c.bf16 %v1229, %v1228
      %v1261 = vpack.c.bf16 %v1231, %v1230
      %v1262 = vpack.c.bf16 %v1233, %v1232
      %v1263 = vpack.c.bf16 %v1235, %v1234
      %v1264 = vpack.c.bf16 %v1237, %v1236
      %v1265 = vpack.c.bf16 %v1239, %v1238
      %v1266 = vpack.c.bf16 %v1241, %v1240
      %v1267 = vpack.c.bf16 %v1243, %v1242
      %v1268 = vpack.c.bf16 %v1245, %v1244
      %v1269 = vpack.c.bf16 %v1247, %v1246
      %v1270 = vpack.c.bf16 %v1249, %v1248
      %v1271 = vpack.c.bf16 %v1251, %v1250
      %v1272 = vpack.c.bf16 %v1253, %v1252
      %v1273 = vpack.c.bf16 %v1255, %v1254
      %v1274 = vpack.c.bf16 %v1257, %v1256
      %v1275 = vpack.c.bf16 %v1259, %v1258
      %v1276 = vld [vmem:[%s1 + $0xe0] sm:$0xf]
      %v1277 = vld [vmem:[%s1 + $0xe8] sm:$0xf]
      %v1278 = vld [vmem:[%s1 + $0xf0] sm:$0xf]
      %v1279 = vld [vmem:[%s1 + $0xf8] sm:$0xf]
      %v1280 = vld [vmem:[%s1 + $0x100] sm:$0xf]
      %v1281 = vld [vmem:[%s1 + $0x108] sm:$0xf]
      %v1282 = vld [vmem:[%s1 + $0x110] sm:$0xf]
      %v1283 = vld [vmem:[%s1 + $0x118] sm:$0xf]
      %v1284 = vld [vmem:[%s2 + $0x3] sm:$0x1]
      %v1285 = vlaneseq
      %v1286 = vshrl.u32 %v1285, 7
      %v1287 = vsub.s32 0, %v1286
      %v1288 = vrot.slane %v1284, %v1287
      %v1297 = vunpack.c.l.b16 %v1276
      %v1298 = vunpack.c.l.b16 %v1277
      %v1299 = vunpack.c.l.b16 %v1278
      %v1300 = vunpack.c.l.b16 %v1279
      %v1301 = vunpack.c.l.b16 %v1280
      %v1302 = vunpack.c.l.b16 %v1281
      %v1303 = vunpack.c.l.b16 %v1282
      %v1304 = vunpack.c.l.b16 %v1283
      %v1305 = vpack.c.b16 %v1298, %v1297
      %v1306 = vpack.c.b16 %v1300, %v1299
      %v1307 = vpack.c.b16 %v1302, %v1301
      %v1308 = vpack.c.b16 %v1304, %v1303
      %v1314 = vsel %vm724, %v1260, 0
      %v1317 = vsel %vm724, %v1261, 0
      %v1320 = vsel %vm724, %v1262, 0
      %v1323 = vsel %vm724, %v1263, 0
      %v1326 = vsel %vm724, %v1264, 0
      %v1329 = vsel %vm724, %v1265, 0
      %v1332 = vsel %vm724, %v1266, 0
      %v1335 = vsel %vm724, %v1267, 0
      %v1338 = vsel %vm724, %v1268, 0
      %v1341 = vsel %vm724, %v1269, 0
      %v1344 = vsel %vm724, %v1270, 0
      %v1347 = vsel %vm724, %v1271, 0
      %v1350 = vsel %vm724, %v1272, 0
      %v1353 = vsel %vm724, %v1273, 0
      %v1356 = vsel %vm724, %v1274, 0
      %v1359 = vsel %vm724, %v1275, 0
      %1361 = vmatprep.subr.bf16.mxu0 0
      %1362 = vmatpush1.bf16.msra.mxu0 0
      %1363 = vmatprep.subr.bf16.mxu0 0
      %1364 = vmatpush1.bf16.msra.mxu0 0
      %1365 = vmatprep.subr.bf16.mxu0 0
      %1366 = vmatpush1.bf16.msra.mxu0 0
      %1367 = vmatprep.subr.bf16.mxu0 0
      %1368 = vmatpush1.bf16.msra.mxu0 0
      %1369 = vmatprep.subr.bf16.mxu0 0
      %1370 = vmatpush1.bf16.msra.mxu0 %v1308
      %1371 = vmatprep.subr.bf16.mxu0 0
      %1372 = vmatpush1.bf16.msra.mxu0 %v1307
      %1373 = vmatprep.subr.bf16.mxu0 0
      %1374 = vmatpush1.bf16.msra.mxu0 %v1306
      %1375 = vmatprep.subr.bf16.mxu0 0
      %1376 = vmatpush1.bf16.msra.mxu0 %v1305
      %1377 = vmatprep.subr.bf16.mxu0 0
      %1378 = vmatpush2.bf16.msra.mxu0 0
      %1379 = vmatprep.subr.bf16.mxu0 0
      %1380 = vmatpush2.bf16.msra.mxu0 0
      %1381 = vmatprep.subr.bf16.mxu0 0
      %1382 = vmatpush2.bf16.msra.mxu0 0
      %1383 = vmatprep.subr.bf16.mxu0 0
      %1384 = vmatpush2.bf16.msra.mxu0 0
      %1385 = vmatprep.subr.bf16.mxu0 0
      %1386 = vmatpush2.bf16.msra.mxu0 0
      %1387 = vmatprep.subr.bf16.mxu0 0
      %1388 = vmatpush2.bf16.msra.mxu0 0
      %1389 = vmatprep.subr.bf16.mxu0 0
      %1390 = vmatpush2.bf16.msra.mxu0 0
      %1391 = vmatprep.subr.bf16.mxu0 0
      %1392 = vmatpush2.bf16.msra.mxu0 0
      %1393 = vmatprep.mubr.bf16.mxu0 0
      %1394 = vmatmul.mubr.bf16.gmra.mxu0 %v1314
      %v1395 = vpop.f32.mrf.mxu0
      %v1396 = vadd.f32 %v1288, %v1395
      %v1397 = vpop.f32.mrf.mxu0
      %v1398 = vpop.f32.mrf.mxu0
      %v1399 = vadd.f32 %v1288, %v1398
      %v1400 = vpop.f32.mrf.mxu0
      %1401 = vmatprep.mubr.bf16.mxu0 0
      %1402 = vmatmul.mubr.bf16.gmra.mxu0 %v1317
      %v1403 = vpop.f32.mrf.mxu0
      %v1404 = vadd.f32 %v1288, %v1403
      %v1405 = vpop.f32.mrf.mxu0
      %v1406 = vpop.f32.mrf.mxu0
      %v1407 = vadd.f32 %v1288, %v1406
      %v1408 = vpop.f32.mrf.mxu0
      %1409 = vmatprep.mubr.bf16.mxu0 0
      %1410 = vmatmul.mubr.bf16.gmra.mxu0 %v1320
      %v1411 = vpop.f32.mrf.mxu0
      %v1412 = vadd.f32 %v1288, %v1411
      %v1413 = vpop.f32.mrf.mxu0
      %v1414 = vpop.f32.mrf.mxu0
      %v1415 = vadd.f32 %v1288, %v1414
      %v1416 = vpop.f32.mrf.mxu0
      %1417 = vmatprep.mubr.bf16.mxu0 0
      %1418 = vmatmul.mubr.bf16.gmra.mxu0 %v1323
      %v1419 = vpop.f32.mrf.mxu0
      %v1420 = vadd.f32 %v1288, %v1419
      %v1421 = vpop.f32.mrf.mxu0
      %v1422 = vpop.f32.mrf.mxu0
      %v1423 = vadd.f32 %v1288, %v1422
      %v1424 = vpop.f32.mrf.mxu0
      %1425 = vmatprep.mubr.bf16.mxu0 0
      %1426 = vmatmul.mubr.bf16.gmra.mxu0 %v1326
      %v1427 = vpop.f32.mrf.mxu0
      %v1428 = vadd.f32 %v1288, %v1427
      %v1429 = vpop.f32.mrf.mxu0
      %v1430 = vpop.f32.mrf.mxu0
      %v1431 = vadd.f32 %v1288, %v1430
      %v1432 = vpop.f32.mrf.mxu0
      %1433 = vmatprep.mubr.bf16.mxu0 0
      %1434 = vmatmul.mubr.bf16.gmra.mxu0 %v1329
      %v1435 = vpop.f32.mrf.mxu0
      %v1436 = vadd.f32 %v1288, %v1435
      %v1437 = vpop.f32.mrf.mxu0
      %v1438 = vpop.f32.mrf.mxu0
      %v1439 = vadd.f32 %v1288, %v1438
      %v1440 = vpop.f32.mrf.mxu0
      %1441 = vmatprep.mubr.bf16.mxu0 0
      %1442 = vmatmul.mubr.bf16.gmra.mxu0 %v1332
      %v1443 = vpop.f32.mrf.mxu0
      %v1444 = vadd.f32 %v1288, %v1443
      %v1445 = vpop.f32.mrf.mxu0
      %v1446 = vpop.f32.mrf.mxu0
      %v1447 = vadd.f32 %v1288, %v1446
      %v1448 = vpop.f32.mrf.mxu0
      %1449 = vmatprep.mubr.bf16.mxu0 0
      %1450 = vmatmul.mubr.bf16.gmra.mxu0 %v1335
      %v1451 = vpop.f32.mrf.mxu0
      %v1452 = vadd.f32 %v1288, %v1451
      %v1453 = vpop.f32.mrf.mxu0
      %v1454 = vpop.f32.mrf.mxu0
      %v1455 = vadd.f32 %v1288, %v1454
      %v1456 = vpop.f32.mrf.mxu0
      %1457 = vmatprep.mubr.bf16.mxu0 0
      %1458 = vmatmul.mubr.bf16.gmra.mxu0 %v1338
      %v1459 = vpop.f32.mrf.mxu0
      %v1460 = vadd.f32 %v1288, %v1459
      %v1461 = vpop.f32.mrf.mxu0
      %v1462 = vpop.f32.mrf.mxu0
      %v1463 = vadd.f32 %v1288, %v1462
      %v1464 = vpop.f32.mrf.mxu0
      %1465 = vmatprep.mubr.bf16.mxu0 0
      %1466 = vmatmul.mubr.bf16.gmra.mxu0 %v1341
      %v1467 = vpop.f32.mrf.mxu0
      %v1468 = vadd.f32 %v1288, %v1467
      %v1469 = vpop.f32.mrf.mxu0
      %v1470 = vpop.f32.mrf.mxu0
      %v1471 = vadd.f32 %v1288, %v1470
      %v1472 = vpop.f32.mrf.mxu0
      %1473 = vmatprep.mubr.bf16.mxu0 0
      %1474 = vmatmul.mubr.bf16.gmra.mxu0 %v1344
      %v1475 = vpop.f32.mrf.mxu0
      %v1476 = vadd.f32 %v1288, %v1475
      %v1477 = vpop.f32.mrf.mxu0
      %v1478 = vpop.f32.mrf.mxu0
      %v1479 = vadd.f32 %v1288, %v1478
      %v1480 = vpop.f32.mrf.mxu0
      %1481 = vmatprep.mubr.bf16.mxu0 0
      %1482 = vmatmul.mubr.bf16.gmra.mxu0 %v1347
      %v1483 = vpop.f32.mrf.mxu0
      %v1484 = vadd.f32 %v1288, %v1483
      %v1485 = vpop.f32.mrf.mxu0
      %v1486 = vpop.f32.mrf.mxu0
      %v1487 = vadd.f32 %v1288, %v1486
      %v1488 = vpop.f32.mrf.mxu0
      %1489 = vmatprep.mubr.bf16.mxu0 0
      %1490 = vmatmul.mubr.bf16.gmra.mxu0 %v1350
      %v1491 = vpop.f32.mrf.mxu0
      %v1492 = vadd.f32 %v1288, %v1491
      %v1493 = vpop.f32.mrf.mxu0
      %v1494 = vpop.f32.mrf.mxu0
      %v1495 = vadd.f32 %v1288, %v1494
      %v1496 = vpop.f32.mrf.mxu0
      %1497 = vmatprep.mubr.bf16.mxu0 0
      %1498 = vmatmul.mubr.bf16.gmra.mxu0 %v1353
      %v1499 = vpop.f32.mrf.mxu0
      %v1500 = vadd.f32 %v1288, %v1499
      %v1501 = vpop.f32.mrf.mxu0
      %v1502 = vpop.f32.mrf.mxu0
      %v1503 = vadd.f32 %v1288, %v1502
      %v1504 = vpop.f32.mrf.mxu0
      %1505 = vmatprep.mubr.bf16.mxu0 0
      %1506 = vmatmul.mubr.bf16.gmra.mxu0 %v1356
      %v1507 = vpop.f32.mrf.mxu0
      %v1508 = vadd.f32 %v1288, %v1507
      %v1509 = vpop.f32.mrf.mxu0
      %v1510 = vpop.f32.mrf.mxu0
      %v1511 = vadd.f32 %v1288, %v1510
      %v1512 = vpop.f32.mrf.mxu0
      %1513 = vmatprep.mubr.bf16.mxu0 0
      %1514 = vmatmul.mubr.bf16.gmra.mxu0 %v1359
      %v1515 = vpop.f32.mrf.mxu0
      %v1516 = vadd.f32 %v1288, %v1515
      %v1517 = vpop.f32.mrf.mxu0
      %v1518 = vpop.f32.mrf.mxu0
      %v1519 = vadd.f32 %v1288, %v1518
      %v1520 = vpop.f32.mrf.mxu0
      %1521 = vdwg.mxu0
      %v1522 = vmax.f32 %v1396, 0.0
      %v1523 = vmax.f32 %v1399, 0.0
      %v1524 = vmax.f32 %v1404, 0.0
      %v1525 = vmax.f32 %v1407, 0.0
      %v1526 = vmax.f32 %v1412, 0.0
      %v1527 = vmax.f32 %v1415, 0.0
      %v1528 = vmax.f32 %v1420, 0.0
      %v1529 = vmax.f32 %v1423, 0.0
      %v1530 = vmax.f32 %v1428, 0.0
      %v1531 = vmax.f32 %v1431, 0.0
      %v1532 = vmax.f32 %v1436, 0.0
      %v1533 = vmax.f32 %v1439, 0.0
      %v1534 = vmax.f32 %v1444, 0.0
      %v1535 = vmax.f32 %v1447, 0.0
      %v1536 = vmax.f32 %v1452, 0.0
      %v1537 = vmax.f32 %v1455, 0.0
      %v1538 = vmax.f32 %v1460, 0.0
      %v1539 = vmax.f32 %v1463, 0.0
      %v1540 = vmax.f32 %v1468, 0.0
      %v1541 = vmax.f32 %v1471, 0.0
      %v1542 = vmax.f32 %v1476, 0.0
      %v1543 = vmax.f32 %v1479, 0.0
      %v1544 = vmax.f32 %v1484, 0.0
      %v1545 = vmax.f32 %v1487, 0.0
      %v1546 = vmax.f32 %v1492, 0.0
      %v1547 = vmax.f32 %v1495, 0.0
      %v1548 = vmax.f32 %v1500, 0.0
      %v1549 = vmax.f32 %v1503, 0.0
      %v1550 = vmax.f32 %v1508, 0.0
      %v1551 = vmax.f32 %v1511, 0.0
      %v1552 = vmax.f32 %v1516, 0.0
      %v1553 = vmax.f32 %v1519, 0.0
      %v1554 = vpack.c.bf16 %v1523, %v1522
      %v1555 = vpack.c.bf16 %v1525, %v1524
      %v1556 = vpack.c.bf16 %v1527, %v1526
      %v1557 = vpack.c.bf16 %v1529, %v1528
      %v1558 = vpack.c.bf16 %v1531, %v1530
      %v1559 = vpack.c.bf16 %v1533, %v1532
      %v1560 = vpack.c.bf16 %v1535, %v1534
      %v1561 = vpack.c.bf16 %v1537, %v1536
      %v1562 = vpack.c.bf16 %v1539, %v1538
      %v1563 = vpack.c.bf16 %v1541, %v1540
      %v1564 = vpack.c.bf16 %v1543, %v1542
      %v1565 = vpack.c.bf16 %v1545, %v1544
      %v1566 = vpack.c.bf16 %v1547, %v1546
      %v1567 = vpack.c.bf16 %v1549, %v1548
      %v1568 = vpack.c.bf16 %v1551, %v1550
      %v1569 = vpack.c.bf16 %v1553, %v1552
      %v1570 = vld [vmem:[%s1 + $0x120] sm:$0xf]
      %v1571 = vld [vmem:[%s1 + $0x128] sm:$0xf]
      %v1572 = vld [vmem:[%s1 + $0x130] sm:$0xf]
      %v1573 = vld [vmem:[%s1 + $0x138] sm:$0xf]
      %v1574 = vld [vmem:[%s1 + $0x140] sm:$0xf]
      %v1575 = vld [vmem:[%s1 + $0x148] sm:$0xf]
      %v1576 = vld [vmem:[%s1 + $0x150] sm:$0xf]
      %v1577 = vld [vmem:[%s1 + $0x158] sm:$0xf]
      %v1578 = vld [vmem:[#allocation2] sm:$0xff]
      %v1579 = vld [vmem:[#allocation2 + $0x8] sm:$0xff]
      %v1580 = vld [vmem:[#allocation2 + $0x10] sm:$0xff]
      %v1581 = vld [vmem:[#allocation2 + $0x18] sm:$0xff]
      %v1582 = vld [vmem:[#allocation2 + $0x20] sm:$0xff]
      %v1583 = vld [vmem:[#allocation2 + $0x28] sm:$0xff]
      %v1584 = vld [vmem:[#allocation2 + $0x30] sm:$0xff]
      %v1585 = vld [vmem:[#allocation2 + $0x38] sm:$0xff]
      %v1586 = vld [vmem:[#allocation2 + $0x40] sm:$0xff]
      %v1587 = vld [vmem:[#allocation2 + $0x48] sm:$0xff]
      %v1588 = vld [vmem:[#allocation2 + $0x50] sm:$0xff]
      %v1589 = vld [vmem:[#allocation2 + $0x58] sm:$0xff]
      %v1590 = vld [vmem:[#allocation2 + $0x60] sm:$0xff]
      %v1591 = vld [vmem:[#allocation2 + $0x68] sm:$0xff]
      %v1592 = vld [vmem:[#allocation2 + $0x70] sm:$0xff]
      %v1593 = vld [vmem:[#allocation2 + $0x78] sm:$0xff]
      %v1594 = vld [vmem:[#allocation2 + $0x80] sm:$0xff]
      %v1595 = vld [vmem:[#allocation2 + $0x88] sm:$0xff]
      %v1596 = vld [vmem:[#allocation2 + $0x90] sm:$0xff]
      %v1597 = vld [vmem:[#allocation2 + $0x98] sm:$0xff]
      %v1598 = vld [vmem:[#allocation2 + $0xa0] sm:$0xff]
      %v1599 = vld [vmem:[#allocation2 + $0xa8] sm:$0xff]
      %v1600 = vld [vmem:[#allocation2 + $0xb0] sm:$0xff]
      %v1601 = vld [vmem:[#allocation2 + $0xb8] sm:$0xff]
      %v1602 = vld [vmem:[#allocation2 + $0xc0] sm:$0xff]
      %v1603 = vld [vmem:[#allocation2 + $0xc8] sm:$0xff]
      %v1604 = vld [vmem:[#allocation2 + $0xd0] sm:$0xff]
      %v1605 = vld [vmem:[#allocation2 + $0xd8] sm:$0xff]
      %v1606 = vld [vmem:[#allocation2 + $0xe0] sm:$0xff]
      %v1607 = vld [vmem:[#allocation2 + $0xe8] sm:$0xff]
      %v1608 = vld [vmem:[#allocation2 + $0xf0] sm:$0xff]
      %v1609 = vld [vmem:[#allocation2 + $0xf8] sm:$0xff]
      %v1610 = vld [vmem:[#allocation2 + $0x100] sm:$0xff]
      %v1611 = vld [vmem:[#allocation2 + $0x108] sm:$0xff]
      %v1612 = vld [vmem:[#allocation2 + $0x110] sm:$0xff]
      %v1613 = vld [vmem:[#allocation2 + $0x118] sm:$0xff]
      %v1614 = vld [vmem:[#allocation2 + $0x120] sm:$0xff]
      %v1615 = vld [vmem:[#allocation2 + $0x128] sm:$0xff]
      %v1616 = vld [vmem:[#allocation2 + $0x130] sm:$0xff]
      %v1617 = vld [vmem:[#allocation2 + $0x138] sm:$0xff]
      %v1618 = vld [vmem:[#allocation2 + $0x140] sm:$0xff]
      %v1619 = vld [vmem:[#allocation2 + $0x148] sm:$0xff]
      %v1620 = vld [vmem:[#allocation2 + $0x150] sm:$0xff]
      %v1621 = vld [vmem:[#allocation2 + $0x158] sm:$0xff]
      %v1622 = vld [vmem:[#allocation2 + $0x160] sm:$0xff]
      %v1623 = vld [vmem:[#allocation2 + $0x168] sm:$0xff]
      %v1624 = vld [vmem:[#allocation2 + $0x170] sm:$0xff]
      %v1625 = vld [vmem:[#allocation2 + $0x178] sm:$0xff]
      %v1626 = vld [vmem:[#allocation2 + $0x180] sm:$0xff]
      %v1627 = vld [vmem:[#allocation2 + $0x188] sm:$0xff]
      %v1628 = vld [vmem:[#allocation2 + $0x190] sm:$0xff]
      %v1629 = vld [vmem:[#allocation2 + $0x198] sm:$0xff]
      %v1630 = vld [vmem:[#allocation2 + $0x1a0] sm:$0xff]
      %v1631 = vld [vmem:[#allocation2 + $0x1a8] sm:$0xff]
      %v1632 = vld [vmem:[#allocation2 + $0x1b0] sm:$0xff]
      %v1633 = vld [vmem:[#allocation2 + $0x1b8] sm:$0xff]
      %v1634 = vld [vmem:[#allocation2 + $0x1c0] sm:$0xff]
      %v1635 = vld [vmem:[#allocation2 + $0x1c8] sm:$0xff]
      %v1636 = vld [vmem:[#allocation2 + $0x1d0] sm:$0xff]
      %v1637 = vld [vmem:[#allocation2 + $0x1d8] sm:$0xff]
      %v1638 = vld [vmem:[#allocation2 + $0x1e0] sm:$0xff]
      %v1639 = vld [vmem:[#allocation2 + $0x1e8] sm:$0xff]
      %v1640 = vld [vmem:[#allocation2 + $0x1f0] sm:$0xff]
      %v1641 = vld [vmem:[#allocation2 + $0x1f8] sm:$0xff]
      %v1650 = vunpack.c.l.b16 %v1570
      %v1651 = vunpack.c.l.b16 %v1571
      %v1652 = vunpack.c.l.b16 %v1572
      %v1653 = vunpack.c.l.b16 %v1573
      %v1654 = vunpack.c.l.b16 %v1574
      %v1655 = vunpack.c.l.b16 %v1575
      %v1656 = vunpack.c.l.b16 %v1576
      %v1657 = vunpack.c.l.b16 %v1577
      %v1658 = vpack.c.b16 %v1651, %v1650
      %v1659 = vpack.c.b16 %v1653, %v1652
      %v1660 = vpack.c.b16 %v1655, %v1654
      %v1661 = vpack.c.b16 %v1657, %v1656
      %1730 = vrot.lane.b32.xlu0 %v1578, 32
      %v1731 = vpop.permute.xlu0 %1730
      %1732 = vrot.lane.b32.xlu0 %v1579, 32
      %v1733 = vpop.permute.xlu0 %1732
      %1734 = vrot.lane.b32.xlu0 %v1580, 32
      %v1735 = vpop.permute.xlu0 %1734
      %1736 = vrot.lane.b32.xlu0 %v1581, 32
      %v1737 = vpop.permute.xlu0 %1736
      %1738 = vrot.lane.b32.xlu0 %v1582, 32
      %v1739 = vpop.permute.xlu0 %1738
      %1740 = vrot.lane.b32.xlu0 %v1583, 32
      %v1741 = vpop.permute.xlu0 %1740
      %1742 = vrot.lane.b32.xlu0 %v1584, 32
      %v1743 = vpop.permute.xlu0 %1742
      %1744 = vrot.lane.b32.xlu0 %v1585, 32
      %v1745 = vpop.permute.xlu0 %1744
      %1746 = vrot.lane.b32.xlu0 %v1586, 32
      %v1747 = vpop.permute.xlu0 %1746
      %1748 = vrot.lane.b32.xlu0 %v1587, 32
      %v1749 = vpop.permute.xlu0 %1748
      %1750 = vrot.lane.b32.xlu0 %v1588, 32
      %v1751 = vpop.permute.xlu0 %1750
      %1752 = vrot.lane.b32.xlu0 %v1589, 32
      %v1753 = vpop.permute.xlu0 %1752
      %1754 = vrot.lane.b32.xlu0 %v1590, 32
      %v1755 = vpop.permute.xlu0 %1754
      %1756 = vrot.lane.b32.xlu0 %v1591, 32
      %v1757 = vpop.permute.xlu0 %1756
      %1758 = vrot.lane.b32.xlu0 %v1592, 32
      %v1759 = vpop.permute.xlu0 %1758
      %1760 = vrot.lane.b32.xlu0 %v1593, 32
      %v1761 = vpop.permute.xlu0 %1760
      %1762 = vrot.lane.b32.xlu0 %v1594, 32
      %v1763 = vpop.permute.xlu0 %1762
      %1764 = vrot.lane.b32.xlu0 %v1595, 32
      %v1765 = vpop.permute.xlu0 %1764
      %1766 = vrot.lane.b32.xlu0 %v1596, 32
      %v1767 = vpop.permute.xlu0 %1766
      %1768 = vrot.lane.b32.xlu0 %v1597, 32
      %v1769 = vpop.permute.xlu0 %1768
      %1770 = vrot.lane.b32.xlu0 %v1598, 32
      %v1771 = vpop.permute.xlu0 %1770
      %1772 = vrot.lane.b32.xlu0 %v1599, 32
      %v1773 = vpop.permute.xlu0 %1772
      %1774 = vrot.lane.b32.xlu0 %v1600, 32
      %v1775 = vpop.permute.xlu0 %1774
      %1776 = vrot.lane.b32.xlu0 %v1601, 32
      %v1777 = vpop.permute.xlu0 %1776
      %1778 = vrot.lane.b32.xlu0 %v1602, 32
      %v1779 = vpop.permute.xlu0 %1778
      %1780 = vrot.lane.b32.xlu0 %v1603, 32
      %v1781 = vpop.permute.xlu0 %1780
      %1782 = vrot.lane.b32.xlu0 %v1604, 32
      %v1783 = vpop.permute.xlu0 %1782
      %1784 = vrot.lane.b32.xlu0 %v1605, 32
      %v1785 = vpop.permute.xlu0 %1784
      %1786 = vrot.lane.b32.xlu0 %v1606, 32
      %v1787 = vpop.permute.xlu0 %1786
      %1788 = vrot.lane.b32.xlu0 %v1607, 32
      %v1789 = vpop.permute.xlu0 %1788
      %1790 = vrot.lane.b32.xlu0 %v1608, 32
      %v1791 = vpop.permute.xlu0 %1790
      %1792 = vrot.lane.b32.xlu0 %v1609, 32
      %v1793 = vpop.permute.xlu0 %1792
      %1794 = vrot.lane.b32.xlu0 %v1610, 32
      %v1795 = vpop.permute.xlu0 %1794
      %1796 = vrot.lane.b32.xlu0 %v1611, 32
      %v1797 = vpop.permute.xlu0 %1796
      %1798 = vrot.lane.b32.xlu0 %v1612, 32
      %v1799 = vpop.permute.xlu0 %1798
      %1800 = vrot.lane.b32.xlu0 %v1613, 32
      %v1801 = vpop.permute.xlu0 %1800
      %1802 = vrot.lane.b32.xlu0 %v1614, 32
      %v1803 = vpop.permute.xlu0 %1802
      %1804 = vrot.lane.b32.xlu0 %v1615, 32
      %v1805 = vpop.permute.xlu0 %1804
      %1806 = vrot.lane.b32.xlu0 %v1616, 32
      %v1807 = vpop.permute.xlu0 %1806
      %1808 = vrot.lane.b32.xlu0 %v1617, 32
      %v1809 = vpop.permute.xlu0 %1808
      %1810 = vrot.lane.b32.xlu0 %v1618, 32
      %v1811 = vpop.permute.xlu0 %1810
      %1812 = vrot.lane.b32.xlu0 %v1619, 32
      %v1813 = vpop.permute.xlu0 %1812
      %1814 = vrot.lane.b32.xlu0 %v1620, 32
      %v1815 = vpop.permute.xlu0 %1814
      %1816 = vrot.lane.b32.xlu0 %v1621, 32
      %v1817 = vpop.permute.xlu0 %1816
      %1818 = vrot.lane.b32.xlu0 %v1622, 32
      %v1819 = vpop.permute.xlu0 %1818
      %1820 = vrot.lane.b32.xlu0 %v1623, 32
      %v1821 = vpop.permute.xlu0 %1820
      %1822 = vrot.lane.b32.xlu0 %v1624, 32
      %v1823 = vpop.permute.xlu0 %1822
      %1824 = vrot.lane.b32.xlu0 %v1625, 32
      %v1825 = vpop.permute.xlu0 %1824
      %1826 = vrot.lane.b32.xlu0 %v1626, 32
      %v1827 = vpop.permute.xlu0 %1826
      %1828 = vrot.lane.b32.xlu0 %v1627, 32
      %v1829 = vpop.permute.xlu0 %1828
      %1830 = vrot.lane.b32.xlu0 %v1628, 32
      %v1831 = vpop.permute.xlu0 %1830
      %1832 = vrot.lane.b32.xlu0 %v1629, 32
      %v1833 = vpop.permute.xlu0 %1832
      %1834 = vrot.lane.b32.xlu0 %v1630, 32
      %v1835 = vpop.permute.xlu0 %1834
      %1836 = vrot.lane.b32.xlu0 %v1631, 32
      %v1837 = vpop.permute.xlu0 %1836
      %1838 = vrot.lane.b32.xlu0 %v1632, 32
      %v1839 = vpop.permute.xlu0 %1838
      %1840 = vrot.lane.b32.xlu0 %v1633, 32
      %v1841 = vpop.permute.xlu0 %1840
      %1842 = vrot.lane.b32.xlu0 %v1634, 32
      %v1843 = vpop.permute.xlu0 %1842
      %1844 = vrot.lane.b32.xlu0 %v1635, 32
      %v1845 = vpop.permute.xlu0 %1844
      %1846 = vrot.lane.b32.xlu0 %v1636, 32
      %v1847 = vpop.permute.xlu0 %1846
      %1848 = vrot.lane.b32.xlu0 %v1637, 32
      %v1849 = vpop.permute.xlu0 %1848
      %1850 = vrot.lane.b32.xlu0 %v1638, 32
      %v1851 = vpop.permute.xlu0 %1850
      %1852 = vrot.lane.b32.xlu0 %v1639, 32
      %v1853 = vpop.permute.xlu0 %1852
      %1854 = vrot.lane.b32.xlu0 %v1640, 32
      %v1855 = vpop.permute.xlu0 %1854
      %1856 = vrot.lane.b32.xlu0 %v1641, 32
      %v1857 = vpop.permute.xlu0 %1856
      %v1858 = vsel %vm538, %v1731, %v1733
      %v1859 = vsel %vm538, %v1735, %v1737
      %v1860 = vsel %vm538, %v1739, %v1741
      %v1861 = vsel %vm538, %v1743, %v1745
      %v1862 = vsel %vm538, %v1747, %v1749
      %v1863 = vsel %vm538, %v1751, %v1753
      %v1864 = vsel %vm538, %v1755, %v1757
      %v1865 = vsel %vm538, %v1759, %v1761
      %v1866 = vsel %vm538, %v1763, %v1765
      %v1867 = vsel %vm538, %v1767, %v1769
      %v1868 = vsel %vm538, %v1771, %v1773
      %v1869 = vsel %vm538, %v1775, %v1777
      %v1870 = vsel %vm538, %v1779, %v1781
      %v1871 = vsel %vm538, %v1783, %v1785
      %v1872 = vsel %vm538, %v1787, %v1789
      %v1873 = vsel %vm538, %v1791, %v1793
      %v1874 = vsel %vm538, %v1795, %v1797
      %v1875 = vsel %vm538, %v1799, %v1801
      %v1876 = vsel %vm538, %v1803, %v1805
      %v1877 = vsel %vm538, %v1807, %v1809
      %v1878 = vsel %vm538, %v1811, %v1813
      %v1879 = vsel %vm538, %v1815, %v1817
      %v1880 = vsel %vm538, %v1819, %v1821
      %v1881 = vsel %vm538, %v1823, %v1825
      %v1882 = vsel %vm538, %v1827, %v1829
      %v1883 = vsel %vm538, %v1831, %v1833
      %v1884 = vsel %vm538, %v1835, %v1837
      %v1885 = vsel %vm538, %v1839, %v1841
      %v1886 = vsel %vm538, %v1843, %v1845
      %v1887 = vsel %vm538, %v1847, %v1849
      %v1888 = vsel %vm538, %v1851, %v1853
      %v1889 = vsel %vm538, %v1855, %v1857
      %v1923 = vsel %vm724, %v1554, 0
      %v1926 = vsel %vm724, %v1555, 0
      %v1929 = vsel %vm724, %v1556, 0
      %v1932 = vsel %vm724, %v1557, 0
      %v1935 = vsel %vm724, %v1558, 0
      %v1938 = vsel %vm724, %v1559, 0
      %v1941 = vsel %vm724, %v1560, 0
      %v1944 = vsel %vm724, %v1561, 0
      %v1947 = vsel %vm724, %v1562, 0
      %v1950 = vsel %vm724, %v1563, 0
      %v1953 = vsel %vm724, %v1564, 0
      %v1956 = vsel %vm724, %v1565, 0
      %v1959 = vsel %vm724, %v1566, 0
      %v1962 = vsel %vm724, %v1567, 0
      %v1965 = vsel %vm724, %v1568, 0
      %v1968 = vsel %vm724, %v1569, 0
      %1970 = vmatprep.subr.bf16.mxu0 0
      %1971 = vmatpush1.bf16.msra.mxu0 0
      %1972 = vmatprep.subr.bf16.mxu0 0
      %1973 = vmatpush1.bf16.msra.mxu0 0
      %1974 = vmatprep.subr.bf16.mxu0 0
      %1975 = vmatpush1.bf16.msra.mxu0 0
      %1976 = vmatprep.subr.bf16.mxu0 0
      %1977 = vmatpush1.bf16.msra.mxu0 0
      %1978 = vmatprep.subr.bf16.mxu0 0
      %1979 = vmatpush1.bf16.msra.mxu0 %v1661
      %1980 = vmatprep.subr.bf16.mxu0 0
      %1981 = vmatpush1.bf16.msra.mxu0 %v1660
      %1982 = vmatprep.subr.bf16.mxu0 0
      %1983 = vmatpush1.bf16.msra.mxu0 %v1659
      %1984 = vmatprep.subr.bf16.mxu0 0
      %1985 = vmatpush1.bf16.msra.mxu0 %v1658
      %1986 = vmatprep.subr.bf16.mxu0 0
      %1987 = vmatpush2.bf16.msra.mxu0 0
      %1988 = vmatprep.subr.bf16.mxu0 0
      %1989 = vmatpush2.bf16.msra.mxu0 0
      %1990 = vmatprep.subr.bf16.mxu0 0
      %1991 = vmatpush2.bf16.msra.mxu0 0
      %1992 = vmatprep.subr.bf16.mxu0 0
      %1993 = vmatpush2.bf16.msra.mxu0 0
      %1994 = vmatprep.subr.bf16.mxu0 0
      %1995 = vmatpush2.bf16.msra.mxu0 0
      %1996 = vmatprep.subr.bf16.mxu0 0
      %1997 = vmatpush2.bf16.msra.mxu0 0
      %1998 = vmatprep.subr.bf16.mxu0 0
      %1999 = vmatpush2.bf16.msra.mxu0 0
      %2000 = vmatprep.subr.bf16.mxu0 0
      %2001 = vmatpush2.bf16.msra.mxu0 0
      %2002 = vmatprep.mubr.bf16.mxu0 0
      %2003 = vmatmul.mubr.bf16.gmra.mxu0 %v1923
      %v2004 = vpop.f32.mrf.mxu0
      %v2005 = vadd.f32 %v1858, %v2004
      %v2006 = vpop.f32.mrf.mxu0
      %v2007 = vpop.f32.mrf.mxu0
      %v2008 = vadd.f32 %v1859, %v2007
      %v2009 = vpop.f32.mrf.mxu0
      %2010 = vmatprep.mubr.bf16.mxu0 0
      %2011 = vmatmul.mubr.bf16.gmra.mxu0 %v1926
      %v2012 = vpop.f32.mrf.mxu0
      %v2013 = vadd.f32 %v1860, %v2012
      %v2014 = vpop.f32.mrf.mxu0
      %v2015 = vpop.f32.mrf.mxu0
      %v2016 = vadd.f32 %v1861, %v2015
      %v2017 = vpop.f32.mrf.mxu0
      %2018 = vmatprep.mubr.bf16.mxu0 0
      %2019 = vmatmul.mubr.bf16.gmra.mxu0 %v1929
      %v2020 = vpop.f32.mrf.mxu0
      %v2021 = vadd.f32 %v1862, %v2020
      %v2022 = vpop.f32.mrf.mxu0
      %v2023 = vpop.f32.mrf.mxu0
      %v2024 = vadd.f32 %v1863, %v2023
      %v2025 = vpop.f32.mrf.mxu0
      %2026 = vmatprep.mubr.bf16.mxu0 0
      %2027 = vmatmul.mubr.bf16.gmra.mxu0 %v1932
      %v2028 = vpop.f32.mrf.mxu0
      %v2029 = vadd.f32 %v1864, %v2028
      %v2030 = vpop.f32.mrf.mxu0
      %v2031 = vpop.f32.mrf.mxu0
      %v2032 = vadd.f32 %v1865, %v2031
      %v2033 = vpop.f32.mrf.mxu0
      %2034 = vmatprep.mubr.bf16.mxu0 0
      %2035 = vmatmul.mubr.bf16.gmra.mxu0 %v1935
      %v2036 = vpop.f32.mrf.mxu0
      %v2037 = vadd.f32 %v1866, %v2036
      %v2038 = vpop.f32.mrf.mxu0
      %v2039 = vpop.f32.mrf.mxu0
      %v2040 = vadd.f32 %v1867, %v2039
      %v2041 = vpop.f32.mrf.mxu0
      %2042 = vmatprep.mubr.bf16.mxu0 0
      %2043 = vmatmul.mubr.bf16.gmra.mxu0 %v1938
      %v2044 = vpop.f32.mrf.mxu0
      %v2045 = vadd.f32 %v1868, %v2044
      %v2046 = vpop.f32.mrf.mxu0
      %v2047 = vpop.f32.mrf.mxu0
      %v2048 = vadd.f32 %v1869, %v2047
      %v2049 = vpop.f32.mrf.mxu0
      %2050 = vmatprep.mubr.bf16.mxu0 0
      %2051 = vmatmul.mubr.bf16.gmra.mxu0 %v1941
      %v2052 = vpop.f32.mrf.mxu0
      %v2053 = vadd.f32 %v1870, %v2052
      %v2054 = vpop.f32.mrf.mxu0
      %v2055 = vpop.f32.mrf.mxu0
      %v2056 = vadd.f32 %v1871, %v2055
      %v2057 = vpop.f32.mrf.mxu0
      %2058 = vmatprep.mubr.bf16.mxu0 0
      %2059 = vmatmul.mubr.bf16.gmra.mxu0 %v1944
      %v2060 = vpop.f32.mrf.mxu0
      %v2061 = vadd.f32 %v1872, %v2060
      %v2062 = vpop.f32.mrf.mxu0
      %v2063 = vpop.f32.mrf.mxu0
      %v2064 = vadd.f32 %v1873, %v2063
      %v2065 = vpop.f32.mrf.mxu0
      %2066 = vmatprep.mubr.bf16.mxu0 0
      %2067 = vmatmul.mubr.bf16.gmra.mxu0 %v1947
      %v2068 = vpop.f32.mrf.mxu0
      %v2069 = vadd.f32 %v1874, %v2068
      %v2070 = vpop.f32.mrf.mxu0
      %v2071 = vpop.f32.mrf.mxu0
      %v2072 = vadd.f32 %v1875, %v2071
      %v2073 = vpop.f32.mrf.mxu0
      %2074 = vmatprep.mubr.bf16.mxu0 0
      %2075 = vmatmul.mubr.bf16.gmra.mxu0 %v1950
      %v2076 = vpop.f32.mrf.mxu0
      %v2077 = vadd.f32 %v1876, %v2076
      %v2078 = vpop.f32.mrf.mxu0
      %v2079 = vpop.f32.mrf.mxu0
      %v2080 = vadd.f32 %v1877, %v2079
      %v2081 = vpop.f32.mrf.mxu0
      %2082 = vmatprep.mubr.bf16.mxu0 0
      %2083 = vmatmul.mubr.bf16.gmra.mxu0 %v1953
      %v2084 = vpop.f32.mrf.mxu0
      %v2085 = vadd.f32 %v1878, %v2084
      %v2086 = vpop.f32.mrf.mxu0
      %v2087 = vpop.f32.mrf.mxu0
      %v2088 = vadd.f32 %v1879, %v2087
      %v2089 = vpop.f32.mrf.mxu0
      %2090 = vmatprep.mubr.bf16.mxu0 0
      %2091 = vmatmul.mubr.bf16.gmra.mxu0 %v1956
      %v2092 = vpop.f32.mrf.mxu0
      %v2093 = vadd.f32 %v1880, %v2092
      %v2094 = vpop.f32.mrf.mxu0
      %v2095 = vpop.f32.mrf.mxu0
      %v2096 = vadd.f32 %v1881, %v2095
      %v2097 = vpop.f32.mrf.mxu0
      %2098 = vmatprep.mubr.bf16.mxu0 0
      %2099 = vmatmul.mubr.bf16.gmra.mxu0 %v1959
      %v2100 = vpop.f32.mrf.mxu0
      %v2101 = vadd.f32 %v1882, %v2100
      %v2102 = vpop.f32.mrf.mxu0
      %v2103 = vpop.f32.mrf.mxu0
      %v2104 = vadd.f32 %v1883, %v2103
      %v2105 = vpop.f32.mrf.mxu0
      %2106 = vmatprep.mubr.bf16.mxu0 0
      %2107 = vmatmul.mubr.bf16.gmra.mxu0 %v1962
      %v2108 = vpop.f32.mrf.mxu0
      %v2109 = vadd.f32 %v1884, %v2108
      %v2110 = vpop.f32.mrf.mxu0
      %v2111 = vpop.f32.mrf.mxu0
      %v2112 = vadd.f32 %v1885, %v2111
      %v2113 = vpop.f32.mrf.mxu0
      %2114 = vmatprep.mubr.bf16.mxu0 0
      %2115 = vmatmul.mubr.bf16.gmra.mxu0 %v1965
      %v2116 = vpop.f32.mrf.mxu0
      %v2117 = vadd.f32 %v1886, %v2116
      %v2118 = vpop.f32.mrf.mxu0
      %v2119 = vpop.f32.mrf.mxu0
      %v2120 = vadd.f32 %v1887, %v2119
      %v2121 = vpop.f32.mrf.mxu0
      %2122 = vmatprep.mubr.bf16.mxu0 0
      %2123 = vmatmul.mubr.bf16.gmra.mxu0 %v1968
      %v2124 = vpop.f32.mrf.mxu0
      %v2125 = vadd.f32 %v1888, %v2124
      %v2126 = vpop.f32.mrf.mxu0
      %v2127 = vpop.f32.mrf.mxu0
      %v2128 = vadd.f32 %v1889, %v2127
      %v2129 = vpop.f32.mrf.mxu0
      %2130 = vdwg.mxu0
      %v2131 = vld [vmem:[%s2 + $0x4] sm:$0x1]
      %v2132 = vlaneseq
      %v2133 = vshrl.u32 %v2132, 7
      %v2134 = vsub.s32 0, %v2133
      %v2135 = vrot.slane %v2131, %v2134
      %v2136 = vadd.f32 %v2005, %v2135
      %v2137 = vadd.f32 %v2008, %v2135
      %v2138 = vadd.f32 %v2013, %v2135
      %v2139 = vadd.f32 %v2016, %v2135
      %v2140 = vadd.f32 %v2021, %v2135
      %v2141 = vadd.f32 %v2024, %v2135
      %v2142 = vadd.f32 %v2029, %v2135
      %v2143 = vadd.f32 %v2032, %v2135
      %v2144 = vadd.f32 %v2037, %v2135
      %v2145 = vadd.f32 %v2040, %v2135
      %v2146 = vadd.f32 %v2045, %v2135
      %v2147 = vadd.f32 %v2048, %v2135
      %v2148 = vadd.f32 %v2053, %v2135
      %v2149 = vadd.f32 %v2056, %v2135
      %v2150 = vadd.f32 %v2061, %v2135
      %v2151 = vadd.f32 %v2064, %v2135
      %v2152 = vadd.f32 %v2069, %v2135
      %v2153 = vadd.f32 %v2072, %v2135
      %v2154 = vadd.f32 %v2077, %v2135
      %v2155 = vadd.f32 %v2080, %v2135
      %v2156 = vadd.f32 %v2085, %v2135
      %v2157 = vadd.f32 %v2088, %v2135
      %v2158 = vadd.f32 %v2093, %v2135
      %v2159 = vadd.f32 %v2096, %v2135
      %v2160 = vadd.f32 %v2101, %v2135
      %v2161 = vadd.f32 %v2104, %v2135
      %v2162 = vadd.f32 %v2109, %v2135
      %v2163 = vadd.f32 %v2112, %v2135
      %v2164 = vadd.f32 %v2117, %v2135
      %v2165 = vadd.f32 %v2120, %v2135
      %v2166 = vadd.f32 %v2125, %v2135
      %v2167 = vadd.f32 %v2128, %v2135
      %v2168 = vmax.f32 %v2136, 0.0
      %v2169 = vmax.f32 %v2137, 0.0
      %v2170 = vmax.f32 %v2138, 0.0
      %v2171 = vmax.f32 %v2139, 0.0
      %v2172 = vmax.f32 %v2140, 0.0
      %v2173 = vmax.f32 %v2141, 0.0
      %v2174 = vmax.f32 %v2142, 0.0
      %v2175 = vmax.f32 %v2143, 0.0
      %v2176 = vmax.f32 %v2144, 0.0
      %v2177 = vmax.f32 %v2145, 0.0
      %v2178 = vmax.f32 %v2146, 0.0
      %v2179 = vmax.f32 %v2147, 0.0
      %v2180 = vmax.f32 %v2148, 0.0
      %v2181 = vmax.f32 %v2149, 0.0
      %v2182 = vmax.f32 %v2150, 0.0
      %v2183 = vmax.f32 %v2151, 0.0
      %v2184 = vmax.f32 %v2152, 0.0
      %v2185 = vmax.f32 %v2153, 0.0
      %v2186 = vmax.f32 %v2154, 0.0
      %v2187 = vmax.f32 %v2155, 0.0
      %v2188 = vmax.f32 %v2156, 0.0
      %v2189 = vmax.f32 %v2157, 0.0
      %v2190 = vmax.f32 %v2158, 0.0
      %v2191 = vmax.f32 %v2159, 0.0
      %v2192 = vmax.f32 %v2160, 0.0
      %v2193 = vmax.f32 %v2161, 0.0
      %v2194 = vmax.f32 %v2162, 0.0
      %v2195 = vmax.f32 %v2163, 0.0
      %v2196 = vmax.f32 %v2164, 0.0
      %v2197 = vmax.f32 %v2165, 0.0
      %v2198 = vmax.f32 %v2166, 0.0
      %v2199 = vmax.f32 %v2167, 0.0
      %v2200 = vpack.c.bf16 %v2169, %v2168
      %v2201 = vpack.c.bf16 %v2171, %v2170
      %v2202 = vpack.c.bf16 %v2173, %v2172
      %v2203 = vpack.c.bf16 %v2175, %v2174
      %v2204 = vpack.c.bf16 %v2177, %v2176
      %v2205 = vpack.c.bf16 %v2179, %v2178
      %v2206 = vpack.c.bf16 %v2181, %v2180
      %v2207 = vpack.c.bf16 %v2183, %v2182
      %v2208 = vpack.c.bf16 %v2185, %v2184
      %v2209 = vpack.c.bf16 %v2187, %v2186
      %v2210 = vpack.c.bf16 %v2189, %v2188
      %v2211 = vpack.c.bf16 %v2191, %v2190
      %v2212 = vpack.c.bf16 %v2193, %v2192
      %v2213 = vpack.c.bf16 %v2195, %v2194
      %v2214 = vpack.c.bf16 %v2197, %v2196
      %v2215 = vpack.c.bf16 %v2199, %v2198
      %v2216 = vld [vmem:[%s1 + $0x160] sm:$0xf]
      %v2217 = vld [vmem:[%s1 + $0x168] sm:$0xf]
      %v2218 = vld [vmem:[%s1 + $0x170] sm:$0xf]
      %v2219 = vld [vmem:[%s1 + $0x178] sm:$0xf]
      %v2220 = vld [vmem:[%s1 + $0x180] sm:$0xf]
      %v2221 = vld [vmem:[%s1 + $0x188] sm:$0xf]
      %v2222 = vld [vmem:[%s1 + $0x190] sm:$0xf]
      %v2223 = vld [vmem:[%s1 + $0x198] sm:$0xf]
      %v2224 = vld [vmem:[%s2 + $0x5] sm:$0x1]
      %v2225 = vlaneseq
      %v2226 = vshrl.u32 %v2225, 7
      %v2227 = vsub.s32 0, %v2226
      %v2228 = vrot.slane %v2224, %v2227
      %v2237 = vunpack.c.l.b16 %v2216
      %v2238 = vunpack.c.l.b16 %v2217
      %v2239 = vunpack.c.l.b16 %v2218
      %v2240 = vunpack.c.l.b16 %v2219
      %v2241 = vunpack.c.l.b16 %v2220
      %v2242 = vunpack.c.l.b16 %v2221
      %v2243 = vunpack.c.l.b16 %v2222
      %v2244 = vunpack.c.l.b16 %v2223
      %v2245 = vpack.c.b16 %v2238, %v2237
      %v2246 = vpack.c.b16 %v2240, %v2239
      %v2247 = vpack.c.b16 %v2242, %v2241
      %v2248 = vpack.c.b16 %v2244, %v2243
      %v2254 = vsel %vm724, %v2200, 0
      %v2257 = vsel %vm724, %v2201, 0
      %v2260 = vsel %vm724, %v2202, 0
      %v2263 = vsel %vm724, %v2203, 0
      %v2266 = vsel %vm724, %v2204, 0
      %v2269 = vsel %vm724, %v2205, 0
      %v2272 = vsel %vm724, %v2206, 0
      %v2275 = vsel %vm724, %v2207, 0
      %v2278 = vsel %vm724, %v2208, 0
      %v2281 = vsel %vm724, %v2209, 0
      %v2284 = vsel %vm724, %v2210, 0
      %v2287 = vsel %vm724, %v2211, 0
      %v2290 = vsel %vm724, %v2212, 0
      %v2293 = vsel %vm724, %v2213, 0
      %v2296 = vsel %vm724, %v2214, 0
      %v2299 = vsel %vm724, %v2215, 0
      %2301 = vmatprep.subr.bf16.mxu0 0
      %2302 = vmatpush1.bf16.msra.mxu0 0
      %2303 = vmatprep.subr.bf16.mxu0 0
      %2304 = vmatpush1.bf16.msra.mxu0 0
      %2305 = vmatprep.subr.bf16.mxu0 0
      %2306 = vmatpush1.bf16.msra.mxu0 0
      %2307 = vmatprep.subr.bf16.mxu0 0
      %2308 = vmatpush1.bf16.msra.mxu0 0
      %2309 = vmatprep.subr.bf16.mxu0 0
      %2310 = vmatpush1.bf16.msra.mxu0 %v2248
      %2311 = vmatprep.subr.bf16.mxu0 0
      %2312 = vmatpush1.bf16.msra.mxu0 %v2247
      %2313 = vmatprep.subr.bf16.mxu0 0
      %2314 = vmatpush1.bf16.msra.mxu0 %v2246
      %2315 = vmatprep.subr.bf16.mxu0 0
      %2316 = vmatpush1.bf16.msra.mxu0 %v2245
      %2317 = vmatprep.subr.bf16.mxu0 0
      %2318 = vmatpush2.bf16.msra.mxu0 0
      %2319 = vmatprep.subr.bf16.mxu0 0
      %2320 = vmatpush2.bf16.msra.mxu0 0
      %2321 = vmatprep.subr.bf16.mxu0 0
      %2322 = vmatpush2.bf16.msra.mxu0 0
      %2323 = vmatprep.subr.bf16.mxu0 0
      %2324 = vmatpush2.bf16.msra.mxu0 0
      %2325 = vmatprep.subr.bf16.mxu0 0
      %2326 = vmatpush2.bf16.msra.mxu0 0
      %2327 = vmatprep.subr.bf16.mxu0 0
      %2328 = vmatpush2.bf16.msra.mxu0 0
      %2329 = vmatprep.subr.bf16.mxu0 0
      %2330 = vmatpush2.bf16.msra.mxu0 0
      %2331 = vmatprep.subr.bf16.mxu0 0
      %2332 = vmatpush2.bf16.msra.mxu0 0
      %2333 = vmatprep.mubr.bf16.mxu0 0
      %2334 = vmatmul.mubr.bf16.gmra.mxu0 %v2254
      %v2335 = vpop.f32.mrf.mxu0
      %v2336 = vadd.f32 %v2228, %v2335
      %v2337 = vpop.f32.mrf.mxu0
      %v2338 = vpop.f32.mrf.mxu0
      %v2339 = vadd.f32 %v2228, %v2338
      %v2340 = vpop.f32.mrf.mxu0
      %2341 = vmatprep.mubr.bf16.mxu0 0
      %2342 = vmatmul.mubr.bf16.gmra.mxu0 %v2257
      %v2343 = vpop.f32.mrf.mxu0
      %v2344 = vadd.f32 %v2228, %v2343
      %v2345 = vpop.f32.mrf.mxu0
      %v2346 = vpop.f32.mrf.mxu0
      %v2347 = vadd.f32 %v2228, %v2346
      %v2348 = vpop.f32.mrf.mxu0
      %2349 = vmatprep.mubr.bf16.mxu0 0
      %2350 = vmatmul.mubr.bf16.gmra.mxu0 %v2260
      %v2351 = vpop.f32.mrf.mxu0
      %v2352 = vadd.f32 %v2228, %v2351
      %v2353 = vpop.f32.mrf.mxu0
      %v2354 = vpop.f32.mrf.mxu0
      %v2355 = vadd.f32 %v2228, %v2354
      %v2356 = vpop.f32.mrf.mxu0
      %2357 = vmatprep.mubr.bf16.mxu0 0
      %2358 = vmatmul.mubr.bf16.gmra.mxu0 %v2263
      %v2359 = vpop.f32.mrf.mxu0
      %v2360 = vadd.f32 %v2228, %v2359
      %v2361 = vpop.f32.mrf.mxu0
      %v2362 = vpop.f32.mrf.mxu0
      %v2363 = vadd.f32 %v2228, %v2362
      %v2364 = vpop.f32.mrf.mxu0
      %2365 = vmatprep.mubr.bf16.mxu0 0
      %2366 = vmatmul.mubr.bf16.gmra.mxu0 %v2266
      %v2367 = vpop.f32.mrf.mxu0
      %v2368 = vadd.f32 %v2228, %v2367
      %v2369 = vpop.f32.mrf.mxu0
      %v2370 = vpop.f32.mrf.mxu0
      %v2371 = vadd.f32 %v2228, %v2370
      %v2372 = vpop.f32.mrf.mxu0
      %2373 = vmatprep.mubr.bf16.mxu0 0
      %2374 = vmatmul.mubr.bf16.gmra.mxu0 %v2269
      %v2375 = vpop.f32.mrf.mxu0
      %v2376 = vadd.f32 %v2228, %v2375
      %v2377 = vpop.f32.mrf.mxu0
      %v2378 = vpop.f32.mrf.mxu0
      %v2379 = vadd.f32 %v2228, %v2378
      %v2380 = vpop.f32.mrf.mxu0
      %2381 = vmatprep.mubr.bf16.mxu0 0
      %2382 = vmatmul.mubr.bf16.gmra.mxu0 %v2272
      %v2383 = vpop.f32.mrf.mxu0
      %v2384 = vadd.f32 %v2228, %v2383
      %v2385 = vpop.f32.mrf.mxu0
      %v2386 = vpop.f32.mrf.mxu0
      %v2387 = vadd.f32 %v2228, %v2386
      %v2388 = vpop.f32.mrf.mxu0
      %2389 = vmatprep.mubr.bf16.mxu0 0
      %2390 = vmatmul.mubr.bf16.gmra.mxu0 %v2275
      %v2391 = vpop.f32.mrf.mxu0
      %v2392 = vadd.f32 %v2228, %v2391
      %v2393 = vpop.f32.mrf.mxu0
      %v2394 = vpop.f32.mrf.mxu0
      %v2395 = vadd.f32 %v2228, %v2394
      %v2396 = vpop.f32.mrf.mxu0
      %2397 = vmatprep.mubr.bf16.mxu0 0
      %2398 = vmatmul.mubr.bf16.gmra.mxu0 %v2278
      %v2399 = vpop.f32.mrf.mxu0
      %v2400 = vadd.f32 %v2228, %v2399
      %v2401 = vpop.f32.mrf.mxu0
      %v2402 = vpop.f32.mrf.mxu0
      %v2403 = vadd.f32 %v2228, %v2402
      %v2404 = vpop.f32.mrf.mxu0
      %2405 = vmatprep.mubr.bf16.mxu0 0
      %2406 = vmatmul.mubr.bf16.gmra.mxu0 %v2281
      %v2407 = vpop.f32.mrf.mxu0
      %v2408 = vadd.f32 %v2228, %v2407
      %v2409 = vpop.f32.mrf.mxu0
      %v2410 = vpop.f32.mrf.mxu0
      %v2411 = vadd.f32 %v2228, %v2410
      %v2412 = vpop.f32.mrf.mxu0
      %2413 = vmatprep.mubr.bf16.mxu0 0
      %2414 = vmatmul.mubr.bf16.gmra.mxu0 %v2284
      %v2415 = vpop.f32.mrf.mxu0
      %v2416 = vadd.f32 %v2228, %v2415
      %v2417 = vpop.f32.mrf.mxu0
      %v2418 = vpop.f32.mrf.mxu0
      %v2419 = vadd.f32 %v2228, %v2418
      %v2420 = vpop.f32.mrf.mxu0
      %2421 = vmatprep.mubr.bf16.mxu0 0
      %2422 = vmatmul.mubr.bf16.gmra.mxu0 %v2287
      %v2423 = vpop.f32.mrf.mxu0
      %v2424 = vadd.f32 %v2228, %v2423
      %v2425 = vpop.f32.mrf.mxu0
      %v2426 = vpop.f32.mrf.mxu0
      %v2427 = vadd.f32 %v2228, %v2426
      %v2428 = vpop.f32.mrf.mxu0
      %2429 = vmatprep.mubr.bf16.mxu0 0
      %2430 = vmatmul.mubr.bf16.gmra.mxu0 %v2290
      %v2431 = vpop.f32.mrf.mxu0
      %v2432 = vadd.f32 %v2228, %v2431
      %v2433 = vpop.f32.mrf.mxu0
      %v2434 = vpop.f32.mrf.mxu0
      %v2435 = vadd.f32 %v2228, %v2434
      %v2436 = vpop.f32.mrf.mxu0
      %2437 = vmatprep.mubr.bf16.mxu0 0
      %2438 = vmatmul.mubr.bf16.gmra.mxu0 %v2293
      %v2439 = vpop.f32.mrf.mxu0
      %v2440 = vadd.f32 %v2228, %v2439
      %v2441 = vpop.f32.mrf.mxu0
      %v2442 = vpop.f32.mrf.mxu0
      %v2443 = vadd.f32 %v2228, %v2442
      %v2444 = vpop.f32.mrf.mxu0
      %2445 = vmatprep.mubr.bf16.mxu0 0
      %2446 = vmatmul.mubr.bf16.gmra.mxu0 %v2296
      %v2447 = vpop.f32.mrf.mxu0
      %v2448 = vadd.f32 %v2228, %v2447
      %v2449 = vpop.f32.mrf.mxu0
      %v2450 = vpop.f32.mrf.mxu0
      %v2451 = vadd.f32 %v2228, %v2450
      %v2452 = vpop.f32.mrf.mxu0
      %2453 = vmatprep.mubr.bf16.mxu0 0
      %2454 = vmatmul.mubr.bf16.gmra.mxu0 %v2299
      %v2455 = vpop.f32.mrf.mxu0
      %v2456 = vadd.f32 %v2228, %v2455
      %v2457 = vpop.f32.mrf.mxu0
      %v2458 = vpop.f32.mrf.mxu0
      %v2459 = vadd.f32 %v2228, %v2458
      %v2460 = vpop.f32.mrf.mxu0
      %2461 = vdwg.mxu0
      %v2462 = vmax.f32 %v2336, 0.0
      %v2463 = vmax.f32 %v2339, 0.0
      %v2464 = vmax.f32 %v2344, 0.0
      %v2465 = vmax.f32 %v2347, 0.0
      %v2466 = vmax.f32 %v2352, 0.0
      %v2467 = vmax.f32 %v2355, 0.0
      %v2468 = vmax.f32 %v2360, 0.0
      %v2469 = vmax.f32 %v2363, 0.0
      %v2470 = vmax.f32 %v2368, 0.0
      %v2471 = vmax.f32 %v2371, 0.0
      %v2472 = vmax.f32 %v2376, 0.0
      %v2473 = vmax.f32 %v2379, 0.0
      %v2474 = vmax.f32 %v2384, 0.0
      %v2475 = vmax.f32 %v2387, 0.0
      %v2476 = vmax.f32 %v2392, 0.0
      %v2477 = vmax.f32 %v2395, 0.0
      %v2478 = vmax.f32 %v2400, 0.0
      %v2479 = vmax.f32 %v2403, 0.0
      %v2480 = vmax.f32 %v2408, 0.0
      %v2481 = vmax.f32 %v2411, 0.0
      %v2482 = vmax.f32 %v2416, 0.0
      %v2483 = vmax.f32 %v2419, 0.0
      %v2484 = vmax.f32 %v2424, 0.0
      %v2485 = vmax.f32 %v2427, 0.0
      %v2486 = vmax.f32 %v2432, 0.0
      %v2487 = vmax.f32 %v2435, 0.0
      %v2488 = vmax.f32 %v2440, 0.0
      %v2489 = vmax.f32 %v2443, 0.0
      %v2490 = vmax.f32 %v2448, 0.0
      %v2491 = vmax.f32 %v2451, 0.0
      %v2492 = vmax.f32 %v2456, 0.0
      %v2493 = vmax.f32 %v2459, 0.0
      %v2494 = vpack.c.bf16 %v2463, %v2462
      %v2495 = vpack.c.bf16 %v2465, %v2464
      %v2496 = vpack.c.bf16 %v2467, %v2466
      %v2497 = vpack.c.bf16 %v2469, %v2468
      %v2498 = vpack.c.bf16 %v2471, %v2470
      %v2499 = vpack.c.bf16 %v2473, %v2472
      %v2500 = vpack.c.bf16 %v2475, %v2474
      %v2501 = vpack.c.bf16 %v2477, %v2476
      %v2502 = vpack.c.bf16 %v2479, %v2478
      %v2503 = vpack.c.bf16 %v2481, %v2480
      %v2504 = vpack.c.bf16 %v2483, %v2482
      %v2505 = vpack.c.bf16 %v2485, %v2484
      %v2506 = vpack.c.bf16 %v2487, %v2486
      %v2507 = vpack.c.bf16 %v2489, %v2488
      %v2508 = vpack.c.bf16 %v2491, %v2490
      %v2509 = vpack.c.bf16 %v2493, %v2492
      %v2510 = vld [vmem:[%s1 + $0x1a0] sm:$0xf]
      %v2511 = vld [vmem:[%s1 + $0x1a8] sm:$0xf]
      %v2512 = vld [vmem:[%s1 + $0x1b0] sm:$0xf]
      %v2513 = vld [vmem:[%s1 + $0x1b8] sm:$0xf]
      %v2514 = vld [vmem:[%s1 + $0x1c0] sm:$0xf]
      %v2515 = vld [vmem:[%s1 + $0x1c8] sm:$0xf]
      %v2516 = vld [vmem:[%s1 + $0x1d0] sm:$0xf]
      %v2517 = vld [vmem:[%s1 + $0x1d8] sm:$0xf]
      %v2518 = vld [vmem:[%s2 + $0x6] sm:$0x1]
      %v2519 = vlaneseq
      %v2520 = vshrl.u32 %v2519, 7
      %v2521 = vsub.s32 0, %v2520
      %v2522 = vrot.slane %v2518, %v2521
      %v2531 = vunpack.c.l.b16 %v2510
      %v2532 = vunpack.c.l.b16 %v2511
      %v2533 = vunpack.c.l.b16 %v2512
      %v2534 = vunpack.c.l.b16 %v2513
      %v2535 = vunpack.c.l.b16 %v2514
      %v2536 = vunpack.c.l.b16 %v2515
      %v2537 = vunpack.c.l.b16 %v2516
      %v2538 = vunpack.c.l.b16 %v2517
      %v2539 = vpack.c.b16 %v2532, %v2531
      %v2540 = vpack.c.b16 %v2534, %v2533
      %v2541 = vpack.c.b16 %v2536, %v2535
      %v2542 = vpack.c.b16 %v2538, %v2537
      %v2548 = vsel %vm724, %v2494, 0
      %v2551 = vsel %vm724, %v2495, 0
      %v2554 = vsel %vm724, %v2496, 0
      %v2557 = vsel %vm724, %v2497, 0
      %v2560 = vsel %vm724, %v2498, 0
      %v2563 = vsel %vm724, %v2499, 0
      %v2566 = vsel %vm724, %v2500, 0
      %v2569 = vsel %vm724, %v2501, 0
      %v2572 = vsel %vm724, %v2502, 0
      %v2575 = vsel %vm724, %v2503, 0
      %v2578 = vsel %vm724, %v2504, 0
      %v2581 = vsel %vm724, %v2505, 0
      %v2584 = vsel %vm724, %v2506, 0
      %v2587 = vsel %vm724, %v2507, 0
      %v2590 = vsel %vm724, %v2508, 0
      %v2593 = vsel %vm724, %v2509, 0
      %2595 = vmatprep.subr.bf16.mxu0 0
      %2596 = vmatpush1.bf16.msra.mxu0 0
      %2597 = vmatprep.subr.bf16.mxu0 0
      %2598 = vmatpush1.bf16.msra.mxu0 0
      %2599 = vmatprep.subr.bf16.mxu0 0
      %2600 = vmatpush1.bf16.msra.mxu0 0
      %2601 = vmatprep.subr.bf16.mxu0 0
      %2602 = vmatpush1.bf16.msra.mxu0 0
      %2603 = vmatprep.subr.bf16.mxu0 0
      %2604 = vmatpush1.bf16.msra.mxu0 %v2542
      %2605 = vmatprep.subr.bf16.mxu0 0
      %2606 = vmatpush1.bf16.msra.mxu0 %v2541
      %2607 = vmatprep.subr.bf16.mxu0 0
      %2608 = vmatpush1.bf16.msra.mxu0 %v2540
      %2609 = vmatprep.subr.bf16.mxu0 0
      %2610 = vmatpush1.bf16.msra.mxu0 %v2539
      %2611 = vmatprep.subr.bf16.mxu0 0
      %2612 = vmatpush2.bf16.msra.mxu0 0
      %2613 = vmatprep.subr.bf16.mxu0 0
      %2614 = vmatpush2.bf16.msra.mxu0 0
      %2615 = vmatprep.subr.bf16.mxu0 0
      %2616 = vmatpush2.bf16.msra.mxu0 0
      %2617 = vmatprep.subr.bf16.mxu0 0
      %2618 = vmatpush2.bf16.msra.mxu0 0
      %2619 = vmatprep.subr.bf16.mxu0 0
      %2620 = vmatpush2.bf16.msra.mxu0 0
      %2621 = vmatprep.subr.bf16.mxu0 0
      %2622 = vmatpush2.bf16.msra.mxu0 0
      %2623 = vmatprep.subr.bf16.mxu0 0
      %2624 = vmatpush2.bf16.msra.mxu0 0
      %2625 = vmatprep.subr.bf16.mxu0 0
      %2626 = vmatpush2.bf16.msra.mxu0 0
      %2627 = vmatprep.mubr.bf16.mxu0 0
      %2628 = vmatmul.mubr.bf16.gmra.mxu0 %v2548
      %v2629 = vpop.f32.mrf.mxu0
      %v2630 = vadd.f32 %v2522, %v2629
      %v2631 = vpop.f32.mrf.mxu0
      %v2632 = vpop.f32.mrf.mxu0
      %v2633 = vadd.f32 %v2522, %v2632
      %v2634 = vpop.f32.mrf.mxu0
      %2635 = vmatprep.mubr.bf16.mxu0 0
      %2636 = vmatmul.mubr.bf16.gmra.mxu0 %v2551
      %v2637 = vpop.f32.mrf.mxu0
      %v2638 = vadd.f32 %v2522, %v2637
      %v2639 = vpop.f32.mrf.mxu0
      %v2640 = vpop.f32.mrf.mxu0
      %v2641 = vadd.f32 %v2522, %v2640
      %v2642 = vpop.f32.mrf.mxu0
      %2643 = vmatprep.mubr.bf16.mxu0 0
      %2644 = vmatmul.mubr.bf16.gmra.mxu0 %v2554
      %v2645 = vpop.f32.mrf.mxu0
      %v2646 = vadd.f32 %v2522, %v2645
      %v2647 = vpop.f32.mrf.mxu0
      %v2648 = vpop.f32.mrf.mxu0
      %v2649 = vadd.f32 %v2522, %v2648
      %v2650 = vpop.f32.mrf.mxu0
      %2651 = vmatprep.mubr.bf16.mxu0 0
      %2652 = vmatmul.mubr.bf16.gmra.mxu0 %v2557
      %v2653 = vpop.f32.mrf.mxu0
      %v2654 = vadd.f32 %v2522, %v2653
      %v2655 = vpop.f32.mrf.mxu0
      %v2656 = vpop.f32.mrf.mxu0
      %v2657 = vadd.f32 %v2522, %v2656
      %v2658 = vpop.f32.mrf.mxu0
      %2659 = vmatprep.mubr.bf16.mxu0 0
      %2660 = vmatmul.mubr.bf16.gmra.mxu0 %v2560
      %v2661 = vpop.f32.mrf.mxu0
      %v2662 = vadd.f32 %v2522, %v2661
      %v2663 = vpop.f32.mrf.mxu0
      %v2664 = vpop.f32.mrf.mxu0
      %v2665 = vadd.f32 %v2522, %v2664
      %v2666 = vpop.f32.mrf.mxu0
      %2667 = vmatprep.mubr.bf16.mxu0 0
      %2668 = vmatmul.mubr.bf16.gmra.mxu0 %v2563
      %v2669 = vpop.f32.mrf.mxu0
      %v2670 = vadd.f32 %v2522, %v2669
      %v2671 = vpop.f32.mrf.mxu0
      %v2672 = vpop.f32.mrf.mxu0
      %v2673 = vadd.f32 %v2522, %v2672
      %v2674 = vpop.f32.mrf.mxu0
      %2675 = vmatprep.mubr.bf16.mxu0 0
      %2676 = vmatmul.mubr.bf16.gmra.mxu0 %v2566
      %v2677 = vpop.f32.mrf.mxu0
      %v2678 = vadd.f32 %v2522, %v2677
      %v2679 = vpop.f32.mrf.mxu0
      %v2680 = vpop.f32.mrf.mxu0
      %v2681 = vadd.f32 %v2522, %v2680
      %v2682 = vpop.f32.mrf.mxu0
      %2683 = vmatprep.mubr.bf16.mxu0 0
      %2684 = vmatmul.mubr.bf16.gmra.mxu0 %v2569
      %v2685 = vpop.f32.mrf.mxu0
      %v2686 = vadd.f32 %v2522, %v2685
      %v2687 = vpop.f32.mrf.mxu0
      %v2688 = vpop.f32.mrf.mxu0
      %v2689 = vadd.f32 %v2522, %v2688
      %v2690 = vpop.f32.mrf.mxu0
      %2691 = vmatprep.mubr.bf16.mxu0 0
      %2692 = vmatmul.mubr.bf16.gmra.mxu0 %v2572
      %v2693 = vpop.f32.mrf.mxu0
      %v2694 = vadd.f32 %v2522, %v2693
      %v2695 = vpop.f32.mrf.mxu0
      %v2696 = vpop.f32.mrf.mxu0
      %v2697 = vadd.f32 %v2522, %v2696
      %v2698 = vpop.f32.mrf.mxu0
      %2699 = vmatprep.mubr.bf16.mxu0 0
      %2700 = vmatmul.mubr.bf16.gmra.mxu0 %v2575
      %v2701 = vpop.f32.mrf.mxu0
      %v2702 = vadd.f32 %v2522, %v2701
      %v2703 = vpop.f32.mrf.mxu0
      %v2704 = vpop.f32.mrf.mxu0
      %v2705 = vadd.f32 %v2522, %v2704
      %v2706 = vpop.f32.mrf.mxu0
      %2707 = vmatprep.mubr.bf16.mxu0 0
      %2708 = vmatmul.mubr.bf16.gmra.mxu0 %v2578
      %v2709 = vpop.f32.mrf.mxu0
      %v2710 = vadd.f32 %v2522, %v2709
      %v2711 = vpop.f32.mrf.mxu0
      %v2712 = vpop.f32.mrf.mxu0
      %v2713 = vadd.f32 %v2522, %v2712
      %v2714 = vpop.f32.mrf.mxu0
      %2715 = vmatprep.mubr.bf16.mxu0 0
      %2716 = vmatmul.mubr.bf16.gmra.mxu0 %v2581
      %v2717 = vpop.f32.mrf.mxu0
      %v2718 = vadd.f32 %v2522, %v2717
      %v2719 = vpop.f32.mrf.mxu0
      %v2720 = vpop.f32.mrf.mxu0
      %v2721 = vadd.f32 %v2522, %v2720
      %v2722 = vpop.f32.mrf.mxu0
      %2723 = vmatprep.mubr.bf16.mxu0 0
      %2724 = vmatmul.mubr.bf16.gmra.mxu0 %v2584
      %v2725 = vpop.f32.mrf.mxu0
      %v2726 = vadd.f32 %v2522, %v2725
      %v2727 = vpop.f32.mrf.mxu0
      %v2728 = vpop.f32.mrf.mxu0
      %v2729 = vadd.f32 %v2522, %v2728
      %v2730 = vpop.f32.mrf.mxu0
      %2731 = vmatprep.mubr.bf16.mxu0 0
      %2732 = vmatmul.mubr.bf16.gmra.mxu0 %v2587
      %v2733 = vpop.f32.mrf.mxu0
      %v2734 = vadd.f32 %v2522, %v2733
      %v2735 = vpop.f32.mrf.mxu0
      %v2736 = vpop.f32.mrf.mxu0
      %v2737 = vadd.f32 %v2522, %v2736
      %v2738 = vpop.f32.mrf.mxu0
      %2739 = vmatprep.mubr.bf16.mxu0 0
      %2740 = vmatmul.mubr.bf16.gmra.mxu0 %v2590
      %v2741 = vpop.f32.mrf.mxu0
      %v2742 = vadd.f32 %v2522, %v2741
      %v2743 = vpop.f32.mrf.mxu0
      %v2744 = vpop.f32.mrf.mxu0
      %v2745 = vadd.f32 %v2522, %v2744
      %v2746 = vpop.f32.mrf.mxu0
      %2747 = vmatprep.mubr.bf16.mxu0 0
      %2748 = vmatmul.mubr.bf16.gmra.mxu0 %v2593
      %v2749 = vpop.f32.mrf.mxu0
      %v2750 = vadd.f32 %v2522, %v2749
      %v2751 = vpop.f32.mrf.mxu0
      %v2752 = vpop.f32.mrf.mxu0
      %v2753 = vadd.f32 %v2522, %v2752
      %v2754 = vpop.f32.mrf.mxu0
      %2755 = vdwg.mxu0
      %v2756 = vmax.f32 %v2630, 0.0
      %v2757 = vmax.f32 %v2633, 0.0
      %v2758 = vmax.f32 %v2638, 0.0
      %v2759 = vmax.f32 %v2641, 0.0
      %v2760 = vmax.f32 %v2646, 0.0
      %v2761 = vmax.f32 %v2649, 0.0
      %v2762 = vmax.f32 %v2654, 0.0
      %v2763 = vmax.f32 %v2657, 0.0
      %v2764 = vmax.f32 %v2662, 0.0
      %v2765 = vmax.f32 %v2665, 0.0
      %v2766 = vmax.f32 %v2670, 0.0
      %v2767 = vmax.f32 %v2673, 0.0
      %v2768 = vmax.f32 %v2678, 0.0
      %v2769 = vmax.f32 %v2681, 0.0
      %v2770 = vmax.f32 %v2686, 0.0
      %v2771 = vmax.f32 %v2689, 0.0
      %v2772 = vmax.f32 %v2694, 0.0
      %v2773 = vmax.f32 %v2697, 0.0
      %v2774 = vmax.f32 %v2702, 0.0
      %v2775 = vmax.f32 %v2705, 0.0
      %v2776 = vmax.f32 %v2710, 0.0
      %v2777 = vmax.f32 %v2713, 0.0
      %v2778 = vmax.f32 %v2718, 0.0
      %v2779 = vmax.f32 %v2721, 0.0
      %v2780 = vmax.f32 %v2726, 0.0
      %v2781 = vmax.f32 %v2729, 0.0
      %v2782 = vmax.f32 %v2734, 0.0
      %v2783 = vmax.f32 %v2737, 0.0
      %v2784 = vmax.f32 %v2742, 0.0
      %v2785 = vmax.f32 %v2745, 0.0
      %v2786 = vmax.f32 %v2750, 0.0
      %v2787 = vmax.f32 %v2753, 0.0
      %v2788 = vpack.c.bf16 %v2757, %v2756
      %v2789 = vpack.c.bf16 %v2759, %v2758
      %v2790 = vpack.c.bf16 %v2761, %v2760
      %v2791 = vpack.c.bf16 %v2763, %v2762
      %v2792 = vpack.c.bf16 %v2765, %v2764
      %v2793 = vpack.c.bf16 %v2767, %v2766
      %v2794 = vpack.c.bf16 %v2769, %v2768
      %v2795 = vpack.c.bf16 %v2771, %v2770
      %v2796 = vpack.c.bf16 %v2773, %v2772
      %v2797 = vpack.c.bf16 %v2775, %v2774
      %v2798 = vpack.c.bf16 %v2777, %v2776
      %v2799 = vpack.c.bf16 %v2779, %v2778
      %v2800 = vpack.c.bf16 %v2781, %v2780
      %v2801 = vpack.c.bf16 %v2783, %v2782
      %v2802 = vpack.c.bf16 %v2785, %v2784
      %v2803 = vpack.c.bf16 %v2787, %v2786
      %v2804 = vld [vmem:[%s1 + $0x1e0] sm:$0xf]
      %v2805 = vld [vmem:[%s1 + $0x1e8] sm:$0xf]
      %v2806 = vld [vmem:[%s1 + $0x1f0] sm:$0xf]
      %v2807 = vld [vmem:[%s1 + $0x1f8] sm:$0xf]
      %v2808 = vld [vmem:[%s1 + $0x200] sm:$0xf]
      %v2809 = vld [vmem:[%s1 + $0x208] sm:$0xf]
      %v2810 = vld [vmem:[%s1 + $0x210] sm:$0xf]
      %v2811 = vld [vmem:[%s1 + $0x218] sm:$0xf]
      %v2812 = vld [vmem:[%s2 + $0x7] sm:$0x1]
      %v2813 = vlaneseq
      %v2814 = vshrl.u32 %v2813, 7
      %v2815 = vsub.s32 0, %v2814
      %v2816 = vrot.slane %v2812, %v2815
      %v2825 = vunpack.c.l.b16 %v2804
      %v2826 = vunpack.c.l.b16 %v2805
      %v2827 = vunpack.c.l.b16 %v2806
      %v2828 = vunpack.c.l.b16 %v2807
      %v2829 = vunpack.c.l.b16 %v2808
      %v2830 = vunpack.c.l.b16 %v2809
      %v2831 = vunpack.c.l.b16 %v2810
      %v2832 = vunpack.c.l.b16 %v2811
      %v2833 = vpack.c.b16 %v2826, %v2825
      %v2834 = vpack.c.b16 %v2828, %v2827
      %v2835 = vpack.c.b16 %v2830, %v2829
      %v2836 = vpack.c.b16 %v2832, %v2831
      %v2842 = vsel %vm724, %v2788, 0
      %v2845 = vsel %vm724, %v2789, 0
      %v2848 = vsel %vm724, %v2790, 0
      %v2851 = vsel %vm724, %v2791, 0
      %v2854 = vsel %vm724, %v2792, 0
      %v2857 = vsel %vm724, %v2793, 0
      %v2860 = vsel %vm724, %v2794, 0
      %v2863 = vsel %vm724, %v2795, 0
      %v2866 = vsel %vm724, %v2796, 0
      %v2869 = vsel %vm724, %v2797, 0
      %v2872 = vsel %vm724, %v2798, 0
      %v2875 = vsel %vm724, %v2799, 0
      %v2878 = vsel %vm724, %v2800, 0
      %v2881 = vsel %vm724, %v2801, 0
      %v2884 = vsel %vm724, %v2802, 0
      %v2887 = vsel %vm724, %v2803, 0
      %2889 = vmatprep.subr.bf16.mxu0 0
      %2890 = vmatpush1.bf16.msra.mxu0 0
      %2891 = vmatprep.subr.bf16.mxu0 0
      %2892 = vmatpush1.bf16.msra.mxu0 0
      %2893 = vmatprep.subr.bf16.mxu0 0
      %2894 = vmatpush1.bf16.msra.mxu0 0
      %2895 = vmatprep.subr.bf16.mxu0 0
      %2896 = vmatpush1.bf16.msra.mxu0 0
      %2897 = vmatprep.subr.bf16.mxu0 0
      %2898 = vmatpush1.bf16.msra.mxu0 %v2836
      %2899 = vmatprep.subr.bf16.mxu0 0
      %2900 = vmatpush1.bf16.msra.mxu0 %v2835
      %2901 = vmatprep.subr.bf16.mxu0 0
      %2902 = vmatpush1.bf16.msra.mxu0 %v2834
      %2903 = vmatprep.subr.bf16.mxu0 0
      %2904 = vmatpush1.bf16.msra.mxu0 %v2833
      %2905 = vmatprep.subr.bf16.mxu0 0
      %2906 = vmatpush2.bf16.msra.mxu0 0
      %2907 = vmatprep.subr.bf16.mxu0 0
      %2908 = vmatpush2.bf16.msra.mxu0 0
      %2909 = vmatprep.subr.bf16.mxu0 0
      %2910 = vmatpush2.bf16.msra.mxu0 0
      %2911 = vmatprep.subr.bf16.mxu0 0
      %2912 = vmatpush2.bf16.msra.mxu0 0
      %2913 = vmatprep.subr.bf16.mxu0 0
      %2914 = vmatpush2.bf16.msra.mxu0 0
      %2915 = vmatprep.subr.bf16.mxu0 0
      %2916 = vmatpush2.bf16.msra.mxu0 0
      %2917 = vmatprep.subr.bf16.mxu0 0
      %2918 = vmatpush2.bf16.msra.mxu0 0
      %2919 = vmatprep.subr.bf16.mxu0 0
      %2920 = vmatpush2.bf16.msra.mxu0 0
      %2921 = vmatprep.mubr.bf16.mxu0 0
      %2922 = vmatmul.mubr.bf16.gmra.mxu0 %v2842
      %v2923 = vpop.f32.mrf.mxu0
      %v2924 = vadd.f32 %v2816, %v2923
      %v2925 = vpop.f32.mrf.mxu0
      %v2926 = vpop.f32.mrf.mxu0
      %v2927 = vadd.f32 %v2816, %v2926
      %v2928 = vpop.f32.mrf.mxu0
      %2929 = vmatprep.mubr.bf16.mxu0 0
      %2930 = vmatmul.mubr.bf16.gmra.mxu0 %v2845
      %v2931 = vpop.f32.mrf.mxu0
      %v2932 = vadd.f32 %v2816, %v2931
      %v2933 = vpop.f32.mrf.mxu0
      %v2934 = vpop.f32.mrf.mxu0
      %v2935 = vadd.f32 %v2816, %v2934
      %v2936 = vpop.f32.mrf.mxu0
      %2937 = vmatprep.mubr.bf16.mxu0 0
      %2938 = vmatmul.mubr.bf16.gmra.mxu0 %v2848
      %v2939 = vpop.f32.mrf.mxu0
      %v2940 = vadd.f32 %v2816, %v2939
      %v2941 = vpop.f32.mrf.mxu0
      %v2942 = vpop.f32.mrf.mxu0
      %v2943 = vadd.f32 %v2816, %v2942
      %v2944 = vpop.f32.mrf.mxu0
      %2945 = vmatprep.mubr.bf16.mxu0 0
      %2946 = vmatmul.mubr.bf16.gmra.mxu0 %v2851
      %v2947 = vpop.f32.mrf.mxu0
      %v2948 = vadd.f32 %v2816, %v2947
      %v2949 = vpop.f32.mrf.mxu0
      %v2950 = vpop.f32.mrf.mxu0
      %v2951 = vadd.f32 %v2816, %v2950
      %v2952 = vpop.f32.mrf.mxu0
      %2953 = vmatprep.mubr.bf16.mxu0 0
      %2954 = vmatmul.mubr.bf16.gmra.mxu0 %v2854
      %v2955 = vpop.f32.mrf.mxu0
      %v2956 = vadd.f32 %v2816, %v2955
      %v2957 = vpop.f32.mrf.mxu0
      %v2958 = vpop.f32.mrf.mxu0
      %v2959 = vadd.f32 %v2816, %v2958
      %v2960 = vpop.f32.mrf.mxu0
      %2961 = vmatprep.mubr.bf16.mxu0 0
      %2962 = vmatmul.mubr.bf16.gmra.mxu0 %v2857
      %v2963 = vpop.f32.mrf.mxu0
      %v2964 = vadd.f32 %v2816, %v2963
      %v2965 = vpop.f32.mrf.mxu0
      %v2966 = vpop.f32.mrf.mxu0
      %v2967 = vadd.f32 %v2816, %v2966
      %v2968 = vpop.f32.mrf.mxu0
      %2969 = vmatprep.mubr.bf16.mxu0 0
      %2970 = vmatmul.mubr.bf16.gmra.mxu0 %v2860
      %v2971 = vpop.f32.mrf.mxu0
      %v2972 = vadd.f32 %v2816, %v2971
      %v2973 = vpop.f32.mrf.mxu0
      %v2974 = vpop.f32.mrf.mxu0
      %v2975 = vadd.f32 %v2816, %v2974
      %v2976 = vpop.f32.mrf.mxu0
      %2977 = vmatprep.mubr.bf16.mxu0 0
      %2978 = vmatmul.mubr.bf16.gmra.mxu0 %v2863
      %v2979 = vpop.f32.mrf.mxu0
      %v2980 = vadd.f32 %v2816, %v2979
      %v2981 = vpop.f32.mrf.mxu0
      %v2982 = vpop.f32.mrf.mxu0
      %v2983 = vadd.f32 %v2816, %v2982
      %v2984 = vpop.f32.mrf.mxu0
      %2985 = vmatprep.mubr.bf16.mxu0 0
      %2986 = vmatmul.mubr.bf16.gmra.mxu0 %v2866
      %v2987 = vpop.f32.mrf.mxu0
      %v2988 = vadd.f32 %v2816, %v2987
      %v2989 = vpop.f32.mrf.mxu0
      %v2990 = vpop.f32.mrf.mxu0
      %v2991 = vadd.f32 %v2816, %v2990
      %v2992 = vpop.f32.mrf.mxu0
      %2993 = vmatprep.mubr.bf16.mxu0 0
      %2994 = vmatmul.mubr.bf16.gmra.mxu0 %v2869
      %v2995 = vpop.f32.mrf.mxu0
      %v2996 = vadd.f32 %v2816, %v2995
      %v2997 = vpop.f32.mrf.mxu0
      %v2998 = vpop.f32.mrf.mxu0
      %v2999 = vadd.f32 %v2816, %v2998
      %v3000 = vpop.f32.mrf.mxu0
      %3001 = vmatprep.mubr.bf16.mxu0 0
      %3002 = vmatmul.mubr.bf16.gmra.mxu0 %v2872
      %v3003 = vpop.f32.mrf.mxu0
      %v3004 = vadd.f32 %v2816, %v3003
      %v3005 = vpop.f32.mrf.mxu0
      %v3006 = vpop.f32.mrf.mxu0
      %v3007 = vadd.f32 %v2816, %v3006
      %v3008 = vpop.f32.mrf.mxu0
      %3009 = vmatprep.mubr.bf16.mxu0 0
      %3010 = vmatmul.mubr.bf16.gmra.mxu0 %v2875
      %v3011 = vpop.f32.mrf.mxu0
      %v3012 = vadd.f32 %v2816, %v3011
      %v3013 = vpop.f32.mrf.mxu0
      %v3014 = vpop.f32.mrf.mxu0
      %v3015 = vadd.f32 %v2816, %v3014
      %v3016 = vpop.f32.mrf.mxu0
      %3017 = vmatprep.mubr.bf16.mxu0 0
      %3018 = vmatmul.mubr.bf16.gmra.mxu0 %v2878
      %v3019 = vpop.f32.mrf.mxu0
      %v3020 = vadd.f32 %v2816, %v3019
      %v3021 = vpop.f32.mrf.mxu0
      %v3022 = vpop.f32.mrf.mxu0
      %v3023 = vadd.f32 %v2816, %v3022
      %v3024 = vpop.f32.mrf.mxu0
      %3025 = vmatprep.mubr.bf16.mxu0 0
      %3026 = vmatmul.mubr.bf16.gmra.mxu0 %v2881
      %v3027 = vpop.f32.mrf.mxu0
      %v3028 = vadd.f32 %v2816, %v3027
      %v3029 = vpop.f32.mrf.mxu0
      %v3030 = vpop.f32.mrf.mxu0
      %v3031 = vadd.f32 %v2816, %v3030
      %v3032 = vpop.f32.mrf.mxu0
      %3033 = vmatprep.mubr.bf16.mxu0 0
      %3034 = vmatmul.mubr.bf16.gmra.mxu0 %v2884
      %v3035 = vpop.f32.mrf.mxu0
      %v3036 = vadd.f32 %v2816, %v3035
      %v3037 = vpop.f32.mrf.mxu0
      %v3038 = vpop.f32.mrf.mxu0
      %v3039 = vadd.f32 %v2816, %v3038
      %v3040 = vpop.f32.mrf.mxu0
      %3041 = vmatprep.mubr.bf16.mxu0 0
      %3042 = vmatmul.mubr.bf16.gmra.mxu0 %v2887
      %v3043 = vpop.f32.mrf.mxu0
      %v3044 = vadd.f32 %v2816, %v3043
      %v3045 = vpop.f32.mrf.mxu0
      %v3046 = vpop.f32.mrf.mxu0
      %v3047 = vadd.f32 %v2816, %v3046
      %v3048 = vpop.f32.mrf.mxu0
      %3049 = vdwg.mxu0
      %v3050 = vmax.f32 %v2924, 0.0
      %v3051 = vmax.f32 %v2927, 0.0
      %v3052 = vmax.f32 %v2932, 0.0
      %v3053 = vmax.f32 %v2935, 0.0
      %v3054 = vmax.f32 %v2940, 0.0
      %v3055 = vmax.f32 %v2943, 0.0
      %v3056 = vmax.f32 %v2948, 0.0
      %v3057 = vmax.f32 %v2951, 0.0
      %v3058 = vmax.f32 %v2956, 0.0
      %v3059 = vmax.f32 %v2959, 0.0
      %v3060 = vmax.f32 %v2964, 0.0
      %v3061 = vmax.f32 %v2967, 0.0
      %v3062 = vmax.f32 %v2972, 0.0
      %v3063 = vmax.f32 %v2975, 0.0
      %v3064 = vmax.f32 %v2980, 0.0
      %v3065 = vmax.f32 %v2983, 0.0
      %v3066 = vmax.f32 %v2988, 0.0
      %v3067 = vmax.f32 %v2991, 0.0
      %v3068 = vmax.f32 %v2996, 0.0
      %v3069 = vmax.f32 %v2999, 0.0
      %v3070 = vmax.f32 %v3004, 0.0
      %v3071 = vmax.f32 %v3007, 0.0
      %v3072 = vmax.f32 %v3012, 0.0
      %v3073 = vmax.f32 %v3015, 0.0
      %v3074 = vmax.f32 %v3020, 0.0
      %v3075 = vmax.f32 %v3023, 0.0
      %v3076 = vmax.f32 %v3028, 0.0
      %v3077 = vmax.f32 %v3031, 0.0
      %v3078 = vmax.f32 %v3036, 0.0
      %v3079 = vmax.f32 %v3039, 0.0
      %v3080 = vmax.f32 %v3044, 0.0
      %v3081 = vmax.f32 %v3047, 0.0
      %v3082 = vpack.c.bf16 %v3051, %v3050
      %v3083 = vpack.c.bf16 %v3053, %v3052
      %v3084 = vpack.c.bf16 %v3055, %v3054
      %v3085 = vpack.c.bf16 %v3057, %v3056
      %v3086 = vpack.c.bf16 %v3059, %v3058
      %v3087 = vpack.c.bf16 %v3061, %v3060
      %v3088 = vpack.c.bf16 %v3063, %v3062
      %v3089 = vpack.c.bf16 %v3065, %v3064
      %v3090 = vpack.c.bf16 %v3067, %v3066
      %v3091 = vpack.c.bf16 %v3069, %v3068
      %v3092 = vpack.c.bf16 %v3071, %v3070
      %v3093 = vpack.c.bf16 %v3073, %v3072
      %v3094 = vpack.c.bf16 %v3075, %v3074
      %v3095 = vpack.c.bf16 %v3077, %v3076
      %v3096 = vpack.c.bf16 %v3079, %v3078
      %v3097 = vpack.c.bf16 %v3081, %v3080
      %v3098 = vld [vmem:[%s1 + $0x220] sm:$0xf]
      %v3099 = vld [vmem:[%s1 + $0x228] sm:$0xf]
      %v3100 = vld [vmem:[%s1 + $0x230] sm:$0xf]
      %v3101 = vld [vmem:[%s1 + $0x238] sm:$0xf]
      %v3102 = vld [vmem:[%s1 + $0x240] sm:$0xf]
      %v3103 = vld [vmem:[%s1 + $0x248] sm:$0xf]
      %v3104 = vld [vmem:[%s1 + $0x250] sm:$0xf]
      %v3105 = vld [vmem:[%s1 + $0x258] sm:$0xf]
      %v3106 = vld [vmem:[%s2 + $0x8] sm:$0x1]
      %v3107 = vlaneseq
      %v3108 = vshrl.u32 %v3107, 7
      %v3109 = vsub.s32 0, %v3108
      %v3110 = vrot.slane %v3106, %v3109
      %v3119 = vunpack.c.l.b16 %v3098
      %v3120 = vunpack.c.l.b16 %v3099
      %v3121 = vunpack.c.l.b16 %v3100
      %v3122 = vunpack.c.l.b16 %v3101
      %v3123 = vunpack.c.l.b16 %v3102
      %v3124 = vunpack.c.l.b16 %v3103
      %v3125 = vunpack.c.l.b16 %v3104
      %v3126 = vunpack.c.l.b16 %v3105
      %v3127 = vpack.c.b16 %v3120, %v3119
      %v3128 = vpack.c.b16 %v3122, %v3121
      %v3129 = vpack.c.b16 %v3124, %v3123
      %v3130 = vpack.c.b16 %v3126, %v3125
      %v3136 = vsel %vm724, %v3082, 0
      %v3139 = vsel %vm724, %v3083, 0
      %v3142 = vsel %vm724, %v3084, 0
      %v3145 = vsel %vm724, %v3085, 0
      %v3148 = vsel %vm724, %v3086, 0
      %v3151 = vsel %vm724, %v3087, 0
      %v3154 = vsel %vm724, %v3088, 0
      %v3157 = vsel %vm724, %v3089, 0
      %v3160 = vsel %vm724, %v3090, 0
      %v3163 = vsel %vm724, %v3091, 0
      %v3166 = vsel %vm724, %v3092, 0
      %v3169 = vsel %vm724, %v3093, 0
      %v3172 = vsel %vm724, %v3094, 0
      %v3175 = vsel %vm724, %v3095, 0
      %v3178 = vsel %vm724, %v3096, 0
      %v3181 = vsel %vm724, %v3097, 0
      %3183 = vmatprep.subr.bf16.mxu0 0
      %3184 = vmatpush1.bf16.msra.mxu0 0
      %3185 = vmatprep.subr.bf16.mxu0 0
      %3186 = vmatpush1.bf16.msra.mxu0 0
      %3187 = vmatprep.subr.bf16.mxu0 0
      %3188 = vmatpush1.bf16.msra.mxu0 0
      %3189 = vmatprep.subr.bf16.mxu0 0
      %3190 = vmatpush1.bf16.msra.mxu0 0
      %3191 = vmatprep.subr.bf16.mxu0 0
      %3192 = vmatpush1.bf16.msra.mxu0 %v3130
      %3193 = vmatprep.subr.bf16.mxu0 0
      %3194 = vmatpush1.bf16.msra.mxu0 %v3129
      %3195 = vmatprep.subr.bf16.mxu0 0
      %3196 = vmatpush1.bf16.msra.mxu0 %v3128
      %3197 = vmatprep.subr.bf16.mxu0 0
      %3198 = vmatpush1.bf16.msra.mxu0 %v3127
      %3199 = vmatprep.subr.bf16.mxu0 0
      %3200 = vmatpush2.bf16.msra.mxu0 0
      %3201 = vmatprep.subr.bf16.mxu0 0
      %3202 = vmatpush2.bf16.msra.mxu0 0
      %3203 = vmatprep.subr.bf16.mxu0 0
      %3204 = vmatpush2.bf16.msra.mxu0 0
      %3205 = vmatprep.subr.bf16.mxu0 0
      %3206 = vmatpush2.bf16.msra.mxu0 0
      %3207 = vmatprep.subr.bf16.mxu0 0
      %3208 = vmatpush2.bf16.msra.mxu0 0
      %3209 = vmatprep.subr.bf16.mxu0 0
      %3210 = vmatpush2.bf16.msra.mxu0 0
      %3211 = vmatprep.subr.bf16.mxu0 0
      %3212 = vmatpush2.bf16.msra.mxu0 0
      %3213 = vmatprep.subr.bf16.mxu0 0
      %3214 = vmatpush2.bf16.msra.mxu0 0
      %3215 = vmatprep.mubr.bf16.mxu0 0
      %3216 = vmatmul.mubr.bf16.gmra.mxu0 %v3136
      %v3217 = vpop.f32.mrf.mxu0
      %v3218 = vadd.f32 %v3110, %v3217
      %v3219 = vpop.f32.mrf.mxu0
      %v3220 = vpop.f32.mrf.mxu0
      %v3221 = vadd.f32 %v3110, %v3220
      %v3222 = vpop.f32.mrf.mxu0
      %3223 = vmatprep.mubr.bf16.mxu0 0
      %3224 = vmatmul.mubr.bf16.gmra.mxu0 %v3139
      %v3225 = vpop.f32.mrf.mxu0
      %v3226 = vadd.f32 %v3110, %v3225
      %v3227 = vpop.f32.mrf.mxu0
      %v3228 = vpop.f32.mrf.mxu0
      %v3229 = vadd.f32 %v3110, %v3228
      %v3230 = vpop.f32.mrf.mxu0
      %3231 = vmatprep.mubr.bf16.mxu0 0
      %3232 = vmatmul.mubr.bf16.gmra.mxu0 %v3142
      %v3233 = vpop.f32.mrf.mxu0
      %v3234 = vadd.f32 %v3110, %v3233
      %v3235 = vpop.f32.mrf.mxu0
      %v3236 = vpop.f32.mrf.mxu0
      %v3237 = vadd.f32 %v3110, %v3236
      %v3238 = vpop.f32.mrf.mxu0
      %3239 = vmatprep.mubr.bf16.mxu0 0
      %3240 = vmatmul.mubr.bf16.gmra.mxu0 %v3145
      %v3241 = vpop.f32.mrf.mxu0
      %v3242 = vadd.f32 %v3110, %v3241
      %v3243 = vpop.f32.mrf.mxu0
      %v3244 = vpop.f32.mrf.mxu0
      %v3245 = vadd.f32 %v3110, %v3244
      %v3246 = vpop.f32.mrf.mxu0
      %3247 = vmatprep.mubr.bf16.mxu0 0
      %3248 = vmatmul.mubr.bf16.gmra.mxu0 %v3148
      %v3249 = vpop.f32.mrf.mxu0
      %v3250 = vadd.f32 %v3110, %v3249
      %v3251 = vpop.f32.mrf.mxu0
      %v3252 = vpop.f32.mrf.mxu0
      %v3253 = vadd.f32 %v3110, %v3252
      %v3254 = vpop.f32.mrf.mxu0
      %3255 = vmatprep.mubr.bf16.mxu0 0
      %3256 = vmatmul.mubr.bf16.gmra.mxu0 %v3151
      %v3257 = vpop.f32.mrf.mxu0
      %v3258 = vadd.f32 %v3110, %v3257
      %v3259 = vpop.f32.mrf.mxu0
      %v3260 = vpop.f32.mrf.mxu0
      %v3261 = vadd.f32 %v3110, %v3260
      %v3262 = vpop.f32.mrf.mxu0
      %3263 = vmatprep.mubr.bf16.mxu0 0
      %3264 = vmatmul.mubr.bf16.gmra.mxu0 %v3154
      %v3265 = vpop.f32.mrf.mxu0
      %v3266 = vadd.f32 %v3110, %v3265
      %v3267 = vpop.f32.mrf.mxu0
      %v3268 = vpop.f32.mrf.mxu0
      %v3269 = vadd.f32 %v3110, %v3268
      %v3270 = vpop.f32.mrf.mxu0
      %3271 = vmatprep.mubr.bf16.mxu0 0
      %3272 = vmatmul.mubr.bf16.gmra.mxu0 %v3157
      %v3273 = vpop.f32.mrf.mxu0
      %v3274 = vadd.f32 %v3110, %v3273
      %v3275 = vpop.f32.mrf.mxu0
      %v3276 = vpop.f32.mrf.mxu0
      %v3277 = vadd.f32 %v3110, %v3276
      %v3278 = vpop.f32.mrf.mxu0
      %3279 = vmatprep.mubr.bf16.mxu0 0
      %3280 = vmatmul.mubr.bf16.gmra.mxu0 %v3160
      %v3281 = vpop.f32.mrf.mxu0
      %v3282 = vadd.f32 %v3110, %v3281
      %v3283 = vpop.f32.mrf.mxu0
      %v3284 = vpop.f32.mrf.mxu0
      %v3285 = vadd.f32 %v3110, %v3284
      %v3286 = vpop.f32.mrf.mxu0
      %3287 = vmatprep.mubr.bf16.mxu0 0
      %3288 = vmatmul.mubr.bf16.gmra.mxu0 %v3163
      %v3289 = vpop.f32.mrf.mxu0
      %v3290 = vadd.f32 %v3110, %v3289
      %v3291 = vpop.f32.mrf.mxu0
      %v3292 = vpop.f32.mrf.mxu0
      %v3293 = vadd.f32 %v3110, %v3292
      %v3294 = vpop.f32.mrf.mxu0
      %3295 = vmatprep.mubr.bf16.mxu0 0
      %3296 = vmatmul.mubr.bf16.gmra.mxu0 %v3166
      %v3297 = vpop.f32.mrf.mxu0
      %v3298 = vadd.f32 %v3110, %v3297
      %v3299 = vpop.f32.mrf.mxu0
      %v3300 = vpop.f32.mrf.mxu0
      %v3301 = vadd.f32 %v3110, %v3300
      %v3302 = vpop.f32.mrf.mxu0
      %3303 = vmatprep.mubr.bf16.mxu0 0
      %3304 = vmatmul.mubr.bf16.gmra.mxu0 %v3169
      %v3305 = vpop.f32.mrf.mxu0
      %v3306 = vadd.f32 %v3110, %v3305
      %v3307 = vpop.f32.mrf.mxu0
      %v3308 = vpop.f32.mrf.mxu0
      %v3309 = vadd.f32 %v3110, %v3308
      %v3310 = vpop.f32.mrf.mxu0
      %3311 = vmatprep.mubr.bf16.mxu0 0
      %3312 = vmatmul.mubr.bf16.gmra.mxu0 %v3172
      %v3313 = vpop.f32.mrf.mxu0
      %v3314 = vadd.f32 %v3110, %v3313
      %v3315 = vpop.f32.mrf.mxu0
      %v3316 = vpop.f32.mrf.mxu0
      %v3317 = vadd.f32 %v3110, %v3316
      %v3318 = vpop.f32.mrf.mxu0
      %3319 = vmatprep.mubr.bf16.mxu0 0
      %3320 = vmatmul.mubr.bf16.gmra.mxu0 %v3175
      %v3321 = vpop.f32.mrf.mxu0
      %v3322 = vadd.f32 %v3110, %v3321
      %v3323 = vpop.f32.mrf.mxu0
      %v3324 = vpop.f32.mrf.mxu0
      %v3325 = vadd.f32 %v3110, %v3324
      %v3326 = vpop.f32.mrf.mxu0
      %3327 = vmatprep.mubr.bf16.mxu0 0
      %3328 = vmatmul.mubr.bf16.gmra.mxu0 %v3178
      %v3329 = vpop.f32.mrf.mxu0
      %v3330 = vadd.f32 %v3110, %v3329
      %v3331 = vpop.f32.mrf.mxu0
      %v3332 = vpop.f32.mrf.mxu0
      %v3333 = vadd.f32 %v3110, %v3332
      %v3334 = vpop.f32.mrf.mxu0
      %3335 = vmatprep.mubr.bf16.mxu0 0
      %3336 = vmatmul.mubr.bf16.gmra.mxu0 %v3181
      %v3337 = vpop.f32.mrf.mxu0
      %v3338 = vadd.f32 %v3110, %v3337
      %v3339 = vpop.f32.mrf.mxu0
      %v3340 = vpop.f32.mrf.mxu0
      %v3341 = vadd.f32 %v3110, %v3340
      %v3342 = vpop.f32.mrf.mxu0
      %3343 = vdwg.mxu0
      %v3344 = vpack.c.bf16 %v3221, %v3218
      %v3345 = vpack.c.bf16 %v3229, %v3226
      %v3346 = vpack.c.bf16 %v3237, %v3234
      %v3347 = vpack.c.bf16 %v3245, %v3242
      %v3348 = vpack.c.bf16 %v3253, %v3250
      %v3349 = vpack.c.bf16 %v3261, %v3258
      %v3350 = vpack.c.bf16 %v3269, %v3266
      %v3351 = vpack.c.bf16 %v3277, %v3274
      %v3352 = vpack.c.bf16 %v3285, %v3282
      %v3353 = vpack.c.bf16 %v3293, %v3290
      %v3354 = vpack.c.bf16 %v3301, %v3298
      %v3355 = vpack.c.bf16 %v3309, %v3306
      %v3356 = vpack.c.bf16 %v3317, %v3314
      %v3357 = vpack.c.bf16 %v3325, %v3322
      %v3358 = vpack.c.bf16 %v3333, %v3330
      %v3359 = vpack.c.bf16 %v3341, %v3338
      %v3360 = vld [vmem:[%s1 + $0x260] sm:$0xf]
      %v3361 = vld [vmem:[%s1 + $0x268] sm:$0xf]
      %v3362 = vld [vmem:[%s1 + $0x270] sm:$0xf]
      %v3363 = vld [vmem:[%s1 + $0x278] sm:$0xf]
      %v3364 = vld [vmem:[%s1 + $0x280] sm:$0xf]
      %v3365 = vld [vmem:[%s1 + $0x288] sm:$0xf]
      %v3366 = vld [vmem:[%s1 + $0x290] sm:$0xf]
      %v3367 = vld [vmem:[%s1 + $0x298] sm:$0xf]
      %v3368 = vld [vmem:[#allocation2] sm:$0xff]
      %v3369 = vld [vmem:[#allocation2 + $0x10] sm:$0xff]
      %v3370 = vld [vmem:[#allocation2 + $0x20] sm:$0xff]
      %v3371 = vld [vmem:[#allocation2 + $0x30] sm:$0xff]
      %v3372 = vld [vmem:[#allocation2 + $0x40] sm:$0xff]
      %v3373 = vld [vmem:[#allocation2 + $0x50] sm:$0xff]
      %v3374 = vld [vmem:[#allocation2 + $0x60] sm:$0xff]
      %v3375 = vld [vmem:[#allocation2 + $0x70] sm:$0xff]
      %v3376 = vld [vmem:[#allocation2 + $0x80] sm:$0xff]
      %v3377 = vld [vmem:[#allocation2 + $0x90] sm:$0xff]
      %v3378 = vld [vmem:[#allocation2 + $0xa0] sm:$0xff]
      %v3379 = vld [vmem:[#allocation2 + $0xb0] sm:$0xff]
      %v3380 = vld [vmem:[#allocation2 + $0xc0] sm:$0xff]
      %v3381 = vld [vmem:[#allocation2 + $0xd0] sm:$0xff]
      %v3382 = vld [vmem:[#allocation2 + $0xe0] sm:$0xff]
      %v3383 = vld [vmem:[#allocation2 + $0xf0] sm:$0xff]
      %v3384 = vld [vmem:[#allocation2 + $0x100] sm:$0xff]
      %v3385 = vld [vmem:[#allocation2 + $0x110] sm:$0xff]
      %v3386 = vld [vmem:[#allocation2 + $0x120] sm:$0xff]
      %v3387 = vld [vmem:[#allocation2 + $0x130] sm:$0xff]
      %v3388 = vld [vmem:[#allocation2 + $0x140] sm:$0xff]
      %v3389 = vld [vmem:[#allocation2 + $0x150] sm:$0xff]
      %v3390 = vld [vmem:[#allocation2 + $0x160] sm:$0xff]
      %v3391 = vld [vmem:[#allocation2 + $0x170] sm:$0xff]
      %v3392 = vld [vmem:[#allocation2 + $0x180] sm:$0xff]
      %v3393 = vld [vmem:[#allocation2 + $0x190] sm:$0xff]
      %v3394 = vld [vmem:[#allocation2 + $0x1a0] sm:$0xff]
      %v3395 = vld [vmem:[#allocation2 + $0x1b0] sm:$0xff]
      %v3396 = vld [vmem:[#allocation2 + $0x1c0] sm:$0xff]
      %v3397 = vld [vmem:[#allocation2 + $0x1d0] sm:$0xff]
      %v3398 = vld [vmem:[#allocation2 + $0x1e0] sm:$0xff]
      %v3399 = vld [vmem:[#allocation2 + $0x1f0] sm:$0xff]
      %v3408 = vunpack.c.l.b16 %v3360
      %v3409 = vunpack.c.l.b16 %v3361
      %v3410 = vunpack.c.l.b16 %v3362
      %v3411 = vunpack.c.l.b16 %v3363
      %v3412 = vunpack.c.l.b16 %v3364
      %v3413 = vunpack.c.l.b16 %v3365
      %v3414 = vunpack.c.l.b16 %v3366
      %v3415 = vunpack.c.l.b16 %v3367
      %v3416 = vpack.c.b16 %v3409, %v3408
      %v3417 = vpack.c.b16 %v3411, %v3410
      %v3418 = vpack.c.b16 %v3413, %v3412
      %v3419 = vpack.c.b16 %v3415, %v3414
      %3456 = vrot.lane.b32.xlu0 %v3368, 64
      %v3457 = vpop.permute.xlu0 %3456
      %3458 = vrot.lane.b32.xlu0 %v3369, 64
      %v3459 = vpop.permute.xlu0 %3458
      %3460 = vrot.lane.b32.xlu0 %v3370, 64
      %v3461 = vpop.permute.xlu0 %3460
      %3462 = vrot.lane.b32.xlu0 %v3371, 64
      %v3463 = vpop.permute.xlu0 %3462
      %3464 = vrot.lane.b32.xlu0 %v3372, 64
      %v3465 = vpop.permute.xlu0 %3464
      %3466 = vrot.lane.b32.xlu0 %v3373, 64
      %v3467 = vpop.permute.xlu0 %3466
      %3468 = vrot.lane.b32.xlu0 %v3374, 64
      %v3469 = vpop.permute.xlu0 %3468
      %3470 = vrot.lane.b32.xlu0 %v3375, 64
      %v3471 = vpop.permute.xlu0 %3470
      %3472 = vrot.lane.b32.xlu0 %v3376, 64
      %v3473 = vpop.permute.xlu0 %3472
      %3474 = vrot.lane.b32.xlu0 %v3377, 64
      %v3475 = vpop.permute.xlu0 %3474
      %3476 = vrot.lane.b32.xlu0 %v3378, 64
      %v3477 = vpop.permute.xlu0 %3476
      %3478 = vrot.lane.b32.xlu0 %v3379, 64
      %v3479 = vpop.permute.xlu0 %3478
      %3480 = vrot.lane.b32.xlu0 %v3380, 64
      %v3481 = vpop.permute.xlu0 %3480
      %3482 = vrot.lane.b32.xlu0 %v3381, 64
      %v3483 = vpop.permute.xlu0 %3482
      %3484 = vrot.lane.b32.xlu0 %v3382, 64
      %v3485 = vpop.permute.xlu0 %3484
      %3486 = vrot.lane.b32.xlu0 %v3383, 64
      %v3487 = vpop.permute.xlu0 %3486
      %3488 = vrot.lane.b32.xlu0 %v3384, 64
      %v3489 = vpop.permute.xlu0 %3488
      %3490 = vrot.lane.b32.xlu0 %v3385, 64
      %v3491 = vpop.permute.xlu0 %3490
      %3492 = vrot.lane.b32.xlu0 %v3386, 64
      %v3493 = vpop.permute.xlu0 %3492
      %3494 = vrot.lane.b32.xlu0 %v3387, 64
      %v3495 = vpop.permute.xlu0 %3494
      %3496 = vrot.lane.b32.xlu0 %v3388, 64
      %v3497 = vpop.permute.xlu0 %3496
      %3498 = vrot.lane.b32.xlu0 %v3389, 64
      %v3499 = vpop.permute.xlu0 %3498
      %3500 = vrot.lane.b32.xlu0 %v3390, 64
      %v3501 = vpop.permute.xlu0 %3500
      %3502 = vrot.lane.b32.xlu0 %v3391, 64
      %v3503 = vpop.permute.xlu0 %3502
      %3504 = vrot.lane.b32.xlu0 %v3392, 64
      %v3505 = vpop.permute.xlu0 %3504
      %3506 = vrot.lane.b32.xlu0 %v3393, 64
      %v3507 = vpop.permute.xlu0 %3506
      %3508 = vrot.lane.b32.xlu0 %v3394, 64
      %v3509 = vpop.permute.xlu0 %3508
      %3510 = vrot.lane.b32.xlu0 %v3395, 64
      %v3511 = vpop.permute.xlu0 %3510
      %3512 = vrot.lane.b32.xlu0 %v3396, 64
      %v3513 = vpop.permute.xlu0 %3512
      %3514 = vrot.lane.b32.xlu0 %v3397, 64
      %v3515 = vpop.permute.xlu0 %3514
      %3516 = vrot.lane.b32.xlu0 %v3398, 64
      %v3517 = vpop.permute.xlu0 %3516
      %3518 = vrot.lane.b32.xlu0 %v3399, 64
      %v3519 = vpop.permute.xlu0 %3518
      %v3553 = vsel %vm724, %v3344, 0
      %v3556 = vsel %vm724, %v3345, 0
      %v3559 = vsel %vm724, %v3346, 0
      %v3562 = vsel %vm724, %v3347, 0
      %v3565 = vsel %vm724, %v3348, 0
      %v3568 = vsel %vm724, %v3349, 0
      %v3571 = vsel %vm724, %v3350, 0
      %v3574 = vsel %vm724, %v3351, 0
      %v3577 = vsel %vm724, %v3352, 0
      %v3580 = vsel %vm724, %v3353, 0
      %v3583 = vsel %vm724, %v3354, 0
      %v3586 = vsel %vm724, %v3355, 0
      %v3589 = vsel %vm724, %v3356, 0
      %v3592 = vsel %vm724, %v3357, 0
      %v3595 = vsel %vm724, %v3358, 0
      %v3598 = vsel %vm724, %v3359, 0
      %3600 = vmatprep.subr.bf16.mxu0 0
      %3601 = vmatpush1.bf16.msra.mxu0 0
      %3602 = vmatprep.subr.bf16.mxu0 0
      %3603 = vmatpush1.bf16.msra.mxu0 0
      %3604 = vmatprep.subr.bf16.mxu0 0
      %3605 = vmatpush1.bf16.msra.mxu0 0
      %3606 = vmatprep.subr.bf16.mxu0 0
      %3607 = vmatpush1.bf16.msra.mxu0 0
      %3608 = vmatprep.subr.bf16.mxu0 0
      %3609 = vmatpush1.bf16.msra.mxu0 %v3419
      %3610 = vmatprep.subr.bf16.mxu0 0
      %3611 = vmatpush1.bf16.msra.mxu0 %v3418
      %3612 = vmatprep.subr.bf16.mxu0 0
      %3613 = vmatpush1.bf16.msra.mxu0 %v3417
      %3614 = vmatprep.subr.bf16.mxu0 0
      %3615 = vmatpush1.bf16.msra.mxu0 %v3416
      %3616 = vmatprep.subr.bf16.mxu0 0
      %3617 = vmatpush2.bf16.msra.mxu0 0
      %3618 = vmatprep.subr.bf16.mxu0 0
      %3619 = vmatpush2.bf16.msra.mxu0 0
      %3620 = vmatprep.subr.bf16.mxu0 0
      %3621 = vmatpush2.bf16.msra.mxu0 0
      %3622 = vmatprep.subr.bf16.mxu0 0
      %3623 = vmatpush2.bf16.msra.mxu0 0
      %3624 = vmatprep.subr.bf16.mxu0 0
      %3625 = vmatpush2.bf16.msra.mxu0 0
      %3626 = vmatprep.subr.bf16.mxu0 0
      %3627 = vmatpush2.bf16.msra.mxu0 0
      %3628 = vmatprep.subr.bf16.mxu0 0
      %3629 = vmatpush2.bf16.msra.mxu0 0
      %3630 = vmatprep.subr.bf16.mxu0 0
      %3631 = vmatpush2.bf16.msra.mxu0 0
      %3632 = vmatprep.mubr.bf16.mxu0 0
      %3633 = vmatmul.mubr.bf16.gmra.mxu0 %v3553
      %v3634 = vpop.f32.mrf.mxu0
      %v3635 = vadd.f32 %v3457, %v3634
      %v3636 = vpop.f32.mrf.mxu0
      %v3637 = vpop.f32.mrf.mxu0
      %v3638 = vadd.f32 %v3459, %v3637
      %v3639 = vpop.f32.mrf.mxu0
      %3640 = vmatprep.mubr.bf16.mxu0 0
      %3641 = vmatmul.mubr.bf16.gmra.mxu0 %v3556
      %v3642 = vpop.f32.mrf.mxu0
      %v3643 = vadd.f32 %v3461, %v3642
      %v3644 = vpop.f32.mrf.mxu0
      %v3645 = vpop.f32.mrf.mxu0
      %v3646 = vadd.f32 %v3463, %v3645
      %v3647 = vpop.f32.mrf.mxu0
      %3648 = vmatprep.mubr.bf16.mxu0 0
      %3649 = vmatmul.mubr.bf16.gmra.mxu0 %v3559
      %v3650 = vpop.f32.mrf.mxu0
      %v3651 = vadd.f32 %v3465, %v3650
      %v3652 = vpop.f32.mrf.mxu0
      %v3653 = vpop.f32.mrf.mxu0
      %v3654 = vadd.f32 %v3467, %v3653
      %v3655 = vpop.f32.mrf.mxu0
      %3656 = vmatprep.mubr.bf16.mxu0 0
      %3657 = vmatmul.mubr.bf16.gmra.mxu0 %v3562
      %v3658 = vpop.f32.mrf.mxu0
      %v3659 = vadd.f32 %v3469, %v3658
      %v3660 = vpop.f32.mrf.mxu0
      %v3661 = vpop.f32.mrf.mxu0
      %v3662 = vadd.f32 %v3471, %v3661
      %v3663 = vpop.f32.mrf.mxu0
      %3664 = vmatprep.mubr.bf16.mxu0 0
      %3665 = vmatmul.mubr.bf16.gmra.mxu0 %v3565
      %v3666 = vpop.f32.mrf.mxu0
      %v3667 = vadd.f32 %v3473, %v3666
      %v3668 = vpop.f32.mrf.mxu0
      %v3669 = vpop.f32.mrf.mxu0
      %v3670 = vadd.f32 %v3475, %v3669
      %v3671 = vpop.f32.mrf.mxu0
      %3672 = vmatprep.mubr.bf16.mxu0 0
      %3673 = vmatmul.mubr.bf16.gmra.mxu0 %v3568
      %v3674 = vpop.f32.mrf.mxu0
      %v3675 = vadd.f32 %v3477, %v3674
      %v3676 = vpop.f32.mrf.mxu0
      %v3677 = vpop.f32.mrf.mxu0
      %v3678 = vadd.f32 %v3479, %v3677
      %v3679 = vpop.f32.mrf.mxu0
      %3680 = vmatprep.mubr.bf16.mxu0 0
      %3681 = vmatmul.mubr.bf16.gmra.mxu0 %v3571
      %v3682 = vpop.f32.mrf.mxu0
      %v3683 = vadd.f32 %v3481, %v3682
      %v3684 = vpop.f32.mrf.mxu0
      %v3685 = vpop.f32.mrf.mxu0
      %v3686 = vadd.f32 %v3483, %v3685
      %v3687 = vpop.f32.mrf.mxu0
      %3688 = vmatprep.mubr.bf16.mxu0 0
      %3689 = vmatmul.mubr.bf16.gmra.mxu0 %v3574
      %v3690 = vpop.f32.mrf.mxu0
      %v3691 = vadd.f32 %v3485, %v3690
      %v3692 = vpop.f32.mrf.mxu0
      %v3693 = vpop.f32.mrf.mxu0
      %v3694 = vadd.f32 %v3487, %v3693
      %v3695 = vpop.f32.mrf.mxu0
      %3696 = vmatprep.mubr.bf16.mxu0 0
      %3697 = vmatmul.mubr.bf16.gmra.mxu0 %v3577
      %v3698 = vpop.f32.mrf.mxu0
      %v3699 = vadd.f32 %v3489, %v3698
      %v3700 = vpop.f32.mrf.mxu0
      %v3701 = vpop.f32.mrf.mxu0
      %v3702 = vadd.f32 %v3491, %v3701
      %v3703 = vpop.f32.mrf.mxu0
      %3704 = vmatprep.mubr.bf16.mxu0 0
      %3705 = vmatmul.mubr.bf16.gmra.mxu0 %v3580
      %v3706 = vpop.f32.mrf.mxu0
      %v3707 = vadd.f32 %v3493, %v3706
      %v3708 = vpop.f32.mrf.mxu0
      %v3709 = vpop.f32.mrf.mxu0
      %v3710 = vadd.f32 %v3495, %v3709
      %v3711 = vpop.f32.mrf.mxu0
      %3712 = vmatprep.mubr.bf16.mxu0 0
      %3713 = vmatmul.mubr.bf16.gmra.mxu0 %v3583
      %v3714 = vpop.f32.mrf.mxu0
      %v3715 = vadd.f32 %v3497, %v3714
      %v3716 = vpop.f32.mrf.mxu0
      %v3717 = vpop.f32.mrf.mxu0
      %v3718 = vadd.f32 %v3499, %v3717
      %v3719 = vpop.f32.mrf.mxu0
      %3720 = vmatprep.mubr.bf16.mxu0 0
      %3721 = vmatmul.mubr.bf16.gmra.mxu0 %v3586
      %v3722 = vpop.f32.mrf.mxu0
      %v3723 = vadd.f32 %v3501, %v3722
      %v3724 = vpop.f32.mrf.mxu0
      %v3725 = vpop.f32.mrf.mxu0
      %v3726 = vadd.f32 %v3503, %v3725
      %v3727 = vpop.f32.mrf.mxu0
      %3728 = vmatprep.mubr.bf16.mxu0 0
      %3729 = vmatmul.mubr.bf16.gmra.mxu0 %v3589
      %v3730 = vpop.f32.mrf.mxu0
      %v3731 = vadd.f32 %v3505, %v3730
      %v3732 = vpop.f32.mrf.mxu0
      %v3733 = vpop.f32.mrf.mxu0
      %v3734 = vadd.f32 %v3507, %v3733
      %v3735 = vpop.f32.mrf.mxu0
      %3736 = vmatprep.mubr.bf16.mxu0 0
      %3737 = vmatmul.mubr.bf16.gmra.mxu0 %v3592
      %v3738 = vpop.f32.mrf.mxu0
      %v3739 = vadd.f32 %v3509, %v3738
      %v3740 = vpop.f32.mrf.mxu0
      %v3741 = vpop.f32.mrf.mxu0
      %v3742 = vadd.f32 %v3511, %v3741
      %v3743 = vpop.f32.mrf.mxu0
      %3744 = vmatprep.mubr.bf16.mxu0 0
      %3745 = vmatmul.mubr.bf16.gmra.mxu0 %v3595
      %v3746 = vpop.f32.mrf.mxu0
      %v3747 = vadd.f32 %v3513, %v3746
      %v3748 = vpop.f32.mrf.mxu0
      %v3749 = vpop.f32.mrf.mxu0
      %v3750 = vadd.f32 %v3515, %v3749
      %v3751 = vpop.f32.mrf.mxu0
      %3752 = vmatprep.mubr.bf16.mxu0 0
      %3753 = vmatmul.mubr.bf16.gmra.mxu0 %v3598
      %v3754 = vpop.f32.mrf.mxu0
      %v3755 = vadd.f32 %v3517, %v3754
      %v3756 = vpop.f32.mrf.mxu0
      %v3757 = vpop.f32.mrf.mxu0
      %v3758 = vadd.f32 %v3519, %v3757
      %v3759 = vpop.f32.mrf.mxu0
      %3760 = vdwg.mxu0
      %v3761 = vld [vmem:[%s2 + $0x9] sm:$0x1]
      %v3762 = vlaneseq
      %v3763 = vshrl.u32 %v3762, 7
      %v3764 = vsub.s32 0, %v3763
      %v3765 = vrot.slane %v3761, %v3764
      %v3766 = vadd.f32 %v3635, %v3765
      %v3767 = vadd.f32 %v3638, %v3765
      %v3768 = vadd.f32 %v3643, %v3765
      %v3769 = vadd.f32 %v3646, %v3765
      %v3770 = vadd.f32 %v3651, %v3765
      %v3771 = vadd.f32 %v3654, %v3765
      %v3772 = vadd.f32 %v3659, %v3765
      %v3773 = vadd.f32 %v3662, %v3765
      %v3774 = vadd.f32 %v3667, %v3765
      %v3775 = vadd.f32 %v3670, %v3765
      %v3776 = vadd.f32 %v3675, %v3765
      %v3777 = vadd.f32 %v3678, %v3765
      %v3778 = vadd.f32 %v3683, %v3765
      %v3779 = vadd.f32 %v3686, %v3765
      %v3780 = vadd.f32 %v3691, %v3765
      %v3781 = vadd.f32 %v3694, %v3765
      %v3782 = vadd.f32 %v3699, %v3765
      %v3783 = vadd.f32 %v3702, %v3765
      %v3784 = vadd.f32 %v3707, %v3765
      %v3785 = vadd.f32 %v3710, %v3765
      %v3786 = vadd.f32 %v3715, %v3765
      %v3787 = vadd.f32 %v3718, %v3765
      %v3788 = vadd.f32 %v3723, %v3765
      %v3789 = vadd.f32 %v3726, %v3765
      %v3790 = vadd.f32 %v3731, %v3765
      %v3791 = vadd.f32 %v3734, %v3765
      %v3792 = vadd.f32 %v3739, %v3765
      %v3793 = vadd.f32 %v3742, %v3765
      %v3794 = vadd.f32 %v3747, %v3765
      %v3795 = vadd.f32 %v3750, %v3765
      %v3796 = vadd.f32 %v3755, %v3765
      %v3797 = vadd.f32 %v3758, %v3765
      %v3798 = vmax.f32 %v3766, 0.0
      %v3799 = vmax.f32 %v3767, 0.0
      %v3800 = vmax.f32 %v3768, 0.0
      %v3801 = vmax.f32 %v3769, 0.0
      %v3802 = vmax.f32 %v3770, 0.0
      %v3803 = vmax.f32 %v3771, 0.0
      %v3804 = vmax.f32 %v3772, 0.0
      %v3805 = vmax.f32 %v3773, 0.0
      %v3806 = vmax.f32 %v3774, 0.0
      %v3807 = vmax.f32 %v3775, 0.0
      %v3808 = vmax.f32 %v3776, 0.0
      %v3809 = vmax.f32 %v3777, 0.0
      %v3810 = vmax.f32 %v3778, 0.0
      %v3811 = vmax.f32 %v3779, 0.0
      %v3812 = vmax.f32 %v3780, 0.0
      %v3813 = vmax.f32 %v3781, 0.0
      %v3814 = vmax.f32 %v3782, 0.0
      %v3815 = vmax.f32 %v3783, 0.0
      %v3816 = vmax.f32 %v3784, 0.0
      %v3817 = vmax.f32 %v3785, 0.0
      %v3818 = vmax.f32 %v3786, 0.0
      %v3819 = vmax.f32 %v3787, 0.0
      %v3820 = vmax.f32 %v3788, 0.0
      %v3821 = vmax.f32 %v3789, 0.0
      %v3822 = vmax.f32 %v3790, 0.0
      %v3823 = vmax.f32 %v3791, 0.0
      %v3824 = vmax.f32 %v3792, 0.0
      %v3825 = vmax.f32 %v3793, 0.0
      %v3826 = vmax.f32 %v3794, 0.0
      %v3827 = vmax.f32 %v3795, 0.0
      %v3828 = vmax.f32 %v3796, 0.0
      %v3829 = vmax.f32 %v3797, 0.0
      %v3830 = vpack.c.bf16 %v3799, %v3798
      %v3831 = vpack.c.bf16 %v3801, %v3800
      %v3832 = vpack.c.bf16 %v3803, %v3802
      %v3833 = vpack.c.bf16 %v3805, %v3804
      %v3834 = vpack.c.bf16 %v3807, %v3806
      %v3835 = vpack.c.bf16 %v3809, %v3808
      %v3836 = vpack.c.bf16 %v3811, %v3810
      %v3837 = vpack.c.bf16 %v3813, %v3812
      %v3838 = vpack.c.bf16 %v3815, %v3814
      %v3839 = vpack.c.bf16 %v3817, %v3816
      %v3840 = vpack.c.bf16 %v3819, %v3818
      %v3841 = vpack.c.bf16 %v3821, %v3820
      %v3842 = vpack.c.bf16 %v3823, %v3822
      %v3843 = vpack.c.bf16 %v3825, %v3824
      %v3844 = vpack.c.bf16 %v3827, %v3826
      %v3845 = vpack.c.bf16 %v3829, %v3828
      %v3846 = vld [vmem:[%s1 + $0x2a0] sm:$0xf]
      %v3847 = vld [vmem:[%s1 + $0x2a8] sm:$0xf]
      %v3848 = vld [vmem:[%s1 + $0x2b0] sm:$0xf]
      %v3849 = vld [vmem:[%s1 + $0x2b8] sm:$0xf]
      %v3850 = vld [vmem:[%s2 + $0xa] sm:$0x1]
      %v3851 = vlaneseq
      %v3852 = vshrl.u32 %v3851, 7
      %v3853 = vsub.s32 0, %v3852
      %v3854 = vrot.slane %v3850, %v3853
      %v3859 = vunpack.c.l.b16 %v3846
      %v3860 = vunpack.c.l.b16 %v3847
      %v3861 = vunpack.c.l.b16 %v3848
      %v3862 = vunpack.c.l.b16 %v3849
      %v3863 = vpack.c.b16 %v3860, %v3859
      %v3864 = vpack.c.b16 %v3862, %v3861
      %v3868 = vsel %vm538, %v3830, 0
      %v3871 = vsel %vm538, %v3831, 0
      %v3874 = vsel %vm538, %v3832, 0
      %v3877 = vsel %vm538, %v3833, 0
      %v3880 = vsel %vm538, %v3834, 0
      %v3883 = vsel %vm538, %v3835, 0
      %v3886 = vsel %vm538, %v3836, 0
      %v3889 = vsel %vm538, %v3837, 0
      %v3892 = vsel %vm538, %v3838, 0
      %v3895 = vsel %vm538, %v3839, 0
      %v3898 = vsel %vm538, %v3840, 0
      %v3901 = vsel %vm538, %v3841, 0
      %v3904 = vsel %vm538, %v3842, 0
      %v3907 = vsel %vm538, %v3843, 0
      %v3910 = vsel %vm538, %v3844, 0
      %v3913 = vsel %vm538, %v3845, 0
      %3915 = vmatprep.subr.bf16.mxu0 0
      %3916 = vmatpush1.bf16.msra.mxu0 0
      %3917 = vmatprep.subr.bf16.mxu0 0
      %3918 = vmatpush1.bf16.msra.mxu0 0
      %3919 = vmatprep.subr.bf16.mxu0 0
      %3920 = vmatpush1.bf16.msra.mxu0 0
      %3921 = vmatprep.subr.bf16.mxu0 0
      %3922 = vmatpush1.bf16.msra.mxu0 0
      %3923 = vmatprep.subr.bf16.mxu0 0
      %3924 = vmatpush1.bf16.msra.mxu0 0
      %3925 = vmatprep.subr.bf16.mxu0 0
      %3926 = vmatpush1.bf16.msra.mxu0 0
      %3927 = vmatprep.subr.bf16.mxu0 0
      %3928 = vmatpush1.bf16.msra.mxu0 %v3864
      %3929 = vmatprep.subr.bf16.mxu0 0
      %3930 = vmatpush1.bf16.msra.mxu0 %v3863
      %3931 = vmatprep.subr.bf16.mxu0 0
      %3932 = vmatpush2.bf16.msra.mxu0 0
      %3933 = vmatprep.subr.bf16.mxu0 0
      %3934 = vmatpush2.bf16.msra.mxu0 0
      %3935 = vmatprep.subr.bf16.mxu0 0
      %3936 = vmatpush2.bf16.msra.mxu0 0
      %3937 = vmatprep.subr.bf16.mxu0 0
      %3938 = vmatpush2.bf16.msra.mxu0 0
      %3939 = vmatprep.subr.bf16.mxu0 0
      %3940 = vmatpush2.bf16.msra.mxu0 0
      %3941 = vmatprep.subr.bf16.mxu0 0
      %3942 = vmatpush2.bf16.msra.mxu0 0
      %3943 = vmatprep.subr.bf16.mxu0 0
      %3944 = vmatpush2.bf16.msra.mxu0 0
      %3945 = vmatprep.subr.bf16.mxu0 0
      %3946 = vmatpush2.bf16.msra.mxu0 0
      %3947 = vmatprep.mubr.bf16.mxu0 0
      %3948 = vmatmul.mubr.bf16.gmra.mxu0 %v3868
      %v3949 = vpop.f32.mrf.mxu0
      %v3950 = vadd.f32 %v3854, %v3949
      %v3951 = vpop.f32.mrf.mxu0
      %v3952 = vpop.f32.mrf.mxu0
      %v3953 = vadd.f32 %v3854, %v3952
      %v3954 = vpop.f32.mrf.mxu0
      %3955 = vmatprep.mubr.bf16.mxu0 0
      %3956 = vmatmul.mubr.bf16.gmra.mxu0 %v3871
      %v3957 = vpop.f32.mrf.mxu0
      %v3958 = vadd.f32 %v3854, %v3957
      %v3959 = vpop.f32.mrf.mxu0
      %v3960 = vpop.f32.mrf.mxu0
      %v3961 = vadd.f32 %v3854, %v3960
      %v3962 = vpop.f32.mrf.mxu0
      %3963 = vmatprep.mubr.bf16.mxu0 0
      %3964 = vmatmul.mubr.bf16.gmra.mxu0 %v3874
      %v3965 = vpop.f32.mrf.mxu0
      %v3966 = vadd.f32 %v3854, %v3965
      %v3967 = vpop.f32.mrf.mxu0
      %v3968 = vpop.f32.mrf.mxu0
      %v3969 = vadd.f32 %v3854, %v3968
      %v3970 = vpop.f32.mrf.mxu0
      %3971 = vmatprep.mubr.bf16.mxu0 0
      %3972 = vmatmul.mubr.bf16.gmra.mxu0 %v3877
      %v3973 = vpop.f32.mrf.mxu0
      %v3974 = vadd.f32 %v3854, %v3973
      %v3975 = vpop.f32.mrf.mxu0
      %v3976 = vpop.f32.mrf.mxu0
      %v3977 = vadd.f32 %v3854, %v3976
      %v3978 = vpop.f32.mrf.mxu0
      %3979 = vmatprep.mubr.bf16.mxu0 0
      %3980 = vmatmul.mubr.bf16.gmra.mxu0 %v3880
      %v3981 = vpop.f32.mrf.mxu0
      %v3982 = vadd.f32 %v3854, %v3981
      %v3983 = vpop.f32.mrf.mxu0
      %v3984 = vpop.f32.mrf.mxu0
      %v3985 = vadd.f32 %v3854, %v3984
      %v3986 = vpop.f32.mrf.mxu0
      %3987 = vmatprep.mubr.bf16.mxu0 0
      %3988 = vmatmul.mubr.bf16.gmra.mxu0 %v3883
      %v3989 = vpop.f32.mrf.mxu0
      %v3990 = vadd.f32 %v3854, %v3989
      %v3991 = vpop.f32.mrf.mxu0
      %v3992 = vpop.f32.mrf.mxu0
      %v3993 = vadd.f32 %v3854, %v3992
      %v3994 = vpop.f32.mrf.mxu0
      %3995 = vmatprep.mubr.bf16.mxu0 0
      %3996 = vmatmul.mubr.bf16.gmra.mxu0 %v3886
      %v3997 = vpop.f32.mrf.mxu0
      %v3998 = vadd.f32 %v3854, %v3997
      %v3999 = vpop.f32.mrf.mxu0
      %v4000 = vpop.f32.mrf.mxu0
      %v4001 = vadd.f32 %v3854, %v4000
      %v4002 = vpop.f32.mrf.mxu0
      %4003 = vmatprep.mubr.bf16.mxu0 0
      %4004 = vmatmul.mubr.bf16.gmra.mxu0 %v3889
      %v4005 = vpop.f32.mrf.mxu0
      %v4006 = vadd.f32 %v3854, %v4005
      %v4007 = vpop.f32.mrf.mxu0
      %v4008 = vpop.f32.mrf.mxu0
      %v4009 = vadd.f32 %v3854, %v4008
      %v4010 = vpop.f32.mrf.mxu0
      %4011 = vmatprep.mubr.bf16.mxu0 0
      %4012 = vmatmul.mubr.bf16.gmra.mxu0 %v3892
      %v4013 = vpop.f32.mrf.mxu0
      %v4014 = vadd.f32 %v3854, %v4013
      %v4015 = vpop.f32.mrf.mxu0
      %v4016 = vpop.f32.mrf.mxu0
      %v4017 = vadd.f32 %v3854, %v4016
      %v4018 = vpop.f32.mrf.mxu0
      %4019 = vmatprep.mubr.bf16.mxu0 0
      %4020 = vmatmul.mubr.bf16.gmra.mxu0 %v3895
      %v4021 = vpop.f32.mrf.mxu0
      %v4022 = vadd.f32 %v3854, %v4021
      %v4023 = vpop.f32.mrf.mxu0
      %v4024 = vpop.f32.mrf.mxu0
      %v4025 = vadd.f32 %v3854, %v4024
      %v4026 = vpop.f32.mrf.mxu0
      %4027 = vmatprep.mubr.bf16.mxu0 0
      %4028 = vmatmul.mubr.bf16.gmra.mxu0 %v3898
      %v4029 = vpop.f32.mrf.mxu0
      %v4030 = vadd.f32 %v3854, %v4029
      %v4031 = vpop.f32.mrf.mxu0
      %v4032 = vpop.f32.mrf.mxu0
      %v4033 = vadd.f32 %v3854, %v4032
      %v4034 = vpop.f32.mrf.mxu0
      %4035 = vmatprep.mubr.bf16.mxu0 0
      %4036 = vmatmul.mubr.bf16.gmra.mxu0 %v3901
      %v4037 = vpop.f32.mrf.mxu0
      %v4038 = vadd.f32 %v3854, %v4037
      %v4039 = vpop.f32.mrf.mxu0
      %v4040 = vpop.f32.mrf.mxu0
      %v4041 = vadd.f32 %v3854, %v4040
      %v4042 = vpop.f32.mrf.mxu0
      %4043 = vmatprep.mubr.bf16.mxu0 0
      %4044 = vmatmul.mubr.bf16.gmra.mxu0 %v3904
      %v4045 = vpop.f32.mrf.mxu0
      %v4046 = vadd.f32 %v3854, %v4045
      %v4047 = vpop.f32.mrf.mxu0
      %v4048 = vpop.f32.mrf.mxu0
      %v4049 = vadd.f32 %v3854, %v4048
      %v4050 = vpop.f32.mrf.mxu0
      %4051 = vmatprep.mubr.bf16.mxu0 0
      %4052 = vmatmul.mubr.bf16.gmra.mxu0 %v3907
      %v4053 = vpop.f32.mrf.mxu0
      %v4054 = vadd.f32 %v3854, %v4053
      %v4055 = vpop.f32.mrf.mxu0
      %v4056 = vpop.f32.mrf.mxu0
      %v4057 = vadd.f32 %v3854, %v4056
      %v4058 = vpop.f32.mrf.mxu0
      %4059 = vmatprep.mubr.bf16.mxu0 0
      %4060 = vmatmul.mubr.bf16.gmra.mxu0 %v3910
      %v4061 = vpop.f32.mrf.mxu0
      %v4062 = vadd.f32 %v3854, %v4061
      %v4063 = vpop.f32.mrf.mxu0
      %v4064 = vpop.f32.mrf.mxu0
      %v4065 = vadd.f32 %v3854, %v4064
      %v4066 = vpop.f32.mrf.mxu0
      %4067 = vmatprep.mubr.bf16.mxu0 0
      %4068 = vmatmul.mubr.bf16.gmra.mxu0 %v3913
      %v4069 = vpop.f32.mrf.mxu0
      %v4070 = vadd.f32 %v3854, %v4069
      %v4071 = vpop.f32.mrf.mxu0
      %v4072 = vpop.f32.mrf.mxu0
      %v4073 = vadd.f32 %v3854, %v4072
      %v4074 = vpop.f32.mrf.mxu0
      %4075 = vdwg.mxu0
      %v4076 = vxor.u32 %v3950, 2147483648
      %v4077 = vxor.u32 %v3953, 2147483648
      %v4078 = vxor.u32 %v3958, 2147483648
      %v4079 = vxor.u32 %v3961, 2147483648
      %v4080 = vxor.u32 %v3966, 2147483648
      %v4081 = vxor.u32 %v3969, 2147483648
      %v4082 = vxor.u32 %v3974, 2147483648
      %v4083 = vxor.u32 %v3977, 2147483648
      %v4084 = vxor.u32 %v3982, 2147483648
      %v4085 = vxor.u32 %v3985, 2147483648
      %v4086 = vxor.u32 %v3990, 2147483648
      %v4087 = vxor.u32 %v3993, 2147483648
      %v4088 = vxor.u32 %v3998, 2147483648
      %v4089 = vxor.u32 %v4001, 2147483648
      %v4090 = vxor.u32 %v4006, 2147483648
      %v4091 = vxor.u32 %v4009, 2147483648
      %v4092 = vxor.u32 %v4014, 2147483648
      %v4093 = vxor.u32 %v4017, 2147483648
      %v4094 = vxor.u32 %v4022, 2147483648
      %v4095 = vxor.u32 %v4025, 2147483648
      %v4096 = vxor.u32 %v4030, 2147483648
      %v4097 = vxor.u32 %v4033, 2147483648
      %v4098 = vxor.u32 %v4038, 2147483648
      %v4099 = vxor.u32 %v4041, 2147483648
      %v4100 = vxor.u32 %v4046, 2147483648
      %v4101 = vxor.u32 %v4049, 2147483648
      %v4102 = vxor.u32 %v4054, 2147483648
      %v4103 = vxor.u32 %v4057, 2147483648
      %v4104 = vxor.u32 %v4062, 2147483648
      %v4105 = vxor.u32 %v4065, 2147483648
      %v4106 = vxor.u32 %v4070, 2147483648
      %v4107 = vxor.u32 %v4073, 2147483648
      %v4108 = vmul.f32 %v4076, 1.442695
      %v4109 = vpow.pop %v4108
      %v4110 = vmul.f32 %v4077, 1.442695
      %v4111 = vpow.pop %v4110
      %v4112 = vmul.f32 %v4078, 1.442695
      %v4113 = vpow.pop %v4112
      %v4114 = vmul.f32 %v4079, 1.442695
      %v4115 = vpow.pop %v4114
      %v4116 = vmul.f32 %v4080, 1.442695
      %v4117 = vpow.pop %v4116
      %v4118 = vmul.f32 %v4081, 1.442695
      %v4119 = vpow.pop %v4118
      %v4120 = vmul.f32 %v4082, 1.442695
      %v4121 = vpow.pop %v4120
      %v4122 = vmul.f32 %v4083, 1.442695
      %v4123 = vpow.pop %v4122
      %v4124 = vmul.f32 %v4084, 1.442695
      %v4125 = vpow.pop %v4124
      %v4126 = vmul.f32 %v4085, 1.442695
      %v4127 = vpow.pop %v4126
      %v4128 = vmul.f32 %v4086, 1.442695
      %v4129 = vpow.pop %v4128
      %v4130 = vmul.f32 %v4087, 1.442695
      %v4131 = vpow.pop %v4130
      %v4132 = vmul.f32 %v4088, 1.442695
      %v4133 = vpow.pop %v4132
      %v4134 = vmul.f32 %v4089, 1.442695
      %v4135 = vpow.pop %v4134
      %v4136 = vmul.f32 %v4090, 1.442695
      %v4137 = vpow.pop %v4136
      %v4138 = vmul.f32 %v4091, 1.442695
      %v4139 = vpow.pop %v4138
      %v4140 = vmul.f32 %v4092, 1.442695
      %v4141 = vpow.pop %v4140
      %v4142 = vmul.f32 %v4093, 1.442695
      %v4143 = vpow.pop %v4142
      %v4144 = vmul.f32 %v4094, 1.442695
      %v4145 = vpow.pop %v4144
      %v4146 = vmul.f32 %v4095, 1.442695
      %v4147 = vpow.pop %v4146
      %v4148 = vmul.f32 %v4096, 1.442695
      %v4149 = vpow.pop %v4148
      %v4150 = vmul.f32 %v4097, 1.442695
      %v4151 = vpow.pop %v4150
      %v4152 = vmul.f32 %v4098, 1.442695
      %v4153 = vpow.pop %v4152
      %v4154 = vmul.f32 %v4099, 1.442695
      %v4155 = vpow.pop %v4154
      %v4156 = vmul.f32 %v4100, 1.442695
      %v4157 = vpow.pop %v4156
      %v4158 = vmul.f32 %v4101, 1.442695
      %v4159 = vpow.pop %v4158
      %v4160 = vmul.f32 %v4102, 1.442695
      %v4161 = vpow.pop %v4160
      %v4162 = vmul.f32 %v4103, 1.442695
      %v4163 = vpow.pop %v4162
      %v4164 = vmul.f32 %v4104, 1.442695
      %v4165 = vpow.pop %v4164
      %v4166 = vmul.f32 %v4105, 1.442695
      %v4167 = vpow.pop %v4166
      %v4168 = vmul.f32 %v4106, 1.442695
      %v4169 = vpow.pop %v4168
      %v4170 = vmul.f32 %v4107, 1.442695
      %v4171 = vpow.pop %v4170
      %v4172 = vadd.f32 %v4109, 1.0
      %v4173 = vadd.f32 %v4111, 1.0
      %v4174 = vadd.f32 %v4113, 1.0
      %v4175 = vadd.f32 %v4115, 1.0
      %v4176 = vadd.f32 %v4117, 1.0
      %v4177 = vadd.f32 %v4119, 1.0
      %v4178 = vadd.f32 %v4121, 1.0
      %v4179 = vadd.f32 %v4123, 1.0
      %v4180 = vadd.f32 %v4125, 1.0
      %v4181 = vadd.f32 %v4127, 1.0
      %v4182 = vadd.f32 %v4129, 1.0
      %v4183 = vadd.f32 %v4131, 1.0
      %v4184 = vadd.f32 %v4133, 1.0
      %v4185 = vadd.f32 %v4135, 1.0
      %v4186 = vadd.f32 %v4137, 1.0
      %v4187 = vadd.f32 %v4139, 1.0
      %v4188 = vadd.f32 %v4141, 1.0
      %v4189 = vadd.f32 %v4143, 1.0
      %v4190 = vadd.f32 %v4145, 1.0
      %v4191 = vadd.f32 %v4147, 1.0
      %v4192 = vadd.f32 %v4149, 1.0
      %v4193 = vadd.f32 %v4151, 1.0
      %v4194 = vadd.f32 %v4153, 1.0
      %v4195 = vadd.f32 %v4155, 1.0
      %v4196 = vadd.f32 %v4157, 1.0
      %v4197 = vadd.f32 %v4159, 1.0
      %v4198 = vadd.f32 %v4161, 1.0
      %v4199 = vadd.f32 %v4163, 1.0
      %v4200 = vadd.f32 %v4165, 1.0
      %v4201 = vadd.f32 %v4167, 1.0
      %v4202 = vadd.f32 %v4169, 1.0
      %v4203 = vadd.f32 %v4171, 1.0
      %v4204 = vrcp.pop %v4172
      %v4205 = vmul.f32 1.0, %v4204
      %v4206 = vrcp.pop %v4173
      %v4207 = vmul.f32 1.0, %v4206
      %v4208 = vrcp.pop %v4174
      %v4209 = vmul.f32 1.0, %v4208
      %v4210 = vrcp.pop %v4175
      %v4211 = vmul.f32 1.0, %v4210
      %v4212 = vrcp.pop %v4176
      %v4213 = vmul.f32 1.0, %v4212
      %v4214 = vrcp.pop %v4177
      %v4215 = vmul.f32 1.0, %v4214
      %v4216 = vrcp.pop %v4178
      %v4217 = vmul.f32 1.0, %v4216
      %v4218 = vrcp.pop %v4179
      %v4219 = vmul.f32 1.0, %v4218
      %v4220 = vrcp.pop %v4180
      %v4221 = vmul.f32 1.0, %v4220
      %v4222 = vrcp.pop %v4181
      %v4223 = vmul.f32 1.0, %v4222
      %v4224 = vrcp.pop %v4182
      %v4225 = vmul.f32 1.0, %v4224
      %v4226 = vrcp.pop %v4183
      %v4227 = vmul.f32 1.0, %v4226
      %v4228 = vrcp.pop %v4184
      %v4229 = vmul.f32 1.0, %v4228
      %v4230 = vrcp.pop %v4185
      %v4231 = vmul.f32 1.0, %v4230
      %v4232 = vrcp.pop %v4186
      %v4233 = vmul.f32 1.0, %v4232
      %v4234 = vrcp.pop %v4187
      %v4235 = vmul.f32 1.0, %v4234
      %v4236 = vrcp.pop %v4188
      %v4237 = vmul.f32 1.0, %v4236
      %v4238 = vrcp.pop %v4189
      %v4239 = vmul.f32 1.0, %v4238
      %v4240 = vrcp.pop %v4190
      %v4241 = vmul.f32 1.0, %v4240
      %v4242 = vrcp.pop %v4191
      %v4243 = vmul.f32 1.0, %v4242
      %v4244 = vrcp.pop %v4192
      %v4245 = vmul.f32 1.0, %v4244
      %v4246 = vrcp.pop %v4193
      %v4247 = vmul.f32 1.0, %v4246
      %v4248 = vrcp.pop %v4194
      %v4249 = vmul.f32 1.0, %v4248
      %v4250 = vrcp.pop %v4195
      %v4251 = vmul.f32 1.0, %v4250
      %v4252 = vrcp.pop %v4196
      %v4253 = vmul.f32 1.0, %v4252
      %v4254 = vrcp.pop %v4197
      %v4255 = vmul.f32 1.0, %v4254
      %v4256 = vrcp.pop %v4198
      %v4257 = vmul.f32 1.0, %v4256
      %v4258 = vrcp.pop %v4199
      %v4259 = vmul.f32 1.0, %v4258
      %v4260 = vrcp.pop %v4200
      %v4261 = vmul.f32 1.0, %v4260
      %v4262 = vrcp.pop %v4201
      %v4263 = vmul.f32 1.0, %v4262
      %v4264 = vrcp.pop %v4202
      %v4265 = vmul.f32 1.0, %v4264
      %v4266 = vrcp.pop %v4203
      %v4267 = vmul.f32 1.0, %v4266
      %4300 = vrot.lane.b32.xlu0 %v3218, 67
      %v4301 = vpop.permute.xlu0 %4300
      %4302 = vrot.lane.b32.xlu0 %v3221, 67
      %v4303 = vpop.permute.xlu0 %4302
      %4304 = vrot.lane.b32.xlu0 %v3226, 67
      %v4305 = vpop.permute.xlu0 %4304
      %4306 = vrot.lane.b32.xlu0 %v3229, 67
      %v4307 = vpop.permute.xlu0 %4306
      %4308 = vrot.lane.b32.xlu0 %v3234, 67
      %v4309 = vpop.permute.xlu0 %4308
      %4310 = vrot.lane.b32.xlu0 %v3237, 67
      %v4311 = vpop.permute.xlu0 %4310
      %4312 = vrot.lane.b32.xlu0 %v3242, 67
      %v4313 = vpop.permute.xlu0 %4312
      %4314 = vrot.lane.b32.xlu0 %v3245, 67
      %v4315 = vpop.permute.xlu0 %4314
      %4316 = vrot.lane.b32.xlu0 %v3250, 67
      %v4317 = vpop.permute.xlu0 %4316
      %4318 = vrot.lane.b32.xlu0 %v3253, 67
      %v4319 = vpop.permute.xlu0 %4318
      %4320 = vrot.lane.b32.xlu0 %v3258, 67
      %v4321 = vpop.permute.xlu0 %4320
      %4322 = vrot.lane.b32.xlu0 %v3261, 67
      %v4323 = vpop.permute.xlu0 %4322
      %4324 = vrot.lane.b32.xlu0 %v3266, 67
      %v4325 = vpop.permute.xlu0 %4324
      %4326 = vrot.lane.b32.xlu0 %v3269, 67
      %v4327 = vpop.permute.xlu0 %4326
      %4328 = vrot.lane.b32.xlu0 %v3274, 67
      %v4329 = vpop.permute.xlu0 %4328
      %4330 = vrot.lane.b32.xlu0 %v3277, 67
      %v4331 = vpop.permute.xlu0 %4330
      %4332 = vrot.lane.b32.xlu0 %v3282, 67
      %v4333 = vpop.permute.xlu0 %4332
      %4334 = vrot.lane.b32.xlu0 %v3285, 67
      %v4335 = vpop.permute.xlu0 %4334
      %4336 = vrot.lane.b32.xlu0 %v3290, 67
      %v4337 = vpop.permute.xlu0 %4336
      %4338 = vrot.lane.b32.xlu0 %v3293, 67
      %v4339 = vpop.permute.xlu0 %4338
      %4340 = vrot.lane.b32.xlu0 %v3298, 67
      %v4341 = vpop.permute.xlu0 %4340
      %4342 = vrot.lane.b32.xlu0 %v3301, 67
      %v4343 = vpop.permute.xlu0 %4342
      %4344 = vrot.lane.b32.xlu0 %v3306, 67
      %v4345 = vpop.permute.xlu0 %4344
      %4346 = vrot.lane.b32.xlu0 %v3309, 67
      %v4347 = vpop.permute.xlu0 %4346
      %4348 = vrot.lane.b32.xlu0 %v3314, 67
      %v4349 = vpop.permute.xlu0 %4348
      %4350 = vrot.lane.b32.xlu0 %v3317, 67
      %v4351 = vpop.permute.xlu0 %4350
      %4352 = vrot.lane.b32.xlu0 %v3322, 67
      %v4353 = vpop.permute.xlu0 %4352
      %4354 = vrot.lane.b32.xlu0 %v3325, 67
      %v4355 = vpop.permute.xlu0 %4354
      %4356 = vrot.lane.b32.xlu0 %v3330, 67
      %v4357 = vpop.permute.xlu0 %4356
      %4358 = vrot.lane.b32.xlu0 %v3333, 67
      %v4359 = vpop.permute.xlu0 %4358
      %4360 = vrot.lane.b32.xlu0 %v3338, 67
      %v4361 = vpop.permute.xlu0 %4360
      %4362 = vrot.lane.b32.xlu0 %v3341, 67
      %v4363 = vpop.permute.xlu0 %4362
      %vm4396 = vcmask 23552
      %v4397 = vsel %vm4396, %v4205, %v4301
      %v4398 = vsel %vm4396, %v4207, %v4303
      %v4399 = vsel %vm4396, %v4209, %v4305
      %v4400 = vsel %vm4396, %v4211, %v4307
      %v4401 = vsel %vm4396, %v4213, %v4309
      %v4402 = vsel %vm4396, %v4215, %v4311
      %v4403 = vsel %vm4396, %v4217, %v4313
      %v4404 = vsel %vm4396, %v4219, %v4315
      %v4405 = vsel %vm4396, %v4221, %v4317
      %v4406 = vsel %vm4396, %v4223, %v4319
      %v4407 = vsel %vm4396, %v4225, %v4321
      %v4408 = vsel %vm4396, %v4227, %v4323
      %v4409 = vsel %vm4396, %v4229, %v4325
      %v4410 = vsel %vm4396, %v4231, %v4327
      %v4411 = vsel %vm4396, %v4233, %v4329
      %v4412 = vsel %vm4396, %v4235, %v4331
      %v4413 = vsel %vm4396, %v4237, %v4333
      %v4414 = vsel %vm4396, %v4239, %v4335
      %v4415 = vsel %vm4396, %v4241, %v4337
      %v4416 = vsel %vm4396, %v4243, %v4339
      %v4417 = vsel %vm4396, %v4245, %v4341
      %v4418 = vsel %vm4396, %v4247, %v4343
      %v4419 = vsel %vm4396, %v4249, %v4345
      %v4420 = vsel %vm4396, %v4251, %v4347
      %v4421 = vsel %vm4396, %v4253, %v4349
      %v4422 = vsel %vm4396, %v4255, %v4351
      %v4423 = vsel %vm4396, %v4257, %v4353
      %v4424 = vsel %vm4396, %v4259, %v4355
      %v4425 = vsel %vm4396, %v4261, %v4357
      %v4426 = vsel %vm4396, %v4263, %v4359
      %v4427 = vsel %vm4396, %v4265, %v4361
      %v4428 = vsel %vm4396, %v4267, %v4363
      %vm4429 = vcmask 31744
      %4430 = vst.msk [vmem:[%s172] sm:$0xff] %vm4429, %v4397
      %4431 = vst.msk [vmem:[%s172 + $0x8] sm:$0xff] %vm4429, %v4398
      %4432 = vst.msk [vmem:[%s172 + $0x10] sm:$0xff] %vm4429, %v4399
      %4433 = vst.msk [vmem:[%s172 + $0x18] sm:$0xff] %vm4429, %v4400
      %4434 = vst.msk [vmem:[%s172 + $0x20] sm:$0xff] %vm4429, %v4401
      %4435 = vst.msk [vmem:[%s172 + $0x28] sm:$0xff] %vm4429, %v4402
      %4436 = vst.msk [vmem:[%s172 + $0x30] sm:$0xff] %vm4429, %v4403
      %4437 = vst.msk [vmem:[%s172 + $0x38] sm:$0xff] %vm4429, %v4404
      %4438 = vst.msk [vmem:[%s172 + $0x40] sm:$0xff] %vm4429, %v4405
      %4439 = vst.msk [vmem:[%s172 + $0x48] sm:$0xff] %vm4429, %v4406
      %4440 = vst.msk [vmem:[%s172 + $0x50] sm:$0xff] %vm4429, %v4407
      %4441 = vst.msk [vmem:[%s172 + $0x58] sm:$0xff] %vm4429, %v4408
      %4442 = vst.msk [vmem:[%s172 + $0x60] sm:$0xff] %vm4429, %v4409
      %4443 = vst.msk [vmem:[%s172 + $0x68] sm:$0xff] %vm4429, %v4410
      %4444 = vst.msk [vmem:[%s172 + $0x70] sm:$0xff] %vm4429, %v4411
      %4445 = vst.msk [vmem:[%s172 + $0x78] sm:$0xff] %vm4429, %v4412
      %4446 = vst.msk [vmem:[%s172 + $0x80] sm:$0xff] %vm4429, %v4413
      %4447 = vst.msk [vmem:[%s172 + $0x88] sm:$0xff] %vm4429, %v4414
      %4448 = vst.msk [vmem:[%s172 + $0x90] sm:$0xff] %vm4429, %v4415
      %4449 = vst.msk [vmem:[%s172 + $0x98] sm:$0xff] %vm4429, %v4416
      %4450 = vst.msk [vmem:[%s172 + $0xa0] sm:$0xff] %vm4429, %v4417
      %4451 = vst.msk [vmem:[%s172 + $0xa8] sm:$0xff] %vm4429, %v4418
      %4452 = vst.msk [vmem:[%s172 + $0xb0] sm:$0xff] %vm4429, %v4419
      %4453 = vst.msk [vmem:[%s172 + $0xb8] sm:$0xff] %vm4429, %v4420
      %4454 = vst.msk [vmem:[%s172 + $0xc0] sm:$0xff] %vm4429, %v4421
      %4455 = vst.msk [vmem:[%s172 + $0xc8] sm:$0xff] %vm4429, %v4422
      %4456 = vst.msk [vmem:[%s172 + $0xd0] sm:$0xff] %vm4429, %v4423
      %4457 = vst.msk [vmem:[%s172 + $0xd8] sm:$0xff] %vm4429, %v4424
      %4458 = vst.msk [vmem:[%s172 + $0xe0] sm:$0xff] %vm4429, %v4425
      %4459 = vst.msk [vmem:[%s172 + $0xe8] sm:$0xff] %vm4429, %v4426
      %4460 = vst.msk [vmem:[%s172 + $0xf0] sm:$0xff] %vm4429, %v4427
      %4461 = vst.msk [vmem:[%s172 + $0xf8] sm:$0xff] %vm4429, %v4428
      %v4462 = vld [vmem:[%s166 + $0x100] sm:$0xff]
      %v4463 = vld [vmem:[%s166 + $0x108] sm:$0xff]
      %v4464 = vld [vmem:[%s166 + $0x110] sm:$0xff]
      %v4465 = vld [vmem:[%s166 + $0x118] sm:$0xff]
      %v4466 = vld [vmem:[%s166 + $0x120] sm:$0xff]
      %v4467 = vld [vmem:[%s166 + $0x128] sm:$0xff]
      %v4468 = vld [vmem:[%s166 + $0x130] sm:$0xff]
      %v4469 = vld [vmem:[%s166 + $0x138] sm:$0xff]
      %v4470 = vld [vmem:[%s166 + $0x140] sm:$0xff]
      %v4471 = vld [vmem:[%s166 + $0x148] sm:$0xff]
      %v4472 = vld [vmem:[%s166 + $0x150] sm:$0xff]
      %v4473 = vld [vmem:[%s166 + $0x158] sm:$0xff]
      %v4474 = vld [vmem:[%s166 + $0x160] sm:$0xff]
      %v4475 = vld [vmem:[%s166 + $0x168] sm:$0xff]
      %v4476 = vld [vmem:[%s166 + $0x170] sm:$0xff]
      %v4477 = vld [vmem:[%s166 + $0x178] sm:$0xff]
      %v4478 = vld [vmem:[%s166 + $0x180] sm:$0xff]
      %v4479 = vld [vmem:[%s166 + $0x188] sm:$0xff]
      %v4480 = vld [vmem:[%s166 + $0x190] sm:$0xff]
      %v4481 = vld [vmem:[%s166 + $0x198] sm:$0xff]
      %v4482 = vld [vmem:[%s166 + $0x1a0] sm:$0xff]
      %v4483 = vld [vmem:[%s166 + $0x1a8] sm:$0xff]
      %v4484 = vld [vmem:[%s166 + $0x1b0] sm:$0xff]
      %v4485 = vld [vmem:[%s166 + $0x1b8] sm:$0xff]
      %v4486 = vld [vmem:[%s166 + $0x1c0] sm:$0xff]
      %v4487 = vld [vmem:[%s166 + $0x1c8] sm:$0xff]
      %v4488 = vld [vmem:[%s166 + $0x1d0] sm:$0xff]
      %v4489 = vld [vmem:[%s166 + $0x1d8] sm:$0xff]
      %v4490 = vld [vmem:[%s166 + $0x1e0] sm:$0xff]
      %v4491 = vld [vmem:[%s166 + $0x1e8] sm:$0xff]
      %v4492 = vld [vmem:[%s166 + $0x1f0] sm:$0xff]
      %v4493 = vld [vmem:[%s166 + $0x1f8] sm:$0xff]
      %v4494 = vpack.c.bf16 %v4463, %v4462
      %v4495 = vpack.c.bf16 %v4465, %v4464
      %v4496 = vpack.c.bf16 %v4467, %v4466
      %v4497 = vpack.c.bf16 %v4469, %v4468
      %v4498 = vpack.c.bf16 %v4471, %v4470
      %v4499 = vpack.c.bf16 %v4473, %v4472
      %v4500 = vpack.c.bf16 %v4475, %v4474
      %v4501 = vpack.c.bf16 %v4477, %v4476
      %v4502 = vpack.c.bf16 %v4479, %v4478
      %v4503 = vpack.c.bf16 %v4481, %v4480
      %v4504 = vpack.c.bf16 %v4483, %v4482
      %v4505 = vpack.c.bf16 %v4485, %v4484
      %v4506 = vpack.c.bf16 %v4487, %v4486
      %v4507 = vpack.c.bf16 %v4489, %v4488
      %v4508 = vpack.c.bf16 %v4491, %v4490
      %v4509 = vpack.c.bf16 %v4493, %v4492
      %v4510 = vld [vmem:[%s1] sm:$0xff]
      %v4511 = vld [vmem:[%s1 + $0x8] sm:$0xff]
      %v4512 = vld [vmem:[%s1 + $0x10] sm:$0xff]
      %v4513 = vld [vmem:[%s1 + $0x18] sm:$0xff]
      %v4514 = vld [vmem:[%s1 + $0x20] sm:$0xff]
      %v4515 = vld [vmem:[%s1 + $0x28] sm:$0xff]
      %v4516 = vld [vmem:[%s1 + $0x30] sm:$0xff]
      %v4517 = vld [vmem:[%s1 + $0x38] sm:$0xff]
      %v4518 = vld [vmem:[%s1 + $0x40] sm:$0xff]
      %v4519 = vld [vmem:[%s1 + $0x48] sm:$0xff]
      %v4520 = vld [vmem:[%s1 + $0x50] sm:$0xff]
      %v4521 = vld [vmem:[%s1 + $0x58] sm:$0xff]
      %v4534 = vunpack.c.l.b16 %v4510
      %v4535 = vunpack.c.h.b16 %v4510
      %v4536 = vunpack.c.l.b16 %v4511
      %v4537 = vunpack.c.h.b16 %v4511
      %v4538 = vunpack.c.l.b16 %v4512
      %v4539 = vunpack.c.h.b16 %v4512
      %v4540 = vunpack.c.l.b16 %v4513
      %v4541 = vunpack.c.h.b16 %v4513
      %v4542 = vunpack.c.l.b16 %v4514
      %v4543 = vunpack.c.h.b16 %v4514
      %v4544 = vunpack.c.l.b16 %v4515
      %v4545 = vunpack.c.h.b16 %v4515
      %v4546 = vunpack.c.l.b16 %v4516
      %v4547 = vunpack.c.h.b16 %v4516
      %v4548 = vunpack.c.l.b16 %v4517
      %v4549 = vunpack.c.h.b16 %v4517
      %v4550 = vunpack.c.l.b16 %v4518
      %v4551 = vunpack.c.h.b16 %v4518
      %v4552 = vunpack.c.l.b16 %v4519
      %v4553 = vunpack.c.h.b16 %v4519
      %v4554 = vunpack.c.l.b16 %v4520
      %v4555 = vunpack.c.h.b16 %v4520
      %v4556 = vunpack.c.l.b16 %v4521
      %v4557 = vunpack.c.h.b16 %v4521
      %v4558 = vpack.c.b16 %v4536, %v4534
      %v4559 = vpack.c.b16 %v4537, %v4535
      %v4560 = vpack.c.b16 %v4540, %v4538
      %v4561 = vpack.c.b16 %v4541, %v4539
      %v4562 = vpack.c.b16 %v4544, %v4542
      %v4563 = vpack.c.b16 %v4545, %v4543
      %v4564 = vpack.c.b16 %v4548, %v4546
      %v4565 = vpack.c.b16 %v4549, %v4547
      %v4566 = vpack.c.b16 %v4552, %v4550
      %v4567 = vpack.c.b16 %v4553, %v4551
      %v4568 = vpack.c.b16 %v4556, %v4554
      %v4569 = vpack.c.b16 %v4557, %v4555
      %v4583 = vsel %vm295, %v4494, 0
      %v4586 = vsel %vm295, %v4495, 0
      %v4589 = vsel %vm295, %v4496, 0
      %v4592 = vsel %vm295, %v4497, 0
      %v4595 = vsel %vm295, %v4498, 0
      %v4598 = vsel %vm295, %v4499, 0
      %v4601 = vsel %vm295, %v4500, 0
      %v4604 = vsel %vm295, %v4501, 0
      %v4607 = vsel %vm295, %v4502, 0
      %v4610 = vsel %vm295, %v4503, 0
      %v4613 = vsel %vm295, %v4504, 0
      %v4616 = vsel %vm295, %v4505, 0
      %v4619 = vsel %vm295, %v4506, 0
      %v4622 = vsel %vm295, %v4507, 0
      %v4625 = vsel %vm295, %v4508, 0
      %v4628 = vsel %vm295, %v4509, 0
      %4630 = vmatprep.subr.bf16.mxu0 0
      %4631 = vmatpush1.bf16.msra.mxu0 0
      %4632 = vmatprep.subr.bf16.mxu0 0
      %4633 = vmatpush1.bf16.msra.mxu0 0
      %4634 = vmatprep.subr.bf16.mxu0 %v4569
      %4635 = vmatpush1.bf16.msra.mxu0 %v4568
      %4636 = vmatprep.subr.bf16.mxu0 %v4567
      %4637 = vmatpush1.bf16.msra.mxu0 %v4566
      %4638 = vmatprep.subr.bf16.mxu0 %v4565
      %4639 = vmatpush1.bf16.msra.mxu0 %v4564
      %4640 = vmatprep.subr.bf16.mxu0 %v4563
      %4641 = vmatpush1.bf16.msra.mxu0 %v4562
      %4642 = vmatprep.subr.bf16.mxu0 %v4561
      %4643 = vmatpush1.bf16.msra.mxu0 %v4560
      %4644 = vmatprep.subr.bf16.mxu0 %v4559
      %4645 = vmatpush1.bf16.msra.mxu0 %v4558
      %4646 = vmatprep.subr.bf16.mxu0 0
      %4647 = vmatpush2.bf16.msra.mxu0 0
      %4648 = vmatprep.subr.bf16.mxu0 0
      %4649 = vmatpush2.bf16.msra.mxu0 0
      %4650 = vmatprep.subr.bf16.mxu0 0
      %4651 = vmatpush2.bf16.msra.mxu0 0
      %4652 = vmatprep.subr.bf16.mxu0 0
      %4653 = vmatpush2.bf16.msra.mxu0 0
      %4654 = vmatprep.subr.bf16.mxu0 0
      %4655 = vmatpush2.bf16.msra.mxu0 0
      %4656 = vmatprep.subr.bf16.mxu0 0
      %4657 = vmatpush2.bf16.msra.mxu0 0
      %4658 = vmatprep.subr.bf16.mxu0 0
      %4659 = vmatpush2.bf16.msra.mxu0 0
      %4660 = vmatprep.subr.bf16.mxu0 0
      %4661 = vmatpush2.bf16.msra.mxu0 0
      %4662 = vmatprep.mubr.bf16.mxu0 0
      %4663 = vmatmul.mubr.bf16.gmra.mxu0 %v4583
      %v4664 = vpop.f32.mrf.mxu0
      %v4665 = vadd.f32 0.0, %v4664
      %v4666 = vpop.f32.mrf.mxu0
      %v4667 = vadd.f32 0.0, %v4666
      %v4668 = vpop.f32.mrf.mxu0
      %v4669 = vadd.f32 0.0, %v4668
      %v4670 = vpop.f32.mrf.mxu0
      %v4671 = vadd.f32 0.0, %v4670
      %4672 = vmatprep.mubr.bf16.mxu0 0
      %4673 = vmatmul.mubr.bf16.gmra.mxu0 %v4586
      %v4674 = vpop.f32.mrf.mxu0
      %v4675 = vadd.f32 0.0, %v4674
      %v4676 = vpop.f32.mrf.mxu0
      %v4677 = vadd.f32 0.0, %v4676
      %v4678 = vpop.f32.mrf.mxu0
      %v4679 = vadd.f32 0.0, %v4678
      %v4680 = vpop.f32.mrf.mxu0
      %v4681 = vadd.f32 0.0, %v4680
      %4682 = vmatprep.mubr.bf16.mxu0 0
      %4683 = vmatmul.mubr.bf16.gmra.mxu0 %v4589
      %v4684 = vpop.f32.mrf.mxu0
      %v4685 = vadd.f32 0.0, %v4684
      %v4686 = vpop.f32.mrf.mxu0
      %v4687 = vadd.f32 0.0, %v4686
      %v4688 = vpop.f32.mrf.mxu0
      %v4689 = vadd.f32 0.0, %v4688
      %v4690 = vpop.f32.mrf.mxu0
      %v4691 = vadd.f32 0.0, %v4690
      %4692 = vmatprep.mubr.bf16.mxu0 0
      %4693 = vmatmul.mubr.bf16.gmra.mxu0 %v4592
      %v4694 = vpop.f32.mrf.mxu0
      %v4695 = vadd.f32 0.0, %v4694
      %v4696 = vpop.f32.mrf.mxu0
      %v4697 = vadd.f32 0.0, %v4696
      %v4698 = vpop.f32.mrf.mxu0
      %v4699 = vadd.f32 0.0, %v4698
      %v4700 = vpop.f32.mrf.mxu0
      %v4701 = vadd.f32 0.0, %v4700
      %4702 = vmatprep.mubr.bf16.mxu0 0
      %4703 = vmatmul.mubr.bf16.gmra.mxu0 %v4595
      %v4704 = vpop.f32.mrf.mxu0
      %v4705 = vadd.f32 0.0, %v4704
      %v4706 = vpop.f32.mrf.mxu0
      %v4707 = vadd.f32 0.0, %v4706
      %v4708 = vpop.f32.mrf.mxu0
      %v4709 = vadd.f32 0.0, %v4708
      %v4710 = vpop.f32.mrf.mxu0
      %v4711 = vadd.f32 0.0, %v4710
      %4712 = vmatprep.mubr.bf16.mxu0 0
      %4713 = vmatmul.mubr.bf16.gmra.mxu0 %v4598
      %v4714 = vpop.f32.mrf.mxu0
      %v4715 = vadd.f32 0.0, %v4714
      %v4716 = vpop.f32.mrf.mxu0
      %v4717 = vadd.f32 0.0, %v4716
      %v4718 = vpop.f32.mrf.mxu0
      %v4719 = vadd.f32 0.0, %v4718
      %v4720 = vpop.f32.mrf.mxu0
      %v4721 = vadd.f32 0.0, %v4720
      %4722 = vmatprep.mubr.bf16.mxu0 0
      %4723 = vmatmul.mubr.bf16.gmra.mxu0 %v4601
      %v4724 = vpop.f32.mrf.mxu0
      %v4725 = vadd.f32 0.0, %v4724
      %v4726 = vpop.f32.mrf.mxu0
      %v4727 = vadd.f32 0.0, %v4726
      %v4728 = vpop.f32.mrf.mxu0
      %v4729 = vadd.f32 0.0, %v4728
      %v4730 = vpop.f32.mrf.mxu0
      %v4731 = vadd.f32 0.0, %v4730
      %4732 = vmatprep.mubr.bf16.mxu0 0
      %4733 = vmatmul.mubr.bf16.gmra.mxu0 %v4604
      %v4734 = vpop.f32.mrf.mxu0
      %v4735 = vadd.f32 0.0, %v4734
      %v4736 = vpop.f32.mrf.mxu0
      %v4737 = vadd.f32 0.0, %v4736
      %v4738 = vpop.f32.mrf.mxu0
      %v4739 = vadd.f32 0.0, %v4738
      %v4740 = vpop.f32.mrf.mxu0
      %v4741 = vadd.f32 0.0, %v4740
      %4742 = vmatprep.mubr.bf16.mxu0 0
      %4743 = vmatmul.mubr.bf16.gmra.mxu0 %v4607
      %v4744 = vpop.f32.mrf.mxu0
      %v4745 = vadd.f32 0.0, %v4744
      %v4746 = vpop.f32.mrf.mxu0
      %v4747 = vadd.f32 0.0, %v4746
      %v4748 = vpop.f32.mrf.mxu0
      %v4749 = vadd.f32 0.0, %v4748
      %v4750 = vpop.f32.mrf.mxu0
      %v4751 = vadd.f32 0.0, %v4750
      %4752 = vmatprep.mubr.bf16.mxu0 0
      %4753 = vmatmul.mubr.bf16.gmra.mxu0 %v4610
      %v4754 = vpop.f32.mrf.mxu0
      %v4755 = vadd.f32 0.0, %v4754
      %v4756 = vpop.f32.mrf.mxu0
      %v4757 = vadd.f32 0.0, %v4756
      %v4758 = vpop.f32.mrf.mxu0
      %v4759 = vadd.f32 0.0, %v4758
      %v4760 = vpop.f32.mrf.mxu0
      %v4761 = vadd.f32 0.0, %v4760
      %4762 = vmatprep.mubr.bf16.mxu0 0
      %4763 = vmatmul.mubr.bf16.gmra.mxu0 %v4613
      %v4764 = vpop.f32.mrf.mxu0
      %v4765 = vadd.f32 0.0, %v4764
      %v4766 = vpop.f32.mrf.mxu0
      %v4767 = vadd.f32 0.0, %v4766
      %v4768 = vpop.f32.mrf.mxu0
      %v4769 = vadd.f32 0.0, %v4768
      %v4770 = vpop.f32.mrf.mxu0
      %v4771 = vadd.f32 0.0, %v4770
      %4772 = vmatprep.mubr.bf16.mxu0 0
      %4773 = vmatmul.mubr.bf16.gmra.mxu0 %v4616
      %v4774 = vpop.f32.mrf.mxu0
      %v4775 = vadd.f32 0.0, %v4774
      %v4776 = vpop.f32.mrf.mxu0
      %v4777 = vadd.f32 0.0, %v4776
      %v4778 = vpop.f32.mrf.mxu0
      %v4779 = vadd.f32 0.0, %v4778
      %v4780 = vpop.f32.mrf.mxu0
      %v4781 = vadd.f32 0.0, %v4780
      %4782 = vmatprep.mubr.bf16.mxu0 0
      %4783 = vmatmul.mubr.bf16.gmra.mxu0 %v4619
      %v4784 = vpop.f32.mrf.mxu0
      %v4785 = vadd.f32 0.0, %v4784
      %v4786 = vpop.f32.mrf.mxu0
      %v4787 = vadd.f32 0.0, %v4786
      %v4788 = vpop.f32.mrf.mxu0
      %v4789 = vadd.f32 0.0, %v4788
      %v4790 = vpop.f32.mrf.mxu0
      %v4791 = vadd.f32 0.0, %v4790
      %4792 = vmatprep.mubr.bf16.mxu0 0
      %4793 = vmatmul.mubr.bf16.gmra.mxu0 %v4622
      %v4794 = vpop.f32.mrf.mxu0
      %v4795 = vadd.f32 0.0, %v4794
      %v4796 = vpop.f32.mrf.mxu0
      %v4797 = vadd.f32 0.0, %v4796
      %v4798 = vpop.f32.mrf.mxu0
      %v4799 = vadd.f32 0.0, %v4798
      %v4800 = vpop.f32.mrf.mxu0
      %v4801 = vadd.f32 0.0, %v4800
      %4802 = vmatprep.mubr.bf16.mxu0 0
      %4803 = vmatmul.mubr.bf16.gmra.mxu0 %v4625
      %v4804 = vpop.f32.mrf.mxu0
      %v4805 = vadd.f32 0.0, %v4804
      %v4806 = vpop.f32.mrf.mxu0
      %v4807 = vadd.f32 0.0, %v4806
      %v4808 = vpop.f32.mrf.mxu0
      %v4809 = vadd.f32 0.0, %v4808
      %v4810 = vpop.f32.mrf.mxu0
      %v4811 = vadd.f32 0.0, %v4810
      %4812 = vmatprep.mubr.bf16.mxu0 0
      %4813 = vmatmul.mubr.bf16.gmra.mxu0 %v4628
      %v4814 = vpop.f32.mrf.mxu0
      %v4815 = vadd.f32 0.0, %v4814
      %v4816 = vpop.f32.mrf.mxu0
      %v4817 = vadd.f32 0.0, %v4816
      %v4818 = vpop.f32.mrf.mxu0
      %v4819 = vadd.f32 0.0, %v4818
      %v4820 = vpop.f32.mrf.mxu0
      %v4821 = vadd.f32 0.0, %v4820
      %4822 = vdwg.mxu0
      %s4823 = scalar_lea.vmem [#allocation2], 512
      %4824 = vst [vmem:[%s4823] sm:$0xff] %v4665
      %4825 = vst.msk [vmem:[%s4823 + $0x8] sm:$0xff] %vm538, %v4667
      %4826 = vst [vmem:[%s4823 + $0x10] sm:$0xff] %v4669
      %4827 = vst.msk [vmem:[%s4823 + $0x18] sm:$0xff] %vm538, %v4671
      %4828 = vst [vmem:[%s4823 + $0x20] sm:$0xff] %v4675
      %4829 = vst.msk [vmem:[%s4823 + $0x28] sm:$0xff] %vm538, %v4677
      %4830 = vst [vmem:[%s4823 + $0x30] sm:$0xff] %v4679
      %4831 = vst.msk [vmem:[%s4823 + $0x38] sm:$0xff] %vm538, %v4681
      %4832 = vst [vmem:[%s4823 + $0x40] sm:$0xff] %v4685
      %4833 = vst.msk [vmem:[%s4823 + $0x48] sm:$0xff] %vm538, %v4687
      %4834 = vst [vmem:[%s4823 + $0x50] sm:$0xff] %v4689
      %4835 = vst.msk [vmem:[%s4823 + $0x58] sm:$0xff] %vm538, %v4691
      %4836 = vst [vmem:[%s4823 + $0x60] sm:$0xff] %v4695
      %4837 = vst.msk [vmem:[%s4823 + $0x68] sm:$0xff] %vm538, %v4697
      %4838 = vst [vmem:[%s4823 + $0x70] sm:$0xff] %v4699
      %4839 = vst.msk [vmem:[%s4823 + $0x78] sm:$0xff] %vm538, %v4701
      %4840 = vst [vmem:[%s4823 + $0x80] sm:$0xff] %v4705
      %4841 = vst.msk [vmem:[%s4823 + $0x88] sm:$0xff] %vm538, %v4707
      %4842 = vst [vmem:[%s4823 + $0x90] sm:$0xff] %v4709
      %4843 = vst.msk [vmem:[%s4823 + $0x98] sm:$0xff] %vm538, %v4711
      %4844 = vst [vmem:[%s4823 + $0xa0] sm:$0xff] %v4715
      %4845 = vst.msk [vmem:[%s4823 + $0xa8] sm:$0xff] %vm538, %v4717
      %4846 = vst [vmem:[%s4823 + $0xb0] sm:$0xff] %v4719
      %4847 = vst.msk [vmem:[%s4823 + $0xb8] sm:$0xff] %vm538, %v4721
      %4848 = vst [vmem:[%s4823 + $0xc0] sm:$0xff] %v4725
      %4849 = vst.msk [vmem:[%s4823 + $0xc8] sm:$0xff] %vm538, %v4727
      %4850 = vst [vmem:[%s4823 + $0xd0] sm:$0xff] %v4729
      %4851 = vst.msk [vmem:[%s4823 + $0xd8] sm:$0xff] %vm538, %v4731
      %4852 = vst [vmem:[%s4823 + $0xe0] sm:$0xff] %v4735
      %4853 = vst.msk [vmem:[%s4823 + $0xe8] sm:$0xff] %vm538, %v4737
      %4854 = vst [vmem:[%s4823 + $0xf0] sm:$0xff] %v4739
      %4855 = vst.msk [vmem:[%s4823 + $0xf8] sm:$0xff] %vm538, %v4741
      %4856 = vst [vmem:[%s4823 + $0x100] sm:$0xff] %v4745
      %4857 = vst.msk [vmem:[%s4823 + $0x108] sm:$0xff] %vm538, %v4747
      %4858 = vst [vmem:[%s4823 + $0x110] sm:$0xff] %v4749
      %4859 = vst.msk [vmem:[%s4823 + $0x118] sm:$0xff] %vm538, %v4751
      %4860 = vst [vmem:[%s4823 + $0x120] sm:$0xff] %v4755
      %4861 = vst.msk [vmem:[%s4823 + $0x128] sm:$0xff] %vm538, %v4757
      %4862 = vst [vmem:[%s4823 + $0x130] sm:$0xff] %v4759
      %4863 = vst.msk [vmem:[%s4823 + $0x138] sm:$0xff] %vm538, %v4761
      %4864 = vst [vmem:[%s4823 + $0x140] sm:$0xff] %v4765
      %4865 = vst.msk [vmem:[%s4823 + $0x148] sm:$0xff] %vm538, %v4767
      %4866 = vst [vmem:[%s4823 + $0x150] sm:$0xff] %v4769
      %4867 = vst.msk [vmem:[%s4823 + $0x158] sm:$0xff] %vm538, %v4771
      %4868 = vst [vmem:[%s4823 + $0x160] sm:$0xff] %v4775
      %4869 = vst.msk [vmem:[%s4823 + $0x168] sm:$0xff] %vm538, %v4777
      %4870 = vst [vmem:[%s4823 + $0x170] sm:$0xff] %v4779
      %4871 = vst.msk [vmem:[%s4823 + $0x178] sm:$0xff] %vm538, %v4781
      %4872 = vst [vmem:[%s4823 + $0x180] sm:$0xff] %v4785
      %4873 = vst.msk [vmem:[%s4823 + $0x188] sm:$0xff] %vm538, %v4787
      %4874 = vst [vmem:[%s4823 + $0x190] sm:$0xff] %v4789
      %4875 = vst.msk [vmem:[%s4823 + $0x198] sm:$0xff] %vm538, %v4791
      %4876 = vst [vmem:[%s4823 + $0x1a0] sm:$0xff] %v4795
      %4877 = vst.msk [vmem:[%s4823 + $0x1a8] sm:$0xff] %vm538, %v4797
      %4878 = vst [vmem:[%s4823 + $0x1b0] sm:$0xff] %v4799
      %4879 = vst.msk [vmem:[%s4823 + $0x1b8] sm:$0xff] %vm538, %v4801
      %4880 = vst [vmem:[%s4823 + $0x1c0] sm:$0xff] %v4805
      %4881 = vst.msk [vmem:[%s4823 + $0x1c8] sm:$0xff] %vm538, %v4807
      %4882 = vst [vmem:[%s4823 + $0x1d0] sm:$0xff] %v4809
      %4883 = vst.msk [vmem:[%s4823 + $0x1d8] sm:$0xff] %vm538, %v4811
      %4884 = vst [vmem:[%s4823 + $0x1e0] sm:$0xff] %v4815
      %4885 = vst.msk [vmem:[%s4823 + $0x1e8] sm:$0xff] %vm538, %v4817
      %4886 = vst [vmem:[%s4823 + $0x1f0] sm:$0xff] %v4819
      %4887 = vst.msk [vmem:[%s4823 + $0x1f8] sm:$0xff] %vm538, %v4821
      %v4888 = vld [vmem:[%s2] sm:$0x1]
      %v4889 = vlaneseq
      %v4890 = vshrl.u32 %v4889, 7
      %v4891 = vsub.s32 0, %v4890
      %v4892 = vrot.slane %v4888, %v4891
      %v4893 = vadd.f32 %v4665, %v4892
      %v4894 = vadd.f32 %v4669, %v4892
      %v4895 = vadd.f32 %v4675, %v4892
      %v4896 = vadd.f32 %v4679, %v4892
      %v4897 = vadd.f32 %v4685, %v4892
      %v4898 = vadd.f32 %v4689, %v4892
      %v4899 = vadd.f32 %v4695, %v4892
      %v4900 = vadd.f32 %v4699, %v4892
      %v4901 = vadd.f32 %v4705, %v4892
      %v4902 = vadd.f32 %v4709, %v4892
      %v4903 = vadd.f32 %v4715, %v4892
      %v4904 = vadd.f32 %v4719, %v4892
      %v4905 = vadd.f32 %v4725, %v4892
      %v4906 = vadd.f32 %v4729, %v4892
      %v4907 = vadd.f32 %v4735, %v4892
      %v4908 = vadd.f32 %v4739, %v4892
      %v4909 = vadd.f32 %v4745, %v4892
      %v4910 = vadd.f32 %v4749, %v4892
      %v4911 = vadd.f32 %v4755, %v4892
      %v4912 = vadd.f32 %v4759, %v4892
      %v4913 = vadd.f32 %v4765, %v4892
      %v4914 = vadd.f32 %v4769, %v4892
      %v4915 = vadd.f32 %v4775, %v4892
      %v4916 = vadd.f32 %v4779, %v4892
      %v4917 = vadd.f32 %v4785, %v4892
      %v4918 = vadd.f32 %v4789, %v4892
      %v4919 = vadd.f32 %v4795, %v4892
      %v4920 = vadd.f32 %v4799, %v4892
      %v4921 = vadd.f32 %v4805, %v4892
      %v4922 = vadd.f32 %v4809, %v4892
      %v4923 = vadd.f32 %v4815, %v4892
      %v4924 = vadd.f32 %v4819, %v4892
      %v4925 = vmax.f32 %v4893, 0.0
      %v4926 = vmax.f32 %v4894, 0.0
      %v4927 = vmax.f32 %v4895, 0.0
      %v4928 = vmax.f32 %v4896, 0.0
      %v4929 = vmax.f32 %v4897, 0.0
      %v4930 = vmax.f32 %v4898, 0.0
      %v4931 = vmax.f32 %v4899, 0.0
      %v4932 = vmax.f32 %v4900, 0.0
      %v4933 = vmax.f32 %v4901, 0.0
      %v4934 = vmax.f32 %v4902, 0.0
      %v4935 = vmax.f32 %v4903, 0.0
      %v4936 = vmax.f32 %v4904, 0.0
      %v4937 = vmax.f32 %v4905, 0.0
      %v4938 = vmax.f32 %v4906, 0.0
      %v4939 = vmax.f32 %v4907, 0.0
      %v4940 = vmax.f32 %v4908, 0.0
      %v4941 = vmax.f32 %v4909, 0.0
      %v4942 = vmax.f32 %v4910, 0.0
      %v4943 = vmax.f32 %v4911, 0.0
      %v4944 = vmax.f32 %v4912, 0.0
      %v4945 = vmax.f32 %v4913, 0.0
      %v4946 = vmax.f32 %v4914, 0.0
      %v4947 = vmax.f32 %v4915, 0.0
      %v4948 = vmax.f32 %v4916, 0.0
      %v4949 = vmax.f32 %v4917, 0.0
      %v4950 = vmax.f32 %v4918, 0.0
      %v4951 = vmax.f32 %v4919, 0.0
      %v4952 = vmax.f32 %v4920, 0.0
      %v4953 = vmax.f32 %v4921, 0.0
      %v4954 = vmax.f32 %v4922, 0.0
      %v4955 = vmax.f32 %v4923, 0.0
      %v4956 = vmax.f32 %v4924, 0.0
      %v4957 = vpack.c.bf16 %v4926, %v4925
      %v4958 = vpack.c.bf16 %v4928, %v4927
      %v4959 = vpack.c.bf16 %v4930, %v4929
      %v4960 = vpack.c.bf16 %v4932, %v4931
      %v4961 = vpack.c.bf16 %v4934, %v4933
      %v4962 = vpack.c.bf16 %v4936, %v4935
      %v4963 = vpack.c.bf16 %v4938, %v4937
      %v4964 = vpack.c.bf16 %v4940, %v4939
      %v4965 = vpack.c.bf16 %v4942, %v4941
      %v4966 = vpack.c.bf16 %v4944, %v4943
      %v4967 = vpack.c.bf16 %v4946, %v4945
      %v4968 = vpack.c.bf16 %v4948, %v4947
      %v4969 = vpack.c.bf16 %v4950, %v4949
      %v4970 = vpack.c.bf16 %v4952, %v4951
      %v4971 = vpack.c.bf16 %v4954, %v4953
      %v4972 = vpack.c.bf16 %v4956, %v4955
      %v4973 = vld [vmem:[%s1 + $0x60] sm:$0xf]
      %v4974 = vld [vmem:[%s1 + $0x68] sm:$0xf]
      %v4975 = vld [vmem:[%s1 + $0x70] sm:$0xf]
      %v4976 = vld [vmem:[%s1 + $0x78] sm:$0xf]
      %v4977 = vld [vmem:[%s1 + $0x80] sm:$0xf]
      %v4978 = vld [vmem:[%s1 + $0x88] sm:$0xf]
      %v4979 = vld [vmem:[%s1 + $0x90] sm:$0xf]
      %v4980 = vld [vmem:[%s1 + $0x98] sm:$0xf]
      %v4981 = vld [vmem:[%s2 + $0x1] sm:$0x1]
      %v4982 = vlaneseq
      %v4983 = vshrl.u32 %v4982, 7
      %v4984 = vsub.s32 0, %v4983
      %v4985 = vrot.slane %v4981, %v4984
      %v4994 = vunpack.c.l.b16 %v4973
      %v4995 = vunpack.c.l.b16 %v4974
      %v4996 = vunpack.c.l.b16 %v4975
      %v4997 = vunpack.c.l.b16 %v4976
      %v4998 = vunpack.c.l.b16 %v4977
      %v4999 = vunpack.c.l.b16 %v4978
      %v5000 = vunpack.c.l.b16 %v4979
      %v5001 = vunpack.c.l.b16 %v4980
      %v5002 = vpack.c.b16 %v4995, %v4994
      %v5003 = vpack.c.b16 %v4997, %v4996
      %v5004 = vpack.c.b16 %v4999, %v4998
      %v5005 = vpack.c.b16 %v5001, %v5000
      %v5011 = vsel %vm724, %v4957, 0
      %v5014 = vsel %vm724, %v4958, 0
      %v5017 = vsel %vm724, %v4959, 0
      %v5020 = vsel %vm724, %v4960, 0
      %v5023 = vsel %vm724, %v4961, 0
      %v5026 = vsel %vm724, %v4962, 0
      %v5029 = vsel %vm724, %v4963, 0
      %v5032 = vsel %vm724, %v4964, 0
      %v5035 = vsel %vm724, %v4965, 0
      %v5038 = vsel %vm724, %v4966, 0
      %v5041 = vsel %vm724, %v4967, 0
      %v5044 = vsel %vm724, %v4968, 0
      %v5047 = vsel %vm724, %v4969, 0
      %v5050 = vsel %vm724, %v4970, 0
      %v5053 = vsel %vm724, %v4971, 0
      %v5056 = vsel %vm724, %v4972, 0
      %5058 = vmatprep.subr.bf16.mxu0 0
      %5059 = vmatpush1.bf16.msra.mxu0 0
      %5060 = vmatprep.subr.bf16.mxu0 0
      %5061 = vmatpush1.bf16.msra.mxu0 0
      %5062 = vmatprep.subr.bf16.mxu0 0
      %5063 = vmatpush1.bf16.msra.mxu0 0
      %5064 = vmatprep.subr.bf16.mxu0 0
      %5065 = vmatpush1.bf16.msra.mxu0 0
      %5066 = vmatprep.subr.bf16.mxu0 0
      %5067 = vmatpush1.bf16.msra.mxu0 %v5005
      %5068 = vmatprep.subr.bf16.mxu0 0
      %5069 = vmatpush1.bf16.msra.mxu0 %v5004
      %5070 = vmatprep.subr.bf16.mxu0 0
      %5071 = vmatpush1.bf16.msra.mxu0 %v5003
      %5072 = vmatprep.subr.bf16.mxu0 0
      %5073 = vmatpush1.bf16.msra.mxu0 %v5002
      %5074 = vmatprep.subr.bf16.mxu0 0
      %5075 = vmatpush2.bf16.msra.mxu0 0
      %5076 = vmatprep.subr.bf16.mxu0 0
      %5077 = vmatpush2.bf16.msra.mxu0 0
      %5078 = vmatprep.subr.bf16.mxu0 0
      %5079 = vmatpush2.bf16.msra.mxu0 0
      %5080 = vmatprep.subr.bf16.mxu0 0
      %5081 = vmatpush2.bf16.msra.mxu0 0
      %5082 = vmatprep.subr.bf16.mxu0 0
      %5083 = vmatpush2.bf16.msra.mxu0 0
      %5084 = vmatprep.subr.bf16.mxu0 0
      %5085 = vmatpush2.bf16.msra.mxu0 0
      %5086 = vmatprep.subr.bf16.mxu0 0
      %5087 = vmatpush2.bf16.msra.mxu0 0
      %5088 = vmatprep.subr.bf16.mxu0 0
      %5089 = vmatpush2.bf16.msra.mxu0 0
      %5090 = vmatprep.mubr.bf16.mxu0 0
      %5091 = vmatmul.mubr.bf16.gmra.mxu0 %v5011
      %v5092 = vpop.f32.mrf.mxu0
      %v5093 = vadd.f32 %v4985, %v5092
      %v5094 = vpop.f32.mrf.mxu0
      %v5095 = vpop.f32.mrf.mxu0
      %v5096 = vadd.f32 %v4985, %v5095
      %v5097 = vpop.f32.mrf.mxu0
      %5098 = vmatprep.mubr.bf16.mxu0 0
      %5099 = vmatmul.mubr.bf16.gmra.mxu0 %v5014
      %v5100 = vpop.f32.mrf.mxu0
      %v5101 = vadd.f32 %v4985, %v5100
      %v5102 = vpop.f32.mrf.mxu0
      %v5103 = vpop.f32.mrf.mxu0
      %v5104 = vadd.f32 %v4985, %v5103
      %v5105 = vpop.f32.mrf.mxu0
      %5106 = vmatprep.mubr.bf16.mxu0 0
      %5107 = vmatmul.mubr.bf16.gmra.mxu0 %v5017
      %v5108 = vpop.f32.mrf.mxu0
      %v5109 = vadd.f32 %v4985, %v5108
      %v5110 = vpop.f32.mrf.mxu0
      %v5111 = vpop.f32.mrf.mxu0
      %v5112 = vadd.f32 %v4985, %v5111
      %v5113 = vpop.f32.mrf.mxu0
      %5114 = vmatprep.mubr.bf16.mxu0 0
      %5115 = vmatmul.mubr.bf16.gmra.mxu0 %v5020
      %v5116 = vpop.f32.mrf.mxu0
      %v5117 = vadd.f32 %v4985, %v5116
      %v5118 = vpop.f32.mrf.mxu0
      %v5119 = vpop.f32.mrf.mxu0
      %v5120 = vadd.f32 %v4985, %v5119
      %v5121 = vpop.f32.mrf.mxu0
      %5122 = vmatprep.mubr.bf16.mxu0 0
      %5123 = vmatmul.mubr.bf16.gmra.mxu0 %v5023
      %v5124 = vpop.f32.mrf.mxu0
      %v5125 = vadd.f32 %v4985, %v5124
      %v5126 = vpop.f32.mrf.mxu0
      %v5127 = vpop.f32.mrf.mxu0
      %v5128 = vadd.f32 %v4985, %v5127
      %v5129 = vpop.f32.mrf.mxu0
      %5130 = vmatprep.mubr.bf16.mxu0 0
      %5131 = vmatmul.mubr.bf16.gmra.mxu0 %v5026
      %v5132 = vpop.f32.mrf.mxu0
      %v5133 = vadd.f32 %v4985, %v5132
      %v5134 = vpop.f32.mrf.mxu0
      %v5135 = vpop.f32.mrf.mxu0
      %v5136 = vadd.f32 %v4985, %v5135
      %v5137 = vpop.f32.mrf.mxu0
      %5138 = vmatprep.mubr.bf16.mxu0 0
      %5139 = vmatmul.mubr.bf16.gmra.mxu0 %v5029
      %v5140 = vpop.f32.mrf.mxu0
      %v5141 = vadd.f32 %v4985, %v5140
      %v5142 = vpop.f32.mrf.mxu0
      %v5143 = vpop.f32.mrf.mxu0
      %v5144 = vadd.f32 %v4985, %v5143
      %v5145 = vpop.f32.mrf.mxu0
      %5146 = vmatprep.mubr.bf16.mxu0 0
      %5147 = vmatmul.mubr.bf16.gmra.mxu0 %v5032
      %v5148 = vpop.f32.mrf.mxu0
      %v5149 = vadd.f32 %v4985, %v5148
      %v5150 = vpop.f32.mrf.mxu0
      %v5151 = vpop.f32.mrf.mxu0
      %v5152 = vadd.f32 %v4985, %v5151
      %v5153 = vpop.f32.mrf.mxu0
      %5154 = vmatprep.mubr.bf16.mxu0 0
      %5155 = vmatmul.mubr.bf16.gmra.mxu0 %v5035
      %v5156 = vpop.f32.mrf.mxu0
      %v5157 = vadd.f32 %v4985, %v5156
      %v5158 = vpop.f32.mrf.mxu0
      %v5159 = vpop.f32.mrf.mxu0
      %v5160 = vadd.f32 %v4985, %v5159
      %v5161 = vpop.f32.mrf.mxu0
      %5162 = vmatprep.mubr.bf16.mxu0 0
      %5163 = vmatmul.mubr.bf16.gmra.mxu0 %v5038
      %v5164 = vpop.f32.mrf.mxu0
      %v5165 = vadd.f32 %v4985, %v5164
      %v5166 = vpop.f32.mrf.mxu0
      %v5167 = vpop.f32.mrf.mxu0
      %v5168 = vadd.f32 %v4985, %v5167
      %v5169 = vpop.f32.mrf.mxu0
      %5170 = vmatprep.mubr.bf16.mxu0 0
      %5171 = vmatmul.mubr.bf16.gmra.mxu0 %v5041
      %v5172 = vpop.f32.mrf.mxu0
      %v5173 = vadd.f32 %v4985, %v5172
      %v5174 = vpop.f32.mrf.mxu0
      %v5175 = vpop.f32.mrf.mxu0
      %v5176 = vadd.f32 %v4985, %v5175
      %v5177 = vpop.f32.mrf.mxu0
      %5178 = vmatprep.mubr.bf16.mxu0 0
      %5179 = vmatmul.mubr.bf16.gmra.mxu0 %v5044
      %v5180 = vpop.f32.mrf.mxu0
      %v5181 = vadd.f32 %v4985, %v5180
      %v5182 = vpop.f32.mrf.mxu0
      %v5183 = vpop.f32.mrf.mxu0
      %v5184 = vadd.f32 %v4985, %v5183
      %v5185 = vpop.f32.mrf.mxu0
      %5186 = vmatprep.mubr.bf16.mxu0 0
      %5187 = vmatmul.mubr.bf16.gmra.mxu0 %v5047
      %v5188 = vpop.f32.mrf.mxu0
      %v5189 = vadd.f32 %v4985, %v5188
      %v5190 = vpop.f32.mrf.mxu0
      %v5191 = vpop.f32.mrf.mxu0
      %v5192 = vadd.f32 %v4985, %v5191
      %v5193 = vpop.f32.mrf.mxu0
      %5194 = vmatprep.mubr.bf16.mxu0 0
      %5195 = vmatmul.mubr.bf16.gmra.mxu0 %v5050
      %v5196 = vpop.f32.mrf.mxu0
      %v5197 = vadd.f32 %v4985, %v5196
      %v5198 = vpop.f32.mrf.mxu0
      %v5199 = vpop.f32.mrf.mxu0
      %v5200 = vadd.f32 %v4985, %v5199
      %v5201 = vpop.f32.mrf.mxu0
      %5202 = vmatprep.mubr.bf16.mxu0 0
      %5203 = vmatmul.mubr.bf16.gmra.mxu0 %v5053
      %v5204 = vpop.f32.mrf.mxu0
      %v5205 = vadd.f32 %v4985, %v5204
      %v5206 = vpop.f32.mrf.mxu0
      %v5207 = vpop.f32.mrf.mxu0
      %v5208 = vadd.f32 %v4985, %v5207
      %v5209 = vpop.f32.mrf.mxu0
      %5210 = vmatprep.mubr.bf16.mxu0 0
      %5211 = vmatmul.mubr.bf16.gmra.mxu0 %v5056
      %v5212 = vpop.f32.mrf.mxu0
      %v5213 = vadd.f32 %v4985, %v5212
      %v5214 = vpop.f32.mrf.mxu0
      %v5215 = vpop.f32.mrf.mxu0
      %v5216 = vadd.f32 %v4985, %v5215
      %v5217 = vpop.f32.mrf.mxu0
      %5218 = vdwg.mxu0
      %v5219 = vmax.f32 %v5093, 0.0
      %v5220 = vmax.f32 %v5096, 0.0
      %v5221 = vmax.f32 %v5101, 0.0
      %v5222 = vmax.f32 %v5104, 0.0
      %v5223 = vmax.f32 %v5109, 0.0
      %v5224 = vmax.f32 %v5112, 0.0
      %v5225 = vmax.f32 %v5117, 0.0
      %v5226 = vmax.f32 %v5120, 0.0
      %v5227 = vmax.f32 %v5125, 0.0
      %v5228 = vmax.f32 %v5128, 0.0
      %v5229 = vmax.f32 %v5133, 0.0
      %v5230 = vmax.f32 %v5136, 0.0
      %v5231 = vmax.f32 %v5141, 0.0
      %v5232 = vmax.f32 %v5144, 0.0
      %v5233 = vmax.f32 %v5149, 0.0
      %v5234 = vmax.f32 %v5152, 0.0
      %v5235 = vmax.f32 %v5157, 0.0
      %v5236 = vmax.f32 %v5160, 0.0
      %v5237 = vmax.f32 %v5165, 0.0
      %v5238 = vmax.f32 %v5168, 0.0
      %v5239 = vmax.f32 %v5173, 0.0
      %v5240 = vmax.f32 %v5176, 0.0
      %v5241 = vmax.f32 %v5181, 0.0
      %v5242 = vmax.f32 %v5184, 0.0
      %v5243 = vmax.f32 %v5189, 0.0
      %v5244 = vmax.f32 %v5192, 0.0
      %v5245 = vmax.f32 %v5197, 0.0
      %v5246 = vmax.f32 %v5200, 0.0
      %v5247 = vmax.f32 %v5205, 0.0
      %v5248 = vmax.f32 %v5208, 0.0
      %v5249 = vmax.f32 %v5213, 0.0
      %v5250 = vmax.f32 %v5216, 0.0
      %v5251 = vpack.c.bf16 %v5220, %v5219
      %v5252 = vpack.c.bf16 %v5222, %v5221
      %v5253 = vpack.c.bf16 %v5224, %v5223
      %v5254 = vpack.c.bf16 %v5226, %v5225
      %v5255 = vpack.c.bf16 %v5228, %v5227
      %v5256 = vpack.c.bf16 %v5230, %v5229
      %v5257 = vpack.c.bf16 %v5232, %v5231
      %v5258 = vpack.c.bf16 %v5234, %v5233
      %v5259 = vpack.c.bf16 %v5236, %v5235
      %v5260 = vpack.c.bf16 %v5238, %v5237
      %v5261 = vpack.c.bf16 %v5240, %v5239
      %v5262 = vpack.c.bf16 %v5242, %v5241
      %v5263 = vpack.c.bf16 %v5244, %v5243
      %v5264 = vpack.c.bf16 %v5246, %v5245
      %v5265 = vpack.c.bf16 %v5248, %v5247
      %v5266 = vpack.c.bf16 %v5250, %v5249
      %v5267 = vld [vmem:[%s1 + $0xa0] sm:$0xf]
      %v5268 = vld [vmem:[%s1 + $0xa8] sm:$0xf]
      %v5269 = vld [vmem:[%s1 + $0xb0] sm:$0xf]
      %v5270 = vld [vmem:[%s1 + $0xb8] sm:$0xf]
      %v5271 = vld [vmem:[%s1 + $0xc0] sm:$0xf]
      %v5272 = vld [vmem:[%s1 + $0xc8] sm:$0xf]
      %v5273 = vld [vmem:[%s1 + $0xd0] sm:$0xf]
      %v5274 = vld [vmem:[%s1 + $0xd8] sm:$0xf]
      %v5275 = vld [vmem:[%s2 + $0x2] sm:$0x1]
      %v5276 = vlaneseq
      %v5277 = vshrl.u32 %v5276, 7
      %v5278 = vsub.s32 0, %v5277
      %v5279 = vrot.slane %v5275, %v5278
      %v5288 = vunpack.c.l.b16 %v5267
      %v5289 = vunpack.c.l.b16 %v5268
      %v5290 = vunpack.c.l.b16 %v5269
      %v5291 = vunpack.c.l.b16 %v5270
      %v5292 = vunpack.c.l.b16 %v5271
      %v5293 = vunpack.c.l.b16 %v5272
      %v5294 = vunpack.c.l.b16 %v5273
      %v5295 = vunpack.c.l.b16 %v5274
      %v5296 = vpack.c.b16 %v5289, %v5288
      %v5297 = vpack.c.b16 %v5291, %v5290
      %v5298 = vpack.c.b16 %v5293, %v5292
      %v5299 = vpack.c.b16 %v5295, %v5294
      %v5305 = vsel %vm724, %v5251, 0
      %v5308 = vsel %vm724, %v5252, 0
      %v5311 = vsel %vm724, %v5253, 0
      %v5314 = vsel %vm724, %v5254, 0
      %v5317 = vsel %vm724, %v5255, 0
      %v5320 = vsel %vm724, %v5256, 0
      %v5323 = vsel %vm724, %v5257, 0
      %v5326 = vsel %vm724, %v5258, 0
      %v5329 = vsel %vm724, %v5259, 0
      %v5332 = vsel %vm724, %v5260, 0
      %v5335 = vsel %vm724, %v5261, 0
      %v5338 = vsel %vm724, %v5262, 0
      %v5341 = vsel %vm724, %v5263, 0
      %v5344 = vsel %vm724, %v5264, 0
      %v5347 = vsel %vm724, %v5265, 0
      %v5350 = vsel %vm724, %v5266, 0
      %5352 = vmatprep.subr.bf16.mxu0 0
      %5353 = vmatpush1.bf16.msra.mxu0 0
      %5354 = vmatprep.subr.bf16.mxu0 0
      %5355 = vmatpush1.bf16.msra.mxu0 0
      %5356 = vmatprep.subr.bf16.mxu0 0
      %5357 = vmatpush1.bf16.msra.mxu0 0
      %5358 = vmatprep.subr.bf16.mxu0 0
      %5359 = vmatpush1.bf16.msra.mxu0 0
      %5360 = vmatprep.subr.bf16.mxu0 0
      %5361 = vmatpush1.bf16.msra.mxu0 %v5299
      %5362 = vmatprep.subr.bf16.mxu0 0
      %5363 = vmatpush1.bf16.msra.mxu0 %v5298
      %5364 = vmatprep.subr.bf16.mxu0 0
      %5365 = vmatpush1.bf16.msra.mxu0 %v5297
      %5366 = vmatprep.subr.bf16.mxu0 0
      %5367 = vmatpush1.bf16.msra.mxu0 %v5296
      %5368 = vmatprep.subr.bf16.mxu0 0
      %5369 = vmatpush2.bf16.msra.mxu0 0
      %5370 = vmatprep.subr.bf16.mxu0 0
      %5371 = vmatpush2.bf16.msra.mxu0 0
      %5372 = vmatprep.subr.bf16.mxu0 0
      %5373 = vmatpush2.bf16.msra.mxu0 0
      %5374 = vmatprep.subr.bf16.mxu0 0
      %5375 = vmatpush2.bf16.msra.mxu0 0
      %5376 = vmatprep.subr.bf16.mxu0 0
      %5377 = vmatpush2.bf16.msra.mxu0 0
      %5378 = vmatprep.subr.bf16.mxu0 0
      %5379 = vmatpush2.bf16.msra.mxu0 0
      %5380 = vmatprep.subr.bf16.mxu0 0
      %5381 = vmatpush2.bf16.msra.mxu0 0
      %5382 = vmatprep.subr.bf16.mxu0 0
      %5383 = vmatpush2.bf16.msra.mxu0 0
      %5384 = vmatprep.mubr.bf16.mxu0 0
      %5385 = vmatmul.mubr.bf16.gmra.mxu0 %v5305
      %v5386 = vpop.f32.mrf.mxu0
      %v5387 = vadd.f32 %v5279, %v5386
      %v5388 = vpop.f32.mrf.mxu0
      %v5389 = vpop.f32.mrf.mxu0
      %v5390 = vadd.f32 %v5279, %v5389
      %v5391 = vpop.f32.mrf.mxu0
      %5392 = vmatprep.mubr.bf16.mxu0 0
      %5393 = vmatmul.mubr.bf16.gmra.mxu0 %v5308
      %v5394 = vpop.f32.mrf.mxu0
      %v5395 = vadd.f32 %v5279, %v5394
      %v5396 = vpop.f32.mrf.mxu0
      %v5397 = vpop.f32.mrf.mxu0
      %v5398 = vadd.f32 %v5279, %v5397
      %v5399 = vpop.f32.mrf.mxu0
      %5400 = vmatprep.mubr.bf16.mxu0 0
      %5401 = vmatmul.mubr.bf16.gmra.mxu0 %v5311
      %v5402 = vpop.f32.mrf.mxu0
      %v5403 = vadd.f32 %v5279, %v5402
      %v5404 = vpop.f32.mrf.mxu0
      %v5405 = vpop.f32.mrf.mxu0
      %v5406 = vadd.f32 %v5279, %v5405
      %v5407 = vpop.f32.mrf.mxu0
      %5408 = vmatprep.mubr.bf16.mxu0 0
      %5409 = vmatmul.mubr.bf16.gmra.mxu0 %v5314
      %v5410 = vpop.f32.mrf.mxu0
      %v5411 = vadd.f32 %v5279, %v5410
      %v5412 = vpop.f32.mrf.mxu0
      %v5413 = vpop.f32.mrf.mxu0
      %v5414 = vadd.f32 %v5279, %v5413
      %v5415 = vpop.f32.mrf.mxu0
      %5416 = vmatprep.mubr.bf16.mxu0 0
      %5417 = vmatmul.mubr.bf16.gmra.mxu0 %v5317
      %v5418 = vpop.f32.mrf.mxu0
      %v5419 = vadd.f32 %v5279, %v5418
      %v5420 = vpop.f32.mrf.mxu0
      %v5421 = vpop.f32.mrf.mxu0
      %v5422 = vadd.f32 %v5279, %v5421
      %v5423 = vpop.f32.mrf.mxu0
      %5424 = vmatprep.mubr.bf16.mxu0 0
      %5425 = vmatmul.mubr.bf16.gmra.mxu0 %v5320
      %v5426 = vpop.f32.mrf.mxu0
      %v5427 = vadd.f32 %v5279, %v5426
      %v5428 = vpop.f32.mrf.mxu0
      %v5429 = vpop.f32.mrf.mxu0
      %v5430 = vadd.f32 %v5279, %v5429
      %v5431 = vpop.f32.mrf.mxu0
      %5432 = vmatprep.mubr.bf16.mxu0 0
      %5433 = vmatmul.mubr.bf16.gmra.mxu0 %v5323
      %v5434 = vpop.f32.mrf.mxu0
      %v5435 = vadd.f32 %v5279, %v5434
      %v5436 = vpop.f32.mrf.mxu0
      %v5437 = vpop.f32.mrf.mxu0
      %v5438 = vadd.f32 %v5279, %v5437
      %v5439 = vpop.f32.mrf.mxu0
      %5440 = vmatprep.mubr.bf16.mxu0 0
      %5441 = vmatmul.mubr.bf16.gmra.mxu0 %v5326
      %v5442 = vpop.f32.mrf.mxu0
      %v5443 = vadd.f32 %v5279, %v5442
      %v5444 = vpop.f32.mrf.mxu0
      %v5445 = vpop.f32.mrf.mxu0
      %v5446 = vadd.f32 %v5279, %v5445
      %v5447 = vpop.f32.mrf.mxu0
      %5448 = vmatprep.mubr.bf16.mxu0 0
      %5449 = vmatmul.mubr.bf16.gmra.mxu0 %v5329
      %v5450 = vpop.f32.mrf.mxu0
      %v5451 = vadd.f32 %v5279, %v5450
      %v5452 = vpop.f32.mrf.mxu0
      %v5453 = vpop.f32.mrf.mxu0
      %v5454 = vadd.f32 %v5279, %v5453
      %v5455 = vpop.f32.mrf.mxu0
      %5456 = vmatprep.mubr.bf16.mxu0 0
      %5457 = vmatmul.mubr.bf16.gmra.mxu0 %v5332
      %v5458 = vpop.f32.mrf.mxu0
      %v5459 = vadd.f32 %v5279, %v5458
      %v5460 = vpop.f32.mrf.mxu0
      %v5461 = vpop.f32.mrf.mxu0
      %v5462 = vadd.f32 %v5279, %v5461
      %v5463 = vpop.f32.mrf.mxu0
      %5464 = vmatprep.mubr.bf16.mxu0 0
      %5465 = vmatmul.mubr.bf16.gmra.mxu0 %v5335
      %v5466 = vpop.f32.mrf.mxu0
      %v5467 = vadd.f32 %v5279, %v5466
      %v5468 = vpop.f32.mrf.mxu0
      %v5469 = vpop.f32.mrf.mxu0
      %v5470 = vadd.f32 %v5279, %v5469
      %v5471 = vpop.f32.mrf.mxu0
      %5472 = vmatprep.mubr.bf16.mxu0 0
      %5473 = vmatmul.mubr.bf16.gmra.mxu0 %v5338
      %v5474 = vpop.f32.mrf.mxu0
      %v5475 = vadd.f32 %v5279, %v5474
      %v5476 = vpop.f32.mrf.mxu0
      %v5477 = vpop.f32.mrf.mxu0
      %v5478 = vadd.f32 %v5279, %v5477
      %v5479 = vpop.f32.mrf.mxu0
      %5480 = vmatprep.mubr.bf16.mxu0 0
      %5481 = vmatmul.mubr.bf16.gmra.mxu0 %v5341
      %v5482 = vpop.f32.mrf.mxu0
      %v5483 = vadd.f32 %v5279, %v5482
      %v5484 = vpop.f32.mrf.mxu0
      %v5485 = vpop.f32.mrf.mxu0
      %v5486 = vadd.f32 %v5279, %v5485
      %v5487 = vpop.f32.mrf.mxu0
      %5488 = vmatprep.mubr.bf16.mxu0 0
      %5489 = vmatmul.mubr.bf16.gmra.mxu0 %v5344
      %v5490 = vpop.f32.mrf.mxu0
      %v5491 = vadd.f32 %v5279, %v5490
      %v5492 = vpop.f32.mrf.mxu0
      %v5493 = vpop.f32.mrf.mxu0
      %v5494 = vadd.f32 %v5279, %v5493
      %v5495 = vpop.f32.mrf.mxu0
      %5496 = vmatprep.mubr.bf16.mxu0 0
      %5497 = vmatmul.mubr.bf16.gmra.mxu0 %v5347
      %v5498 = vpop.f32.mrf.mxu0
      %v5499 = vadd.f32 %v5279, %v5498
      %v5500 = vpop.f32.mrf.mxu0
      %v5501 = vpop.f32.mrf.mxu0
      %v5502 = vadd.f32 %v5279, %v5501
      %v5503 = vpop.f32.mrf.mxu0
      %5504 = vmatprep.mubr.bf16.mxu0 0
      %5505 = vmatmul.mubr.bf16.gmra.mxu0 %v5350
      %v5506 = vpop.f32.mrf.mxu0
      %v5507 = vadd.f32 %v5279, %v5506
      %v5508 = vpop.f32.mrf.mxu0
      %v5509 = vpop.f32.mrf.mxu0
      %v5510 = vadd.f32 %v5279, %v5509
      %v5511 = vpop.f32.mrf.mxu0
      %5512 = vdwg.mxu0
      %v5513 = vmax.f32 %v5387, 0.0
      %v5514 = vmax.f32 %v5390, 0.0
      %v5515 = vmax.f32 %v5395, 0.0
      %v5516 = vmax.f32 %v5398, 0.0
      %v5517 = vmax.f32 %v5403, 0.0
      %v5518 = vmax.f32 %v5406, 0.0
      %v5519 = vmax.f32 %v5411, 0.0
      %v5520 = vmax.f32 %v5414, 0.0
      %v5521 = vmax.f32 %v5419, 0.0
      %v5522 = vmax.f32 %v5422, 0.0
      %v5523 = vmax.f32 %v5427, 0.0
      %v5524 = vmax.f32 %v5430, 0.0
      %v5525 = vmax.f32 %v5435, 0.0
      %v5526 = vmax.f32 %v5438, 0.0
      %v5527 = vmax.f32 %v5443, 0.0
      %v5528 = vmax.f32 %v5446, 0.0
      %v5529 = vmax.f32 %v5451, 0.0
      %v5530 = vmax.f32 %v5454, 0.0
      %v5531 = vmax.f32 %v5459, 0.0
      %v5532 = vmax.f32 %v5462, 0.0
      %v5533 = vmax.f32 %v5467, 0.0
      %v5534 = vmax.f32 %v5470, 0.0
      %v5535 = vmax.f32 %v5475, 0.0
      %v5536 = vmax.f32 %v5478, 0.0
      %v5537 = vmax.f32 %v5483, 0.0
      %v5538 = vmax.f32 %v5486, 0.0
      %v5539 = vmax.f32 %v5491, 0.0
      %v5540 = vmax.f32 %v5494, 0.0
      %v5541 = vmax.f32 %v5499, 0.0
      %v5542 = vmax.f32 %v5502, 0.0
      %v5543 = vmax.f32 %v5507, 0.0
      %v5544 = vmax.f32 %v5510, 0.0
      %v5545 = vpack.c.bf16 %v5514, %v5513
      %v5546 = vpack.c.bf16 %v5516, %v5515
      %v5547 = vpack.c.bf16 %v5518, %v5517
      %v5548 = vpack.c.bf16 %v5520, %v5519
      %v5549 = vpack.c.bf16 %v5522, %v5521
      %v5550 = vpack.c.bf16 %v5524, %v5523
      %v5551 = vpack.c.bf16 %v5526, %v5525
      %v5552 = vpack.c.bf16 %v5528, %v5527
      %v5553 = vpack.c.bf16 %v5530, %v5529
      %v5554 = vpack.c.bf16 %v5532, %v5531
      %v5555 = vpack.c.bf16 %v5534, %v5533
      %v5556 = vpack.c.bf16 %v5536, %v5535
      %v5557 = vpack.c.bf16 %v5538, %v5537
      %v5558 = vpack.c.bf16 %v5540, %v5539
      %v5559 = vpack.c.bf16 %v5542, %v5541
      %v5560 = vpack.c.bf16 %v5544, %v5543
      %v5561 = vld [vmem:[%s1 + $0xe0] sm:$0xf]
      %v5562 = vld [vmem:[%s1 + $0xe8] sm:$0xf]
      %v5563 = vld [vmem:[%s1 + $0xf0] sm:$0xf]
      %v5564 = vld [vmem:[%s1 + $0xf8] sm:$0xf]
      %v5565 = vld [vmem:[%s1 + $0x100] sm:$0xf]
      %v5566 = vld [vmem:[%s1 + $0x108] sm:$0xf]
      %v5567 = vld [vmem:[%s1 + $0x110] sm:$0xf]
      %v5568 = vld [vmem:[%s1 + $0x118] sm:$0xf]
      %v5569 = vld [vmem:[%s2 + $0x3] sm:$0x1]
      %v5570 = vlaneseq
      %v5571 = vshrl.u32 %v5570, 7
      %v5572 = vsub.s32 0, %v5571
      %v5573 = vrot.slane %v5569, %v5572
      %v5582 = vunpack.c.l.b16 %v5561
      %v5583 = vunpack.c.l.b16 %v5562
      %v5584 = vunpack.c.l.b16 %v5563
      %v5585 = vunpack.c.l.b16 %v5564
      %v5586 = vunpack.c.l.b16 %v5565
      %v5587 = vunpack.c.l.b16 %v5566
      %v5588 = vunpack.c.l.b16 %v5567
      %v5589 = vunpack.c.l.b16 %v5568
      %v5590 = vpack.c.b16 %v5583, %v5582
      %v5591 = vpack.c.b16 %v5585, %v5584
      %v5592 = vpack.c.b16 %v5587, %v5586
      %v5593 = vpack.c.b16 %v5589, %v5588
      %v5599 = vsel %vm724, %v5545, 0
      %v5602 = vsel %vm724, %v5546, 0
      %v5605 = vsel %vm724, %v5547, 0
      %v5608 = vsel %vm724, %v5548, 0
      %v5611 = vsel %vm724, %v5549, 0
      %v5614 = vsel %vm724, %v5550, 0
      %v5617 = vsel %vm724, %v5551, 0
      %v5620 = vsel %vm724, %v5552, 0
      %v5623 = vsel %vm724, %v5553, 0
      %v5626 = vsel %vm724, %v5554, 0
      %v5629 = vsel %vm724, %v5555, 0
      %v5632 = vsel %vm724, %v5556, 0
      %v5635 = vsel %vm724, %v5557, 0
      %v5638 = vsel %vm724, %v5558, 0
      %v5641 = vsel %vm724, %v5559, 0
      %v5644 = vsel %vm724, %v5560, 0
      %5646 = vmatprep.subr.bf16.mxu0 0
      %5647 = vmatpush1.bf16.msra.mxu0 0
      %5648 = vmatprep.subr.bf16.mxu0 0
      %5649 = vmatpush1.bf16.msra.mxu0 0
      %5650 = vmatprep.subr.bf16.mxu0 0
      %5651 = vmatpush1.bf16.msra.mxu0 0
      %5652 = vmatprep.subr.bf16.mxu0 0
      %5653 = vmatpush1.bf16.msra.mxu0 0
      %5654 = vmatprep.subr.bf16.mxu0 0
      %5655 = vmatpush1.bf16.msra.mxu0 %v5593
      %5656 = vmatprep.subr.bf16.mxu0 0
      %5657 = vmatpush1.bf16.msra.mxu0 %v5592
      %5658 = vmatprep.subr.bf16.mxu0 0
      %5659 = vmatpush1.bf16.msra.mxu0 %v5591
      %5660 = vmatprep.subr.bf16.mxu0 0
      %5661 = vmatpush1.bf16.msra.mxu0 %v5590
      %5662 = vmatprep.subr.bf16.mxu0 0
      %5663 = vmatpush2.bf16.msra.mxu0 0
      %5664 = vmatprep.subr.bf16.mxu0 0
      %5665 = vmatpush2.bf16.msra.mxu0 0
      %5666 = vmatprep.subr.bf16.mxu0 0
      %5667 = vmatpush2.bf16.msra.mxu0 0
      %5668 = vmatprep.subr.bf16.mxu0 0
      %5669 = vmatpush2.bf16.msra.mxu0 0
      %5670 = vmatprep.subr.bf16.mxu0 0
      %5671 = vmatpush2.bf16.msra.mxu0 0
      %5672 = vmatprep.subr.bf16.mxu0 0
      %5673 = vmatpush2.bf16.msra.mxu0 0
      %5674 = vmatprep.subr.bf16.mxu0 0
      %5675 = vmatpush2.bf16.msra.mxu0 0
      %5676 = vmatprep.subr.bf16.mxu0 0
      %5677 = vmatpush2.bf16.msra.mxu0 0
      %5678 = vmatprep.mubr.bf16.mxu0 0
      %5679 = vmatmul.mubr.bf16.gmra.mxu0 %v5599
      %v5680 = vpop.f32.mrf.mxu0
      %v5681 = vadd.f32 %v5573, %v5680
      %v5682 = vpop.f32.mrf.mxu0
      %v5683 = vpop.f32.mrf.mxu0
      %v5684 = vadd.f32 %v5573, %v5683
      %v5685 = vpop.f32.mrf.mxu0
      %5686 = vmatprep.mubr.bf16.mxu0 0
      %5687 = vmatmul.mubr.bf16.gmra.mxu0 %v5602
      %v5688 = vpop.f32.mrf.mxu0
      %v5689 = vadd.f32 %v5573, %v5688
      %v5690 = vpop.f32.mrf.mxu0
      %v5691 = vpop.f32.mrf.mxu0
      %v5692 = vadd.f32 %v5573, %v5691
      %v5693 = vpop.f32.mrf.mxu0
      %5694 = vmatprep.mubr.bf16.mxu0 0
      %5695 = vmatmul.mubr.bf16.gmra.mxu0 %v5605
      %v5696 = vpop.f32.mrf.mxu0
      %v5697 = vadd.f32 %v5573, %v5696
      %v5698 = vpop.f32.mrf.mxu0
      %v5699 = vpop.f32.mrf.mxu0
      %v5700 = vadd.f32 %v5573, %v5699
      %v5701 = vpop.f32.mrf.mxu0
      %5702 = vmatprep.mubr.bf16.mxu0 0
      %5703 = vmatmul.mubr.bf16.gmra.mxu0 %v5608
      %v5704 = vpop.f32.mrf.mxu0
      %v5705 = vadd.f32 %v5573, %v5704
      %v5706 = vpop.f32.mrf.mxu0
      %v5707 = vpop.f32.mrf.mxu0
      %v5708 = vadd.f32 %v5573, %v5707
      %v5709 = vpop.f32.mrf.mxu0
      %5710 = vmatprep.mubr.bf16.mxu0 0
      %5711 = vmatmul.mubr.bf16.gmra.mxu0 %v5611
      %v5712 = vpop.f32.mrf.mxu0
      %v5713 = vadd.f32 %v5573, %v5712
      %v5714 = vpop.f32.mrf.mxu0
      %v5715 = vpop.f32.mrf.mxu0
      %v5716 = vadd.f32 %v5573, %v5715
      %v5717 = vpop.f32.mrf.mxu0
      %5718 = vmatprep.mubr.bf16.mxu0 0
      %5719 = vmatmul.mubr.bf16.gmra.mxu0 %v5614
      %v5720 = vpop.f32.mrf.mxu0
      %v5721 = vadd.f32 %v5573, %v5720
      %v5722 = vpop.f32.mrf.mxu0
      %v5723 = vpop.f32.mrf.mxu0
      %v5724 = vadd.f32 %v5573, %v5723
      %v5725 = vpop.f32.mrf.mxu0
      %5726 = vmatprep.mubr.bf16.mxu0 0
      %5727 = vmatmul.mubr.bf16.gmra.mxu0 %v5617
      %v5728 = vpop.f32.mrf.mxu0
      %v5729 = vadd.f32 %v5573, %v5728
      %v5730 = vpop.f32.mrf.mxu0
      %v5731 = vpop.f32.mrf.mxu0
      %v5732 = vadd.f32 %v5573, %v5731
      %v5733 = vpop.f32.mrf.mxu0
      %5734 = vmatprep.mubr.bf16.mxu0 0
      %5735 = vmatmul.mubr.bf16.gmra.mxu0 %v5620
      %v5736 = vpop.f32.mrf.mxu0
      %v5737 = vadd.f32 %v5573, %v5736
      %v5738 = vpop.f32.mrf.mxu0
      %v5739 = vpop.f32.mrf.mxu0
      %v5740 = vadd.f32 %v5573, %v5739
      %v5741 = vpop.f32.mrf.mxu0
      %5742 = vmatprep.mubr.bf16.mxu0 0
      %5743 = vmatmul.mubr.bf16.gmra.mxu0 %v5623
      %v5744 = vpop.f32.mrf.mxu0
      %v5745 = vadd.f32 %v5573, %v5744
      %v5746 = vpop.f32.mrf.mxu0
      %v5747 = vpop.f32.mrf.mxu0
      %v5748 = vadd.f32 %v5573, %v5747
      %v5749 = vpop.f32.mrf.mxu0
      %5750 = vmatprep.mubr.bf16.mxu0 0
      %5751 = vmatmul.mubr.bf16.gmra.mxu0 %v5626
      %v5752 = vpop.f32.mrf.mxu0
      %v5753 = vadd.f32 %v5573, %v5752
      %v5754 = vpop.f32.mrf.mxu0
      %v5755 = vpop.f32.mrf.mxu0
      %v5756 = vadd.f32 %v5573, %v5755
      %v5757 = vpop.f32.mrf.mxu0
      %5758 = vmatprep.mubr.bf16.mxu0 0
      %5759 = vmatmul.mubr.bf16.gmra.mxu0 %v5629
      %v5760 = vpop.f32.mrf.mxu0
      %v5761 = vadd.f32 %v5573, %v5760
      %v5762 = vpop.f32.mrf.mxu0
      %v5763 = vpop.f32.mrf.mxu0
      %v5764 = vadd.f32 %v5573, %v5763
      %v5765 = vpop.f32.mrf.mxu0
      %5766 = vmatprep.mubr.bf16.mxu0 0
      %5767 = vmatmul.mubr.bf16.gmra.mxu0 %v5632
      %v5768 = vpop.f32.mrf.mxu0
      %v5769 = vadd.f32 %v5573, %v5768
      %v5770 = vpop.f32.mrf.mxu0
      %v5771 = vpop.f32.mrf.mxu0
      %v5772 = vadd.f32 %v5573, %v5771
      %v5773 = vpop.f32.mrf.mxu0
      %5774 = vmatprep.mubr.bf16.mxu0 0
      %5775 = vmatmul.mubr.bf16.gmra.mxu0 %v5635
      %v5776 = vpop.f32.mrf.mxu0
      %v5777 = vadd.f32 %v5573, %v5776
      %v5778 = vpop.f32.mrf.mxu0
      %v5779 = vpop.f32.mrf.mxu0
      %v5780 = vadd.f32 %v5573, %v5779
      %v5781 = vpop.f32.mrf.mxu0
      %5782 = vmatprep.mubr.bf16.mxu0 0
      %5783 = vmatmul.mubr.bf16.gmra.mxu0 %v5638
      %v5784 = vpop.f32.mrf.mxu0
      %v5785 = vadd.f32 %v5573, %v5784
      %v5786 = vpop.f32.mrf.mxu0
      %v5787 = vpop.f32.mrf.mxu0
      %v5788 = vadd.f32 %v5573, %v5787
      %v5789 = vpop.f32.mrf.mxu0
      %5790 = vmatprep.mubr.bf16.mxu0 0
      %5791 = vmatmul.mubr.bf16.gmra.mxu0 %v5641
      %v5792 = vpop.f32.mrf.mxu0
      %v5793 = vadd.f32 %v5573, %v5792
      %v5794 = vpop.f32.mrf.mxu0
      %v5795 = vpop.f32.mrf.mxu0
      %v5796 = vadd.f32 %v5573, %v5795
      %v5797 = vpop.f32.mrf.mxu0
      %5798 = vmatprep.mubr.bf16.mxu0 0
      %5799 = vmatmul.mubr.bf16.gmra.mxu0 %v5644
      %v5800 = vpop.f32.mrf.mxu0
      %v5801 = vadd.f32 %v5573, %v5800
      %v5802 = vpop.f32.mrf.mxu0
      %v5803 = vpop.f32.mrf.mxu0
      %v5804 = vadd.f32 %v5573, %v5803
      %v5805 = vpop.f32.mrf.mxu0
      %5806 = vdwg.mxu0
      %v5807 = vmax.f32 %v5681, 0.0
      %v5808 = vmax.f32 %v5684, 0.0
      %v5809 = vmax.f32 %v5689, 0.0
      %v5810 = vmax.f32 %v5692, 0.0
      %v5811 = vmax.f32 %v5697, 0.0
      %v5812 = vmax.f32 %v5700, 0.0
      %v5813 = vmax.f32 %v5705, 0.0
      %v5814 = vmax.f32 %v5708, 0.0
      %v5815 = vmax.f32 %v5713, 0.0
      %v5816 = vmax.f32 %v5716, 0.0
      %v5817 = vmax.f32 %v5721, 0.0
      %v5818 = vmax.f32 %v5724, 0.0
      %v5819 = vmax.f32 %v5729, 0.0
      %v5820 = vmax.f32 %v5732, 0.0
      %v5821 = vmax.f32 %v5737, 0.0
      %v5822 = vmax.f32 %v5740, 0.0
      %v5823 = vmax.f32 %v5745, 0.0
      %v5824 = vmax.f32 %v5748, 0.0
      %v5825 = vmax.f32 %v5753, 0.0
      %v5826 = vmax.f32 %v5756, 0.0
      %v5827 = vmax.f32 %v5761, 0.0
      %v5828 = vmax.f32 %v5764, 0.0
      %v5829 = vmax.f32 %v5769, 0.0
      %v5830 = vmax.f32 %v5772, 0.0
      %v5831 = vmax.f32 %v5777, 0.0
      %v5832 = vmax.f32 %v5780, 0.0
      %v5833 = vmax.f32 %v5785, 0.0
      %v5834 = vmax.f32 %v5788, 0.0
      %v5835 = vmax.f32 %v5793, 0.0
      %v5836 = vmax.f32 %v5796, 0.0
      %v5837 = vmax.f32 %v5801, 0.0
      %v5838 = vmax.f32 %v5804, 0.0
      %v5839 = vpack.c.bf16 %v5808, %v5807
      %v5840 = vpack.c.bf16 %v5810, %v5809
      %v5841 = vpack.c.bf16 %v5812, %v5811
      %v5842 = vpack.c.bf16 %v5814, %v5813
      %v5843 = vpack.c.bf16 %v5816, %v5815
      %v5844 = vpack.c.bf16 %v5818, %v5817
      %v5845 = vpack.c.bf16 %v5820, %v5819
      %v5846 = vpack.c.bf16 %v5822, %v5821
      %v5847 = vpack.c.bf16 %v5824, %v5823
      %v5848 = vpack.c.bf16 %v5826, %v5825
      %v5849 = vpack.c.bf16 %v5828, %v5827
      %v5850 = vpack.c.bf16 %v5830, %v5829
      %v5851 = vpack.c.bf16 %v5832, %v5831
      %v5852 = vpack.c.bf16 %v5834, %v5833
      %v5853 = vpack.c.bf16 %v5836, %v5835
      %v5854 = vpack.c.bf16 %v5838, %v5837
      %v5855 = vld [vmem:[%s1 + $0x120] sm:$0xf]
      %v5856 = vld [vmem:[%s1 + $0x128] sm:$0xf]
      %v5857 = vld [vmem:[%s1 + $0x130] sm:$0xf]
      %v5858 = vld [vmem:[%s1 + $0x138] sm:$0xf]
      %v5859 = vld [vmem:[%s1 + $0x140] sm:$0xf]
      %v5860 = vld [vmem:[%s1 + $0x148] sm:$0xf]
      %v5861 = vld [vmem:[%s1 + $0x150] sm:$0xf]
      %v5862 = vld [vmem:[%s1 + $0x158] sm:$0xf]
      %v5863 = vld [vmem:[%s4823] sm:$0xff]
      %v5864 = vld [vmem:[%s4823 + $0x8] sm:$0xff]
      %v5865 = vld [vmem:[%s4823 + $0x10] sm:$0xff]
      %v5866 = vld [vmem:[%s4823 + $0x18] sm:$0xff]
      %v5867 = vld [vmem:[%s4823 + $0x20] sm:$0xff]
      %v5868 = vld [vmem:[%s4823 + $0x28] sm:$0xff]
      %v5869 = vld [vmem:[%s4823 + $0x30] sm:$0xff]
      %v5870 = vld [vmem:[%s4823 + $0x38] sm:$0xff]
      %v5871 = vld [vmem:[%s4823 + $0x40] sm:$0xff]
      %v5872 = vld [vmem:[%s4823 + $0x48] sm:$0xff]
      %v5873 = vld [vmem:[%s4823 + $0x50] sm:$0xff]
      %v5874 = vld [vmem:[%s4823 + $0x58] sm:$0xff]
      %v5875 = vld [vmem:[%s4823 + $0x60] sm:$0xff]
      %v5876 = vld [vmem:[%s4823 + $0x68] sm:$0xff]
      %v5877 = vld [vmem:[%s4823 + $0x70] sm:$0xff]
      %v5878 = vld [vmem:[%s4823 + $0x78] sm:$0xff]
      %v5879 = vld [vmem:[%s4823 + $0x80] sm:$0xff]
      %v5880 = vld [vmem:[%s4823 + $0x88] sm:$0xff]
      %v5881 = vld [vmem:[%s4823 + $0x90] sm:$0xff]
      %v5882 = vld [vmem:[%s4823 + $0x98] sm:$0xff]
      %v5883 = vld [vmem:[%s4823 + $0xa0] sm:$0xff]
      %v5884 = vld [vmem:[%s4823 + $0xa8] sm:$0xff]
      %v5885 = vld [vmem:[%s4823 + $0xb0] sm:$0xff]
      %v5886 = vld [vmem:[%s4823 + $0xb8] sm:$0xff]
      %v5887 = vld [vmem:[%s4823 + $0xc0] sm:$0xff]
      %v5888 = vld [vmem:[%s4823 + $0xc8] sm:$0xff]
      %v5889 = vld [vmem:[%s4823 + $0xd0] sm:$0xff]
      %v5890 = vld [vmem:[%s4823 + $0xd8] sm:$0xff]
      %v5891 = vld [vmem:[%s4823 + $0xe0] sm:$0xff]
      %v5892 = vld [vmem:[%s4823 + $0xe8] sm:$0xff]
      %v5893 = vld [vmem:[%s4823 + $0xf0] sm:$0xff]
      %v5894 = vld [vmem:[%s4823 + $0xf8] sm:$0xff]
      %v5895 = vld [vmem:[%s4823 + $0x100] sm:$0xff]
      %v5896 = vld [vmem:[%s4823 + $0x108] sm:$0xff]
      %v5897 = vld [vmem:[%s4823 + $0x110] sm:$0xff]
      %v5898 = vld [vmem:[%s4823 + $0x118] sm:$0xff]
      %v5899 = vld [vmem:[%s4823 + $0x120] sm:$0xff]
      %v5900 = vld [vmem:[%s4823 + $0x128] sm:$0xff]
      %v5901 = vld [vmem:[%s4823 + $0x130] sm:$0xff]
      %v5902 = vld [vmem:[%s4823 + $0x138] sm:$0xff]
      %v5903 = vld [vmem:[%s4823 + $0x140] sm:$0xff]
      %v5904 = vld [vmem:[%s4823 + $0x148] sm:$0xff]
      %v5905 = vld [vmem:[%s4823 + $0x150] sm:$0xff]
      %v5906 = vld [vmem:[%s4823 + $0x158] sm:$0xff]
      %v5907 = vld [vmem:[%s4823 + $0x160] sm:$0xff]
      %v5908 = vld [vmem:[%s4823 + $0x168] sm:$0xff]
      %v5909 = vld [vmem:[%s4823 + $0x170] sm:$0xff]
      %v5910 = vld [vmem:[%s4823 + $0x178] sm:$0xff]
      %v5911 = vld [vmem:[%s4823 + $0x180] sm:$0xff]
      %v5912 = vld [vmem:[%s4823 + $0x188] sm:$0xff]
      %v5913 = vld [vmem:[%s4823 + $0x190] sm:$0xff]
      %v5914 = vld [vmem:[%s4823 + $0x198] sm:$0xff]
      %v5915 = vld [vmem:[%s4823 + $0x1a0] sm:$0xff]
      %v5916 = vld [vmem:[%s4823 + $0x1a8] sm:$0xff]
      %v5917 = vld [vmem:[%s4823 + $0x1b0] sm:$0xff]
      %v5918 = vld [vmem:[%s4823 + $0x1b8] sm:$0xff]
      %v5919 = vld [vmem:[%s4823 + $0x1c0] sm:$0xff]
      %v5920 = vld [vmem:[%s4823 + $0x1c8] sm:$0xff]
      %v5921 = vld [vmem:[%s4823 + $0x1d0] sm:$0xff]
      %v5922 = vld [vmem:[%s4823 + $0x1d8] sm:$0xff]
      %v5923 = vld [vmem:[%s4823 + $0x1e0] sm:$0xff]
      %v5924 = vld [vmem:[%s4823 + $0x1e8] sm:$0xff]
      %v5925 = vld [vmem:[%s4823 + $0x1f0] sm:$0xff]
      %v5926 = vld [vmem:[%s4823 + $0x1f8] sm:$0xff]
      %v5935 = vunpack.c.l.b16 %v5855
      %v5936 = vunpack.c.l.b16 %v5856
      %v5937 = vunpack.c.l.b16 %v5857
      %v5938 = vunpack.c.l.b16 %v5858
      %v5939 = vunpack.c.l.b16 %v5859
      %v5940 = vunpack.c.l.b16 %v5860
      %v5941 = vunpack.c.l.b16 %v5861
      %v5942 = vunpack.c.l.b16 %v5862
      %v5943 = vpack.c.b16 %v5936, %v5935
      %v5944 = vpack.c.b16 %v5938, %v5937
      %v5945 = vpack.c.b16 %v5940, %v5939
      %v5946 = vpack.c.b16 %v5942, %v5941
      %6015 = vrot.lane.b32.xlu0 %v5863, 32
      %v6016 = vpop.permute.xlu0 %6015
      %6017 = vrot.lane.b32.xlu0 %v5864, 32
      %v6018 = vpop.permute.xlu0 %6017
      %6019 = vrot.lane.b32.xlu0 %v5865, 32
      %v6020 = vpop.permute.xlu0 %6019
      %6021 = vrot.lane.b32.xlu0 %v5866, 32
      %v6022 = vpop.permute.xlu0 %6021
      %6023 = vrot.lane.b32.xlu0 %v5867, 32
      %v6024 = vpop.permute.xlu0 %6023
      %6025 = vrot.lane.b32.xlu0 %v5868, 32
      %v6026 = vpop.permute.xlu0 %6025
      %6027 = vrot.lane.b32.xlu0 %v5869, 32
      %v6028 = vpop.permute.xlu0 %6027
      %6029 = vrot.lane.b32.xlu0 %v5870, 32
      %v6030 = vpop.permute.xlu0 %6029
      %6031 = vrot.lane.b32.xlu0 %v5871, 32
      %v6032 = vpop.permute.xlu0 %6031
      %6033 = vrot.lane.b32.xlu0 %v5872, 32
      %v6034 = vpop.permute.xlu0 %6033
      %6035 = vrot.lane.b32.xlu0 %v5873, 32
      %v6036 = vpop.permute.xlu0 %6035
      %6037 = vrot.lane.b32.xlu0 %v5874, 32
      %v6038 = vpop.permute.xlu0 %6037
      %6039 = vrot.lane.b32.xlu0 %v5875, 32
      %v6040 = vpop.permute.xlu0 %6039
      %6041 = vrot.lane.b32.xlu0 %v5876, 32
      %v6042 = vpop.permute.xlu0 %6041
      %6043 = vrot.lane.b32.xlu0 %v5877, 32
      %v6044 = vpop.permute.xlu0 %6043
      %6045 = vrot.lane.b32.xlu0 %v5878, 32
      %v6046 = vpop.permute.xlu0 %6045
      %6047 = vrot.lane.b32.xlu0 %v5879, 32
      %v6048 = vpop.permute.xlu0 %6047
      %6049 = vrot.lane.b32.xlu0 %v5880, 32
      %v6050 = vpop.permute.xlu0 %6049
      %6051 = vrot.lane.b32.xlu0 %v5881, 32
      %v6052 = vpop.permute.xlu0 %6051
      %6053 = vrot.lane.b32.xlu0 %v5882, 32
      %v6054 = vpop.permute.xlu0 %6053
      %6055 = vrot.lane.b32.xlu0 %v5883, 32
      %v6056 = vpop.permute.xlu0 %6055
      %6057 = vrot.lane.b32.xlu0 %v5884, 32
      %v6058 = vpop.permute.xlu0 %6057
      %6059 = vrot.lane.b32.xlu0 %v5885, 32
      %v6060 = vpop.permute.xlu0 %6059
      %6061 = vrot.lane.b32.xlu0 %v5886, 32
      %v6062 = vpop.permute.xlu0 %6061
      %6063 = vrot.lane.b32.xlu0 %v5887, 32
      %v6064 = vpop.permute.xlu0 %6063
      %6065 = vrot.lane.b32.xlu0 %v5888, 32
      %v6066 = vpop.permute.xlu0 %6065
      %6067 = vrot.lane.b32.xlu0 %v5889, 32
      %v6068 = vpop.permute.xlu0 %6067
      %6069 = vrot.lane.b32.xlu0 %v5890, 32
      %v6070 = vpop.permute.xlu0 %6069
      %6071 = vrot.lane.b32.xlu0 %v5891, 32
      %v6072 = vpop.permute.xlu0 %6071
      %6073 = vrot.lane.b32.xlu0 %v5892, 32
      %v6074 = vpop.permute.xlu0 %6073
      %6075 = vrot.lane.b32.xlu0 %v5893, 32
      %v6076 = vpop.permute.xlu0 %6075
      %6077 = vrot.lane.b32.xlu0 %v5894, 32
      %v6078 = vpop.permute.xlu0 %6077
      %6079 = vrot.lane.b32.xlu0 %v5895, 32
      %v6080 = vpop.permute.xlu0 %6079
      %6081 = vrot.lane.b32.xlu0 %v5896, 32
      %v6082 = vpop.permute.xlu0 %6081
      %6083 = vrot.lane.b32.xlu0 %v5897, 32
      %v6084 = vpop.permute.xlu0 %6083
      %6085 = vrot.lane.b32.xlu0 %v5898, 32
      %v6086 = vpop.permute.xlu0 %6085
      %6087 = vrot.lane.b32.xlu0 %v5899, 32
      %v6088 = vpop.permute.xlu0 %6087
      %6089 = vrot.lane.b32.xlu0 %v5900, 32
      %v6090 = vpop.permute.xlu0 %6089
      %6091 = vrot.lane.b32.xlu0 %v5901, 32
      %v6092 = vpop.permute.xlu0 %6091
      %6093 = vrot.lane.b32.xlu0 %v5902, 32
      %v6094 = vpop.permute.xlu0 %6093
      %6095 = vrot.lane.b32.xlu0 %v5903, 32
      %v6096 = vpop.permute.xlu0 %6095
      %6097 = vrot.lane.b32.xlu0 %v5904, 32
      %v6098 = vpop.permute.xlu0 %6097
      %6099 = vrot.lane.b32.xlu0 %v5905, 32
      %v6100 = vpop.permute.xlu0 %6099
      %6101 = vrot.lane.b32.xlu0 %v5906, 32
      %v6102 = vpop.permute.xlu0 %6101
      %6103 = vrot.lane.b32.xlu0 %v5907, 32
      %v6104 = vpop.permute.xlu0 %6103
      %6105 = vrot.lane.b32.xlu0 %v5908, 32
      %v6106 = vpop.permute.xlu0 %6105
      %6107 = vrot.lane.b32.xlu0 %v5909, 32
      %v6108 = vpop.permute.xlu0 %6107
      %6109 = vrot.lane.b32.xlu0 %v5910, 32
      %v6110 = vpop.permute.xlu0 %6109
      %6111 = vrot.lane.b32.xlu0 %v5911, 32
      %v6112 = vpop.permute.xlu0 %6111
      %6113 = vrot.lane.b32.xlu0 %v5912, 32
      %v6114 = vpop.permute.xlu0 %6113
      %6115 = vrot.lane.b32.xlu0 %v5913, 32
      %v6116 = vpop.permute.xlu0 %6115
      %6117 = vrot.lane.b32.xlu0 %v5914, 32
      %v6118 = vpop.permute.xlu0 %6117
      %6119 = vrot.lane.b32.xlu0 %v5915, 32
      %v6120 = vpop.permute.xlu0 %6119
      %6121 = vrot.lane.b32.xlu0 %v5916, 32
      %v6122 = vpop.permute.xlu0 %6121
      %6123 = vrot.lane.b32.xlu0 %v5917, 32
      %v6124 = vpop.permute.xlu0 %6123
      %6125 = vrot.lane.b32.xlu0 %v5918, 32
      %v6126 = vpop.permute.xlu0 %6125
      %6127 = vrot.lane.b32.xlu0 %v5919, 32
      %v6128 = vpop.permute.xlu0 %6127
      %6129 = vrot.lane.b32.xlu0 %v5920, 32
      %v6130 = vpop.permute.xlu0 %6129
      %6131 = vrot.lane.b32.xlu0 %v5921, 32
      %v6132 = vpop.permute.xlu0 %6131
      %6133 = vrot.lane.b32.xlu0 %v5922, 32
      %v6134 = vpop.permute.xlu0 %6133
      %6135 = vrot.lane.b32.xlu0 %v5923, 32
      %v6136 = vpop.permute.xlu0 %6135
      %6137 = vrot.lane.b32.xlu0 %v5924, 32
      %v6138 = vpop.permute.xlu0 %6137
      %6139 = vrot.lane.b32.xlu0 %v5925, 32
      %v6140 = vpop.permute.xlu0 %6139
      %6141 = vrot.lane.b32.xlu0 %v5926, 32
      %v6142 = vpop.permute.xlu0 %6141
      %v6143 = vsel %vm538, %v6016, %v6018
      %v6144 = vsel %vm538, %v6020, %v6022
      %v6145 = vsel %vm538, %v6024, %v6026
      %v6146 = vsel %vm538, %v6028, %v6030
      %v6147 = vsel %vm538, %v6032, %v6034
      %v6148 = vsel %vm538, %v6036, %v6038
      %v6149 = vsel %vm538, %v6040, %v6042
      %v6150 = vsel %vm538, %v6044, %v6046
      %v6151 = vsel %vm538, %v6048, %v6050
      %v6152 = vsel %vm538, %v6052, %v6054
      %v6153 = vsel %vm538, %v6056, %v6058
      %v6154 = vsel %vm538, %v6060, %v6062
      %v6155 = vsel %vm538, %v6064, %v6066
      %v6156 = vsel %vm538, %v6068, %v6070
      %v6157 = vsel %vm538, %v6072, %v6074
      %v6158 = vsel %vm538, %v6076, %v6078
      %v6159 = vsel %vm538, %v6080, %v6082
      %v6160 = vsel %vm538, %v6084, %v6086
      %v6161 = vsel %vm538, %v6088, %v6090
      %v6162 = vsel %vm538, %v6092, %v6094
      %v6163 = vsel %vm538, %v6096, %v6098
      %v6164 = vsel %vm538, %v6100, %v6102
      %v6165 = vsel %vm538, %v6104, %v6106
      %v6166 = vsel %vm538, %v6108, %v6110
      %v6167 = vsel %vm538, %v6112, %v6114
      %v6168 = vsel %vm538, %v6116, %v6118
      %v6169 = vsel %vm538, %v6120, %v6122
      %v6170 = vsel %vm538, %v6124, %v6126
      %v6171 = vsel %vm538, %v6128, %v6130
      %v6172 = vsel %vm538, %v6132, %v6134
      %v6173 = vsel %vm538, %v6136, %v6138
      %v6174 = vsel %vm538, %v6140, %v6142
      %v6208 = vsel %vm724, %v5839, 0
      %v6211 = vsel %vm724, %v5840, 0
      %v6214 = vsel %vm724, %v5841, 0
      %v6217 = vsel %vm724, %v5842, 0
      %v6220 = vsel %vm724, %v5843, 0
      %v6223 = vsel %vm724, %v5844, 0
      %v6226 = vsel %vm724, %v5845, 0
      %v6229 = vsel %vm724, %v5846, 0
      %v6232 = vsel %vm724, %v5847, 0
      %v6235 = vsel %vm724, %v5848, 0
      %v6238 = vsel %vm724, %v5849, 0
      %v6241 = vsel %vm724, %v5850, 0
      %v6244 = vsel %vm724, %v5851, 0
      %v6247 = vsel %vm724, %v5852, 0
      %v6250 = vsel %vm724, %v5853, 0
      %v6253 = vsel %vm724, %v5854, 0
      %6255 = vmatprep.subr.bf16.mxu0 0
      %6256 = vmatpush1.bf16.msra.mxu0 0
      %6257 = vmatprep.subr.bf16.mxu0 0
      %6258 = vmatpush1.bf16.msra.mxu0 0
      %6259 = vmatprep.subr.bf16.mxu0 0
      %6260 = vmatpush1.bf16.msra.mxu0 0
      %6261 = vmatprep.subr.bf16.mxu0 0
      %6262 = vmatpush1.bf16.msra.mxu0 0
      %6263 = vmatprep.subr.bf16.mxu0 0
      %6264 = vmatpush1.bf16.msra.mxu0 %v5946
      %6265 = vmatprep.subr.bf16.mxu0 0
      %6266 = vmatpush1.bf16.msra.mxu0 %v5945
      %6267 = vmatprep.subr.bf16.mxu0 0
      %6268 = vmatpush1.bf16.msra.mxu0 %v5944
      %6269 = vmatprep.subr.bf16.mxu0 0
      %6270 = vmatpush1.bf16.msra.mxu0 %v5943
      %6271 = vmatprep.subr.bf16.mxu0 0
      %6272 = vmatpush2.bf16.msra.mxu0 0
      %6273 = vmatprep.subr.bf16.mxu0 0
      %6274 = vmatpush2.bf16.msra.mxu0 0
      %6275 = vmatprep.subr.bf16.mxu0 0
      %6276 = vmatpush2.bf16.msra.mxu0 0
      %6277 = vmatprep.subr.bf16.mxu0 0
      %6278 = vmatpush2.bf16.msra.mxu0 0
      %6279 = vmatprep.subr.bf16.mxu0 0
      %6280 = vmatpush2.bf16.msra.mxu0 0
      %6281 = vmatprep.subr.bf16.mxu0 0
      %6282 = vmatpush2.bf16.msra.mxu0 0
      %6283 = vmatprep.subr.bf16.mxu0 0
      %6284 = vmatpush2.bf16.msra.mxu0 0
      %6285 = vmatprep.subr.bf16.mxu0 0
      %6286 = vmatpush2.bf16.msra.mxu0 0
      %6287 = vmatprep.mubr.bf16.mxu0 0
      %6288 = vmatmul.mubr.bf16.gmra.mxu0 %v6208
      %v6289 = vpop.f32.mrf.mxu0
      %v6290 = vadd.f32 %v6143, %v6289
      %v6291 = vpop.f32.mrf.mxu0
      %v6292 = vpop.f32.mrf.mxu0
      %v6293 = vadd.f32 %v6144, %v6292
      %v6294 = vpop.f32.mrf.mxu0
      %6295 = vmatprep.mubr.bf16.mxu0 0
      %6296 = vmatmul.mubr.bf16.gmra.mxu0 %v6211
      %v6297 = vpop.f32.mrf.mxu0
      %v6298 = vadd.f32 %v6145, %v6297
      %v6299 = vpop.f32.mrf.mxu0
      %v6300 = vpop.f32.mrf.mxu0
      %v6301 = vadd.f32 %v6146, %v6300
      %v6302 = vpop.f32.mrf.mxu0
      %6303 = vmatprep.mubr.bf16.mxu0 0
      %6304 = vmatmul.mubr.bf16.gmra.mxu0 %v6214
      %v6305 = vpop.f32.mrf.mxu0
      %v6306 = vadd.f32 %v6147, %v6305
      %v6307 = vpop.f32.mrf.mxu0
      %v6308 = vpop.f32.mrf.mxu0
      %v6309 = vadd.f32 %v6148, %v6308
      %v6310 = vpop.f32.mrf.mxu0
      %6311 = vmatprep.mubr.bf16.mxu0 0
      %6312 = vmatmul.mubr.bf16.gmra.mxu0 %v6217
      %v6313 = vpop.f32.mrf.mxu0
      %v6314 = vadd.f32 %v6149, %v6313
      %v6315 = vpop.f32.mrf.mxu0
      %v6316 = vpop.f32.mrf.mxu0
      %v6317 = vadd.f32 %v6150, %v6316
      %v6318 = vpop.f32.mrf.mxu0
      %6319 = vmatprep.mubr.bf16.mxu0 0
      %6320 = vmatmul.mubr.bf16.gmra.mxu0 %v6220
      %v6321 = vpop.f32.mrf.mxu0
      %v6322 = vadd.f32 %v6151, %v6321
      %v6323 = vpop.f32.mrf.mxu0
      %v6324 = vpop.f32.mrf.mxu0
      %v6325 = vadd.f32 %v6152, %v6324
      %v6326 = vpop.f32.mrf.mxu0
      %6327 = vmatprep.mubr.bf16.mxu0 0
      %6328 = vmatmul.mubr.bf16.gmra.mxu0 %v6223
      %v6329 = vpop.f32.mrf.mxu0
      %v6330 = vadd.f32 %v6153, %v6329
      %v6331 = vpop.f32.mrf.mxu0
      %v6332 = vpop.f32.mrf.mxu0
      %v6333 = vadd.f32 %v6154, %v6332
      %v6334 = vpop.f32.mrf.mxu0
      %6335 = vmatprep.mubr.bf16.mxu0 0
      %6336 = vmatmul.mubr.bf16.gmra.mxu0 %v6226
      %v6337 = vpop.f32.mrf.mxu0
      %v6338 = vadd.f32 %v6155, %v6337
      %v6339 = vpop.f32.mrf.mxu0
      %v6340 = vpop.f32.mrf.mxu0
      %v6341 = vadd.f32 %v6156, %v6340
      %v6342 = vpop.f32.mrf.mxu0
      %6343 = vmatprep.mubr.bf16.mxu0 0
      %6344 = vmatmul.mubr.bf16.gmra.mxu0 %v6229
      %v6345 = vpop.f32.mrf.mxu0
      %v6346 = vadd.f32 %v6157, %v6345
      %v6347 = vpop.f32.mrf.mxu0
      %v6348 = vpop.f32.mrf.mxu0
      %v6349 = vadd.f32 %v6158, %v6348
      %v6350 = vpop.f32.mrf.mxu0
      %6351 = vmatprep.mubr.bf16.mxu0 0
      %6352 = vmatmul.mubr.bf16.gmra.mxu0 %v6232
      %v6353 = vpop.f32.mrf.mxu0
      %v6354 = vadd.f32 %v6159, %v6353
      %v6355 = vpop.f32.mrf.mxu0
      %v6356 = vpop.f32.mrf.mxu0
      %v6357 = vadd.f32 %v6160, %v6356
      %v6358 = vpop.f32.mrf.mxu0
      %6359 = vmatprep.mubr.bf16.mxu0 0
      %6360 = vmatmul.mubr.bf16.gmra.mxu0 %v6235
      %v6361 = vpop.f32.mrf.mxu0
      %v6362 = vadd.f32 %v6161, %v6361
      %v6363 = vpop.f32.mrf.mxu0
      %v6364 = vpop.f32.mrf.mxu0
      %v6365 = vadd.f32 %v6162, %v6364
      %v6366 = vpop.f32.mrf.mxu0
      %6367 = vmatprep.mubr.bf16.mxu0 0
      %6368 = vmatmul.mubr.bf16.gmra.mxu0 %v6238
      %v6369 = vpop.f32.mrf.mxu0
      %v6370 = vadd.f32 %v6163, %v6369
      %v6371 = vpop.f32.mrf.mxu0
      %v6372 = vpop.f32.mrf.mxu0
      %v6373 = vadd.f32 %v6164, %v6372
      %v6374 = vpop.f32.mrf.mxu0
      %6375 = vmatprep.mubr.bf16.mxu0 0
      %6376 = vmatmul.mubr.bf16.gmra.mxu0 %v6241
      %v6377 = vpop.f32.mrf.mxu0
      %v6378 = vadd.f32 %v6165, %v6377
      %v6379 = vpop.f32.mrf.mxu0
      %v6380 = vpop.f32.mrf.mxu0
      %v6381 = vadd.f32 %v6166, %v6380
      %v6382 = vpop.f32.mrf.mxu0
      %6383 = vmatprep.mubr.bf16.mxu0 0
      %6384 = vmatmul.mubr.bf16.gmra.mxu0 %v6244
      %v6385 = vpop.f32.mrf.mxu0
      %v6386 = vadd.f32 %v6167, %v6385
      %v6387 = vpop.f32.mrf.mxu0
      %v6388 = vpop.f32.mrf.mxu0
      %v6389 = vadd.f32 %v6168, %v6388
      %v6390 = vpop.f32.mrf.mxu0
      %6391 = vmatprep.mubr.bf16.mxu0 0
      %6392 = vmatmul.mubr.bf16.gmra.mxu0 %v6247
      %v6393 = vpop.f32.mrf.mxu0
      %v6394 = vadd.f32 %v6169, %v6393
      %v6395 = vpop.f32.mrf.mxu0
      %v6396 = vpop.f32.mrf.mxu0
      %v6397 = vadd.f32 %v6170, %v6396
      %v6398 = vpop.f32.mrf.mxu0
      %6399 = vmatprep.mubr.bf16.mxu0 0
      %6400 = vmatmul.mubr.bf16.gmra.mxu0 %v6250
      %v6401 = vpop.f32.mrf.mxu0
      %v6402 = vadd.f32 %v6171, %v6401
      %v6403 = vpop.f32.mrf.mxu0
      %v6404 = vpop.f32.mrf.mxu0
      %v6405 = vadd.f32 %v6172, %v6404
      %v6406 = vpop.f32.mrf.mxu0
      %6407 = vmatprep.mubr.bf16.mxu0 0
      %6408 = vmatmul.mubr.bf16.gmra.mxu0 %v6253
      %v6409 = vpop.f32.mrf.mxu0
      %v6410 = vadd.f32 %v6173, %v6409
      %v6411 = vpop.f32.mrf.mxu0
      %v6412 = vpop.f32.mrf.mxu0
      %v6413 = vadd.f32 %v6174, %v6412
      %v6414 = vpop.f32.mrf.mxu0
      %6415 = vdwg.mxu0
      %v6416 = vld [vmem:[%s2 + $0x4] sm:$0x1]
      %v6417 = vlaneseq
      %v6418 = vshrl.u32 %v6417, 7
      %v6419 = vsub.s32 0, %v6418
      %v6420 = vrot.slane %v6416, %v6419
      %v6421 = vadd.f32 %v6290, %v6420
      %v6422 = vadd.f32 %v6293, %v6420
      %v6423 = vadd.f32 %v6298, %v6420
      %v6424 = vadd.f32 %v6301, %v6420
      %v6425 = vadd.f32 %v6306, %v6420
      %v6426 = vadd.f32 %v6309, %v6420
      %v6427 = vadd.f32 %v6314, %v6420
      %v6428 = vadd.f32 %v6317, %v6420
      %v6429 = vadd.f32 %v6322, %v6420
      %v6430 = vadd.f32 %v6325, %v6420
      %v6431 = vadd.f32 %v6330, %v6420
      %v6432 = vadd.f32 %v6333, %v6420
      %v6433 = vadd.f32 %v6338, %v6420
      %v6434 = vadd.f32 %v6341, %v6420
      %v6435 = vadd.f32 %v6346, %v6420
      %v6436 = vadd.f32 %v6349, %v6420
      %v6437 = vadd.f32 %v6354, %v6420
      %v6438 = vadd.f32 %v6357, %v6420
      %v6439 = vadd.f32 %v6362, %v6420
      %v6440 = vadd.f32 %v6365, %v6420
      %v6441 = vadd.f32 %v6370, %v6420
      %v6442 = vadd.f32 %v6373, %v6420
      %v6443 = vadd.f32 %v6378, %v6420
      %v6444 = vadd.f32 %v6381, %v6420
      %v6445 = vadd.f32 %v6386, %v6420
      %v6446 = vadd.f32 %v6389, %v6420
      %v6447 = vadd.f32 %v6394, %v6420
      %v6448 = vadd.f32 %v6397, %v6420
      %v6449 = vadd.f32 %v6402, %v6420
      %v6450 = vadd.f32 %v6405, %v6420
      %v6451 = vadd.f32 %v6410, %v6420
      %v6452 = vadd.f32 %v6413, %v6420
      %v6453 = vmax.f32 %v6421, 0.0
      %v6454 = vmax.f32 %v6422, 0.0
      %v6455 = vmax.f32 %v6423, 0.0
      %v6456 = vmax.f32 %v6424, 0.0
      %v6457 = vmax.f32 %v6425, 0.0
      %v6458 = vmax.f32 %v6426, 0.0
      %v6459 = vmax.f32 %v6427, 0.0
      %v6460 = vmax.f32 %v6428, 0.0
      %v6461 = vmax.f32 %v6429, 0.0
      %v6462 = vmax.f32 %v6430, 0.0
      %v6463 = vmax.f32 %v6431, 0.0
      %v6464 = vmax.f32 %v6432, 0.0
      %v6465 = vmax.f32 %v6433, 0.0
      %v6466 = vmax.f32 %v6434, 0.0
      %v6467 = vmax.f32 %v6435, 0.0
      %v6468 = vmax.f32 %v6436, 0.0
      %v6469 = vmax.f32 %v6437, 0.0
      %v6470 = vmax.f32 %v6438, 0.0
      %v6471 = vmax.f32 %v6439, 0.0
      %v6472 = vmax.f32 %v6440, 0.0
      %v6473 = vmax.f32 %v6441, 0.0
      %v6474 = vmax.f32 %v6442, 0.0
      %v6475 = vmax.f32 %v6443, 0.0
      %v6476 = vmax.f32 %v6444, 0.0
      %v6477 = vmax.f32 %v6445, 0.0
      %v6478 = vmax.f32 %v6446, 0.0
      %v6479 = vmax.f32 %v6447, 0.0
      %v6480 = vmax.f32 %v6448, 0.0
      %v6481 = vmax.f32 %v6449, 0.0
      %v6482 = vmax.f32 %v6450, 0.0
      %v6483 = vmax.f32 %v6451, 0.0
      %v6484 = vmax.f32 %v6452, 0.0
      %v6485 = vpack.c.bf16 %v6454, %v6453
      %v6486 = vpack.c.bf16 %v6456, %v6455
      %v6487 = vpack.c.bf16 %v6458, %v6457
      %v6488 = vpack.c.bf16 %v6460, %v6459
      %v6489 = vpack.c.bf16 %v6462, %v6461
      %v6490 = vpack.c.bf16 %v6464, %v6463
      %v6491 = vpack.c.bf16 %v6466, %v6465
      %v6492 = vpack.c.bf16 %v6468, %v6467
      %v6493 = vpack.c.bf16 %v6470, %v6469
      %v6494 = vpack.c.bf16 %v6472, %v6471
      %v6495 = vpack.c.bf16 %v6474, %v6473
      %v6496 = vpack.c.bf16 %v6476, %v6475
      %v6497 = vpack.c.bf16 %v6478, %v6477
      %v6498 = vpack.c.bf16 %v6480, %v6479
      %v6499 = vpack.c.bf16 %v6482, %v6481
      %v6500 = vpack.c.bf16 %v6484, %v6483
      %v6501 = vld [vmem:[%s1 + $0x160] sm:$0xf]
      %v6502 = vld [vmem:[%s1 + $0x168] sm:$0xf]
      %v6503 = vld [vmem:[%s1 + $0x170] sm:$0xf]
      %v6504 = vld [vmem:[%s1 + $0x178] sm:$0xf]
      %v6505 = vld [vmem:[%s1 + $0x180] sm:$0xf]
      %v6506 = vld [vmem:[%s1 + $0x188] sm:$0xf]
      %v6507 = vld [vmem:[%s1 + $0x190] sm:$0xf]
      %v6508 = vld [vmem:[%s1 + $0x198] sm:$0xf]
      %v6509 = vld [vmem:[%s2 + $0x5] sm:$0x1]
      %v6510 = vlaneseq
      %v6511 = vshrl.u32 %v6510, 7
      %v6512 = vsub.s32 0, %v6511
      %v6513 = vrot.slane %v6509, %v6512
      %v6522 = vunpack.c.l.b16 %v6501
      %v6523 = vunpack.c.l.b16 %v6502
      %v6524 = vunpack.c.l.b16 %v6503
      %v6525 = vunpack.c.l.b16 %v6504
      %v6526 = vunpack.c.l.b16 %v6505
      %v6527 = vunpack.c.l.b16 %v6506
      %v6528 = vunpack.c.l.b16 %v6507
      %v6529 = vunpack.c.l.b16 %v6508
      %v6530 = vpack.c.b16 %v6523, %v6522
      %v6531 = vpack.c.b16 %v6525, %v6524
      %v6532 = vpack.c.b16 %v6527, %v6526
      %v6533 = vpack.c.b16 %v6529, %v6528
      %v6539 = vsel %vm724, %v6485, 0
      %v6542 = vsel %vm724, %v6486, 0
      %v6545 = vsel %vm724, %v6487, 0
      %v6548 = vsel %vm724, %v6488, 0
      %v6551 = vsel %vm724, %v6489, 0
      %v6554 = vsel %vm724, %v6490, 0
      %v6557 = vsel %vm724, %v6491, 0
      %v6560 = vsel %vm724, %v6492, 0
      %v6563 = vsel %vm724, %v6493, 0
      %v6566 = vsel %vm724, %v6494, 0
      %v6569 = vsel %vm724, %v6495, 0
      %v6572 = vsel %vm724, %v6496, 0
      %v6575 = vsel %vm724, %v6497, 0
      %v6578 = vsel %vm724, %v6498, 0
      %v6581 = vsel %vm724, %v6499, 0
      %v6584 = vsel %vm724, %v6500, 0
      %6586 = vmatprep.subr.bf16.mxu0 0
      %6587 = vmatpush1.bf16.msra.mxu0 0
      %6588 = vmatprep.subr.bf16.mxu0 0
      %6589 = vmatpush1.bf16.msra.mxu0 0
      %6590 = vmatprep.subr.bf16.mxu0 0
      %6591 = vmatpush1.bf16.msra.mxu0 0
      %6592 = vmatprep.subr.bf16.mxu0 0
      %6593 = vmatpush1.bf16.msra.mxu0 0
      %6594 = vmatprep.subr.bf16.mxu0 0
      %6595 = vmatpush1.bf16.msra.mxu0 %v6533
      %6596 = vmatprep.subr.bf16.mxu0 0
      %6597 = vmatpush1.bf16.msra.mxu0 %v6532
      %6598 = vmatprep.subr.bf16.mxu0 0
      %6599 = vmatpush1.bf16.msra.mxu0 %v6531
      %6600 = vmatprep.subr.bf16.mxu0 0
      %6601 = vmatpush1.bf16.msra.mxu0 %v6530
      %6602 = vmatprep.subr.bf16.mxu0 0
      %6603 = vmatpush2.bf16.msra.mxu0 0
      %6604 = vmatprep.subr.bf16.mxu0 0
      %6605 = vmatpush2.bf16.msra.mxu0 0
      %6606 = vmatprep.subr.bf16.mxu0 0
      %6607 = vmatpush2.bf16.msra.mxu0 0
      %6608 = vmatprep.subr.bf16.mxu0 0
      %6609 = vmatpush2.bf16.msra.mxu0 0
      %6610 = vmatprep.subr.bf16.mxu0 0
      %6611 = vmatpush2.bf16.msra.mxu0 0
      %6612 = vmatprep.subr.bf16.mxu0 0
      %6613 = vmatpush2.bf16.msra.mxu0 0
      %6614 = vmatprep.subr.bf16.mxu0 0
      %6615 = vmatpush2.bf16.msra.mxu0 0
      %6616 = vmatprep.subr.bf16.mxu0 0
      %6617 = vmatpush2.bf16.msra.mxu0 0
      %6618 = vmatprep.mubr.bf16.mxu0 0
      %6619 = vmatmul.mubr.bf16.gmra.mxu0 %v6539
      %v6620 = vpop.f32.mrf.mxu0
      %v6621 = vadd.f32 %v6513, %v6620
      %v6622 = vpop.f32.mrf.mxu0
      %v6623 = vpop.f32.mrf.mxu0
      %v6624 = vadd.f32 %v6513, %v6623
      %v6625 = vpop.f32.mrf.mxu0
      %6626 = vmatprep.mubr.bf16.mxu0 0
      %6627 = vmatmul.mubr.bf16.gmra.mxu0 %v6542
      %v6628 = vpop.f32.mrf.mxu0
      %v6629 = vadd.f32 %v6513, %v6628
      %v6630 = vpop.f32.mrf.mxu0
      %v6631 = vpop.f32.mrf.mxu0
      %v6632 = vadd.f32 %v6513, %v6631
      %v6633 = vpop.f32.mrf.mxu0
      %6634 = vmatprep.mubr.bf16.mxu0 0
      %6635 = vmatmul.mubr.bf16.gmra.mxu0 %v6545
      %v6636 = vpop.f32.mrf.mxu0
      %v6637 = vadd.f32 %v6513, %v6636
      %v6638 = vpop.f32.mrf.mxu0
      %v6639 = vpop.f32.mrf.mxu0
      %v6640 = vadd.f32 %v6513, %v6639
      %v6641 = vpop.f32.mrf.mxu0
      %6642 = vmatprep.mubr.bf16.mxu0 0
      %6643 = vmatmul.mubr.bf16.gmra.mxu0 %v6548
      %v6644 = vpop.f32.mrf.mxu0
      %v6645 = vadd.f32 %v6513, %v6644
      %v6646 = vpop.f32.mrf.mxu0
      %v6647 = vpop.f32.mrf.mxu0
      %v6648 = vadd.f32 %v6513, %v6647
      %v6649 = vpop.f32.mrf.mxu0
      %6650 = vmatprep.mubr.bf16.mxu0 0
      %6651 = vmatmul.mubr.bf16.gmra.mxu0 %v6551
      %v6652 = vpop.f32.mrf.mxu0
      %v6653 = vadd.f32 %v6513, %v6652
      %v6654 = vpop.f32.mrf.mxu0
      %v6655 = vpop.f32.mrf.mxu0
      %v6656 = vadd.f32 %v6513, %v6655
      %v6657 = vpop.f32.mrf.mxu0
      %6658 = vmatprep.mubr.bf16.mxu0 0
      %6659 = vmatmul.mubr.bf16.gmra.mxu0 %v6554
      %v6660 = vpop.f32.mrf.mxu0
      %v6661 = vadd.f32 %v6513, %v6660
      %v6662 = vpop.f32.mrf.mxu0
      %v6663 = vpop.f32.mrf.mxu0
      %v6664 = vadd.f32 %v6513, %v6663
      %v6665 = vpop.f32.mrf.mxu0
      %6666 = vmatprep.mubr.bf16.mxu0 0
      %6667 = vmatmul.mubr.bf16.gmra.mxu0 %v6557
      %v6668 = vpop.f32.mrf.mxu0
      %v6669 = vadd.f32 %v6513, %v6668
      %v6670 = vpop.f32.mrf.mxu0
      %v6671 = vpop.f32.mrf.mxu0
      %v6672 = vadd.f32 %v6513, %v6671
      %v6673 = vpop.f32.mrf.mxu0
      %6674 = vmatprep.mubr.bf16.mxu0 0
      %6675 = vmatmul.mubr.bf16.gmra.mxu0 %v6560
      %v6676 = vpop.f32.mrf.mxu0
      %v6677 = vadd.f32 %v6513, %v6676
      %v6678 = vpop.f32.mrf.mxu0
      %v6679 = vpop.f32.mrf.mxu0
      %v6680 = vadd.f32 %v6513, %v6679
      %v6681 = vpop.f32.mrf.mxu0
      %6682 = vmatprep.mubr.bf16.mxu0 0
      %6683 = vmatmul.mubr.bf16.gmra.mxu0 %v6563
      %v6684 = vpop.f32.mrf.mxu0
      %v6685 = vadd.f32 %v6513, %v6684
      %v6686 = vpop.f32.mrf.mxu0
      %v6687 = vpop.f32.mrf.mxu0
      %v6688 = vadd.f32 %v6513, %v6687
      %v6689 = vpop.f32.mrf.mxu0
      %6690 = vmatprep.mubr.bf16.mxu0 0
      %6691 = vmatmul.mubr.bf16.gmra.mxu0 %v6566
      %v6692 = vpop.f32.mrf.mxu0
      %v6693 = vadd.f32 %v6513, %v6692
      %v6694 = vpop.f32.mrf.mxu0
      %v6695 = vpop.f32.mrf.mxu0
      %v6696 = vadd.f32 %v6513, %v6695
      %v6697 = vpop.f32.mrf.mxu0
      %6698 = vmatprep.mubr.bf16.mxu0 0
      %6699 = vmatmul.mubr.bf16.gmra.mxu0 %v6569
      %v6700 = vpop.f32.mrf.mxu0
      %v6701 = vadd.f32 %v6513, %v6700
      %v6702 = vpop.f32.mrf.mxu0
      %v6703 = vpop.f32.mrf.mxu0
      %v6704 = vadd.f32 %v6513, %v6703
      %v6705 = vpop.f32.mrf.mxu0
      %6706 = vmatprep.mubr.bf16.mxu0 0
      %6707 = vmatmul.mubr.bf16.gmra.mxu0 %v6572
      %v6708 = vpop.f32.mrf.mxu0
      %v6709 = vadd.f32 %v6513, %v6708
      %v6710 = vpop.f32.mrf.mxu0
      %v6711 = vpop.f32.mrf.mxu0
      %v6712 = vadd.f32 %v6513, %v6711
      %v6713 = vpop.f32.mrf.mxu0
      %6714 = vmatprep.mubr.bf16.mxu0 0
      %6715 = vmatmul.mubr.bf16.gmra.mxu0 %v6575
      %v6716 = vpop.f32.mrf.mxu0
      %v6717 = vadd.f32 %v6513, %v6716
      %v6718 = vpop.f32.mrf.mxu0
      %v6719 = vpop.f32.mrf.mxu0
      %v6720 = vadd.f32 %v6513, %v6719
      %v6721 = vpop.f32.mrf.mxu0
      %6722 = vmatprep.mubr.bf16.mxu0 0
      %6723 = vmatmul.mubr.bf16.gmra.mxu0 %v6578
      %v6724 = vpop.f32.mrf.mxu0
      %v6725 = vadd.f32 %v6513, %v6724
      %v6726 = vpop.f32.mrf.mxu0
      %v6727 = vpop.f32.mrf.mxu0
      %v6728 = vadd.f32 %v6513, %v6727
      %v6729 = vpop.f32.mrf.mxu0
      %6730 = vmatprep.mubr.bf16.mxu0 0
      %6731 = vmatmul.mubr.bf16.gmra.mxu0 %v6581
      %v6732 = vpop.f32.mrf.mxu0
      %v6733 = vadd.f32 %v6513, %v6732
      %v6734 = vpop.f32.mrf.mxu0
      %v6735 = vpop.f32.mrf.mxu0
      %v6736 = vadd.f32 %v6513, %v6735
      %v6737 = vpop.f32.mrf.mxu0
      %6738 = vmatprep.mubr.bf16.mxu0 0
      %6739 = vmatmul.mubr.bf16.gmra.mxu0 %v6584
      %v6740 = vpop.f32.mrf.mxu0
      %v6741 = vadd.f32 %v6513, %v6740
      %v6742 = vpop.f32.mrf.mxu0
      %v6743 = vpop.f32.mrf.mxu0
      %v6744 = vadd.f32 %v6513, %v6743
      %v6745 = vpop.f32.mrf.mxu0
      %6746 = vdwg.mxu0
      %v6747 = vmax.f32 %v6621, 0.0
      %v6748 = vmax.f32 %v6624, 0.0
      %v6749 = vmax.f32 %v6629, 0.0
      %v6750 = vmax.f32 %v6632, 0.0
      %v6751 = vmax.f32 %v6637, 0.0
      %v6752 = vmax.f32 %v6640, 0.0
      %v6753 = vmax.f32 %v6645, 0.0
      %v6754 = vmax.f32 %v6648, 0.0
      %v6755 = vmax.f32 %v6653, 0.0
      %v6756 = vmax.f32 %v6656, 0.0
      %v6757 = vmax.f32 %v6661, 0.0
      %v6758 = vmax.f32 %v6664, 0.0
      %v6759 = vmax.f32 %v6669, 0.0
      %v6760 = vmax.f32 %v6672, 0.0
      %v6761 = vmax.f32 %v6677, 0.0
      %v6762 = vmax.f32 %v6680, 0.0
      %v6763 = vmax.f32 %v6685, 0.0
      %v6764 = vmax.f32 %v6688, 0.0
      %v6765 = vmax.f32 %v6693, 0.0
      %v6766 = vmax.f32 %v6696, 0.0
      %v6767 = vmax.f32 %v6701, 0.0
      %v6768 = vmax.f32 %v6704, 0.0
      %v6769 = vmax.f32 %v6709, 0.0
      %v6770 = vmax.f32 %v6712, 0.0
      %v6771 = vmax.f32 %v6717, 0.0
      %v6772 = vmax.f32 %v6720, 0.0
      %v6773 = vmax.f32 %v6725, 0.0
      %v6774 = vmax.f32 %v6728, 0.0
      %v6775 = vmax.f32 %v6733, 0.0
      %v6776 = vmax.f32 %v6736, 0.0
      %v6777 = vmax.f32 %v6741, 0.0
      %v6778 = vmax.f32 %v6744, 0.0
      %v6779 = vpack.c.bf16 %v6748, %v6747
      %v6780 = vpack.c.bf16 %v6750, %v6749
      %v6781 = vpack.c.bf16 %v6752, %v6751
      %v6782 = vpack.c.bf16 %v6754, %v6753
      %v6783 = vpack.c.bf16 %v6756, %v6755
      %v6784 = vpack.c.bf16 %v6758, %v6757
      %v6785 = vpack.c.bf16 %v6760, %v6759
      %v6786 = vpack.c.bf16 %v6762, %v6761
      %v6787 = vpack.c.bf16 %v6764, %v6763
      %v6788 = vpack.c.bf16 %v6766, %v6765
      %v6789 = vpack.c.bf16 %v6768, %v6767
      %v6790 = vpack.c.bf16 %v6770, %v6769
      %v6791 = vpack.c.bf16 %v6772, %v6771
      %v6792 = vpack.c.bf16 %v6774, %v6773
      %v6793 = vpack.c.bf16 %v6776, %v6775
      %v6794 = vpack.c.bf16 %v6778, %v6777
      %v6795 = vld [vmem:[%s1 + $0x1a0] sm:$0xf]
      %v6796 = vld [vmem:[%s1 + $0x1a8] sm:$0xf]
      %v6797 = vld [vmem:[%s1 + $0x1b0] sm:$0xf]
      %v6798 = vld [vmem:[%s1 + $0x1b8] sm:$0xf]
      %v6799 = vld [vmem:[%s1 + $0x1c0] sm:$0xf]
      %v6800 = vld [vmem:[%s1 + $0x1c8] sm:$0xf]
      %v6801 = vld [vmem:[%s1 + $0x1d0] sm:$0xf]
      %v6802 = vld [vmem:[%s1 + $0x1d8] sm:$0xf]
      %v6803 = vld [vmem:[%s2 + $0x6] sm:$0x1]
      %v6804 = vlaneseq
      %v6805 = vshrl.u32 %v6804, 7
      %v6806 = vsub.s32 0, %v6805
      %v6807 = vrot.slane %v6803, %v6806
      %v6816 = vunpack.c.l.b16 %v6795
      %v6817 = vunpack.c.l.b16 %v6796
      %v6818 = vunpack.c.l.b16 %v6797
      %v6819 = vunpack.c.l.b16 %v6798
      %v6820 = vunpack.c.l.b16 %v6799
      %v6821 = vunpack.c.l.b16 %v6800
      %v6822 = vunpack.c.l.b16 %v6801
      %v6823 = vunpack.c.l.b16 %v6802
      %v6824 = vpack.c.b16 %v6817, %v6816
      %v6825 = vpack.c.b16 %v6819, %v6818
      %v6826 = vpack.c.b16 %v6821, %v6820
      %v6827 = vpack.c.b16 %v6823, %v6822
      %v6833 = vsel %vm724, %v6779, 0
      %v6836 = vsel %vm724, %v6780, 0
      %v6839 = vsel %vm724, %v6781, 0
      %v6842 = vsel %vm724, %v6782, 0
      %v6845 = vsel %vm724, %v6783, 0
      %v6848 = vsel %vm724, %v6784, 0
      %v6851 = vsel %vm724, %v6785, 0
      %v6854 = vsel %vm724, %v6786, 0
      %v6857 = vsel %vm724, %v6787, 0
      %v6860 = vsel %vm724, %v6788, 0
      %v6863 = vsel %vm724, %v6789, 0
      %v6866 = vsel %vm724, %v6790, 0
      %v6869 = vsel %vm724, %v6791, 0
      %v6872 = vsel %vm724, %v6792, 0
      %v6875 = vsel %vm724, %v6793, 0
      %v6878 = vsel %vm724, %v6794, 0
      %6880 = vmatprep.subr.bf16.mxu0 0
      %6881 = vmatpush1.bf16.msra.mxu0 0
      %6882 = vmatprep.subr.bf16.mxu0 0
      %6883 = vmatpush1.bf16.msra.mxu0 0
      %6884 = vmatprep.subr.bf16.mxu0 0
      %6885 = vmatpush1.bf16.msra.mxu0 0
      %6886 = vmatprep.subr.bf16.mxu0 0
      %6887 = vmatpush1.bf16.msra.mxu0 0
      %6888 = vmatprep.subr.bf16.mxu0 0
      %6889 = vmatpush1.bf16.msra.mxu0 %v6827
      %6890 = vmatprep.subr.bf16.mxu0 0
      %6891 = vmatpush1.bf16.msra.mxu0 %v6826
      %6892 = vmatprep.subr.bf16.mxu0 0
      %6893 = vmatpush1.bf16.msra.mxu0 %v6825
      %6894 = vmatprep.subr.bf16.mxu0 0
      %6895 = vmatpush1.bf16.msra.mxu0 %v6824
      %6896 = vmatprep.subr.bf16.mxu0 0
      %6897 = vmatpush2.bf16.msra.mxu0 0
      %6898 = vmatprep.subr.bf16.mxu0 0
      %6899 = vmatpush2.bf16.msra.mxu0 0
      %6900 = vmatprep.subr.bf16.mxu0 0
      %6901 = vmatpush2.bf16.msra.mxu0 0
      %6902 = vmatprep.subr.bf16.mxu0 0
      %6903 = vmatpush2.bf16.msra.mxu0 0
      %6904 = vmatprep.subr.bf16.mxu0 0
      %6905 = vmatpush2.bf16.msra.mxu0 0
      %6906 = vmatprep.subr.bf16.mxu0 0
      %6907 = vmatpush2.bf16.msra.mxu0 0
      %6908 = vmatprep.subr.bf16.mxu0 0
      %6909 = vmatpush2.bf16.msra.mxu0 0
      %6910 = vmatprep.subr.bf16.mxu0 0
      %6911 = vmatpush2.bf16.msra.mxu0 0
      %6912 = vmatprep.mubr.bf16.mxu0 0
      %6913 = vmatmul.mubr.bf16.gmra.mxu0 %v6833
      %v6914 = vpop.f32.mrf.mxu0
      %v6915 = vadd.f32 %v6807, %v6914
      %v6916 = vpop.f32.mrf.mxu0
      %v6917 = vpop.f32.mrf.mxu0
      %v6918 = vadd.f32 %v6807, %v6917
      %v6919 = vpop.f32.mrf.mxu0
      %6920 = vmatprep.mubr.bf16.mxu0 0
      %6921 = vmatmul.mubr.bf16.gmra.mxu0 %v6836
      %v6922 = vpop.f32.mrf.mxu0
      %v6923 = vadd.f32 %v6807, %v6922
      %v6924 = vpop.f32.mrf.mxu0
      %v6925 = vpop.f32.mrf.mxu0
      %v6926 = vadd.f32 %v6807, %v6925
      %v6927 = vpop.f32.mrf.mxu0
      %6928 = vmatprep.mubr.bf16.mxu0 0
      %6929 = vmatmul.mubr.bf16.gmra.mxu0 %v6839
      %v6930 = vpop.f32.mrf.mxu0
      %v6931 = vadd.f32 %v6807, %v6930
      %v6932 = vpop.f32.mrf.mxu0
      %v6933 = vpop.f32.mrf.mxu0
      %v6934 = vadd.f32 %v6807, %v6933
      %v6935 = vpop.f32.mrf.mxu0
      %6936 = vmatprep.mubr.bf16.mxu0 0
      %6937 = vmatmul.mubr.bf16.gmra.mxu0 %v6842
      %v6938 = vpop.f32.mrf.mxu0
      %v6939 = vadd.f32 %v6807, %v6938
      %v6940 = vpop.f32.mrf.mxu0
      %v6941 = vpop.f32.mrf.mxu0
      %v6942 = vadd.f32 %v6807, %v6941
      %v6943 = vpop.f32.mrf.mxu0
      %6944 = vmatprep.mubr.bf16.mxu0 0
      %6945 = vmatmul.mubr.bf16.gmra.mxu0 %v6845
      %v6946 = vpop.f32.mrf.mxu0
      %v6947 = vadd.f32 %v6807, %v6946
      %v6948 = vpop.f32.mrf.mxu0
      %v6949 = vpop.f32.mrf.mxu0
      %v6950 = vadd.f32 %v6807, %v6949
      %v6951 = vpop.f32.mrf.mxu0
      %6952 = vmatprep.mubr.bf16.mxu0 0
      %6953 = vmatmul.mubr.bf16.gmra.mxu0 %v6848
      %v6954 = vpop.f32.mrf.mxu0
      %v6955 = vadd.f32 %v6807, %v6954
      %v6956 = vpop.f32.mrf.mxu0
      %v6957 = vpop.f32.mrf.mxu0
      %v6958 = vadd.f32 %v6807, %v6957
      %v6959 = vpop.f32.mrf.mxu0
      %6960 = vmatprep.mubr.bf16.mxu0 0
      %6961 = vmatmul.mubr.bf16.gmra.mxu0 %v6851
      %v6962 = vpop.f32.mrf.mxu0
      %v6963 = vadd.f32 %v6807, %v6962
      %v6964 = vpop.f32.mrf.mxu0
      %v6965 = vpop.f32.mrf.mxu0
      %v6966 = vadd.f32 %v6807, %v6965
      %v6967 = vpop.f32.mrf.mxu0
      %6968 = vmatprep.mubr.bf16.mxu0 0
      %6969 = vmatmul.mubr.bf16.gmra.mxu0 %v6854
      %v6970 = vpop.f32.mrf.mxu0
      %v6971 = vadd.f32 %v6807, %v6970
      %v6972 = vpop.f32.mrf.mxu0
      %v6973 = vpop.f32.mrf.mxu0
      %v6974 = vadd.f32 %v6807, %v6973
      %v6975 = vpop.f32.mrf.mxu0
      %6976 = vmatprep.mubr.bf16.mxu0 0
      %6977 = vmatmul.mubr.bf16.gmra.mxu0 %v6857
      %v6978 = vpop.f32.mrf.mxu0
      %v6979 = vadd.f32 %v6807, %v6978
      %v6980 = vpop.f32.mrf.mxu0
      %v6981 = vpop.f32.mrf.mxu0
      %v6982 = vadd.f32 %v6807, %v6981
      %v6983 = vpop.f32.mrf.mxu0
      %6984 = vmatprep.mubr.bf16.mxu0 0
      %6985 = vmatmul.mubr.bf16.gmra.mxu0 %v6860
      %v6986 = vpop.f32.mrf.mxu0
      %v6987 = vadd.f32 %v6807, %v6986
      %v6988 = vpop.f32.mrf.mxu0
      %v6989 = vpop.f32.mrf.mxu0
      %v6990 = vadd.f32 %v6807, %v6989
      %v6991 = vpop.f32.mrf.mxu0
      %6992 = vmatprep.mubr.bf16.mxu0 0
      %6993 = vmatmul.mubr.bf16.gmra.mxu0 %v6863
      %v6994 = vpop.f32.mrf.mxu0
      %v6995 = vadd.f32 %v6807, %v6994
      %v6996 = vpop.f32.mrf.mxu0
      %v6997 = vpop.f32.mrf.mxu0
      %v6998 = vadd.f32 %v6807, %v6997
      %v6999 = vpop.f32.mrf.mxu0
      %7000 = vmatprep.mubr.bf16.mxu0 0
      %7001 = vmatmul.mubr.bf16.gmra.mxu0 %v6866
      %v7002 = vpop.f32.mrf.mxu0
      %v7003 = vadd.f32 %v6807, %v7002
      %v7004 = vpop.f32.mrf.mxu0
      %v7005 = vpop.f32.mrf.mxu0
      %v7006 = vadd.f32 %v6807, %v7005
      %v7007 = vpop.f32.mrf.mxu0
      %7008 = vmatprep.mubr.bf16.mxu0 0
      %7009 = vmatmul.mubr.bf16.gmra.mxu0 %v6869
      %v7010 = vpop.f32.mrf.mxu0
      %v7011 = vadd.f32 %v6807, %v7010
      %v7012 = vpop.f32.mrf.mxu0
      %v7013 = vpop.f32.mrf.mxu0
      %v7014 = vadd.f32 %v6807, %v7013
      %v7015 = vpop.f32.mrf.mxu0
      %7016 = vmatprep.mubr.bf16.mxu0 0
      %7017 = vmatmul.mubr.bf16.gmra.mxu0 %v6872
      %v7018 = vpop.f32.mrf.mxu0
      %v7019 = vadd.f32 %v6807, %v7018
      %v7020 = vpop.f32.mrf.mxu0
      %v7021 = vpop.f32.mrf.mxu0
      %v7022 = vadd.f32 %v6807, %v7021
      %v7023 = vpop.f32.mrf.mxu0
      %7024 = vmatprep.mubr.bf16.mxu0 0
      %7025 = vmatmul.mubr.bf16.gmra.mxu0 %v6875
      %v7026 = vpop.f32.mrf.mxu0
      %v7027 = vadd.f32 %v6807, %v7026
      %v7028 = vpop.f32.mrf.mxu0
      %v7029 = vpop.f32.mrf.mxu0
      %v7030 = vadd.f32 %v6807, %v7029
      %v7031 = vpop.f32.mrf.mxu0
      %7032 = vmatprep.mubr.bf16.mxu0 0
      %7033 = vmatmul.mubr.bf16.gmra.mxu0 %v6878
      %v7034 = vpop.f32.mrf.mxu0
      %v7035 = vadd.f32 %v6807, %v7034
      %v7036 = vpop.f32.mrf.mxu0
      %v7037 = vpop.f32.mrf.mxu0
      %v7038 = vadd.f32 %v6807, %v7037
      %v7039 = vpop.f32.mrf.mxu0
      %7040 = vdwg.mxu0
      %v7041 = vmax.f32 %v6915, 0.0
      %v7042 = vmax.f32 %v6918, 0.0
      %v7043 = vmax.f32 %v6923, 0.0
      %v7044 = vmax.f32 %v6926, 0.0
      %v7045 = vmax.f32 %v6931, 0.0
      %v7046 = vmax.f32 %v6934, 0.0
      %v7047 = vmax.f32 %v6939, 0.0
      %v7048 = vmax.f32 %v6942, 0.0
      %v7049 = vmax.f32 %v6947, 0.0
      %v7050 = vmax.f32 %v6950, 0.0
      %v7051 = vmax.f32 %v6955, 0.0
      %v7052 = vmax.f32 %v6958, 0.0
      %v7053 = vmax.f32 %v6963, 0.0
      %v7054 = vmax.f32 %v6966, 0.0
      %v7055 = vmax.f32 %v6971, 0.0
      %v7056 = vmax.f32 %v6974, 0.0
      %v7057 = vmax.f32 %v6979, 0.0
      %v7058 = vmax.f32 %v6982, 0.0
      %v7059 = vmax.f32 %v6987, 0.0
      %v7060 = vmax.f32 %v6990, 0.0
      %v7061 = vmax.f32 %v6995, 0.0
      %v7062 = vmax.f32 %v6998, 0.0
      %v7063 = vmax.f32 %v7003, 0.0
      %v7064 = vmax.f32 %v7006, 0.0
      %v7065 = vmax.f32 %v7011, 0.0
      %v7066 = vmax.f32 %v7014, 0.0
      %v7067 = vmax.f32 %v7019, 0.0
      %v7068 = vmax.f32 %v7022, 0.0
      %v7069 = vmax.f32 %v7027, 0.0
      %v7070 = vmax.f32 %v7030, 0.0
      %v7071 = vmax.f32 %v7035, 0.0
      %v7072 = vmax.f32 %v7038, 0.0
      %v7073 = vpack.c.bf16 %v7042, %v7041
      %v7074 = vpack.c.bf16 %v7044, %v7043
      %v7075 = vpack.c.bf16 %v7046, %v7045
      %v7076 = vpack.c.bf16 %v7048, %v7047
      %v7077 = vpack.c.bf16 %v7050, %v7049
      %v7078 = vpack.c.bf16 %v7052, %v7051
      %v7079 = vpack.c.bf16 %v7054, %v7053
      %v7080 = vpack.c.bf16 %v7056, %v7055
      %v7081 = vpack.c.bf16 %v7058, %v7057
      %v7082 = vpack.c.bf16 %v7060, %v7059
      %v7083 = vpack.c.bf16 %v7062, %v7061
      %v7084 = vpack.c.bf16 %v7064, %v7063
      %v7085 = vpack.c.bf16 %v7066, %v7065
      %v7086 = vpack.c.bf16 %v7068, %v7067
      %v7087 = vpack.c.bf16 %v7070, %v7069
      %v7088 = vpack.c.bf16 %v7072, %v7071
      %v7089 = vld [vmem:[%s1 + $0x1e0] sm:$0xf]
      %v7090 = vld [vmem:[%s1 + $0x1e8] sm:$0xf]
      %v7091 = vld [vmem:[%s1 + $0x1f0] sm:$0xf]
      %v7092 = vld [vmem:[%s1 + $0x1f8] sm:$0xf]
      %v7093 = vld [vmem:[%s1 + $0x200] sm:$0xf]
      %v7094 = vld [vmem:[%s1 + $0x208] sm:$0xf]
      %v7095 = vld [vmem:[%s1 + $0x210] sm:$0xf]
      %v7096 = vld [vmem:[%s1 + $0x218] sm:$0xf]
      %v7097 = vld [vmem:[%s2 + $0x7] sm:$0x1]
      %v7098 = vlaneseq
      %v7099 = vshrl.u32 %v7098, 7
      %v7100 = vsub.s32 0, %v7099
      %v7101 = vrot.slane %v7097, %v7100
      %v7110 = vunpack.c.l.b16 %v7089
      %v7111 = vunpack.c.l.b16 %v7090
      %v7112 = vunpack.c.l.b16 %v7091
      %v7113 = vunpack.c.l.b16 %v7092
      %v7114 = vunpack.c.l.b16 %v7093
      %v7115 = vunpack.c.l.b16 %v7094
      %v7116 = vunpack.c.l.b16 %v7095
      %v7117 = vunpack.c.l.b16 %v7096
      %v7118 = vpack.c.b16 %v7111, %v7110
      %v7119 = vpack.c.b16 %v7113, %v7112
      %v7120 = vpack.c.b16 %v7115, %v7114
      %v7121 = vpack.c.b16 %v7117, %v7116
      %v7127 = vsel %vm724, %v7073, 0
      %v7130 = vsel %vm724, %v7074, 0
      %v7133 = vsel %vm724, %v7075, 0
      %v7136 = vsel %vm724, %v7076, 0
      %v7139 = vsel %vm724, %v7077, 0
      %v7142 = vsel %vm724, %v7078, 0
      %v7145 = vsel %vm724, %v7079, 0
      %v7148 = vsel %vm724, %v7080, 0
      %v7151 = vsel %vm724, %v7081, 0
      %v7154 = vsel %vm724, %v7082, 0
      %v7157 = vsel %vm724, %v7083, 0
      %v7160 = vsel %vm724, %v7084, 0
      %v7163 = vsel %vm724, %v7085, 0
      %v7166 = vsel %vm724, %v7086, 0
      %v7169 = vsel %vm724, %v7087, 0
      %v7172 = vsel %vm724, %v7088, 0
      %7174 = vmatprep.subr.bf16.mxu0 0
      %7175 = vmatpush1.bf16.msra.mxu0 0
      %7176 = vmatprep.subr.bf16.mxu0 0
      %7177 = vmatpush1.bf16.msra.mxu0 0
      %7178 = vmatprep.subr.bf16.mxu0 0
      %7179 = vmatpush1.bf16.msra.mxu0 0
      %7180 = vmatprep.subr.bf16.mxu0 0
      %7181 = vmatpush1.bf16.msra.mxu0 0
      %7182 = vmatprep.subr.bf16.mxu0 0
      %7183 = vmatpush1.bf16.msra.mxu0 %v7121
      %7184 = vmatprep.subr.bf16.mxu0 0
      %7185 = vmatpush1.bf16.msra.mxu0 %v7120
      %7186 = vmatprep.subr.bf16.mxu0 0
      %7187 = vmatpush1.bf16.msra.mxu0 %v7119
      %7188 = vmatprep.subr.bf16.mxu0 0
      %7189 = vmatpush1.bf16.msra.mxu0 %v7118
      %7190 = vmatprep.subr.bf16.mxu0 0
      %7191 = vmatpush2.bf16.msra.mxu0 0
      %7192 = vmatprep.subr.bf16.mxu0 0
      %7193 = vmatpush2.bf16.msra.mxu0 0
      %7194 = vmatprep.subr.bf16.mxu0 0
      %7195 = vmatpush2.bf16.msra.mxu0 0
      %7196 = vmatprep.subr.bf16.mxu0 0
      %7197 = vmatpush2.bf16.msra.mxu0 0
      %7198 = vmatprep.subr.bf16.mxu0 0
      %7199 = vmatpush2.bf16.msra.mxu0 0
      %7200 = vmatprep.subr.bf16.mxu0 0
      %7201 = vmatpush2.bf16.msra.mxu0 0
      %7202 = vmatprep.subr.bf16.mxu0 0
      %7203 = vmatpush2.bf16.msra.mxu0 0
      %7204 = vmatprep.subr.bf16.mxu0 0
      %7205 = vmatpush2.bf16.msra.mxu0 0
      %7206 = vmatprep.mubr.bf16.mxu0 0
      %7207 = vmatmul.mubr.bf16.gmra.mxu0 %v7127
      %v7208 = vpop.f32.mrf.mxu0
      %v7209 = vadd.f32 %v7101, %v7208
      %v7210 = vpop.f32.mrf.mxu0
      %v7211 = vpop.f32.mrf.mxu0
      %v7212 = vadd.f32 %v7101, %v7211
      %v7213 = vpop.f32.mrf.mxu0
      %7214 = vmatprep.mubr.bf16.mxu0 0
      %7215 = vmatmul.mubr.bf16.gmra.mxu0 %v7130
      %v7216 = vpop.f32.mrf.mxu0
      %v7217 = vadd.f32 %v7101, %v7216
      %v7218 = vpop.f32.mrf.mxu0
      %v7219 = vpop.f32.mrf.mxu0
      %v7220 = vadd.f32 %v7101, %v7219
      %v7221 = vpop.f32.mrf.mxu0
      %7222 = vmatprep.mubr.bf16.mxu0 0
      %7223 = vmatmul.mubr.bf16.gmra.mxu0 %v7133
      %v7224 = vpop.f32.mrf.mxu0
      %v7225 = vadd.f32 %v7101, %v7224
      %v7226 = vpop.f32.mrf.mxu0
      %v7227 = vpop.f32.mrf.mxu0
      %v7228 = vadd.f32 %v7101, %v7227
      %v7229 = vpop.f32.mrf.mxu0
      %7230 = vmatprep.mubr.bf16.mxu0 0
      %7231 = vmatmul.mubr.bf16.gmra.mxu0 %v7136
      %v7232 = vpop.f32.mrf.mxu0
      %v7233 = vadd.f32 %v7101, %v7232
      %v7234 = vpop.f32.mrf.mxu0
      %v7235 = vpop.f32.mrf.mxu0
      %v7236 = vadd.f32 %v7101, %v7235
      %v7237 = vpop.f32.mrf.mxu0
      %7238 = vmatprep.mubr.bf16.mxu0 0
      %7239 = vmatmul.mubr.bf16.gmra.mxu0 %v7139
      %v7240 = vpop.f32.mrf.mxu0
      %v7241 = vadd.f32 %v7101, %v7240
      %v7242 = vpop.f32.mrf.mxu0
      %v7243 = vpop.f32.mrf.mxu0
      %v7244 = vadd.f32 %v7101, %v7243
      %v7245 = vpop.f32.mrf.mxu0
      %7246 = vmatprep.mubr.bf16.mxu0 0
      %7247 = vmatmul.mubr.bf16.gmra.mxu0 %v7142
      %v7248 = vpop.f32.mrf.mxu0
      %v7249 = vadd.f32 %v7101, %v7248
      %v7250 = vpop.f32.mrf.mxu0
      %v7251 = vpop.f32.mrf.mxu0
      %v7252 = vadd.f32 %v7101, %v7251
      %v7253 = vpop.f32.mrf.mxu0
      %7254 = vmatprep.mubr.bf16.mxu0 0
      %7255 = vmatmul.mubr.bf16.gmra.mxu0 %v7145
      %v7256 = vpop.f32.mrf.mxu0
      %v7257 = vadd.f32 %v7101, %v7256
      %v7258 = vpop.f32.mrf.mxu0
      %v7259 = vpop.f32.mrf.mxu0
      %v7260 = vadd.f32 %v7101, %v7259
      %v7261 = vpop.f32.mrf.mxu0
      %7262 = vmatprep.mubr.bf16.mxu0 0
      %7263 = vmatmul.mubr.bf16.gmra.mxu0 %v7148
      %v7264 = vpop.f32.mrf.mxu0
      %v7265 = vadd.f32 %v7101, %v7264
      %v7266 = vpop.f32.mrf.mxu0
      %v7267 = vpop.f32.mrf.mxu0
      %v7268 = vadd.f32 %v7101, %v7267
      %v7269 = vpop.f32.mrf.mxu0
      %7270 = vmatprep.mubr.bf16.mxu0 0
      %7271 = vmatmul.mubr.bf16.gmra.mxu0 %v7151
      %v7272 = vpop.f32.mrf.mxu0
      %v7273 = vadd.f32 %v7101, %v7272
      %v7274 = vpop.f32.mrf.mxu0
      %v7275 = vpop.f32.mrf.mxu0
      %v7276 = vadd.f32 %v7101, %v7275
      %v7277 = vpop.f32.mrf.mxu0
      %7278 = vmatprep.mubr.bf16.mxu0 0
      %7279 = vmatmul.mubr.bf16.gmra.mxu0 %v7154
      %v7280 = vpop.f32.mrf.mxu0
      %v7281 = vadd.f32 %v7101, %v7280
      %v7282 = vpop.f32.mrf.mxu0
      %v7283 = vpop.f32.mrf.mxu0
      %v7284 = vadd.f32 %v7101, %v7283
      %v7285 = vpop.f32.mrf.mxu0
      %7286 = vmatprep.mubr.bf16.mxu0 0
      %7287 = vmatmul.mubr.bf16.gmra.mxu0 %v7157
      %v7288 = vpop.f32.mrf.mxu0
      %v7289 = vadd.f32 %v7101, %v7288
      %v7290 = vpop.f32.mrf.mxu0
      %v7291 = vpop.f32.mrf.mxu0
      %v7292 = vadd.f32 %v7101, %v7291
      %v7293 = vpop.f32.mrf.mxu0
      %7294 = vmatprep.mubr.bf16.mxu0 0
      %7295 = vmatmul.mubr.bf16.gmra.mxu0 %v7160
      %v7296 = vpop.f32.mrf.mxu0
      %v7297 = vadd.f32 %v7101, %v7296
      %v7298 = vpop.f32.mrf.mxu0
      %v7299 = vpop.f32.mrf.mxu0
      %v7300 = vadd.f32 %v7101, %v7299
      %v7301 = vpop.f32.mrf.mxu0
      %7302 = vmatprep.mubr.bf16.mxu0 0
      %7303 = vmatmul.mubr.bf16.gmra.mxu0 %v7163
      %v7304 = vpop.f32.mrf.mxu0
      %v7305 = vadd.f32 %v7101, %v7304
      %v7306 = vpop.f32.mrf.mxu0
      %v7307 = vpop.f32.mrf.mxu0
      %v7308 = vadd.f32 %v7101, %v7307
      %v7309 = vpop.f32.mrf.mxu0
      %7310 = vmatprep.mubr.bf16.mxu0 0
      %7311 = vmatmul.mubr.bf16.gmra.mxu0 %v7166
      %v7312 = vpop.f32.mrf.mxu0
      %v7313 = vadd.f32 %v7101, %v7312
      %v7314 = vpop.f32.mrf.mxu0
      %v7315 = vpop.f32.mrf.mxu0
      %v7316 = vadd.f32 %v7101, %v7315
      %v7317 = vpop.f32.mrf.mxu0
      %7318 = vmatprep.mubr.bf16.mxu0 0
      %7319 = vmatmul.mubr.bf16.gmra.mxu0 %v7169
      %v7320 = vpop.f32.mrf.mxu0
      %v7321 = vadd.f32 %v7101, %v7320
      %v7322 = vpop.f32.mrf.mxu0
      %v7323 = vpop.f32.mrf.mxu0
      %v7324 = vadd.f32 %v7101, %v7323
      %v7325 = vpop.f32.mrf.mxu0
      %7326 = vmatprep.mubr.bf16.mxu0 0
      %7327 = vmatmul.mubr.bf16.gmra.mxu0 %v7172
      %v7328 = vpop.f32.mrf.mxu0
      %v7329 = vadd.f32 %v7101, %v7328
      %v7330 = vpop.f32.mrf.mxu0
      %v7331 = vpop.f32.mrf.mxu0
      %v7332 = vadd.f32 %v7101, %v7331
      %v7333 = vpop.f32.mrf.mxu0
      %7334 = vdwg.mxu0
      %v7335 = vmax.f32 %v7209, 0.0
      %v7336 = vmax.f32 %v7212, 0.0
      %v7337 = vmax.f32 %v7217, 0.0
      %v7338 = vmax.f32 %v7220, 0.0
      %v7339 = vmax.f32 %v7225, 0.0
      %v7340 = vmax.f32 %v7228, 0.0
      %v7341 = vmax.f32 %v7233, 0.0
      %v7342 = vmax.f32 %v7236, 0.0
      %v7343 = vmax.f32 %v7241, 0.0
      %v7344 = vmax.f32 %v7244, 0.0
      %v7345 = vmax.f32 %v7249, 0.0
      %v7346 = vmax.f32 %v7252, 0.0
      %v7347 = vmax.f32 %v7257, 0.0
      %v7348 = vmax.f32 %v7260, 0.0
      %v7349 = vmax.f32 %v7265, 0.0
      %v7350 = vmax.f32 %v7268, 0.0
      %v7351 = vmax.f32 %v7273, 0.0
      %v7352 = vmax.f32 %v7276, 0.0
      %v7353 = vmax.f32 %v7281, 0.0
      %v7354 = vmax.f32 %v7284, 0.0
      %v7355 = vmax.f32 %v7289, 0.0
      %v7356 = vmax.f32 %v7292, 0.0
      %v7357 = vmax.f32 %v7297, 0.0
      %v7358 = vmax.f32 %v7300, 0.0
      %v7359 = vmax.f32 %v7305, 0.0
      %v7360 = vmax.f32 %v7308, 0.0
      %v7361 = vmax.f32 %v7313, 0.0
      %v7362 = vmax.f32 %v7316, 0.0
      %v7363 = vmax.f32 %v7321, 0.0
      %v7364 = vmax.f32 %v7324, 0.0
      %v7365 = vmax.f32 %v7329, 0.0
      %v7366 = vmax.f32 %v7332, 0.0
      %v7367 = vpack.c.bf16 %v7336, %v7335
      %v7368 = vpack.c.bf16 %v7338, %v7337
      %v7369 = vpack.c.bf16 %v7340, %v7339
      %v7370 = vpack.c.bf16 %v7342, %v7341
      %v7371 = vpack.c.bf16 %v7344, %v7343
      %v7372 = vpack.c.bf16 %v7346, %v7345
      %v7373 = vpack.c.bf16 %v7348, %v7347
      %v7374 = vpack.c.bf16 %v7350, %v7349
      %v7375 = vpack.c.bf16 %v7352, %v7351
      %v7376 = vpack.c.bf16 %v7354, %v7353
      %v7377 = vpack.c.bf16 %v7356, %v7355
      %v7378 = vpack.c.bf16 %v7358, %v7357
      %v7379 = vpack.c.bf16 %v7360, %v7359
      %v7380 = vpack.c.bf16 %v7362, %v7361
      %v7381 = vpack.c.bf16 %v7364, %v7363
      %v7382 = vpack.c.bf16 %v7366, %v7365
      %v7383 = vld [vmem:[%s1 + $0x220] sm:$0xf]
      %v7384 = vld [vmem:[%s1 + $0x228] sm:$0xf]
      %v7385 = vld [vmem:[%s1 + $0x230] sm:$0xf]
      %v7386 = vld [vmem:[%s1 + $0x238] sm:$0xf]
      %v7387 = vld [vmem:[%s1 + $0x240] sm:$0xf]
      %v7388 = vld [vmem:[%s1 + $0x248] sm:$0xf]
      %v7389 = vld [vmem:[%s1 + $0x250] sm:$0xf]
      %v7390 = vld [vmem:[%s1 + $0x258] sm:$0xf]
      %v7391 = vld [vmem:[%s2 + $0x8] sm:$0x1]
      %v7392 = vlaneseq
      %v7393 = vshrl.u32 %v7392, 7
      %v7394 = vsub.s32 0, %v7393
      %v7395 = vrot.slane %v7391, %v7394
      %v7404 = vunpack.c.l.b16 %v7383
      %v7405 = vunpack.c.l.b16 %v7384
      %v7406 = vunpack.c.l.b16 %v7385
      %v7407 = vunpack.c.l.b16 %v7386
      %v7408 = vunpack.c.l.b16 %v7387
      %v7409 = vunpack.c.l.b16 %v7388
      %v7410 = vunpack.c.l.b16 %v7389
      %v7411 = vunpack.c.l.b16 %v7390
      %v7412 = vpack.c.b16 %v7405, %v7404
      %v7413 = vpack.c.b16 %v7407, %v7406
      %v7414 = vpack.c.b16 %v7409, %v7408
      %v7415 = vpack.c.b16 %v7411, %v7410
      %v7421 = vsel %vm724, %v7367, 0
      %v7424 = vsel %vm724, %v7368, 0
      %v7427 = vsel %vm724, %v7369, 0
      %v7430 = vsel %vm724, %v7370, 0
      %v7433 = vsel %vm724, %v7371, 0
      %v7436 = vsel %vm724, %v7372, 0
      %v7439 = vsel %vm724, %v7373, 0
      %v7442 = vsel %vm724, %v7374, 0
      %v7445 = vsel %vm724, %v7375, 0
      %v7448 = vsel %vm724, %v7376, 0
      %v7451 = vsel %vm724, %v7377, 0
      %v7454 = vsel %vm724, %v7378, 0
      %v7457 = vsel %vm724, %v7379, 0
      %v7460 = vsel %vm724, %v7380, 0
      %v7463 = vsel %vm724, %v7381, 0
      %v7466 = vsel %vm724, %v7382, 0
      %7468 = vmatprep.subr.bf16.mxu0 0
      %7469 = vmatpush1.bf16.msra.mxu0 0
      %7470 = vmatprep.subr.bf16.mxu0 0
      %7471 = vmatpush1.bf16.msra.mxu0 0
      %7472 = vmatprep.subr.bf16.mxu0 0
      %7473 = vmatpush1.bf16.msra.mxu0 0
      %7474 = vmatprep.subr.bf16.mxu0 0
      %7475 = vmatpush1.bf16.msra.mxu0 0
      %7476 = vmatprep.subr.bf16.mxu0 0
      %7477 = vmatpush1.bf16.msra.mxu0 %v7415
      %7478 = vmatprep.subr.bf16.mxu0 0
      %7479 = vmatpush1.bf16.msra.mxu0 %v7414
      %7480 = vmatprep.subr.bf16.mxu0 0
      %7481 = vmatpush1.bf16.msra.mxu0 %v7413
      %7482 = vmatprep.subr.bf16.mxu0 0
      %7483 = vmatpush1.bf16.msra.mxu0 %v7412
      %7484 = vmatprep.subr.bf16.mxu0 0
      %7485 = vmatpush2.bf16.msra.mxu0 0
      %7486 = vmatprep.subr.bf16.mxu0 0
      %7487 = vmatpush2.bf16.msra.mxu0 0
      %7488 = vmatprep.subr.bf16.mxu0 0
      %7489 = vmatpush2.bf16.msra.mxu0 0
      %7490 = vmatprep.subr.bf16.mxu0 0
      %7491 = vmatpush2.bf16.msra.mxu0 0
      %7492 = vmatprep.subr.bf16.mxu0 0
      %7493 = vmatpush2.bf16.msra.mxu0 0
      %7494 = vmatprep.subr.bf16.mxu0 0
      %7495 = vmatpush2.bf16.msra.mxu0 0
      %7496 = vmatprep.subr.bf16.mxu0 0
      %7497 = vmatpush2.bf16.msra.mxu0 0
      %7498 = vmatprep.subr.bf16.mxu0 0
      %7499 = vmatpush2.bf16.msra.mxu0 0
      %7500 = vmatprep.mubr.bf16.mxu0 0
      %7501 = vmatmul.mubr.bf16.gmra.mxu0 %v7421
      %v7502 = vpop.f32.mrf.mxu0
      %v7503 = vadd.f32 %v7395, %v7502
      %v7504 = vpop.f32.mrf.mxu0
      %v7505 = vpop.f32.mrf.mxu0
      %v7506 = vadd.f32 %v7395, %v7505
      %v7507 = vpop.f32.mrf.mxu0
      %7508 = vmatprep.mubr.bf16.mxu0 0
      %7509 = vmatmul.mubr.bf16.gmra.mxu0 %v7424
      %v7510 = vpop.f32.mrf.mxu0
      %v7511 = vadd.f32 %v7395, %v7510
      %v7512 = vpop.f32.mrf.mxu0
      %v7513 = vpop.f32.mrf.mxu0
      %v7514 = vadd.f32 %v7395, %v7513
      %v7515 = vpop.f32.mrf.mxu0
      %7516 = vmatprep.mubr.bf16.mxu0 0
      %7517 = vmatmul.mubr.bf16.gmra.mxu0 %v7427
      %v7518 = vpop.f32.mrf.mxu0
      %v7519 = vadd.f32 %v7395, %v7518
      %v7520 = vpop.f32.mrf.mxu0
      %v7521 = vpop.f32.mrf.mxu0
      %v7522 = vadd.f32 %v7395, %v7521
      %v7523 = vpop.f32.mrf.mxu0
      %7524 = vmatprep.mubr.bf16.mxu0 0
      %7525 = vmatmul.mubr.bf16.gmra.mxu0 %v7430
      %v7526 = vpop.f32.mrf.mxu0
      %v7527 = vadd.f32 %v7395, %v7526
      %v7528 = vpop.f32.mrf.mxu0
      %v7529 = vpop.f32.mrf.mxu0
      %v7530 = vadd.f32 %v7395, %v7529
      %v7531 = vpop.f32.mrf.mxu0
      %7532 = vmatprep.mubr.bf16.mxu0 0
      %7533 = vmatmul.mubr.bf16.gmra.mxu0 %v7433
      %v7534 = vpop.f32.mrf.mxu0
      %v7535 = vadd.f32 %v7395, %v7534
      %v7536 = vpop.f32.mrf.mxu0
      %v7537 = vpop.f32.mrf.mxu0
      %v7538 = vadd.f32 %v7395, %v7537
      %v7539 = vpop.f32.mrf.mxu0
      %7540 = vmatprep.mubr.bf16.mxu0 0
      %7541 = vmatmul.mubr.bf16.gmra.mxu0 %v7436
      %v7542 = vpop.f32.mrf.mxu0
      %v7543 = vadd.f32 %v7395, %v7542
      %v7544 = vpop.f32.mrf.mxu0
      %v7545 = vpop.f32.mrf.mxu0
      %v7546 = vadd.f32 %v7395, %v7545
      %v7547 = vpop.f32.mrf.mxu0
      %7548 = vmatprep.mubr.bf16.mxu0 0
      %7549 = vmatmul.mubr.bf16.gmra.mxu0 %v7439
      %v7550 = vpop.f32.mrf.mxu0
      %v7551 = vadd.f32 %v7395, %v7550
      %v7552 = vpop.f32.mrf.mxu0
      %v7553 = vpop.f32.mrf.mxu0
      %v7554 = vadd.f32 %v7395, %v7553
      %v7555 = vpop.f32.mrf.mxu0
      %7556 = vmatprep.mubr.bf16.mxu0 0
      %7557 = vmatmul.mubr.bf16.gmra.mxu0 %v7442
      %v7558 = vpop.f32.mrf.mxu0
      %v7559 = vadd.f32 %v7395, %v7558
      %v7560 = vpop.f32.mrf.mxu0
      %v7561 = vpop.f32.mrf.mxu0
      %v7562 = vadd.f32 %v7395, %v7561
      %v7563 = vpop.f32.mrf.mxu0
      %7564 = vmatprep.mubr.bf16.mxu0 0
      %7565 = vmatmul.mubr.bf16.gmra.mxu0 %v7445
      %v7566 = vpop.f32.mrf.mxu0
      %v7567 = vadd.f32 %v7395, %v7566
      %v7568 = vpop.f32.mrf.mxu0
      %v7569 = vpop.f32.mrf.mxu0
      %v7570 = vadd.f32 %v7395, %v7569
      %v7571 = vpop.f32.mrf.mxu0
      %7572 = vmatprep.mubr.bf16.mxu0 0
      %7573 = vmatmul.mubr.bf16.gmra.mxu0 %v7448
      %v7574 = vpop.f32.mrf.mxu0
      %v7575 = vadd.f32 %v7395, %v7574
      %v7576 = vpop.f32.mrf.mxu0
      %v7577 = vpop.f32.mrf.mxu0
      %v7578 = vadd.f32 %v7395, %v7577
      %v7579 = vpop.f32.mrf.mxu0
      %7580 = vmatprep.mubr.bf16.mxu0 0
      %7581 = vmatmul.mubr.bf16.gmra.mxu0 %v7451
      %v7582 = vpop.f32.mrf.mxu0
      %v7583 = vadd.f32 %v7395, %v7582
      %v7584 = vpop.f32.mrf.mxu0
      %v7585 = vpop.f32.mrf.mxu0
      %v7586 = vadd.f32 %v7395, %v7585
      %v7587 = vpop.f32.mrf.mxu0
      %7588 = vmatprep.mubr.bf16.mxu0 0
      %7589 = vmatmul.mubr.bf16.gmra.mxu0 %v7454
      %v7590 = vpop.f32.mrf.mxu0
      %v7591 = vadd.f32 %v7395, %v7590
      %v7592 = vpop.f32.mrf.mxu0
      %v7593 = vpop.f32.mrf.mxu0
      %v7594 = vadd.f32 %v7395, %v7593
      %v7595 = vpop.f32.mrf.mxu0
      %7596 = vmatprep.mubr.bf16.mxu0 0
      %7597 = vmatmul.mubr.bf16.gmra.mxu0 %v7457
      %v7598 = vpop.f32.mrf.mxu0
      %v7599 = vadd.f32 %v7395, %v7598
      %v7600 = vpop.f32.mrf.mxu0
      %v7601 = vpop.f32.mrf.mxu0
      %v7602 = vadd.f32 %v7395, %v7601
      %v7603 = vpop.f32.mrf.mxu0
      %7604 = vmatprep.mubr.bf16.mxu0 0
      %7605 = vmatmul.mubr.bf16.gmra.mxu0 %v7460
      %v7606 = vpop.f32.mrf.mxu0
      %v7607 = vadd.f32 %v7395, %v7606
      %v7608 = vpop.f32.mrf.mxu0
      %v7609 = vpop.f32.mrf.mxu0
      %v7610 = vadd.f32 %v7395, %v7609
      %v7611 = vpop.f32.mrf.mxu0
      %7612 = vmatprep.mubr.bf16.mxu0 0
      %7613 = vmatmul.mubr.bf16.gmra.mxu0 %v7463
      %v7614 = vpop.f32.mrf.mxu0
      %v7615 = vadd.f32 %v7395, %v7614
      %v7616 = vpop.f32.mrf.mxu0
      %v7617 = vpop.f32.mrf.mxu0
      %v7618 = vadd.f32 %v7395, %v7617
      %v7619 = vpop.f32.mrf.mxu0
      %7620 = vmatprep.mubr.bf16.mxu0 0
      %7621 = vmatmul.mubr.bf16.gmra.mxu0 %v7466
      %v7622 = vpop.f32.mrf.mxu0
      %v7623 = vadd.f32 %v7395, %v7622
      %v7624 = vpop.f32.mrf.mxu0
      %v7625 = vpop.f32.mrf.mxu0
      %v7626 = vadd.f32 %v7395, %v7625
      %v7627 = vpop.f32.mrf.mxu0
      %7628 = vdwg.mxu0
      %v7629 = vpack.c.bf16 %v7506, %v7503
      %v7630 = vpack.c.bf16 %v7514, %v7511
      %v7631 = vpack.c.bf16 %v7522, %v7519
      %v7632 = vpack.c.bf16 %v7530, %v7527
      %v7633 = vpack.c.bf16 %v7538, %v7535
      %v7634 = vpack.c.bf16 %v7546, %v7543
      %v7635 = vpack.c.bf16 %v7554, %v7551
      %v7636 = vpack.c.bf16 %v7562, %v7559
      %v7637 = vpack.c.bf16 %v7570, %v7567
      %v7638 = vpack.c.bf16 %v7578, %v7575
      %v7639 = vpack.c.bf16 %v7586, %v7583
      %v7640 = vpack.c.bf16 %v7594, %v7591
      %v7641 = vpack.c.bf16 %v7602, %v7599
      %v7642 = vpack.c.bf16 %v7610, %v7607
      %v7643 = vpack.c.bf16 %v7618, %v7615
      %v7644 = vpack.c.bf16 %v7626, %v7623
      %v7645 = vld [vmem:[%s1 + $0x260] sm:$0xf]
      %v7646 = vld [vmem:[%s1 + $0x268] sm:$0xf]
      %v7647 = vld [vmem:[%s1 + $0x270] sm:$0xf]
      %v7648 = vld [vmem:[%s1 + $0x278] sm:$0xf]
      %v7649 = vld [vmem:[%s1 + $0x280] sm:$0xf]
      %v7650 = vld [vmem:[%s1 + $0x288] sm:$0xf]
      %v7651 = vld [vmem:[%s1 + $0x290] sm:$0xf]
      %v7652 = vld [vmem:[%s1 + $0x298] sm:$0xf]
      %v7653 = vld [vmem:[%s4823] sm:$0xff]
      %v7654 = vld [vmem:[%s4823 + $0x10] sm:$0xff]
      %v7655 = vld [vmem:[%s4823 + $0x20] sm:$0xff]
      %v7656 = vld [vmem:[%s4823 + $0x30] sm:$0xff]
      %v7657 = vld [vmem:[%s4823 + $0x40] sm:$0xff]
      %v7658 = vld [vmem:[%s4823 + $0x50] sm:$0xff]
      %v7659 = vld [vmem:[%s4823 + $0x60] sm:$0xff]
      %v7660 = vld [vmem:[%s4823 + $0x70] sm:$0xff]
      %v7661 = vld [vmem:[%s4823 + $0x80] sm:$0xff]
      %v7662 = vld [vmem:[%s4823 + $0x90] sm:$0xff]
      %v7663 = vld [vmem:[%s4823 + $0xa0] sm:$0xff]
      %v7664 = vld [vmem:[%s4823 + $0xb0] sm:$0xff]
      %v7665 = vld [vmem:[%s4823 + $0xc0] sm:$0xff]
      %v7666 = vld [vmem:[%s4823 + $0xd0] sm:$0xff]
      %v7667 = vld [vmem:[%s4823 + $0xe0] sm:$0xff]
      %v7668 = vld [vmem:[%s4823 + $0xf0] sm:$0xff]
      %v7669 = vld [vmem:[%s4823 + $0x100] sm:$0xff]
      %v7670 = vld [vmem:[%s4823 + $0x110] sm:$0xff]
      %v7671 = vld [vmem:[%s4823 + $0x120] sm:$0xff]
      %v7672 = vld [vmem:[%s4823 + $0x130] sm:$0xff]
      %v7673 = vld [vmem:[%s4823 + $0x140] sm:$0xff]
      %v7674 = vld [vmem:[%s4823 + $0x150] sm:$0xff]
      %v7675 = vld [vmem:[%s4823 + $0x160] sm:$0xff]
      %v7676 = vld [vmem:[%s4823 + $0x170] sm:$0xff]
      %v7677 = vld [vmem:[%s4823 + $0x180] sm:$0xff]
      %v7678 = vld [vmem:[%s4823 + $0x190] sm:$0xff]
      %v7679 = vld [vmem:[%s4823 + $0x1a0] sm:$0xff]
      %v7680 = vld [vmem:[%s4823 + $0x1b0] sm:$0xff]
      %v7681 = vld [vmem:[%s4823 + $0x1c0] sm:$0xff]
      %v7682 = vld [vmem:[%s4823 + $0x1d0] sm:$0xff]
      %v7683 = vld [vmem:[%s4823 + $0x1e0] sm:$0xff]
      %v7684 = vld [vmem:[%s4823 + $0x1f0] sm:$0xff]
      %v7693 = vunpack.c.l.b16 %v7645
      %v7694 = vunpack.c.l.b16 %v7646
      %v7695 = vunpack.c.l.b16 %v7647
      %v7696 = vunpack.c.l.b16 %v7648
      %v7697 = vunpack.c.l.b16 %v7649
      %v7698 = vunpack.c.l.b16 %v7650
      %v7699 = vunpack.c.l.b16 %v7651
      %v7700 = vunpack.c.l.b16 %v7652
      %v7701 = vpack.c.b16 %v7694, %v7693
      %v7702 = vpack.c.b16 %v7696, %v7695
      %v7703 = vpack.c.b16 %v7698, %v7697
      %v7704 = vpack.c.b16 %v7700, %v7699
      %7741 = vrot.lane.b32.xlu0 %v7653, 64
      %v7742 = vpop.permute.xlu0 %7741
      %7743 = vrot.lane.b32.xlu0 %v7654, 64
      %v7744 = vpop.permute.xlu0 %7743
      %7745 = vrot.lane.b32.xlu0 %v7655, 64
      %v7746 = vpop.permute.xlu0 %7745
      %7747 = vrot.lane.b32.xlu0 %v7656, 64
      %v7748 = vpop.permute.xlu0 %7747
      %7749 = vrot.lane.b32.xlu0 %v7657, 64
      %v7750 = vpop.permute.xlu0 %7749
      %7751 = vrot.lane.b32.xlu0 %v7658, 64
      %v7752 = vpop.permute.xlu0 %7751
      %7753 = vrot.lane.b32.xlu0 %v7659, 64
      %v7754 = vpop.permute.xlu0 %7753
      %7755 = vrot.lane.b32.xlu0 %v7660, 64
      %v7756 = vpop.permute.xlu0 %7755
      %7757 = vrot.lane.b32.xlu0 %v7661, 64
      %v7758 = vpop.permute.xlu0 %7757
      %7759 = vrot.lane.b32.xlu0 %v7662, 64
      %v7760 = vpop.permute.xlu0 %7759
      %7761 = vrot.lane.b32.xlu0 %v7663, 64
      %v7762 = vpop.permute.xlu0 %7761
      %7763 = vrot.lane.b32.xlu0 %v7664, 64
      %v7764 = vpop.permute.xlu0 %7763
      %7765 = vrot.lane.b32.xlu0 %v7665, 64
      %v7766 = vpop.permute.xlu0 %7765
      %7767 = vrot.lane.b32.xlu0 %v7666, 64
      %v7768 = vpop.permute.xlu0 %7767
      %7769 = vrot.lane.b32.xlu0 %v7667, 64
      %v7770 = vpop.permute.xlu0 %7769
      %7771 = vrot.lane.b32.xlu0 %v7668, 64
      %v7772 = vpop.permute.xlu0 %7771
      %7773 = vrot.lane.b32.xlu0 %v7669, 64
      %v7774 = vpop.permute.xlu0 %7773
      %7775 = vrot.lane.b32.xlu0 %v7670, 64
      %v7776 = vpop.permute.xlu0 %7775
      %7777 = vrot.lane.b32.xlu0 %v7671, 64
      %v7778 = vpop.permute.xlu0 %7777
      %7779 = vrot.lane.b32.xlu0 %v7672, 64
      %v7780 = vpop.permute.xlu0 %7779
      %7781 = vrot.lane.b32.xlu0 %v7673, 64
      %v7782 = vpop.permute.xlu0 %7781
      %7783 = vrot.lane.b32.xlu0 %v7674, 64
      %v7784 = vpop.permute.xlu0 %7783
      %7785 = vrot.lane.b32.xlu0 %v7675, 64
      %v7786 = vpop.permute.xlu0 %7785
      %7787 = vrot.lane.b32.xlu0 %v7676, 64
      %v7788 = vpop.permute.xlu0 %7787
      %7789 = vrot.lane.b32.xlu0 %v7677, 64
      %v7790 = vpop.permute.xlu0 %7789
      %7791 = vrot.lane.b32.xlu0 %v7678, 64
      %v7792 = vpop.permute.xlu0 %7791
      %7793 = vrot.lane.b32.xlu0 %v7679, 64
      %v7794 = vpop.permute.xlu0 %7793
      %7795 = vrot.lane.b32.xlu0 %v7680, 64
      %v7796 = vpop.permute.xlu0 %7795
      %7797 = vrot.lane.b32.xlu0 %v7681, 64
      %v7798 = vpop.permute.xlu0 %7797
      %7799 = vrot.lane.b32.xlu0 %v7682, 64
      %v7800 = vpop.permute.xlu0 %7799
      %7801 = vrot.lane.b32.xlu0 %v7683, 64
      %v7802 = vpop.permute.xlu0 %7801
      %7803 = vrot.lane.b32.xlu0 %v7684, 64
      %v7804 = vpop.permute.xlu0 %7803
      %v7838 = vsel %vm724, %v7629, 0
      %v7841 = vsel %vm724, %v7630, 0
      %v7844 = vsel %vm724, %v7631, 0
      %v7847 = vsel %vm724, %v7632, 0
      %v7850 = vsel %vm724, %v7633, 0
      %v7853 = vsel %vm724, %v7634, 0
      %v7856 = vsel %vm724, %v7635, 0
      %v7859 = vsel %vm724, %v7636, 0
      %v7862 = vsel %vm724, %v7637, 0
      %v7865 = vsel %vm724, %v7638, 0
      %v7868 = vsel %vm724, %v7639, 0
      %v7871 = vsel %vm724, %v7640, 0
      %v7874 = vsel %vm724, %v7641, 0
      %v7877 = vsel %vm724, %v7642, 0
      %v7880 = vsel %vm724, %v7643, 0
      %v7883 = vsel %vm724, %v7644, 0
      %7885 = vmatprep.subr.bf16.mxu0 0
      %7886 = vmatpush1.bf16.msra.mxu0 0
      %7887 = vmatprep.subr.bf16.mxu0 0
      %7888 = vmatpush1.bf16.msra.mxu0 0
      %7889 = vmatprep.subr.bf16.mxu0 0
      %7890 = vmatpush1.bf16.msra.mxu0 0
      %7891 = vmatprep.subr.bf16.mxu0 0
      %7892 = vmatpush1.bf16.msra.mxu0 0
      %7893 = vmatprep.subr.bf16.mxu0 0
      %7894 = vmatpush1.bf16.msra.mxu0 %v7704
      %7895 = vmatprep.subr.bf16.mxu0 0
      %7896 = vmatpush1.bf16.msra.mxu0 %v7703
      %7897 = vmatprep.subr.bf16.mxu0 0
      %7898 = vmatpush1.bf16.msra.mxu0 %v7702
      %7899 = vmatprep.subr.bf16.mxu0 0
      %7900 = vmatpush1.bf16.msra.mxu0 %v7701
      %7901 = vmatprep.subr.bf16.mxu0 0
      %7902 = vmatpush2.bf16.msra.mxu0 0
      %7903 = vmatprep.subr.bf16.mxu0 0
      %7904 = vmatpush2.bf16.msra.mxu0 0
      %7905 = vmatprep.subr.bf16.mxu0 0
      %7906 = vmatpush2.bf16.msra.mxu0 0
      %7907 = vmatprep.subr.bf16.mxu0 0
      %7908 = vmatpush2.bf16.msra.mxu0 0
      %7909 = vmatprep.subr.bf16.mxu0 0
      %7910 = vmatpush2.bf16.msra.mxu0 0
      %7911 = vmatprep.subr.bf16.mxu0 0
      %7912 = vmatpush2.bf16.msra.mxu0 0
      %7913 = vmatprep.subr.bf16.mxu0 0
      %7914 = vmatpush2.bf16.msra.mxu0 0
      %7915 = vmatprep.subr.bf16.mxu0 0
      %7916 = vmatpush2.bf16.msra.mxu0 0
      %7917 = vmatprep.mubr.bf16.mxu0 0
      %7918 = vmatmul.mubr.bf16.gmra.mxu0 %v7838
      %v7919 = vpop.f32.mrf.mxu0
      %v7920 = vadd.f32 %v7742, %v7919
      %v7921 = vpop.f32.mrf.mxu0
      %v7922 = vpop.f32.mrf.mxu0
      %v7923 = vadd.f32 %v7744, %v7922
      %v7924 = vpop.f32.mrf.mxu0
      %7925 = vmatprep.mubr.bf16.mxu0 0
      %7926 = vmatmul.mubr.bf16.gmra.mxu0 %v7841
      %v7927 = vpop.f32.mrf.mxu0
      %v7928 = vadd.f32 %v7746, %v7927
      %v7929 = vpop.f32.mrf.mxu0
      %v7930 = vpop.f32.mrf.mxu0
      %v7931 = vadd.f32 %v7748, %v7930
      %v7932 = vpop.f32.mrf.mxu0
      %7933 = vmatprep.mubr.bf16.mxu0 0
      %7934 = vmatmul.mubr.bf16.gmra.mxu0 %v7844
      %v7935 = vpop.f32.mrf.mxu0
      %v7936 = vadd.f32 %v7750, %v7935
      %v7937 = vpop.f32.mrf.mxu0
      %v7938 = vpop.f32.mrf.mxu0
      %v7939 = vadd.f32 %v7752, %v7938
      %v7940 = vpop.f32.mrf.mxu0
      %7941 = vmatprep.mubr.bf16.mxu0 0
      %7942 = vmatmul.mubr.bf16.gmra.mxu0 %v7847
      %v7943 = vpop.f32.mrf.mxu0
      %v7944 = vadd.f32 %v7754, %v7943
      %v7945 = vpop.f32.mrf.mxu0
      %v7946 = vpop.f32.mrf.mxu0
      %v7947 = vadd.f32 %v7756, %v7946
      %v7948 = vpop.f32.mrf.mxu0
      %7949 = vmatprep.mubr.bf16.mxu0 0
      %7950 = vmatmul.mubr.bf16.gmra.mxu0 %v7850
      %v7951 = vpop.f32.mrf.mxu0
      %v7952 = vadd.f32 %v7758, %v7951
      %v7953 = vpop.f32.mrf.mxu0
      %v7954 = vpop.f32.mrf.mxu0
      %v7955 = vadd.f32 %v7760, %v7954
      %v7956 = vpop.f32.mrf.mxu0
      %7957 = vmatprep.mubr.bf16.mxu0 0
      %7958 = vmatmul.mubr.bf16.gmra.mxu0 %v7853
      %v7959 = vpop.f32.mrf.mxu0
      %v7960 = vadd.f32 %v7762, %v7959
      %v7961 = vpop.f32.mrf.mxu0
      %v7962 = vpop.f32.mrf.mxu0
      %v7963 = vadd.f32 %v7764, %v7962
      %v7964 = vpop.f32.mrf.mxu0
      %7965 = vmatprep.mubr.bf16.mxu0 0
      %7966 = vmatmul.mubr.bf16.gmra.mxu0 %v7856
      %v7967 = vpop.f32.mrf.mxu0
      %v7968 = vadd.f32 %v7766, %v7967
      %v7969 = vpop.f32.mrf.mxu0
      %v7970 = vpop.f32.mrf.mxu0
      %v7971 = vadd.f32 %v7768, %v7970
      %v7972 = vpop.f32.mrf.mxu0
      %7973 = vmatprep.mubr.bf16.mxu0 0
      %7974 = vmatmul.mubr.bf16.gmra.mxu0 %v7859
      %v7975 = vpop.f32.mrf.mxu0
      %v7976 = vadd.f32 %v7770, %v7975
      %v7977 = vpop.f32.mrf.mxu0
      %v7978 = vpop.f32.mrf.mxu0
      %v7979 = vadd.f32 %v7772, %v7978
      %v7980 = vpop.f32.mrf.mxu0
      %7981 = vmatprep.mubr.bf16.mxu0 0
      %7982 = vmatmul.mubr.bf16.gmra.mxu0 %v7862
      %v7983 = vpop.f32.mrf.mxu0
      %v7984 = vadd.f32 %v7774, %v7983
      %v7985 = vpop.f32.mrf.mxu0
      %v7986 = vpop.f32.mrf.mxu0
      %v7987 = vadd.f32 %v7776, %v7986
      %v7988 = vpop.f32.mrf.mxu0
      %7989 = vmatprep.mubr.bf16.mxu0 0
      %7990 = vmatmul.mubr.bf16.gmra.mxu0 %v7865
      %v7991 = vpop.f32.mrf.mxu0
      %v7992 = vadd.f32 %v7778, %v7991
      %v7993 = vpop.f32.mrf.mxu0
      %v7994 = vpop.f32.mrf.mxu0
      %v7995 = vadd.f32 %v7780, %v7994
      %v7996 = vpop.f32.mrf.mxu0
      %7997 = vmatprep.mubr.bf16.mxu0 0
      %7998 = vmatmul.mubr.bf16.gmra.mxu0 %v7868
      %v7999 = vpop.f32.mrf.mxu0
      %v8000 = vadd.f32 %v7782, %v7999
      %v8001 = vpop.f32.mrf.mxu0
      %v8002 = vpop.f32.mrf.mxu0
      %v8003 = vadd.f32 %v7784, %v8002
      %v8004 = vpop.f32.mrf.mxu0
      %8005 = vmatprep.mubr.bf16.mxu0 0
      %8006 = vmatmul.mubr.bf16.gmra.mxu0 %v7871
      %v8007 = vpop.f32.mrf.mxu0
      %v8008 = vadd.f32 %v7786, %v8007
      %v8009 = vpop.f32.mrf.mxu0
      %v8010 = vpop.f32.mrf.mxu0
      %v8011 = vadd.f32 %v7788, %v8010
      %v8012 = vpop.f32.mrf.mxu0
      %8013 = vmatprep.mubr.bf16.mxu0 0
      %8014 = vmatmul.mubr.bf16.gmra.mxu0 %v7874
      %v8015 = vpop.f32.mrf.mxu0
      %v8016 = vadd.f32 %v7790, %v8015
      %v8017 = vpop.f32.mrf.mxu0
      %v8018 = vpop.f32.mrf.mxu0
      %v8019 = vadd.f32 %v7792, %v8018
      %v8020 = vpop.f32.mrf.mxu0
      %8021 = vmatprep.mubr.bf16.mxu0 0
      %8022 = vmatmul.mubr.bf16.gmra.mxu0 %v7877
      %v8023 = vpop.f32.mrf.mxu0
      %v8024 = vadd.f32 %v7794, %v8023
      %v8025 = vpop.f32.mrf.mxu0
      %v8026 = vpop.f32.mrf.mxu0
      %v8027 = vadd.f32 %v7796, %v8026
      %v8028 = vpop.f32.mrf.mxu0
      %8029 = vmatprep.mubr.bf16.mxu0 0
      %8030 = vmatmul.mubr.bf16.gmra.mxu0 %v7880
      %v8031 = vpop.f32.mrf.mxu0
      %v8032 = vadd.f32 %v7798, %v8031
      %v8033 = vpop.f32.mrf.mxu0
      %v8034 = vpop.f32.mrf.mxu0
      %v8035 = vadd.f32 %v7800, %v8034
      %v8036 = vpop.f32.mrf.mxu0
      %8037 = vmatprep.mubr.bf16.mxu0 0
      %8038 = vmatmul.mubr.bf16.gmra.mxu0 %v7883
      %v8039 = vpop.f32.mrf.mxu0
      %v8040 = vadd.f32 %v7802, %v8039
      %v8041 = vpop.f32.mrf.mxu0
      %v8042 = vpop.f32.mrf.mxu0
      %v8043 = vadd.f32 %v7804, %v8042
      %v8044 = vpop.f32.mrf.mxu0
      %8045 = vdwg.mxu0
      %v8046 = vld [vmem:[%s2 + $0x9] sm:$0x1]
      %v8047 = vlaneseq
      %v8048 = vshrl.u32 %v8047, 7
      %v8049 = vsub.s32 0, %v8048
      %v8050 = vrot.slane %v8046, %v8049
      %v8051 = vadd.f32 %v7920, %v8050
      %v8052 = vadd.f32 %v7923, %v8050
      %v8053 = vadd.f32 %v7928, %v8050
      %v8054 = vadd.f32 %v7931, %v8050
      %v8055 = vadd.f32 %v7936, %v8050
      %v8056 = vadd.f32 %v7939, %v8050
      %v8057 = vadd.f32 %v7944, %v8050
      %v8058 = vadd.f32 %v7947, %v8050
      %v8059 = vadd.f32 %v7952, %v8050
      %v8060 = vadd.f32 %v7955, %v8050
      %v8061 = vadd.f32 %v7960, %v8050
      %v8062 = vadd.f32 %v7963, %v8050
      %v8063 = vadd.f32 %v7968, %v8050
      %v8064 = vadd.f32 %v7971, %v8050
      %v8065 = vadd.f32 %v7976, %v8050
      %v8066 = vadd.f32 %v7979, %v8050
      %v8067 = vadd.f32 %v7984, %v8050
      %v8068 = vadd.f32 %v7987, %v8050
      %v8069 = vadd.f32 %v7992, %v8050
      %v8070 = vadd.f32 %v7995, %v8050
      %v8071 = vadd.f32 %v8000, %v8050
      %v8072 = vadd.f32 %v8003, %v8050
      %v8073 = vadd.f32 %v8008, %v8050
      %v8074 = vadd.f32 %v8011, %v8050
      %v8075 = vadd.f32 %v8016, %v8050
      %v8076 = vadd.f32 %v8019, %v8050
      %v8077 = vadd.f32 %v8024, %v8050
      %v8078 = vadd.f32 %v8027, %v8050
      %v8079 = vadd.f32 %v8032, %v8050
      %v8080 = vadd.f32 %v8035, %v8050
      %v8081 = vadd.f32 %v8040, %v8050
      %v8082 = vadd.f32 %v8043, %v8050
      %v8083 = vmax.f32 %v8051, 0.0
      %v8084 = vmax.f32 %v8052, 0.0
      %v8085 = vmax.f32 %v8053, 0.0
      %v8086 = vmax.f32 %v8054, 0.0
      %v8087 = vmax.f32 %v8055, 0.0
      %v8088 = vmax.f32 %v8056, 0.0
      %v8089 = vmax.f32 %v8057, 0.0
      %v8090 = vmax.f32 %v8058, 0.0
      %v8091 = vmax.f32 %v8059, 0.0
      %v8092 = vmax.f32 %v8060, 0.0
      %v8093 = vmax.f32 %v8061, 0.0
      %v8094 = vmax.f32 %v8062, 0.0
      %v8095 = vmax.f32 %v8063, 0.0
      %v8096 = vmax.f32 %v8064, 0.0
      %v8097 = vmax.f32 %v8065, 0.0
      %v8098 = vmax.f32 %v8066, 0.0
      %v8099 = vmax.f32 %v8067, 0.0
      %v8100 = vmax.f32 %v8068, 0.0
      %v8101 = vmax.f32 %v8069, 0.0
      %v8102 = vmax.f32 %v8070, 0.0
      %v8103 = vmax.f32 %v8071, 0.0
      %v8104 = vmax.f32 %v8072, 0.0
      %v8105 = vmax.f32 %v8073, 0.0
      %v8106 = vmax.f32 %v8074, 0.0
      %v8107 = vmax.f32 %v8075, 0.0
      %v8108 = vmax.f32 %v8076, 0.0
      %v8109 = vmax.f32 %v8077, 0.0
      %v8110 = vmax.f32 %v8078, 0.0
      %v8111 = vmax.f32 %v8079, 0.0
      %v8112 = vmax.f32 %v8080, 0.0
      %v8113 = vmax.f32 %v8081, 0.0
      %v8114 = vmax.f32 %v8082, 0.0
      %v8115 = vpack.c.bf16 %v8084, %v8083
      %v8116 = vpack.c.bf16 %v8086, %v8085
      %v8117 = vpack.c.bf16 %v8088, %v8087
      %v8118 = vpack.c.bf16 %v8090, %v8089
      %v8119 = vpack.c.bf16 %v8092, %v8091
      %v8120 = vpack.c.bf16 %v8094, %v8093
      %v8121 = vpack.c.bf16 %v8096, %v8095
      %v8122 = vpack.c.bf16 %v8098, %v8097
      %v8123 = vpack.c.bf16 %v8100, %v8099
      %v8124 = vpack.c.bf16 %v8102, %v8101
      %v8125 = vpack.c.bf16 %v8104, %v8103
      %v8126 = vpack.c.bf16 %v8106, %v8105
      %v8127 = vpack.c.bf16 %v8108, %v8107
      %v8128 = vpack.c.bf16 %v8110, %v8109
      %v8129 = vpack.c.bf16 %v8112, %v8111
      %v8130 = vpack.c.bf16 %v8114, %v8113
      %v8131 = vld [vmem:[%s1 + $0x2a0] sm:$0xf]
      %v8132 = vld [vmem:[%s1 + $0x2a8] sm:$0xf]
      %v8133 = vld [vmem:[%s1 + $0x2b0] sm:$0xf]
      %v8134 = vld [vmem:[%s1 + $0x2b8] sm:$0xf]
      %v8135 = vld [vmem:[%s2 + $0xa] sm:$0x1]
      %v8136 = vlaneseq
      %v8137 = vshrl.u32 %v8136, 7
      %v8138 = vsub.s32 0, %v8137
      %v8139 = vrot.slane %v8135, %v8138
      %v8144 = vunpack.c.l.b16 %v8131
      %v8145 = vunpack.c.l.b16 %v8132
      %v8146 = vunpack.c.l.b16 %v8133
      %v8147 = vunpack.c.l.b16 %v8134
      %v8148 = vpack.c.b16 %v8145, %v8144
      %v8149 = vpack.c.b16 %v8147, %v8146
      %v8153 = vsel %vm538, %v8115, 0
      %v8156 = vsel %vm538, %v8116, 0
      %v8159 = vsel %vm538, %v8117, 0
      %v8162 = vsel %vm538, %v8118, 0
      %v8165 = vsel %vm538, %v8119, 0
      %v8168 = vsel %vm538, %v8120, 0
      %v8171 = vsel %vm538, %v8121, 0
      %v8174 = vsel %vm538, %v8122, 0
      %v8177 = vsel %vm538, %v8123, 0
      %v8180 = vsel %vm538, %v8124, 0
      %v8183 = vsel %vm538, %v8125, 0
      %v8186 = vsel %vm538, %v8126, 0
      %v8189 = vsel %vm538, %v8127, 0
      %v8192 = vsel %vm538, %v8128, 0
      %v8195 = vsel %vm538, %v8129, 0
      %v8198 = vsel %vm538, %v8130, 0
      %8200 = vmatprep.subr.bf16.mxu0 0
      %8201 = vmatpush1.bf16.msra.mxu0 0
      %8202 = vmatprep.subr.bf16.mxu0 0
      %8203 = vmatpush1.bf16.msra.mxu0 0
      %8204 = vmatprep.subr.bf16.mxu0 0
      %8205 = vmatpush1.bf16.msra.mxu0 0
      %8206 = vmatprep.subr.bf16.mxu0 0
      %8207 = vmatpush1.bf16.msra.mxu0 0
      %8208 = vmatprep.subr.bf16.mxu0 0
      %8209 = vmatpush1.bf16.msra.mxu0 0
      %8210 = vmatprep.subr.bf16.mxu0 0
      %8211 = vmatpush1.bf16.msra.mxu0 0
      %8212 = vmatprep.subr.bf16.mxu0 0
      %8213 = vmatpush1.bf16.msra.mxu0 %v8149
      %8214 = vmatprep.subr.bf16.mxu0 0
      %8215 = vmatpush1.bf16.msra.mxu0 %v8148
      %8216 = vmatprep.subr.bf16.mxu0 0
      %8217 = vmatpush2.bf16.msra.mxu0 0
      %8218 = vmatprep.subr.bf16.mxu0 0
      %8219 = vmatpush2.bf16.msra.mxu0 0
      %8220 = vmatprep.subr.bf16.mxu0 0
      %8221 = vmatpush2.bf16.msra.mxu0 0
      %8222 = vmatprep.subr.bf16.mxu0 0
      %8223 = vmatpush2.bf16.msra.mxu0 0
      %8224 = vmatprep.subr.bf16.mxu0 0
      %8225 = vmatpush2.bf16.msra.mxu0 0
      %8226 = vmatprep.subr.bf16.mxu0 0
      %8227 = vmatpush2.bf16.msra.mxu0 0
      %8228 = vmatprep.subr.bf16.mxu0 0
      %8229 = vmatpush2.bf16.msra.mxu0 0
      %8230 = vmatprep.subr.bf16.mxu0 0
      %8231 = vmatpush2.bf16.msra.mxu0 0
      %8232 = vmatprep.mubr.bf16.mxu0 0
      %8233 = vmatmul.mubr.bf16.gmra.mxu0 %v8153
      %v8234 = vpop.f32.mrf.mxu0
      %v8235 = vadd.f32 %v8139, %v8234
      %v8236 = vpop.f32.mrf.mxu0
      %v8237 = vpop.f32.mrf.mxu0
      %v8238 = vadd.f32 %v8139, %v8237
      %v8239 = vpop.f32.mrf.mxu0
      %8240 = vmatprep.mubr.bf16.mxu0 0
      %8241 = vmatmul.mubr.bf16.gmra.mxu0 %v8156
      %v8242 = vpop.f32.mrf.mxu0
      %v8243 = vadd.f32 %v8139, %v8242
      %v8244 = vpop.f32.mrf.mxu0
      %v8245 = vpop.f32.mrf.mxu0
      %v8246 = vadd.f32 %v8139, %v8245
      %v8247 = vpop.f32.mrf.mxu0
      %8248 = vmatprep.mubr.bf16.mxu0 0
      %8249 = vmatmul.mubr.bf16.gmra.mxu0 %v8159
      %v8250 = vpop.f32.mrf.mxu0
      %v8251 = vadd.f32 %v8139, %v8250
      %v8252 = vpop.f32.mrf.mxu0
      %v8253 = vpop.f32.mrf.mxu0
      %v8254 = vadd.f32 %v8139, %v8253
      %v8255 = vpop.f32.mrf.mxu0
      %8256 = vmatprep.mubr.bf16.mxu0 0
      %8257 = vmatmul.mubr.bf16.gmra.mxu0 %v8162
      %v8258 = vpop.f32.mrf.mxu0
      %v8259 = vadd.f32 %v8139, %v8258
      %v8260 = vpop.f32.mrf.mxu0
      %v8261 = vpop.f32.mrf.mxu0
      %v8262 = vadd.f32 %v8139, %v8261
      %v8263 = vpop.f32.mrf.mxu0
      %8264 = vmatprep.mubr.bf16.mxu0 0
      %8265 = vmatmul.mubr.bf16.gmra.mxu0 %v8165
      %v8266 = vpop.f32.mrf.mxu0
      %v8267 = vadd.f32 %v8139, %v8266
      %v8268 = vpop.f32.mrf.mxu0
      %v8269 = vpop.f32.mrf.mxu0
      %v8270 = vadd.f32 %v8139, %v8269
      %v8271 = vpop.f32.mrf.mxu0
      %8272 = vmatprep.mubr.bf16.mxu0 0
      %8273 = vmatmul.mubr.bf16.gmra.mxu0 %v8168
      %v8274 = vpop.f32.mrf.mxu0
      %v8275 = vadd.f32 %v8139, %v8274
      %v8276 = vpop.f32.mrf.mxu0
      %v8277 = vpop.f32.mrf.mxu0
      %v8278 = vadd.f32 %v8139, %v8277
      %v8279 = vpop.f32.mrf.mxu0
      %8280 = vmatprep.mubr.bf16.mxu0 0
      %8281 = vmatmul.mubr.bf16.gmra.mxu0 %v8171
      %v8282 = vpop.f32.mrf.mxu0
      %v8283 = vadd.f32 %v8139, %v8282
      %v8284 = vpop.f32.mrf.mxu0
      %v8285 = vpop.f32.mrf.mxu0
      %v8286 = vadd.f32 %v8139, %v8285
      %v8287 = vpop.f32.mrf.mxu0
      %8288 = vmatprep.mubr.bf16.mxu0 0
      %8289 = vmatmul.mubr.bf16.gmra.mxu0 %v8174
      %v8290 = vpop.f32.mrf.mxu0
      %v8291 = vadd.f32 %v8139, %v8290
      %v8292 = vpop.f32.mrf.mxu0
      %v8293 = vpop.f32.mrf.mxu0
      %v8294 = vadd.f32 %v8139, %v8293
      %v8295 = vpop.f32.mrf.mxu0
      %8296 = vmatprep.mubr.bf16.mxu0 0
      %8297 = vmatmul.mubr.bf16.gmra.mxu0 %v8177
      %v8298 = vpop.f32.mrf.mxu0
      %v8299 = vadd.f32 %v8139, %v8298
      %v8300 = vpop.f32.mrf.mxu0
      %v8301 = vpop.f32.mrf.mxu0
      %v8302 = vadd.f32 %v8139, %v8301
      %v8303 = vpop.f32.mrf.mxu0
      %8304 = vmatprep.mubr.bf16.mxu0 0
      %8305 = vmatmul.mubr.bf16.gmra.mxu0 %v8180
      %v8306 = vpop.f32.mrf.mxu0
      %v8307 = vadd.f32 %v8139, %v8306
      %v8308 = vpop.f32.mrf.mxu0
      %v8309 = vpop.f32.mrf.mxu0
      %v8310 = vadd.f32 %v8139, %v8309
      %v8311 = vpop.f32.mrf.mxu0
      %8312 = vmatprep.mubr.bf16.mxu0 0
      %8313 = vmatmul.mubr.bf16.gmra.mxu0 %v8183
      %v8314 = vpop.f32.mrf.mxu0
      %v8315 = vadd.f32 %v8139, %v8314
      %v8316 = vpop.f32.mrf.mxu0
      %v8317 = vpop.f32.mrf.mxu0
      %v8318 = vadd.f32 %v8139, %v8317
      %v8319 = vpop.f32.mrf.mxu0
      %8320 = vmatprep.mubr.bf16.mxu0 0
      %8321 = vmatmul.mubr.bf16.gmra.mxu0 %v8186
      %v8322 = vpop.f32.mrf.mxu0
      %v8323 = vadd.f32 %v8139, %v8322
      %v8324 = vpop.f32.mrf.mxu0
      %v8325 = vpop.f32.mrf.mxu0
      %v8326 = vadd.f32 %v8139, %v8325
      %v8327 = vpop.f32.mrf.mxu0
      %8328 = vmatprep.mubr.bf16.mxu0 0
      %8329 = vmatmul.mubr.bf16.gmra.mxu0 %v8189
      %v8330 = vpop.f32.mrf.mxu0
      %v8331 = vadd.f32 %v8139, %v8330
      %v8332 = vpop.f32.mrf.mxu0
      %v8333 = vpop.f32.mrf.mxu0
      %v8334 = vadd.f32 %v8139, %v8333
      %v8335 = vpop.f32.mrf.mxu0
      %8336 = vmatprep.mubr.bf16.mxu0 0
      %8337 = vmatmul.mubr.bf16.gmra.mxu0 %v8192
      %v8338 = vpop.f32.mrf.mxu0
      %v8339 = vadd.f32 %v8139, %v8338
      %v8340 = vpop.f32.mrf.mxu0
      %v8341 = vpop.f32.mrf.mxu0
      %v8342 = vadd.f32 %v8139, %v8341
      %v8343 = vpop.f32.mrf.mxu0
      %8344 = vmatprep.mubr.bf16.mxu0 0
      %8345 = vmatmul.mubr.bf16.gmra.mxu0 %v8195
      %v8346 = vpop.f32.mrf.mxu0
      %v8347 = vadd.f32 %v8139, %v8346
      %v8348 = vpop.f32.mrf.mxu0
      %v8349 = vpop.f32.mrf.mxu0
      %v8350 = vadd.f32 %v8139, %v8349
      %v8351 = vpop.f32.mrf.mxu0
      %8352 = vmatprep.mubr.bf16.mxu0 0
      %8353 = vmatmul.mubr.bf16.gmra.mxu0 %v8198
      %v8354 = vpop.f32.mrf.mxu0
      %v8355 = vadd.f32 %v8139, %v8354
      %v8356 = vpop.f32.mrf.mxu0
      %v8357 = vpop.f32.mrf.mxu0
      %v8358 = vadd.f32 %v8139, %v8357
      %v8359 = vpop.f32.mrf.mxu0
      %8360 = vdwg.mxu0
      %v8361 = vxor.u32 %v8235, 2147483648
      %v8362 = vxor.u32 %v8238, 2147483648
      %v8363 = vxor.u32 %v8243, 2147483648
      %v8364 = vxor.u32 %v8246, 2147483648
      %v8365 = vxor.u32 %v8251, 2147483648
      %v8366 = vxor.u32 %v8254, 2147483648
      %v8367 = vxor.u32 %v8259, 2147483648
      %v8368 = vxor.u32 %v8262, 2147483648
      %v8369 = vxor.u32 %v8267, 2147483648
      %v8370 = vxor.u32 %v8270, 2147483648
      %v8371 = vxor.u32 %v8275, 2147483648
      %v8372 = vxor.u32 %v8278, 2147483648
      %v8373 = vxor.u32 %v8283, 2147483648
      %v8374 = vxor.u32 %v8286, 2147483648
      %v8375 = vxor.u32 %v8291, 2147483648
      %v8376 = vxor.u32 %v8294, 2147483648
      %v8377 = vxor.u32 %v8299, 2147483648
      %v8378 = vxor.u32 %v8302, 2147483648
      %v8379 = vxor.u32 %v8307, 2147483648
      %v8380 = vxor.u32 %v8310, 2147483648
      %v8381 = vxor.u32 %v8315, 2147483648
      %v8382 = vxor.u32 %v8318, 2147483648
      %v8383 = vxor.u32 %v8323, 2147483648
      %v8384 = vxor.u32 %v8326, 2147483648
      %v8385 = vxor.u32 %v8331, 2147483648
      %v8386 = vxor.u32 %v8334, 2147483648
      %v8387 = vxor.u32 %v8339, 2147483648
      %v8388 = vxor.u32 %v8342, 2147483648
      %v8389 = vxor.u32 %v8347, 2147483648
      %v8390 = vxor.u32 %v8350, 2147483648
      %v8391 = vxor.u32 %v8355, 2147483648
      %v8392 = vxor.u32 %v8358, 2147483648
      %v8393 = vmul.f32 %v8361, 1.442695
      %v8394 = vpow.pop %v8393
      %v8395 = vmul.f32 %v8362, 1.442695
      %v8396 = vpow.pop %v8395
      %v8397 = vmul.f32 %v8363, 1.442695
      %v8398 = vpow.pop %v8397
      %v8399 = vmul.f32 %v8364, 1.442695
      %v8400 = vpow.pop %v8399
      %v8401 = vmul.f32 %v8365, 1.442695
      %v8402 = vpow.pop %v8401
      %v8403 = vmul.f32 %v8366, 1.442695
      %v8404 = vpow.pop %v8403
      %v8405 = vmul.f32 %v8367, 1.442695
      %v8406 = vpow.pop %v8405
      %v8407 = vmul.f32 %v8368, 1.442695
      %v8408 = vpow.pop %v8407
      %v8409 = vmul.f32 %v8369, 1.442695
      %v8410 = vpow.pop %v8409
      %v8411 = vmul.f32 %v8370, 1.442695
      %v8412 = vpow.pop %v8411
      %v8413 = vmul.f32 %v8371, 1.442695
      %v8414 = vpow.pop %v8413
      %v8415 = vmul.f32 %v8372, 1.442695
      %v8416 = vpow.pop %v8415
      %v8417 = vmul.f32 %v8373, 1.442695
      %v8418 = vpow.pop %v8417
      %v8419 = vmul.f32 %v8374, 1.442695
      %v8420 = vpow.pop %v8419
      %v8421 = vmul.f32 %v8375, 1.442695
      %v8422 = vpow.pop %v8421
      %v8423 = vmul.f32 %v8376, 1.442695
      %v8424 = vpow.pop %v8423
      %v8425 = vmul.f32 %v8377, 1.442695
      %v8426 = vpow.pop %v8425
      %v8427 = vmul.f32 %v8378, 1.442695
      %v8428 = vpow.pop %v8427
      %v8429 = vmul.f32 %v8379, 1.442695
      %v8430 = vpow.pop %v8429
      %v8431 = vmul.f32 %v8380, 1.442695
      %v8432 = vpow.pop %v8431
      %v8433 = vmul.f32 %v8381, 1.442695
      %v8434 = vpow.pop %v8433
      %v8435 = vmul.f32 %v8382, 1.442695
      %v8436 = vpow.pop %v8435
      %v8437 = vmul.f32 %v8383, 1.442695
      %v8438 = vpow.pop %v8437
      %v8439 = vmul.f32 %v8384, 1.442695
      %v8440 = vpow.pop %v8439
      %v8441 = vmul.f32 %v8385, 1.442695
      %v8442 = vpow.pop %v8441
      %v8443 = vmul.f32 %v8386, 1.442695
      %v8444 = vpow.pop %v8443
      %v8445 = vmul.f32 %v8387, 1.442695
      %v8446 = vpow.pop %v8445
      %v8447 = vmul.f32 %v8388, 1.442695
      %v8448 = vpow.pop %v8447
      %v8449 = vmul.f32 %v8389, 1.442695
      %v8450 = vpow.pop %v8449
      %v8451 = vmul.f32 %v8390, 1.442695
      %v8452 = vpow.pop %v8451
      %v8453 = vmul.f32 %v8391, 1.442695
      %v8454 = vpow.pop %v8453
      %v8455 = vmul.f32 %v8392, 1.442695
      %v8456 = vpow.pop %v8455
      %v8457 = vadd.f32 %v8394, 1.0
      %v8458 = vadd.f32 %v8396, 1.0
      %v8459 = vadd.f32 %v8398, 1.0
      %v8460 = vadd.f32 %v8400, 1.0
      %v8461 = vadd.f32 %v8402, 1.0
      %v8462 = vadd.f32 %v8404, 1.0
      %v8463 = vadd.f32 %v8406, 1.0
      %v8464 = vadd.f32 %v8408, 1.0
      %v8465 = vadd.f32 %v8410, 1.0
      %v8466 = vadd.f32 %v8412, 1.0
      %v8467 = vadd.f32 %v8414, 1.0
      %v8468 = vadd.f32 %v8416, 1.0
      %v8469 = vadd.f32 %v8418, 1.0
      %v8470 = vadd.f32 %v8420, 1.0
      %v8471 = vadd.f32 %v8422, 1.0
      %v8472 = vadd.f32 %v8424, 1.0
      %v8473 = vadd.f32 %v8426, 1.0
      %v8474 = vadd.f32 %v8428, 1.0
      %v8475 = vadd.f32 %v8430, 1.0
      %v8476 = vadd.f32 %v8432, 1.0
      %v8477 = vadd.f32 %v8434, 1.0
      %v8478 = vadd.f32 %v8436, 1.0
      %v8479 = vadd.f32 %v8438, 1.0
      %v8480 = vadd.f32 %v8440, 1.0
      %v8481 = vadd.f32 %v8442, 1.0
      %v8482 = vadd.f32 %v8444, 1.0
      %v8483 = vadd.f32 %v8446, 1.0
      %v8484 = vadd.f32 %v8448, 1.0
      %v8485 = vadd.f32 %v8450, 1.0
      %v8486 = vadd.f32 %v8452, 1.0
      %v8487 = vadd.f32 %v8454, 1.0
      %v8488 = vadd.f32 %v8456, 1.0
      %v8489 = vrcp.pop %v8457
      %v8490 = vmul.f32 1.0, %v8489
      %v8491 = vrcp.pop %v8458
      %v8492 = vmul.f32 1.0, %v8491
      %v8493 = vrcp.pop %v8459
      %v8494 = vmul.f32 1.0, %v8493
      %v8495 = vrcp.pop %v8460
      %v8496 = vmul.f32 1.0, %v8495
      %v8497 = vrcp.pop %v8461
      %v8498 = vmul.f32 1.0, %v8497
      %v8499 = vrcp.pop %v8462
      %v8500 = vmul.f32 1.0, %v8499
      %v8501 = vrcp.pop %v8463
      %v8502 = vmul.f32 1.0, %v8501
      %v8503 = vrcp.pop %v8464
      %v8504 = vmul.f32 1.0, %v8503
      %v8505 = vrcp.pop %v8465
      %v8506 = vmul.f32 1.0, %v8505
      %v8507 = vrcp.pop %v8466
      %v8508 = vmul.f32 1.0, %v8507
      %v8509 = vrcp.pop %v8467
      %v8510 = vmul.f32 1.0, %v8509
      %v8511 = vrcp.pop %v8468
      %v8512 = vmul.f32 1.0, %v8511
      %v8513 = vrcp.pop %v8469
      %v8514 = vmul.f32 1.0, %v8513
      %v8515 = vrcp.pop %v8470
      %v8516 = vmul.f32 1.0, %v8515
      %v8517 = vrcp.pop %v8471
      %v8518 = vmul.f32 1.0, %v8517
      %v8519 = vrcp.pop %v8472
      %v8520 = vmul.f32 1.0, %v8519
      %v8521 = vrcp.pop %v8473
      %v8522 = vmul.f32 1.0, %v8521
      %v8523 = vrcp.pop %v8474
      %v8524 = vmul.f32 1.0, %v8523
      %v8525 = vrcp.pop %v8475
      %v8526 = vmul.f32 1.0, %v8525
      %v8527 = vrcp.pop %v8476
      %v8528 = vmul.f32 1.0, %v8527
      %v8529 = vrcp.pop %v8477
      %v8530 = vmul.f32 1.0, %v8529
      %v8531 = vrcp.pop %v8478
      %v8532 = vmul.f32 1.0, %v8531
      %v8533 = vrcp.pop %v8479
      %v8534 = vmul.f32 1.0, %v8533
      %v8535 = vrcp.pop %v8480
      %v8536 = vmul.f32 1.0, %v8535
      %v8537 = vrcp.pop %v8481
      %v8538 = vmul.f32 1.0, %v8537
      %v8539 = vrcp.pop %v8482
      %v8540 = vmul.f32 1.0, %v8539
      %v8541 = vrcp.pop %v8483
      %v8542 = vmul.f32 1.0, %v8541
      %v8543 = vrcp.pop %v8484
      %v8544 = vmul.f32 1.0, %v8543
      %v8545 = vrcp.pop %v8485
      %v8546 = vmul.f32 1.0, %v8545
      %v8547 = vrcp.pop %v8486
      %v8548 = vmul.f32 1.0, %v8547
      %v8549 = vrcp.pop %v8487
      %v8550 = vmul.f32 1.0, %v8549
      %v8551 = vrcp.pop %v8488
      %v8552 = vmul.f32 1.0, %v8551
      %8585 = vrot.lane.b32.xlu0 %v7503, 67
      %v8586 = vpop.permute.xlu0 %8585
      %8587 = vrot.lane.b32.xlu0 %v7506, 67
      %v8588 = vpop.permute.xlu0 %8587
      %8589 = vrot.lane.b32.xlu0 %v7511, 67
      %v8590 = vpop.permute.xlu0 %8589
      %8591 = vrot.lane.b32.xlu0 %v7514, 67
      %v8592 = vpop.permute.xlu0 %8591
      %8593 = vrot.lane.b32.xlu0 %v7519, 67
      %v8594 = vpop.permute.xlu0 %8593
      %8595 = vrot.lane.b32.xlu0 %v7522, 67
      %v8596 = vpop.permute.xlu0 %8595
      %8597 = vrot.lane.b32.xlu0 %v7527, 67
      %v8598 = vpop.permute.xlu0 %8597
      %8599 = vrot.lane.b32.xlu0 %v7530, 67
      %v8600 = vpop.permute.xlu0 %8599
      %8601 = vrot.lane.b32.xlu0 %v7535, 67
      %v8602 = vpop.permute.xlu0 %8601
      %8603 = vrot.lane.b32.xlu0 %v7538, 67
      %v8604 = vpop.permute.xlu0 %8603
      %8605 = vrot.lane.b32.xlu0 %v7543, 67
      %v8606 = vpop.permute.xlu0 %8605
      %8607 = vrot.lane.b32.xlu0 %v7546, 67
      %v8608 = vpop.permute.xlu0 %8607
      %8609 = vrot.lane.b32.xlu0 %v7551, 67
      %v8610 = vpop.permute.xlu0 %8609
      %8611 = vrot.lane.b32.xlu0 %v7554, 67
      %v8612 = vpop.permute.xlu0 %8611
      %8613 = vrot.lane.b32.xlu0 %v7559, 67
      %v8614 = vpop.permute.xlu0 %8613
      %8615 = vrot.lane.b32.xlu0 %v7562, 67
      %v8616 = vpop.permute.xlu0 %8615
      %8617 = vrot.lane.b32.xlu0 %v7567, 67
      %v8618 = vpop.permute.xlu0 %8617
      %8619 = vrot.lane.b32.xlu0 %v7570, 67
      %v8620 = vpop.permute.xlu0 %8619
      %8621 = vrot.lane.b32.xlu0 %v7575, 67
      %v8622 = vpop.permute.xlu0 %8621
      %8623 = vrot.lane.b32.xlu0 %v7578, 67
      %v8624 = vpop.permute.xlu0 %8623
      %8625 = vrot.lane.b32.xlu0 %v7583, 67
      %v8626 = vpop.permute.xlu0 %8625
      %8627 = vrot.lane.b32.xlu0 %v7586, 67
      %v8628 = vpop.permute.xlu0 %8627
      %8629 = vrot.lane.b32.xlu0 %v7591, 67
      %v8630 = vpop.permute.xlu0 %8629
      %8631 = vrot.lane.b32.xlu0 %v7594, 67
      %v8632 = vpop.permute.xlu0 %8631
      %8633 = vrot.lane.b32.xlu0 %v7599, 67
      %v8634 = vpop.permute.xlu0 %8633
      %8635 = vrot.lane.b32.xlu0 %v7602, 67
      %v8636 = vpop.permute.xlu0 %8635
      %8637 = vrot.lane.b32.xlu0 %v7607, 67
      %v8638 = vpop.permute.xlu0 %8637
      %8639 = vrot.lane.b32.xlu0 %v7610, 67
      %v8640 = vpop.permute.xlu0 %8639
      %8641 = vrot.lane.b32.xlu0 %v7615, 67
      %v8642 = vpop.permute.xlu0 %8641
      %8643 = vrot.lane.b32.xlu0 %v7618, 67
      %v8644 = vpop.permute.xlu0 %8643
      %8645 = vrot.lane.b32.xlu0 %v7623, 67
      %v8646 = vpop.permute.xlu0 %8645
      %8647 = vrot.lane.b32.xlu0 %v7626, 67
      %v8648 = vpop.permute.xlu0 %8647
      %v8681 = vsel %vm4396, %v8490, %v8586
      %v8682 = vsel %vm4396, %v8492, %v8588
      %v8683 = vsel %vm4396, %v8494, %v8590
      %v8684 = vsel %vm4396, %v8496, %v8592
      %v8685 = vsel %vm4396, %v8498, %v8594
      %v8686 = vsel %vm4396, %v8500, %v8596
      %v8687 = vsel %vm4396, %v8502, %v8598
      %v8688 = vsel %vm4396, %v8504, %v8600
      %v8689 = vsel %vm4396, %v8506, %v8602
      %v8690 = vsel %vm4396, %v8508, %v8604
      %v8691 = vsel %vm4396, %v8510, %v8606
      %v8692 = vsel %vm4396, %v8512, %v8608
      %v8693 = vsel %vm4396, %v8514, %v8610
      %v8694 = vsel %vm4396, %v8516, %v8612
      %v8695 = vsel %vm4396, %v8518, %v8614
      %v8696 = vsel %vm4396, %v8520, %v8616
      %v8697 = vsel %vm4396, %v8522, %v8618
      %v8698 = vsel %vm4396, %v8524, %v8620
      %v8699 = vsel %vm4396, %v8526, %v8622
      %v8700 = vsel %vm4396, %v8528, %v8624
      %v8701 = vsel %vm4396, %v8530, %v8626
      %v8702 = vsel %vm4396, %v8532, %v8628
      %v8703 = vsel %vm4396, %v8534, %v8630
      %v8704 = vsel %vm4396, %v8536, %v8632
      %v8705 = vsel %vm4396, %v8538, %v8634
      %v8706 = vsel %vm4396, %v8540, %v8636
      %v8707 = vsel %vm4396, %v8542, %v8638
      %v8708 = vsel %vm4396, %v8544, %v8640
      %v8709 = vsel %vm4396, %v8546, %v8642
      %v8710 = vsel %vm4396, %v8548, %v8644
      %v8711 = vsel %vm4396, %v8550, %v8646
      %v8712 = vsel %vm4396, %v8552, %v8648
      %8713 = vst.msk [vmem:[%s172 + $0x100] sm:$0xff] %vm4429, %v8681
      %8714 = vst.msk [vmem:[%s172 + $0x108] sm:$0xff] %vm4429, %v8682
      %8715 = vst.msk [vmem:[%s172 + $0x110] sm:$0xff] %vm4429, %v8683
      %8716 = vst.msk [vmem:[%s172 + $0x118] sm:$0xff] %vm4429, %v8684
      %8717 = vst.msk [vmem:[%s172 + $0x120] sm:$0xff] %vm4429, %v8685
      %8718 = vst.msk [vmem:[%s172 + $0x128] sm:$0xff] %vm4429, %v8686
      %8719 = vst.msk [vmem:[%s172 + $0x130] sm:$0xff] %vm4429, %v8687
      %8720 = vst.msk [vmem:[%s172 + $0x138] sm:$0xff] %vm4429, %v8688
      %8721 = vst.msk [vmem:[%s172 + $0x140] sm:$0xff] %vm4429, %v8689
      %8722 = vst.msk [vmem:[%s172 + $0x148] sm:$0xff] %vm4429, %v8690
      %8723 = vst.msk [vmem:[%s172 + $0x150] sm:$0xff] %vm4429, %v8691
      %8724 = vst.msk [vmem:[%s172 + $0x158] sm:$0xff] %vm4429, %v8692
      %8725 = vst.msk [vmem:[%s172 + $0x160] sm:$0xff] %vm4429, %v8693
      %8726 = vst.msk [vmem:[%s172 + $0x168] sm:$0xff] %vm4429, %v8694
      %8727 = vst.msk [vmem:[%s172 + $0x170] sm:$0xff] %vm4429, %v8695
      %8728 = vst.msk [vmem:[%s172 + $0x178] sm:$0xff] %vm4429, %v8696
      %8729 = vst.msk [vmem:[%s172 + $0x180] sm:$0xff] %vm4429, %v8697
      %8730 = vst.msk [vmem:[%s172 + $0x188] sm:$0xff] %vm4429, %v8698
      %8731 = vst.msk [vmem:[%s172 + $0x190] sm:$0xff] %vm4429, %v8699
      %8732 = vst.msk [vmem:[%s172 + $0x198] sm:$0xff] %vm4429, %v8700
      %8733 = vst.msk [vmem:[%s172 + $0x1a0] sm:$0xff] %vm4429, %v8701
      %8734 = vst.msk [vmem:[%s172 + $0x1a8] sm:$0xff] %vm4429, %v8702
      %8735 = vst.msk [vmem:[%s172 + $0x1b0] sm:$0xff] %vm4429, %v8703
      %8736 = vst.msk [vmem:[%s172 + $0x1b8] sm:$0xff] %vm4429, %v8704
      %8737 = vst.msk [vmem:[%s172 + $0x1c0] sm:$0xff] %vm4429, %v8705
      %8738 = vst.msk [vmem:[%s172 + $0x1c8] sm:$0xff] %vm4429, %v8706
      %8739 = vst.msk [vmem:[%s172 + $0x1d0] sm:$0xff] %vm4429, %v8707
      %8740 = vst.msk [vmem:[%s172 + $0x1d8] sm:$0xff] %vm4429, %v8708
      %8741 = vst.msk [vmem:[%s172 + $0x1e0] sm:$0xff] %vm4429, %v8709
      %8742 = vst.msk [vmem:[%s172 + $0x1e8] sm:$0xff] %vm4429, %v8710
      %8743 = vst.msk [vmem:[%s172 + $0x1f0] sm:$0xff] %vm4429, %v8711
      %8744 = vst.msk [vmem:[%s172 + $0x1f8] sm:$0xff] %vm4429, %v8712
      %s8745 = smul.u32 64, %s14
      %p8746 = scmp.lt.s32.totalorder %s8745, 255
      %s8747 = scalar_select %p8746, %s8745, 255
      %s8748 = smul.addr %s8747, 8
      %s8749 = scalar_lea.vmem %s3, %s8748
      // Predicated region
      $region33: #{tpu_custom_call.1} parent=31 // pred_check
        %p8750 = pneg %p100
      $region34: #{tpu_custom_call.1} parent=31 // pred_check_branch
        %8752 = sbr.rel (%p8750) target = $region36
      $region35: #{tpu_custom_call.1} parent=31 // pred_region
        %s8753 = smul.u32 64, %s14
      $region36: #{tpu_custom_call.1} parent=31 // pred_fallthru
        _
    $region32: #{tpu_custom_call.1} parent=5 // pred_fallthru
      _
    %p8754 = scmp.le.s32.totalorder 2, %s9
    // Predicated region
    $region37: #{tpu_custom_call.1} parent=5 // pred_check
      %p8755 = pneg %p8754
    $region38: #{tpu_custom_call.1} parent=5 // pred_check_branch
      %8757 = sbr.rel (%p8755) target = $region40
    $region39: #{tpu_custom_call.1} parent=5 // pred_region
      %s8758 = ssub.s32 %s9, 2
      // Predicated region
      $region41: #{tpu_custom_call.1} parent=39 // pred_check
        %p8759 = pneg %p106
      $region42: #{tpu_custom_call.1} parent=39 // pred_check_branch
        %8761 = sbr.rel (%p8759) target = $region44
      $region43: #{tpu_custom_call.1} parent=39 // pred_region
        %s8762 = smul.u32 64, %s15
        %p8763 = scmp.lt.s32.totalorder %s8762, 255
        %s8764 = scalar_select %p8763, %s8762, 255
        %s8765 = smul.addr %s8764, 8
        %s8766 = scalar_lea.vmem %s3, %s8765
      $region44: #{tpu_custom_call.1} parent=39 // pred_fallthru
        _
    $region40: #{tpu_custom_call.1} parent=5 // pred_fallthru
      _
  $region6: #{tpu_custom_call.1} parent=0 // loop_footer
    %s13 = sadd.s32 1, %s9
  $region7: #{tpu_custom_call.1} parent=0 // loop_footer_branch
    %8 = sbr.rel target = $region3
  $region8: #{tpu_custom_call.1} parent=0 // loop_exit
    _

</llo_original>
